<compile_context>
chip_gen: v7x
topology: tpu7x:2x2x1
jax: 0.10.0
libtpu: 0.0.40
codegen_flags: <defaults>
</compile_context>

<pallas_src>
import math
from functools import partial

import jax
import jax.numpy as jnp
from jax import lax
from jax.experimental import pallas as pl
from jax.experimental.pallas import tpu as pltpu


_VMEM = pl.BlockSpec(memory_space=pltpu.MemorySpace.VMEM)


# ---------------------------------------------------------------------------
# Helpers mirroring the original utility functions
# ---------------------------------------------------------------------------
def _align8(x):
    return ((x + 7) // 8) * 8


def _align128(x):
    return ((x + 127) // 128) * 128


def find_optimal_cnn1d_padding(L_in, K, S):
    """Smallest padding P such that the conv covers the input exactly."""
    for P in range(0, K):
        if (L_in + 2 * P - K) % S == 0:
            l_red = (L_in + 2 * P - K) // S + 1
            return l_red, P
    raise ValueError("no valid padding found")


def find_out_padding_cnn1d_transpose(L_obj, L_in, K, S, P):
    return L_obj - ((L_in - 1) * S - 2 * P + K)


def make_positional_encoding(d_embedding, max_len):
    position = jnp.arange(max_len, dtype=jnp.float32)[:, None]
    div_term = jnp.exp(
        jnp.arange(0, d_embedding, 2, dtype=jnp.float32)
        * (-math.log(10000.0) / d_embedding))
    pe = jnp.zeros((max_len, d_embedding), dtype=jnp.float32)
    pe = pe.at[:, 0::2].set(jnp.sin(position * div_term))
    pe = pe.at[:, 1::2].set(jnp.cos(position * div_term))
    return pe


# ---------------------------------------------------------------------------
# Packed-slab layouts (shared between init_params and the kernel wrapper)
# ---------------------------------------------------------------------------
def _layer_lane_layout(D, d_ff):
    """Lane offsets inside the per-layer matrix slab (all 128-aligned)."""
    o_in = 0
    o_out = _align128(3 * D)
    o_w1 = _align128(o_out + D)
    o_w2 = _align128(o_w1 + d_ff)
    total = _align128(o_w2 + d_ff)
    return o_in, o_out, o_w1, o_w2, total


def _small_layout(KA, N, D, Dc, Kc):
    """Row offsets inside the narrow constants slab (all 8-aligned)."""
    off = {}
    r = 0
    for name, rows in (("conv_w", KA), ("pe", N), ("pin_w", D),
                       ("codebook", Kc), ("pout_w", Dc), ("vecs", 8),
                       ("amask", N), ("vmask", N)):
        off[name] = r
        r = _align8(r + rows)
    width = max(D, Dc, Kc, N)
    return off, r, width


def _misc128_layout(LA):
    """Row offsets inside the 128-lane constants slab (all 8-aligned)."""
    off = {"ggmat": 0}
    r = _align8(LA)
    off["gmat"] = r
    r = _align8(r + LA)
    off["rowblk"] = r
    r += 8
    return off, r


# ---------------------------------------------------------------------------
# The single fused Pallas kernel
# ---------------------------------------------------------------------------
def _layernorm(x, g, b, eps):
    mu = jnp.mean(x, axis=-1, keepdims=True)
    var = jnp.mean((x - mu) ** 2, axis=-1, keepdims=True)
    return (x - mu) * lax.rsqrt(var + eps) * g + b


def _tree_sum(xs):
    while len(xs) > 1:
        nxt = [xs[i] + xs[i + 1] for i in range(0, len(xs) - 1, 2)]
        if len(xs) % 2:
            nxt.append(xs[-1])
        xs = nxt
    return xs[0]


def _abnativ_fused_kernel(
    # ----- inputs (packed slabs) -----
    xin_ref, lmat_ref, lvec_ref, bigwr_ref, m128_ref, msml_ref,
    # ----- outputs (packed) -----
    out_ref, idx_ref,
    # ----- static config -----
    *, B, LP, l_red, D, H, Dh, L_seq, A, Kc, Dc, KA, d_ff,
    n_enc, n_dec, ln_eps, commit_cost,
    lm_off, sml_off, m_off, q_row_off,
):
    N = B * LP
    LA = L_seq * A
    scale = 1.0 / math.sqrt(Dh)
    o_in, o_out, o_w1, o_w2 = lm_off

    # ------------------- per-call inputs (one packed slab) ------------------
    cols = xin_ref[0:N, 0:KA]          # (N, K*A) im2col rows, batch-major
    data2 = xin_ref[N:N + B, :]        # (B, L_seq*A)

    # ------------------------- small constants ------------------------------
    so = sml_off
    conv_w = msml_ref[so["conv_w"]:so["conv_w"] + KA, 0:D]
    pe = msml_ref[so["pe"]:so["pe"] + N, 0:D]
    pin_w = msml_ref[so["pin_w"]:so["pin_w"] + D, 0:Dc]
    cb = msml_ref[so["codebook"]:so["codebook"] + Kc, 0:Dc]
    pout_w = msml_ref[so["pout_w"]:so["pout_w"] + Dc, 0:D]
    vecs = msml_ref[so["vecs"]:so["vecs"] + 8, :]
    conv_b = vecs[0:1, 0:D]
    csq = vecs[1:2, 0:Kc]
    pin_b = vecs[2:3, 0:Dc]
    pout_b = vecs[3:4, 0:D]
    amask = msml_ref[so["amask"]:so["amask"] + N, 0:N]     # additive attn mask
    vmask = msml_ref[so["vmask"]:so["vmask"] + N, 0:1]     # valid-row mask

    rowblk = m128_ref[m_off["rowblk"]:m_off["rowblk"] + 8, :]
    tbias = rowblk[0:1, :]
    oh_pbe = rowblk[1:2, :]
    oh_lpbe = rowblk[2:3, :]
    oh_cmt = rowblk[3:4, :]
    oh_prp = rowblk[4:5, :]

    # --------- one MHAEncoderBlock, all batches fused along sublanes --------
    def mha_block(x, li):
        in_w = lmat_ref[li, :, o_in:o_in + 3 * D]          # (D, 3D)
        out_w = lmat_ref[li, :, o_out:o_out + D]           # (D, D)
        w1 = lmat_ref[li, :, o_w1:o_w1 + d_ff]             # (D, d_ff)
        w2 = lmat_ref[li, :, o_w2:o_w2 + d_ff]             # torch layout (D, d_ff)
        lv = lvec_ref[li]
        in_b = lv[0:1, 0:3 * D]
        out_b = lv[1:2, 0:D]
        ln1_g = lv[2:3, 0:D]
        ln1_b = lv[3:4, 0:D]
        ln2_g = lv[4:5, 0:D]
        ln2_b = lv[5:6, 0:D]
        b1 = lv[6:7, 0:d_ff]
        b2 = lv[7:8, 0:D]

        qkv = jnp.dot(x, in_w, preferred_element_type=jnp.float32) + in_b
        q = qkv[:, 0:D] * scale
        k = qkv[:, D:2 * D]
        v = qkv[:, 2 * D:3 * D]
        heads = []
        for h in range(H):                                 # statically unrolled
            lo, hi = h * Dh, (h + 1) * Dh
            s = lax.dot_general(q[:, lo:hi], k[:, lo:hi],
                                (((1,), (1,)), ((), ())),
                                preferred_element_type=jnp.float32)  # (N, N)
            s = s + amask
            s = s - jnp.max(s, axis=-1, keepdims=True)
            p = jnp.exp(s)
            p = p * pl.reciprocal(jnp.sum(p, axis=-1, keepdims=True),
                                  approx=True)
            heads.append(jnp.dot(p, v[:, lo:hi],
                                 preferred_element_type=jnp.float32))
        attn = jnp.concatenate(heads, axis=-1)             # (N, D)
        attn = jnp.dot(attn, out_w, preferred_element_type=jnp.float32) + out_b
        x = _layernorm(x + attn, ln1_g, ln1_b, ln_eps)
        ff = jnp.maximum(
            jnp.dot(x, w1, preferred_element_type=jnp.float32) + b1, 0.0)
        ff = lax.dot_general(ff, w2, (((1,), (1,)), ((), ())),
                             preferred_element_type=jnp.float32) + b2
        return _layernorm(x + ff, ln2_g, ln2_b, ln_eps)

    # ------------------------------ Encoder ---------------------------------
    x = jnp.dot(cols, conv_w, preferred_element_type=jnp.float32) + conv_b + pe
    for li in range(n_enc):
        x = mha_block(x, li)

    # --------------------- VectorQuantize (inference path) ------------------
    # TODO(synk): EMA codebook update / kmeans init are training-time stats
    # and are not modeled; only the quantization path is.
    e = jnp.dot(x, pin_w, preferred_element_type=jnp.float32) + pin_b  # (N, Dc)
    dots = lax.dot_general(e, cb, (((1,), (1,)), ((), ())),
                           preferred_element_type=jnp.float32)         # (N, Kc)
    dist = jnp.sum(e * e, axis=-1, keepdims=True) - 2.0 * dots + csq
    mind = jnp.min(dist, axis=-1, keepdims=True)
    ids_f = lax.broadcasted_iota(jnp.int32, (N, Kc), 1).astype(jnp.float32)
    # argmin with first-occurrence tie-break, no gather needed
    idxf = jnp.min(jnp.where(dist <= mind, ids_f, float(Kc)),
                   axis=-1, keepdims=True)                             # (N, 1)
    onehot = (ids_f == idxf).astype(jnp.float32)                       # (N, Kc)
    counts = jnp.sum(onehot * vmask, axis=0, keepdims=True)            # (1, Kc)
    quant = jnp.dot(onehot, cb, preferred_element_type=jnp.float32)    # (N, Dc)
    rowm = jnp.mean((quant - e) ** 2, axis=-1, keepdims=True) * vmask  # (N, 1)
    commit2 = jnp.concatenate(
        [jnp.sum(rowm[b * LP:(b + 1) * LP, :], axis=0, keepdims=True)
         for b in range(B)], axis=0) * (commit_cost / l_red)           # (B, 1)
    # straight-through estimator: forward value is quant
    q_out = jnp.dot(quant, pout_w, preferred_element_type=jnp.float32) + pout_b

    out_ref[q_row_off:q_row_off + N, 0:D] = q_out
    idx_ref[...] = idxf.astype(jnp.int32)

    # ------------------------------ Decoder ---------------------------------
    z = q_out + pe
    for li in range(n_enc, n_enc + n_dec):
        z = mha_block(z, li)

    # ConvTranspose1d folded into ONE wide matmul + block-diagonal extraction:
    # y[b, :] = sum_j z[b*LP+j, :] @ bigw[j]   with bigw[j] at lane block j.
    t = jnp.dot(z, bigwr_ref[...], preferred_element_type=jnp.float32)  # (N, l_red*LA)
    rows = []
    for b in range(B):
        parts = [t[b * LP + j:b * LP + j + 1, j * LA:(j + 1) * LA]
                 for j in range(l_red)]
        rows.append(_tree_sum(parts))
    y = jnp.concatenate(rows, axis=0) + tbias                           # (B, LA)

    # per-alphabet-group softmax (global row-max shift cancels within a group;
    # exact divide here so x_recon rows sum to 1 to tight tolerance)
    ey = jnp.exp(y - jnp.max(y, axis=-1, keepdims=True))
    denom = jnp.dot(ey, m128_ref[m_off["ggmat"]:m_off["ggmat"] + LA, :],
                    preferred_element_type=jnp.float32)
    xrec = ey / denom                                                   # (B, LA)

    # MSE reconstruction errors (F.mse_loss reduction='none' + means)
    dsq = (xrec - data2) ** 2
    epos = jnp.dot(dsq, m128_ref[m_off["gmat"]:m_off["gmat"] + LA, :],
                   preferred_element_type=jnp.float32)   # (B, LA), lanes 0:L_seq
    errpbe = jnp.sum(epos, axis=-1, keepdims=True) * (1.0 / L_seq)      # (B, 1)
    losspbe = errpbe + commit2

    # perplexity over the flattened B*l_red codes (pooled across the batch)
    probs = counts * (1.0 / (B * l_red))
    plogp = probs * jnp.log(probs + 1e-10)
    perp = jnp.exp(-jnp.sum(plogp, axis=-1, keepdims=True))             # (1, 1)

    stats = (epos + errpbe * oh_pbe + losspbe * oh_lpbe
             + commit2 * oh_cmt + perp * oh_prp)                        # (B, LA)
    out_ref[0:3 * B, :] = jnp.concatenate([xrec, dsq, stats], axis=0)


# ---------------------------------------------------------------------------
# Forward wrapper (only im2col/packing + free reshapes stay in XLA)
# ---------------------------------------------------------------------------
def abnativ_forward(data, params, hp):
    B, L_seq, A = data.shape
    D = hp["d_embedding"]
    H = hp["num_heads"]
    Dh = D // H
    K = hp["kernel"]
    S = hp["stride"]
    Kc = hp["num_embeddings"]
    Dc = hp["embedding_dim_code_book"]
    d_ff = hp["d_ff"]
    n_enc = n_dec = hp["num_mha_layers"]
    l_red, P = find_optimal_cnn1d_padding(L_seq, K, S)
    LP = _align8(l_red)
    N = B * LP
    KA = K * A
    LA = L_seq * A

    o_in, o_out, o_w1, o_w2, _ = _layer_lane_layout(D, d_ff)
    sml_off, _, _ = _small_layout(KA, N, D, Dc, Kc)
    m_off, _ = _misc128_layout(LA)
    q_row_off = _align8(3 * B)
    out_rows = q_row_off + N

    # im2col for the Conv1d (cheap one-off gather; stays in XLA), batch-major
    xp = jnp.pad(data, ((0, 0), (P, P), (0, 0)))
    gidx = jnp.arange(l_red)[:, None] * S + jnp.arange(K)[None, :]
    cols = xp[:, gidx, :].reshape(B, l_red, KA)
    cols = jnp.pad(cols, ((0, 0), (0, LP - l_red), (0, 0))).reshape(N, KA)

    # pack the two per-call tensors into one input slab (one DMA)
    xin = jnp.zeros((N + B, LA), jnp.float32)
    xin = xin.at[0:N, 0:KA].set(cols)
    xin = xin.at[N:N + B, :].set(data.reshape(B, LA))

    kernel = partial(
        _abnativ_fused_kernel,
        B=B, LP=LP, l_red=l_red, D=D, H=H, Dh=Dh, L_seq=L_seq, A=A,
        Kc=Kc, Dc=Dc, KA=KA, d_ff=d_ff, n_enc=n_enc, n_dec=n_dec,
        ln_eps=1e-6, commit_cost=float(hp["commitment_cost"]),
        lm_off=(o_in, o_out, o_w1, o_w2), sml_off=sml_off, m_off=m_off,
        q_row_off=q_row_off,
    )

    out_big, idx2 = pl.pallas_call(
        kernel,
        out_shape=(jax.ShapeDtypeStruct((out_rows, LA), jnp.float32),
                   jax.ShapeDtypeStruct((N, 1), jnp.int32)),
        in_specs=[_VMEM] * 6,
        out_specs=(_VMEM, _VMEM),
    )(xin, params["layer_mats"], params["layer_vecs"], params["bigw_r"],
      params["misc128"], params["misc_small"])

    stats = out_big[2 * B:3 * B, :]
    qout = out_big[q_row_off:q_row_off + N, 0:D].reshape(B, LP, D)[:, :l_red, :]

    return {
        "inputs": data,
        "x_recon": out_big[0:B, :].reshape(B, L_seq, A),
        "recon_error_pres_pposi": out_big[B:2 * B, :].reshape(B, L_seq, A),
        "recon_error_pposi": stats[:, 0:L_seq],
        "recon_error_pbe": stats[:, L_seq],
        "loss_pbe": stats[:, L_seq + 1],
        "quantize_projected_out": qout,
        "loss_vq_commit_pbe": stats[:, L_seq + 2],
        "perplexity": stats[0, L_seq + 3],
        "encoding_indices": idx2.reshape(B, LP)[:, :l_red],
    }


# ---------------------------------------------------------------------------
# Deterministic parameter init, packed into a few kernel-ready slabs
# ---------------------------------------------------------------------------
def _normal(key, shape, scale=0.02):
    return scale * jax.random.normal(key, shape, dtype=jnp.float32)


def init_params(key, hp, batch_size):
    D = hp["d_embedding"]
    A = hp["alphabet_size"]
    K = hp["kernel"]
    S = hp["stride"]
    Dc = hp["embedding_dim_code_book"]
    Kc = hp["num_embeddings"]
    d_ff = hp["d_ff"]
    L_seq = hp["length_seq"]
    n_layers = 2 * hp["num_mha_layers"]       # encoder layers first, then decoder
    B = batch_size
    l_red, padding = find_optimal_cnn1d_padding(L_seq, K, S)
    LP = _align8(l_red)
    N = B * LP
    KA = K * A
    LA = L_seq * A
    assert L_seq + 4 <= LA, "stats lanes must fit next to errpos"

    keys = jax.random.split(key, 8 + 4 * n_layers)
    kit = iter(keys)

    conv_w_raw = _normal(next(kit), (D, A, K))     # torch Conv1d weight (out, in, K)
    conv_b = jnp.zeros((D,), jnp.float32)
    convT_w_raw = _normal(next(kit), (D, A, K))    # torch ConvT1d weight (in, out, K)
    convT_b = jnp.zeros((A,), jnp.float32)

    # ---- per-layer matrix / vector slabs ----
    o_in, o_out, o_w1, o_w2, lm_lanes = _layer_lane_layout(D, d_ff)
    lv_lanes = max(128, _align128(max(3 * D, d_ff)))
    lm = jnp.zeros((n_layers, D, lm_lanes), jnp.float32)
    lv = jnp.zeros((n_layers, 8, lv_lanes), jnp.float32)
    for li in range(n_layers):
        in_w_t = _normal(next(kit), (3 * D, D))
        out_w_t = _normal(next(kit), (D, D))
        w1_t = _normal(next(kit), (d_ff, D))
        w2_t = _normal(next(kit), (D, d_ff))
        lm = lm.at[li, :, o_in:o_in + 3 * D].set(in_w_t.T)     # stored (D, 3D)
        lm = lm.at[li, :, o_out:o_out + D].set(out_w_t.T)      # stored (D, D)
        lm = lm.at[li, :, o_w1:o_w1 + d_ff].set(w1_t.T)        # stored (D, d_ff)
        lm = lm.at[li, :, o_w2:o_w2 + d_ff].set(w2_t)          # torch layout (D, d_ff)
        lv = lv.at[li, 2, 0:D].set(1.0)                        # ln1 gamma
        lv = lv.at[li, 4, 0:D].set(1.0)                        # ln2 gamma
        # linear / LN biases (rows 0,1,3,5,6,7) are zero-initialised

    pin_w_t = _normal(next(kit), (Dc, D))                      # Linear(D -> Dc)
    codebook = _normal(next(kit), (Kc, Dc), scale=1.0)
    pout_w_t = _normal(next(kit), (D, Dc))                     # Linear(Dc -> D)

    # ---- misc_small slab (narrow constants) ----
    pe_l = make_positional_encoding(D, l_red)
    pe_pad = jnp.zeros((LP, D), jnp.float32).at[:l_red].set(pe_l)
    pe_full = jnp.tile(pe_pad, (B, 1))                         # (N, D)

    r_idx = jnp.arange(N)
    same_batch = (r_idx[:, None] // LP) == (r_idx[None, :] // LP)
    key_valid = (r_idx[None, :] % LP) < l_red
    amask = jnp.where(same_batch & key_valid, 0.0, -1e9).astype(jnp.float32)
    vmask = ((r_idx % LP) < l_red).astype(jnp.float32)[:, None]

    sml_off, sml_rows, sml_w = _small_layout(KA, N, D, Dc, Kc)
    msml = jnp.zeros((sml_rows, sml_w), jnp.float32)
    # Conv1d folded to im2col form: row index k*A + a.
    conv_w_folded = jnp.transpose(conv_w_raw, (2, 1, 0)).reshape(KA, D)
    msml = msml.at[sml_off["conv_w"]:sml_off["conv_w"] + KA, 0:D].set(conv_w_folded)
    msml = msml.at[sml_off["pe"]:sml_off["pe"] + N, 0:D].set(pe_full)
    msml = msml.at[sml_off["pin_w"]:sml_off["pin_w"] + D, 0:Dc].set(pin_w_t.T)
    msml = msml.at[sml_off["codebook"]:sml_off["codebook"] + Kc, 0:Dc].set(codebook)
    msml = msml.at[sml_off["pout_w"]:sml_off["pout_w"] + Dc, 0:D].set(pout_w_t.T)
    vo = sml_off["vecs"]
    msml = msml.at[vo + 0, 0:D].set(conv_b)
    msml = msml.at[vo + 1, 0:Kc].set(jnp.sum(codebook * codebook, axis=-1))
    # rows vo+2 (pin_b) / vo+3 (pout_b) stay zero (zero-initialised biases)
    msml = msml.at[sml_off["amask"]:sml_off["amask"] + N, 0:N].set(amask)
    msml = msml.at[sml_off["vmask"]:sml_off["vmask"] + N, 0:1].set(vmask)

    # ---- ConvTranspose1d folded into ONE wide matmul weight ----
    # bigw_r[d, j*LA + i*A + a] = Wt[d, a, k]  with  i = j*S + k - padding.
    # TODO(synk): positions beyond L_core (nonzero output_padding) keep
    # bias-only values; exact for the reference hparams (L_core == L_seq).
    L_core = (l_red - 1) * S + K - 2 * padding
    bigw = jnp.zeros((l_red, D, LA), jnp.float32)
    for j in range(l_red):
        for k in range(K):
            i = j * S + k - padding
            if 0 <= i < min(L_core, L_seq):
                bigw = bigw.at[j, :, i * A:(i + 1) * A].add(convT_w_raw[:, :, k])
    bigw_r = jnp.transpose(bigw, (1, 0, 2)).reshape(D, l_red * LA)
    tbias = jnp.tile(convT_b, (L_seq,))

    # grouping matrices for per-alphabet softmax / per-position MSE reductions
    gmat = jnp.repeat(jnp.eye(L_seq, dtype=jnp.float32), A, axis=0)   # (LA, L)
    ggmat = gmat @ gmat.T                                             # (LA, LA)

    m_off, m_rows = _misc128_layout(LA)
    m128 = jnp.zeros((m_rows, LA), jnp.float32)
    m128 = m128.at[m_off["ggmat"]:m_off["ggmat"] + LA, :].set(ggmat)
    m128 = m128.at[m_off["gmat"]:m_off["gmat"] + LA, 0:L_seq].set(gmat * (1.0 / A))
    ro = m_off["rowblk"]
    m128 = m128.at[ro + 0, :].set(tbias)
    m128 = m128.at[ro + 1, L_seq + 0].set(1.0)     # errpbe lane
    m128 = m128.at[ro + 2, L_seq + 1].set(1.0)     # loss_pbe lane
    m128 = m128.at[ro + 3, L_seq + 2].set(1.0)     # commit lane
    m128 = m128.at[ro + 4, L_seq + 3].set(1.0)     # perplexity lane

    # NOTE: dense_to_alphabet / dense_reconstruction exist in the PyTorch
    # Decoder but are never used in Decoder.forward, so they are omitted.
    return {
        "layer_mats": lm, "layer_vecs": lv, "bigw_r": bigw_r,
        "misc128": m128, "misc_small": msml,
    }


# ---------------------------------------------------------------------------
# Main
# ---------------------------------------------------------------------------
if __name__ == "__main__":
    hparams = {
        "d_embedding": 32,
        "kernel": 4,
        "stride": 2,
        "num_heads": 4,
        "num_mha_layers": 2,
        "d_ff": 64,
        "length_seq": 16,
        "alphabet_size": 8,
        "drop": 0.0,
        "num_embeddings": 16,
        "embedding_dim_code_book": 16,
        "decay": 0.99,
        "commitment_cost": 0.25,
        "learning_rate": 1e-3,
    }

    key = jax.random.PRNGKey(0)
    k_data, k_params = jax.random.split(key)

    B = 2
    # residue-probability-like input: (batch, length_seq, alphabet_size)
    data = jax.nn.softmax(
        jax.random.normal(
            k_data, (B, hparams["length_seq"], hparams["alphabet_size"]),
            dtype=jnp.float32),
        axis=-1,
    )

    params = init_params(k_params, hparams, batch_size=B)

    fwd = jax.jit(partial(abnativ_forward, hp=hparams))
    out = fwd(data, params)
    out = jax.tree_util.tree_map(jax.block_until_ready, out)

    l_red, _ = find_optimal_cnn1d_padding(
        hparams["length_seq"], hparams["kernel"], hparams["stride"])

    # sanity checks
    assert out["x_recon"].shape == data.shape
    assert out["recon_error_pres_pposi"].shape == data.shape
    assert out["recon_error_pposi"].shape == (B, hparams["length_seq"])
    assert out["recon_error_pbe"].shape == (B,)
    assert out["loss_pbe"].shape == (B,)
    assert out["loss_vq_commit_pbe"].shape == (B,)
    assert out["quantize_projected_out"].shape == (B, l_red, hparams["d_embedding"])
    assert out["encoding_indices"].shape == (B, l_red)
    assert out["perplexity"].shape == ()
    assert bool(jnp.all(jnp.isfinite(out["x_recon"])))
    # decoder softmax rows must sum to 1 (exact divide kept for this stage)
    assert bool(jnp.allclose(jnp.sum(out["x_recon"], axis=-1), 1.0, atol=1e-5))

    print("KERNEL_OK")
</pallas_src>

<mosaic_0001>
module attributes {stable_mosaic.version = 11 : i64} {
  func.func @_abnativ_fused_kernel(%arg0: memref<18x128xf32, #tpu.memory_space<vmem>>, %arg1: memref<4x32x512xf32, #tpu.memory_space<vmem>>, %arg2: memref<4x8x128xf32, #tpu.memory_space<vmem>>, %arg3: memref<32x896xf32, #tpu.memory_space<vmem>>, %arg4: memref<264x128xf32, #tpu.memory_space<vmem>>, %arg5: memref<152x32xf32, #tpu.memory_space<vmem>>, %arg6: memref<24x128xf32, #tpu.memory_space<vmem>>, %arg7: memref<16x1xi32, #tpu.memory_space<vmem>>) attributes {dimension_semantics = [], scalar_prefetch = 0 : i64, scratch_operands = 0 : i64, tpu.core_type = #tpu.core_type<tc>} {
    %c0 = arith.constant 0 : index
    %c0_0 = arith.constant 0 : index
    %0 = vector.load %arg0[%c0, %c0_0] : memref<18x128xf32, #tpu.memory_space<vmem>>, vector<16x32xf32>
    %c16 = arith.constant 16 : index
    %c0_1 = arith.constant 0 : index
    %1 = vector.load %arg0[%c16, %c0_1] : memref<18x128xf32, #tpu.memory_space<vmem>>, vector<2x128xf32>
    %c0_2 = arith.constant 0 : index
    %c0_3 = arith.constant 0 : index
    %2 = vector.load %arg5[%c0_2, %c0_3] : memref<152x32xf32, #tpu.memory_space<vmem>>, vector<32x32xf32>
    %c32 = arith.constant 32 : index
    %c0_4 = arith.constant 0 : index
    %3 = vector.load %arg5[%c32, %c0_4] : memref<152x32xf32, #tpu.memory_space<vmem>>, vector<16x32xf32>
    %c48 = arith.constant 48 : index
    %c0_5 = arith.constant 0 : index
    %4 = vector.load %arg5[%c48, %c0_5] : memref<152x32xf32, #tpu.memory_space<vmem>>, vector<32x16xf32>
    %c80 = arith.constant 80 : index
    %c0_6 = arith.constant 0 : index
    %5 = vector.load %arg5[%c80, %c0_6] : memref<152x32xf32, #tpu.memory_space<vmem>>, vector<16x16xf32>
    %c96 = arith.constant 96 : index
    %c0_7 = arith.constant 0 : index
    %6 = vector.load %arg5[%c96, %c0_7] : memref<152x32xf32, #tpu.memory_space<vmem>>, vector<16x32xf32>
    %c112 = arith.constant 112 : index
    %c0_8 = arith.constant 0 : index
    %7 = vector.load %arg5[%c112, %c0_8] : memref<152x32xf32, #tpu.memory_space<vmem>>, vector<8x32xf32>
    %8 = vector.extract_strided_slice %7 {offsets = [0, 0], sizes = [1, 32], strides = [1, 1]} : vector<8x32xf32> to vector<1x32xf32>
    %9 = vector.extract_strided_slice %7 {offsets = [1, 0], sizes = [1, 16], strides = [1, 1]} : vector<8x32xf32> to vector<1x16xf32>
    %10 = vector.extract_strided_slice %7 {offsets = [2, 0], sizes = [1, 16], strides = [1, 1]} : vector<8x32xf32> to vector<1x16xf32>
    %11 = vector.extract_strided_slice %7 {offsets = [3, 0], sizes = [1, 32], strides = [1, 1]} : vector<8x32xf32> to vector<1x32xf32>
    %c120 = arith.constant 120 : index
    %c0_9 = arith.constant 0 : index
    %12 = vector.load %arg5[%c120, %c0_9] : memref<152x32xf32, #tpu.memory_space<vmem>>, vector<16x16xf32>
    %c136 = arith.constant 136 : index
    %c0_10 = arith.constant 0 : index
    %13 = vector.load %arg5[%c136, %c0_10] : memref<152x32xf32, #tpu.memory_space<vmem>>, vector<16x1xf32>
    %c256 = arith.constant 256 : index
    %c0_11 = arith.constant 0 : index
    %14 = vector.load %arg4[%c256, %c0_11] : memref<264x128xf32, #tpu.memory_space<vmem>>, vector<8x128xf32>
    %15 = vector.extract_strided_slice %14 {offsets = [0, 0], sizes = [1, 128], strides = [1, 1]} : vector<8x128xf32> to vector<1x128xf32>
    %16 = vector.extract_strided_slice %14 {offsets = [1, 0], sizes = [1, 128], strides = [1, 1]} : vector<8x128xf32> to vector<1x128xf32>
    %17 = vector.extract_strided_slice %14 {offsets = [2, 0], sizes = [1, 128], strides = [1, 1]} : vector<8x128xf32> to vector<1x128xf32>
    %18 = vector.extract_strided_slice %14 {offsets = [3, 0], sizes = [1, 128], strides = [1, 1]} : vector<8x128xf32> to vector<1x128xf32>
    %19 = vector.extract_strided_slice %14 {offsets = [4, 0], sizes = [1, 128], strides = [1, 1]} : vector<8x128xf32> to vector<1x128xf32>
    %cst = arith.constant dense<0.000000e+00> : vector<16x32xf32>
    %20 = tpu.matmul %0, %2, %cst {dimension_numbers = #tpu.dot_dimension_numbers<[1], [0], [0], [1], [0, 0, 1, 1], [], []>} : vector<16x32xf32>, vector<32x32xf32>, vector<16x32xf32> -> vector<16x32xf32>
    %21 = vector.broadcast %8 : vector<1x32xf32> to vector<16x32xf32>
    %22 = arith.addf %20, %21 : vector<16x32xf32>
    %23 = arith.addf %22, %3 : vector<16x32xf32>
    %c0_12 = arith.constant 0 : index
    %c0_13 = arith.constant 0 : index
    %c0_14 = arith.constant 0 : index
    %24 = vector.load %arg1[%c0_12, %c0_13, %c0_14] : memref<4x32x512xf32, #tpu.memory_space<vmem>>, vector<1x32x96xf32>
    %25 = vector.shape_cast %24 : vector<1x32x96xf32> to vector<32x96xf32>
    %c0_15 = arith.constant 0 : index
    %c0_16 = arith.constant 0 : index
    %c128 = arith.constant 128 : index
    %26 = vector.load %arg1[%c0_15, %c0_16, %c128] : memref<4x32x512xf32, #tpu.memory_space<vmem>>, vector<1x32x32xf32>
    %27 = vector.shape_cast %26 : vector<1x32x32xf32> to vector<32x32xf32>
    %c0_17 = arith.constant 0 : index
    %c0_18 = arith.constant 0 : index
    %c256_19 = arith.constant 256 : index
    %28 = vector.load %arg1[%c0_17, %c0_18, %c256_19] : memref<4x32x512xf32, #tpu.memory_space<vmem>>, vector<1x32x64xf32>
    %29 = vector.shape_cast %28 : vector<1x32x64xf32> to vector<32x64xf32>
    %c0_20 = arith.constant 0 : index
    %c0_21 = arith.constant 0 : index
    %c384 = arith.constant 384 : index
    %30 = vector.load %arg1[%c0_20, %c0_21, %c384] : memref<4x32x512xf32, #tpu.memory_space<vmem>>, vector<1x32x64xf32>
    %31 = vector.shape_cast %30 : vector<1x32x64xf32> to vector<32x64xf32>
    %c0_22 = arith.constant 0 : index
    %c0_23 = arith.constant 0 : index
    %c0_24 = arith.constant 0 : index
    %32 = vector.load %arg2[%c0_22, %c0_23, %c0_24] : memref<4x8x128xf32, #tpu.memory_space<vmem>>, vector<1x8x128xf32>
    %33 = vector.shape_cast %32 : vector<1x8x128xf32> to vector<8x128xf32>
    %34 = vector.extract_strided_slice %33 {offsets = [0, 0], sizes = [1, 96], strides = [1, 1]} : vector<8x128xf32> to vector<1x96xf32>
    %35 = vector.extract_strided_slice %33 {offsets = [1, 0], sizes = [1, 32], strides = [1, 1]} : vector<8x128xf32> to vector<1x32xf32>
    %36 = vector.extract_strided_slice %33 {offsets = [2, 0], sizes = [1, 32], strides = [1, 1]} : vector<8x128xf32> to vector<1x32xf32>
    %37 = vector.extract_strided_slice %33 {offsets = [3, 0], sizes = [1, 32], strides = [1, 1]} : vector<8x128xf32> to vector<1x32xf32>
    %38 = vector.extract_strided_slice %33 {offsets = [4, 0], sizes = [1, 32], strides = [1, 1]} : vector<8x128xf32> to vector<1x32xf32>
    %39 = vector.extract_strided_slice %33 {offsets = [5, 0], sizes = [1, 32], strides = [1, 1]} : vector<8x128xf32> to vector<1x32xf32>
    %40 = vector.extract_strided_slice %33 {offsets = [6, 0], sizes = [1, 64], strides = [1, 1]} : vector<8x128xf32> to vector<1x64xf32>
    %41 = vector.extract_strided_slice %33 {offsets = [7, 0], sizes = [1, 32], strides = [1, 1]} : vector<8x128xf32> to vector<1x32xf32>
    %cst_25 = arith.constant dense<0.000000e+00> : vector<16x96xf32>
    %42 = tpu.matmul %23, %25, %cst_25 {dimension_numbers = #tpu.dot_dimension_numbers<[1], [0], [0], [1], [0, 0, 1, 1], [], []>} : vector<16x32xf32>, vector<32x96xf32>, vector<16x96xf32> -> vector<16x96xf32>
    %43 = vector.broadcast %34 : vector<1x96xf32> to vector<16x96xf32>
    %44 = arith.addf %42, %43 : vector<16x96xf32>
    %45 = vector.extract_strided_slice %44 {offsets = [0, 0], sizes = [16, 32], strides = [1, 1]} : vector<16x96xf32> to vector<16x32xf32>
    %cst_26 = arith.constant 0.353553385 : f32
    %46 = vector.broadcast %cst_26 : f32 to vector<16x32xf32>
    %47 = arith.mulf %45, %46 : vector<16x32xf32>
    %48 = vector.extract_strided_slice %44 {offsets = [0, 32], sizes = [16, 32], strides = [1, 1]} : vector<16x96xf32> to vector<16x32xf32>
    %49 = vector.extract_strided_slice %44 {offsets = [0, 64], sizes = [16, 32], strides = [1, 1]} : vector<16x96xf32> to vector<16x32xf32>
    %50 = vector.extract_strided_slice %47 {offsets = [0, 0], sizes = [16, 8], strides = [1, 1]} : vector<16x32xf32> to vector<16x8xf32>
    %51 = vector.extract_strided_slice %48 {offsets = [0, 0], sizes = [16, 8], strides = [1, 1]} : vector<16x32xf32> to vector<16x8xf32>
    %cst_27 = arith.constant dense<0.000000e+00> : vector<16x16xf32>
    %52 = tpu.matmul %50, %51, %cst_27 {dimension_numbers = #tpu.dot_dimension_numbers<[1], [1], [0], [0], [0, 0, 1, 0], [], []>} : vector<16x8xf32>, vector<16x8xf32>, vector<16x16xf32> -> vector<16x16xf32>
    %53 = arith.addf %52, %12 : vector<16x16xf32>
    %cst_28 = arith.constant dense<0xFF800000> : vector<16xf32>
    %54 = vector.multi_reduction <maximumf>, %53, %cst_28 [1] : vector<16x16xf32> to vector<16xf32>
    %55 = vector.shape_cast %54 : vector<16xf32> to vector<16x1xf32>
    %56 = vector.broadcast %55 : vector<16x1xf32> to vector<16x16xf32>
    %57 = arith.subf %53, %56 : vector<16x16xf32>
    %58 = math.exp %57 : vector<16x16xf32>
    %cst_29 = arith.constant dense<0.000000e+00> : vector<16xf32>
    %59 = vector.multi_reduction <add>, %58, %cst_29 [1] : vector<16x16xf32> to vector<16xf32>
    %60 = vector.shape_cast %59 : vector<16xf32> to vector<16x1xf32>
    %61 = tpu.reciprocal %60 {approx = true} : vector<16x1xf32> -> vector<16x1xf32>
    %62 = vector.broadcast %61 : vector<16x1xf32> to vector<16x16xf32>
    %63 = arith.mulf %58, %62 : vector<16x16xf32>
    %64 = vector.extract_strided_slice %49 {offsets = [0, 0], sizes = [16, 8], strides = [1, 1]} : vector<16x32xf32> to vector<16x8xf32>
    %cst_30 = arith.constant dense<0.000000e+00> : vector<16x8xf32>
    %65 = tpu.matmul %63, %64, %cst_30 {dimension_numbers = #tpu.dot_dimension_numbers<[1], [0], [0], [1], [0, 0, 1, 1], [], []>} : vector<16x16xf32>, vector<16x8xf32>, vector<16x8xf32> -> vector<16x8xf32>
    %66 = vector.extract_strided_slice %47 {offsets = [0, 8], sizes = [16, 8], strides = [1, 1]} : vector<16x32xf32> to vector<16x8xf32>
    %67 = vector.extract_strided_slice %48 {offsets = [0, 8], sizes = [16, 8], strides = [1, 1]} : vector<16x32xf32> to vector<16x8xf32>
    %cst_31 = arith.constant dense<0.000000e+00> : vector<16x16xf32>
    %68 = tpu.matmul %66, %67, %cst_31 {dimension_numbers = #tpu.dot_dimension_numbers<[1], [1], [0], [0], [0, 0, 1, 0], [], []>} : vector<16x8xf32>, vector<16x8xf32>, vector<16x16xf32> -> vector<16x16xf32>
    %69 = arith.addf %68, %12 : vector<16x16xf32>
    %cst_32 = arith.constant dense<0xFF800000> : vector<16xf32>
    %70 = vector.multi_reduction <maximumf>, %69, %cst_32 [1] : vector<16x16xf32> to vector<16xf32>
    %71 = vector.shape_cast %70 : vector<16xf32> to vector<16x1xf32>
    %72 = vector.broadcast %71 : vector<16x1xf32> to vector<16x16xf32>
    %73 = arith.subf %69, %72 : vector<16x16xf32>
    %74 = math.exp %73 : vector<16x16xf32>
    %cst_33 = arith.constant dense<0.000000e+00> : vector<16xf32>
    %75 = vector.multi_reduction <add>, %74, %cst_33 [1] : vector<16x16xf32> to vector<16xf32>
    %76 = vector.shape_cast %75 : vector<16xf32> to vector<16x1xf32>
    %77 = tpu.reciprocal %76 {approx = true} : vector<16x1xf32> -> vector<16x1xf32>
    %78 = vector.broadcast %77 : vector<16x1xf32> to vector<16x16xf32>
    %79 = arith.mulf %74, %78 : vector<16x16xf32>
    %80 = vector.extract_strided_slice %49 {offsets = [0, 8], sizes = [16, 8], strides = [1, 1]} : vector<16x32xf32> to vector<16x8xf32>
    %cst_34 = arith.constant dense<0.000000e+00> : vector<16x8xf32>
    %81 = tpu.matmul %79, %80, %cst_34 {dimension_numbers = #tpu.dot_dimension_numbers<[1], [0], [0], [1], [0, 0, 1, 1], [], []>} : vector<16x16xf32>, vector<16x8xf32>, vector<16x8xf32> -> vector<16x8xf32>
    %82 = vector.extract_strided_slice %47 {offsets = [0, 16], sizes = [16, 8], strides = [1, 1]} : vector<16x32xf32> to vector<16x8xf32>
    %83 = vector.extract_strided_slice %48 {offsets = [0, 16], sizes = [16, 8], strides = [1, 1]} : vector<16x32xf32> to vector<16x8xf32>
    %cst_35 = arith.constant dense<0.000000e+00> : vector<16x16xf32>
    %84 = tpu.matmul %82, %83, %cst_35 {dimension_numbers = #tpu.dot_dimension_numbers<[1], [1], [0], [0], [0, 0, 1, 0], [], []>} : vector<16x8xf32>, vector<16x8xf32>, vector<16x16xf32> -> vector<16x16xf32>
    %85 = arith.addf %84, %12 : vector<16x16xf32>
    %cst_36 = arith.constant dense<0xFF800000> : vector<16xf32>
    %86 = vector.multi_reduction <maximumf>, %85, %cst_36 [1] : vector<16x16xf32> to vector<16xf32>
    %87 = vector.shape_cast %86 : vector<16xf32> to vector<16x1xf32>
    %88 = vector.broadcast %87 : vector<16x1xf32> to vector<16x16xf32>
    %89 = arith.subf %85, %88 : vector<16x16xf32>
    %90 = math.exp %89 : vector<16x16xf32>
    %cst_37 = arith.constant dense<0.000000e+00> : vector<16xf32>
    %91 = vector.multi_reduction <add>, %90, %cst_37 [1] : vector<16x16xf32> to vector<16xf32>
    %92 = vector.shape_cast %91 : vector<16xf32> to vector<16x1xf32>
    %93 = tpu.reciprocal %92 {approx = true} : vector<16x1xf32> -> vector<16x1xf32>
    %94 = vector.broadcast %93 : vector<16x1xf32> to vector<16x16xf32>
    %95 = arith.mulf %90, %94 : vector<16x16xf32>
    %96 = vector.extract_strided_slice %49 {offsets = [0, 16], sizes = [16, 8], strides = [1, 1]} : vector<16x32xf32> to vector<16x8xf32>
    %cst_38 = arith.constant dense<0.000000e+00> : vector<16x8xf32>
    %97 = tpu.matmul %95, %96, %cst_38 {dimension_numbers = #tpu.dot_dimension_numbers<[1], [0], [0], [1], [0, 0, 1, 1], [], []>} : vector<16x16xf32>, vector<16x8xf32>, vector<16x8xf32> -> vector<16x8xf32>
    %98 = vector.extract_strided_slice %47 {offsets = [0, 24], sizes = [16, 8], strides = [1, 1]} : vector<16x32xf32> to vector<16x8xf32>
    %99 = vector.extract_strided_slice %48 {offsets = [0, 24], sizes = [16, 8], strides = [1, 1]} : vector<16x32xf32> to vector<16x8xf32>
    %cst_39 = arith.constant dense<0.000000e+00> : vector<16x16xf32>
    %100 = tpu.matmul %98, %99, %cst_39 {dimension_numbers = #tpu.dot_dimension_numbers<[1], [1], [0], [0], [0, 0, 1, 0], [], []>} : vector<16x8xf32>, vector<16x8xf32>, vector<16x16xf32> -> vector<16x16xf32>
    %101 = arith.addf %100, %12 : vector<16x16xf32>
    %cst_40 = arith.constant dense<0xFF800000> : vector<16xf32>
    %102 = vector.multi_reduction <maximumf>, %101, %cst_40 [1] : vector<16x16xf32> to vector<16xf32>
    %103 = vector.shape_cast %102 : vector<16xf32> to vector<16x1xf32>
    %104 = vector.broadcast %103 : vector<16x1xf32> to vector<16x16xf32>
    %105 = arith.subf %101, %104 : vector<16x16xf32>
    %106 = math.exp %105 : vector<16x16xf32>
    %cst_41 = arith.constant dense<0.000000e+00> : vector<16xf32>
    %107 = vector.multi_reduction <add>, %106, %cst_41 [1] : vector<16x16xf32> to vector<16xf32>
    %108 = vector.shape_cast %107 : vector<16xf32> to vector<16x1xf32>
    %109 = tpu.reciprocal %108 {approx = true} : vector<16x1xf32> -> vector<16x1xf32>
    %110 = vector.broadcast %109 : vector<16x1xf32> to vector<16x16xf32>
    %111 = arith.mulf %106, %110 : vector<16x16xf32>
    %112 = vector.extract_strided_slice %49 {offsets = [0, 24], sizes = [16, 8], strides = [1, 1]} : vector<16x32xf32> to vector<16x8xf32>
    %cst_42 = arith.constant dense<0.000000e+00> : vector<16x8xf32>
    %113 = tpu.matmul %111, %112, %cst_42 {dimension_numbers = #tpu.dot_dimension_numbers<[1], [0], [0], [1], [0, 0, 1, 1], [], []>} : vector<16x16xf32>, vector<16x8xf32>, vector<16x8xf32> -> vector<16x8xf32>
    %114 = tpu.concatenate %65, %81, %97, %113 in 1 : vector<16x8xf32>, vector<16x8xf32>, vector<16x8xf32>, vector<16x8xf32> -> vector<16x32xf32>
    %cst_43 = arith.constant dense<0.000000e+00> : vector<16x32xf32>
    %115 = tpu.matmul %114, %27, %cst_43 {dimension_numbers = #tpu.dot_dimension_numbers<[1], [0], [0], [1], [0, 0, 1, 1], [], []>} : vector<16x32xf32>, vector<32x32xf32>, vector<16x32xf32> -> vector<16x32xf32>
    %116 = vector.broadcast %35 : vector<1x32xf32> to vector<16x32xf32>
    %117 = arith.addf %115, %116 : vector<16x32xf32>
    %118 = arith.addf %23, %117 : vector<16x32xf32>
    %cst_44 = arith.constant dense<0.000000e+00> : vector<16xf32>
    %119 = vector.multi_reduction <add>, %118, %cst_44 [1] : vector<16x32xf32> to vector<16xf32>
    %120 = vector.shape_cast %119 : vector<16xf32> to vector<16x1xf32>
    %cst_45 = arith.constant 3.200000e+01 : f32
    %121 = vector.broadcast %cst_45 : f32 to vector<16x1xf32>
    %122 = arith.divf %120, %121 : vector<16x1xf32>
    %123 = vector.broadcast %122 : vector<16x1xf32> to vector<16x32xf32>
    %124 = arith.subf %118, %123 : vector<16x32xf32>
    %125 = arith.mulf %124, %124 : vector<16x32xf32>
    %cst_46 = arith.constant dense<0.000000e+00> : vector<16xf32>
    %126 = vector.multi_reduction <add>, %125, %cst_46 [1] : vector<16x32xf32> to vector<16xf32>
    %127 = vector.shape_cast %126 : vector<16xf32> to vector<16x1xf32>
    %cst_47 = arith.constant 3.200000e+01 : f32
    %128 = vector.broadcast %cst_47 : f32 to vector<16x1xf32>
    %129 = arith.divf %127, %128 : vector<16x1xf32>
    %130 = vector.broadcast %122 : vector<16x1xf32> to vector<16x32xf32>
    %131 = arith.subf %118, %130 : vector<16x32xf32>
    %cst_48 = arith.constant 9.99999997E-7 : f32
    %132 = vector.broadcast %cst_48 : f32 to vector<16x1xf32>
    %133 = arith.addf %129, %132 : vector<16x1xf32>
    %134 = math.rsqrt %133 : vector<16x1xf32>
    %135 = vector.broadcast %134 : vector<16x1xf32> to vector<16x32xf32>
    %136 = arith.mulf %131, %135 : vector<16x32xf32>
    %137 = vector.broadcast %36 : vector<1x32xf32> to vector<16x32xf32>
    %138 = arith.mulf %136, %137 : vector<16x32xf32>
    %139 = vector.broadcast %37 : vector<1x32xf32> to vector<16x32xf32>
    %140 = arith.addf %138, %139 : vector<16x32xf32>
    %cst_49 = arith.constant dense<0.000000e+00> : vector<16x64xf32>
    %141 = tpu.matmul %140, %29, %cst_49 {dimension_numbers = #tpu.dot_dimension_numbers<[1], [0], [0], [1], [0, 0, 1, 1], [], []>} : vector<16x32xf32>, vector<32x64xf32>, vector<16x64xf32> -> vector<16x64xf32>
    %142 = vector.broadcast %40 : vector<1x64xf32> to vector<16x64xf32>
    %143 = arith.addf %141, %142 : vector<16x64xf32>
    %cst_50 = arith.constant 0.000000e+00 : f32
    %144 = vector.broadcast %cst_50 : f32 to vector<16x64xf32>
    %145 = arith.maximumf %143, %144 : vector<16x64xf32>
    %cst_51 = arith.constant dense<0.000000e+00> : vector<16x32xf32>
    %146 = tpu.matmul %145, %31, %cst_51 {dimension_numbers = #tpu.dot_dimension_numbers<[1], [1], [0], [0], [0, 0, 1, 0], [], []>} : vector<16x64xf32>, vector<32x64xf32>, vector<16x32xf32> -> vector<16x32xf32>
    %147 = vector.broadcast %41 : vector<1x32xf32> to vector<16x32xf32>
    %148 = arith.addf %146, %147 : vector<16x32xf32>
    %149 = arith.addf %140, %148 : vector<16x32xf32>
    %cst_52 = arith.constant dense<0.000000e+00> : vector<16xf32>
    %150 = vector.multi_reduction <add>, %149, %cst_52 [1] : vector<16x32xf32> to vector<16xf32>
    %151 = vector.shape_cast %150 : vector<16xf32> to vector<16x1xf32>
    %cst_53 = arith.constant 3.200000e+01 : f32
    %152 = vector.broadcast %cst_53 : f32 to vector<16x1xf32>
    %153 = arith.divf %151, %152 : vector<16x1xf32>
    %154 = vector.broadcast %153 : vector<16x1xf32> to vector<16x32xf32>
    %155 = arith.subf %149, %154 : vector<16x32xf32>
    %156 = arith.mulf %155, %155 : vector<16x32xf32>
    %cst_54 = arith.constant dense<0.000000e+00> : vector<16xf32>
    %157 = vector.multi_reduction <add>, %156, %cst_54 [1] : vector<16x32xf32> to vector<16xf32>
    %158 = vector.shape_cast %157 : vector<16xf32> to vector<16x1xf32>
    %cst_55 = arith.constant 3.200000e+01 : f32
    %159 = vector.broadcast %cst_55 : f32 to vector<16x1xf32>
    %160 = arith.divf %158, %159 : vector<16x1xf32>
    %161 = vector.broadcast %153 : vector<16x1xf32> to vector<16x32xf32>
    %162 = arith.subf %149, %161 : vector<16x32xf32>
    %cst_56 = arith.constant 9.99999997E-7 : f32
    %163 = vector.broadcast %cst_56 : f32 to vector<16x1xf32>
    %164 = arith.addf %160, %163 : vector<16x1xf32>
    %165 = math.rsqrt %164 : vector<16x1xf32>
    %166 = vector.broadcast %165 : vector<16x1xf32> to vector<16x32xf32>
    %167 = arith.mulf %162, %166 : vector<16x32xf32>
    %168 = vector.broadcast %38 : vector<1x32xf32> to vector<16x32xf32>
    %169 = arith.mulf %167, %168 : vector<16x32xf32>
    %170 = vector.broadcast %39 : vector<1x32xf32> to vector<16x32xf32>
    %171 = arith.addf %169, %170 : vector<16x32xf32>
    %c1 = arith.constant 1 : index
    %c0_57 = arith.constant 0 : index
    %c0_58 = arith.constant 0 : index
    %172 = vector.load %arg1[%c1, %c0_57, %c0_58] : memref<4x32x512xf32, #tpu.memory_space<vmem>>, vector<1x32x96xf32>
    %173 = vector.shape_cast %172 : vector<1x32x96xf32> to vector<32x96xf32>
    %c1_59 = arith.constant 1 : index
    %c0_60 = arith.constant 0 : index
    %c128_61 = arith.constant 128 : index
    %174 = vector.load %arg1[%c1_59, %c0_60, %c128_61] : memref<4x32x512xf32, #tpu.memory_space<vmem>>, vector<1x32x32xf32>
    %175 = vector.shape_cast %174 : vector<1x32x32xf32> to vector<32x32xf32>
    %c1_62 = arith.constant 1 : index
    %c0_63 = arith.constant 0 : index
    %c256_64 = arith.constant 256 : index
    %176 = vector.load %arg1[%c1_62, %c0_63, %c256_64] : memref<4x32x512xf32, #tpu.memory_space<vmem>>, vector<1x32x64xf32>
    %177 = vector.shape_cast %176 : vector<1x32x64xf32> to vector<32x64xf32>
    %c1_65 = arith.constant 1 : index
    %c0_66 = arith.constant 0 : index
    %c384_67 = arith.constant 384 : index
    %178 = vector.load %arg1[%c1_65, %c0_66, %c384_67] : memref<4x32x512xf32, #tpu.memory_space<vmem>>, vector<1x32x64xf32>
    %179 = vector.shape_cast %178 : vector<1x32x64xf32> to vector<32x64xf32>
    %c1_68 = arith.constant 1 : index
    %c0_69 = arith.constant 0 : index
    %c0_70 = arith.constant 0 : index
    %180 = vector.load %arg2[%c1_68, %c0_69, %c0_70] : memref<4x8x128xf32, #tpu.memory_space<vmem>>, vector<1x8x128xf32>
    %181 = vector.shape_cast %180 : vector<1x8x128xf32> to vector<8x128xf32>
    %182 = vector.extract_strided_slice %181 {offsets = [0, 0], sizes = [1, 96], strides = [1, 1]} : vector<8x128xf32> to vector<1x96xf32>
    %183 = vector.extract_strided_slice %181 {offsets = [1, 0], sizes = [1, 32], strides = [1, 1]} : vector<8x128xf32> to vector<1x32xf32>
    %184 = vector.extract_strided_slice %181 {offsets = [2, 0], sizes = [1, 32], strides = [1, 1]} : vector<8x128xf32> to vector<1x32xf32>
    %185 = vector.extract_strided_slice %181 {offsets = [3, 0], sizes = [1, 32], strides = [1, 1]} : vector<8x128xf32> to vector<1x32xf32>
    %186 = vector.extract_strided_slice %181 {offsets = [4, 0], sizes = [1, 32], strides = [1, 1]} : vector<8x128xf32> to vector<1x32xf32>
    %187 = vector.extract_strided_slice %181 {offsets = [5, 0], sizes = [1, 32], strides = [1, 1]} : vector<8x128xf32> to vector<1x32xf32>
    %188 = vector.extract_strided_slice %181 {offsets = [6, 0], sizes = [1, 64], strides = [1, 1]} : vector<8x128xf32> to vector<1x64xf32>
    %189 = vector.extract_strided_slice %181 {offsets = [7, 0], sizes = [1, 32], strides = [1, 1]} : vector<8x128xf32> to vector<1x32xf32>
    %cst_71 = arith.constant dense<0.000000e+00> : vector<16x96xf32>
    %190 = tpu.matmul %171, %173, %cst_71 {dimension_numbers = #tpu.dot_dimension_numbers<[1], [0], [0], [1], [0, 0, 1, 1], [], []>} : vector<16x32xf32>, vector<32x96xf32>, vector<16x96xf32> -> vector<16x96xf32>
    %191 = vector.broadcast %182 : vector<1x96xf32> to vector<16x96xf32>
    %192 = arith.addf %190, %191 : vector<16x96xf32>
    %193 = vector.extract_strided_slice %192 {offsets = [0, 0], sizes = [16, 32], strides = [1, 1]} : vector<16x96xf32> to vector<16x32xf32>
    %cst_72 = arith.constant 0.353553385 : f32
    %194 = vector.broadcast %cst_72 : f32 to vector<16x32xf32>
    %195 = arith.mulf %193, %194 : vector<16x32xf32>
    %196 = vector.extract_strided_slice %192 {offsets = [0, 32], sizes = [16, 32], strides = [1, 1]} : vector<16x96xf32> to vector<16x32xf32>
    %197 = vector.extract_strided_slice %192 {offsets = [0, 64], sizes = [16, 32], strides = [1, 1]} : vector<16x96xf32> to vector<16x32xf32>
    %198 = vector.extract_strided_slice %195 {offsets = [0, 0], sizes = [16, 8], strides = [1, 1]} : vector<16x32xf32> to vector<16x8xf32>
    %199 = vector.extract_strided_slice %196 {offsets = [0, 0], sizes = [16, 8], strides = [1, 1]} : vector<16x32xf32> to vector<16x8xf32>
    %cst_73 = arith.constant dense<0.000000e+00> : vector<16x16xf32>
    %200 = tpu.matmul %198, %199, %cst_73 {dimension_numbers = #tpu.dot_dimension_numbers<[1], [1], [0], [0], [0, 0, 1, 0], [], []>} : vector<16x8xf32>, vector<16x8xf32>, vector<16x16xf32> -> vector<16x16xf32>
    %201 = arith.addf %200, %12 : vector<16x16xf32>
    %cst_74 = arith.constant dense<0xFF800000> : vector<16xf32>
    %202 = vector.multi_reduction <maximumf>, %201, %cst_74 [1] : vector<16x16xf32> to vector<16xf32>
    %203 = vector.shape_cast %202 : vector<16xf32> to vector<16x1xf32>
    %204 = vector.broadcast %203 : vector<16x1xf32> to vector<16x16xf32>
    %205 = arith.subf %201, %204 : vector<16x16xf32>
    %206 = math.exp %205 : vector<16x16xf32>
    %cst_75 = arith.constant dense<0.000000e+00> : vector<16xf32>
    %207 = vector.multi_reduction <add>, %206, %cst_75 [1] : vector<16x16xf32> to vector<16xf32>
    %208 = vector.shape_cast %207 : vector<16xf32> to vector<16x1xf32>
    %209 = tpu.reciprocal %208 {approx = true} : vector<16x1xf32> -> vector<16x1xf32>
    %210 = vector.broadcast %209 : vector<16x1xf32> to vector<16x16xf32>
    %211 = arith.mulf %206, %210 : vector<16x16xf32>
    %212 = vector.extract_strided_slice %197 {offsets = [0, 0], sizes = [16, 8], strides = [1, 1]} : vector<16x32xf32> to vector<16x8xf32>
    %cst_76 = arith.constant dense<0.000000e+00> : vector<16x8xf32>
    %213 = tpu.matmul %211, %212, %cst_76 {dimension_numbers = #tpu.dot_dimension_numbers<[1], [0], [0], [1], [0, 0, 1, 1], [], []>} : vector<16x16xf32>, vector<16x8xf32>, vector<16x8xf32> -> vector<16x8xf32>
    %214 = vector.extract_strided_slice %195 {offsets = [0, 8], sizes = [16, 8], strides = [1, 1]} : vector<16x32xf32> to vector<16x8xf32>
    %215 = vector.extract_strided_slice %196 {offsets = [0, 8], sizes = [16, 8], strides = [1, 1]} : vector<16x32xf32> to vector<16x8xf32>
    %cst_77 = arith.constant dense<0.000000e+00> : vector<16x16xf32>
    %216 = tpu.matmul %214, %215, %cst_77 {dimension_numbers = #tpu.dot_dimension_numbers<[1], [1], [0], [0], [0, 0, 1, 0], [], []>} : vector<16x8xf32>, vector<16x8xf32>, vector<16x16xf32> -> vector<16x16xf32>
    %217 = arith.addf %216, %12 : vector<16x16xf32>
    %cst_78 = arith.constant dense<0xFF800000> : vector<16xf32>
    %218 = vector.multi_reduction <maximumf>, %217, %cst_78 [1] : vector<16x16xf32> to vector<16xf32>
    %219 = vector.shape_cast %218 : vector<16xf32> to vector<16x1xf32>
    %220 = vector.broadcast %219 : vector<16x1xf32> to vector<16x16xf32>
    %221 = arith.subf %217, %220 : vector<16x16xf32>
    %222 = math.exp %221 : vector<16x16xf32>
    %cst_79 = arith.constant dense<0.000000e+00> : vector<16xf32>
    %223 = vector.multi_reduction <add>, %222, %cst_79 [1] : vector<16x16xf32> to vector<16xf32>
    %224 = vector.shape_cast %223 : vector<16xf32> to vector<16x1xf32>
    %225 = tpu.reciprocal %224 {approx = true} : vector<16x1xf32> -> vector<16x1xf32>
    %226 = vector.broadcast %225 : vector<16x1xf32> to vector<16x16xf32>
    %227 = arith.mulf %222, %226 : vector<16x16xf32>
    %228 = vector.extract_strided_slice %197 {offsets = [0, 8], sizes = [16, 8], strides = [1, 1]} : vector<16x32xf32> to vector<16x8xf32>
    %cst_80 = arith.constant dense<0.000000e+00> : vector<16x8xf32>
    %229 = tpu.matmul %227, %228, %cst_80 {dimension_numbers = #tpu.dot_dimension_numbers<[1], [0], [0], [1], [0, 0, 1, 1], [], []>} : vector<16x16xf32>, vector<16x8xf32>, vector<16x8xf32> -> vector<16x8xf32>
    %230 = vector.extract_strided_slice %195 {offsets = [0, 16], sizes = [16, 8], strides = [1, 1]} : vector<16x32xf32> to vector<16x8xf32>
    %231 = vector.extract_strided_slice %196 {offsets = [0, 16], sizes = [16, 8], strides = [1, 1]} : vector<16x32xf32> to vector<16x8xf32>
    %cst_81 = arith.constant dense<0.000000e+00> : vector<16x16xf32>
    %232 = tpu.matmul %230, %231, %cst_81 {dimension_numbers = #tpu.dot_dimension_numbers<[1], [1], [0], [0], [0, 0, 1, 0], [], []>} : vector<16x8xf32>, vector<16x8xf32>, vector<16x16xf32> -> vector<16x16xf32>
    %233 = arith.addf %232, %12 : vector<16x16xf32>
    %cst_82 = arith.constant dense<0xFF800000> : vector<16xf32>
    %234 = vector.multi_reduction <maximumf>, %233, %cst_82 [1] : vector<16x16xf32> to vector<16xf32>
    %235 = vector.shape_cast %234 : vector<16xf32> to vector<16x1xf32>
    %236 = vector.broadcast %235 : vector<16x1xf32> to vector<16x16xf32>
    %237 = arith.subf %233, %236 : vector<16x16xf32>
    %238 = math.exp %237 : vector<16x16xf32>
    %cst_83 = arith.constant dense<0.000000e+00> : vector<16xf32>
    %239 = vector.multi_reduction <add>, %238, %cst_83 [1] : vector<16x16xf32> to vector<16xf32>
    %240 = vector.shape_cast %239 : vector<16xf32> to vector<16x1xf32>
    %241 = tpu.reciprocal %240 {approx = true} : vector<16x1xf32> -> vector<16x1xf32>
    %242 = vector.broadcast %241 : vector<16x1xf32> to vector<16x16xf32>
    %243 = arith.mulf %238, %242 : vector<16x16xf32>
    %244 = vector.extract_strided_slice %197 {offsets = [0, 16], sizes = [16, 8], strides = [1, 1]} : vector<16x32xf32> to vector<16x8xf32>
    %cst_84 = arith.constant dense<0.000000e+00> : vector<16x8xf32>
    %245 = tpu.matmul %243, %244, %cst_84 {dimension_numbers = #tpu.dot_dimension_numbers<[1], [0], [0], [1], [0, 0, 1, 1], [], []>} : vector<16x16xf32>, vector<16x8xf32>, vector<16x8xf32> -> vector<16x8xf32>
    %246 = vector.extract_strided_slice %195 {offsets = [0, 24], sizes = [16, 8], strides = [1, 1]} : vector<16x32xf32> to vector<16x8xf32>
    %247 = vector.extract_strided_slice %196 {offsets = [0, 24], sizes = [16, 8], strides = [1, 1]} : vector<16x32xf32> to vector<16x8xf32>
    %cst_85 = arith.constant dense<0.000000e+00> : vector<16x16xf32>
    %248 = tpu.matmul %246, %247, %cst_85 {dimension_numbers = #tpu.dot_dimension_numbers<[1], [1], [0], [0], [0, 0, 1, 0], [], []>} : vector<16x8xf32>, vector<16x8xf32>, vector<16x16xf32> -> vector<16x16xf32>
    %249 = arith.addf %248, %12 : vector<16x16xf32>
    %cst_86 = arith.constant dense<0xFF800000> : vector<16xf32>
    %250 = vector.multi_reduction <maximumf>, %249, %cst_86 [1] : vector<16x16xf32> to vector<16xf32>
    %251 = vector.shape_cast %250 : vector<16xf32> to vector<16x1xf32>
    %252 = vector.broadcast %251 : vector<16x1xf32> to vector<16x16xf32>
    %253 = arith.subf %249, %252 : vector<16x16xf32>
    %254 = math.exp %253 : vector<16x16xf32>
    %cst_87 = arith.constant dense<0.000000e+00> : vector<16xf32>
    %255 = vector.multi_reduction <add>, %254, %cst_87 [1] : vector<16x16xf32> to vector<16xf32>
    %256 = vector.shape_cast %255 : vector<16xf32> to vector<16x1xf32>
    %257 = tpu.reciprocal %256 {approx = true} : vector<16x1xf32> -> vector<16x1xf32>
    %258 = vector.broadcast %257 : vector<16x1xf32> to vector<16x16xf32>
    %259 = arith.mulf %254, %258 : vector<16x16xf32>
    %260 = vector.extract_strided_slice %197 {offsets = [0, 24], sizes = [16, 8], strides = [1, 1]} : vector<16x32xf32> to vector<16x8xf32>
    %cst_88 = arith.constant dense<0.000000e+00> : vector<16x8xf32>
    %261 = tpu.matmul %259, %260, %cst_88 {dimension_numbers = #tpu.dot_dimension_numbers<[1], [0], [0], [1], [0, 0, 1, 1], [], []>} : vector<16x16xf32>, vector<16x8xf32>, vector<16x8xf32> -> vector<16x8xf32>
    %262 = tpu.concatenate %213, %229, %245, %261 in 1 : vector<16x8xf32>, vector<16x8xf32>, vector<16x8xf32>, vector<16x8xf32> -> vector<16x32xf32>
    %cst_89 = arith.constant dense<0.000000e+00> : vector<16x32xf32>
    %263 = tpu.matmul %262, %175, %cst_89 {dimension_numbers = #tpu.dot_dimension_numbers<[1], [0], [0], [1], [0, 0, 1, 1], [], []>} : vector<16x32xf32>, vector<32x32xf32>, vector<16x32xf32> -> vector<16x32xf32>
    %264 = vector.broadcast %183 : vector<1x32xf32> to vector<16x32xf32>
    %265 = arith.addf %263, %264 : vector<16x32xf32>
    %266 = arith.addf %171, %265 : vector<16x32xf32>
    %cst_90 = arith.constant dense<0.000000e+00> : vector<16xf32>
    %267 = vector.multi_reduction <add>, %266, %cst_90 [1] : vector<16x32xf32> to vector<16xf32>
    %268 = vector.shape_cast %267 : vector<16xf32> to vector<16x1xf32>
    %cst_91 = arith.constant 3.200000e+01 : f32
    %269 = vector.broadcast %cst_91 : f32 to vector<16x1xf32>
    %270 = arith.divf %268, %269 : vector<16x1xf32>
    %271 = vector.broadcast %270 : vector<16x1xf32> to vector<16x32xf32>
    %272 = arith.subf %266, %271 : vector<16x32xf32>
    %273 = arith.mulf %272, %272 : vector<16x32xf32>
    %cst_92 = arith.constant dense<0.000000e+00> : vector<16xf32>
    %274 = vector.multi_reduction <add>, %273, %cst_92 [1] : vector<16x32xf32> to vector<16xf32>
    %275 = vector.shape_cast %274 : vector<16xf32> to vector<16x1xf32>
    %cst_93 = arith.constant 3.200000e+01 : f32
    %276 = vector.broadcast %cst_93 : f32 to vector<16x1xf32>
    %277 = arith.divf %275, %276 : vector<16x1xf32>
    %278 = vector.broadcast %270 : vector<16x1xf32> to vector<16x32xf32>
    %279 = arith.subf %266, %278 : vector<16x32xf32>
    %cst_94 = arith.constant 9.99999997E-7 : f32
    %280 = vector.broadcast %cst_94 : f32 to vector<16x1xf32>
    %281 = arith.addf %277, %280 : vector<16x1xf32>
    %282 = math.rsqrt %281 : vector<16x1xf32>
    %283 = vector.broadcast %282 : vector<16x1xf32> to vector<16x32xf32>
    %284 = arith.mulf %279, %283 : vector<16x32xf32>
    %285 = vector.broadcast %184 : vector<1x32xf32> to vector<16x32xf32>
    %286 = arith.mulf %284, %285 : vector<16x32xf32>
    %287 = vector.broadcast %185 : vector<1x32xf32> to vector<16x32xf32>
    %288 = arith.addf %286, %287 : vector<16x32xf32>
    %cst_95 = arith.constant dense<0.000000e+00> : vector<16x64xf32>
    %289 = tpu.matmul %288, %177, %cst_95 {dimension_numbers = #tpu.dot_dimension_numbers<[1], [0], [0], [1], [0, 0, 1, 1], [], []>} : vector<16x32xf32>, vector<32x64xf32>, vector<16x64xf32> -> vector<16x64xf32>
    %290 = vector.broadcast %188 : vector<1x64xf32> to vector<16x64xf32>
    %291 = arith.addf %289, %290 : vector<16x64xf32>
    %cst_96 = arith.constant 0.000000e+00 : f32
    %292 = vector.broadcast %cst_96 : f32 to vector<16x64xf32>
    %293 = arith.maximumf %291, %292 : vector<16x64xf32>
    %cst_97 = arith.constant dense<0.000000e+00> : vector<16x32xf32>
    %294 = tpu.matmul %293, %179, %cst_97 {dimension_numbers = #tpu.dot_dimension_numbers<[1], [1], [0], [0], [0, 0, 1, 0], [], []>} : vector<16x64xf32>, vector<32x64xf32>, vector<16x32xf32> -> vector<16x32xf32>
    %295 = vector.broadcast %189 : vector<1x32xf32> to vector<16x32xf32>
    %296 = arith.addf %294, %295 : vector<16x32xf32>
    %297 = arith.addf %288, %296 : vector<16x32xf32>
    %cst_98 = arith.constant dense<0.000000e+00> : vector<16xf32>
    %298 = vector.multi_reduction <add>, %297, %cst_98 [1] : vector<16x32xf32> to vector<16xf32>
    %299 = vector.shape_cast %298 : vector<16xf32> to vector<16x1xf32>
    %cst_99 = arith.constant 3.200000e+01 : f32
    %300 = vector.broadcast %cst_99 : f32 to vector<16x1xf32>
    %301 = arith.divf %299, %300 : vector<16x1xf32>
    %302 = vector.broadcast %301 : vector<16x1xf32> to vector<16x32xf32>
    %303 = arith.subf %297, %302 : vector<16x32xf32>
    %304 = arith.mulf %303, %303 : vector<16x32xf32>
    %cst_100 = arith.constant dense<0.000000e+00> : vector<16xf32>
    %305 = vector.multi_reduction <add>, %304, %cst_100 [1] : vector<16x32xf32> to vector<16xf32>
    %306 = vector.shape_cast %305 : vector<16xf32> to vector<16x1xf32>
    %cst_101 = arith.constant 3.200000e+01 : f32
    %307 = vector.broadcast %cst_101 : f32 to vector<16x1xf32>
    %308 = arith.divf %306, %307 : vector<16x1xf32>
    %309 = vector.broadcast %301 : vector<16x1xf32> to vector<16x32xf32>
    %310 = arith.subf %297, %309 : vector<16x32xf32>
    %cst_102 = arith.constant 9.99999997E-7 : f32
    %311 = vector.broadcast %cst_102 : f32 to vector<16x1xf32>
    %312 = arith.addf %308, %311 : vector<16x1xf32>
    %313 = math.rsqrt %312 : vector<16x1xf32>
    %314 = vector.broadcast %313 : vector<16x1xf32> to vector<16x32xf32>
    %315 = arith.mulf %310, %314 : vector<16x32xf32>
    %316 = vector.broadcast %186 : vector<1x32xf32> to vector<16x32xf32>
    %317 = arith.mulf %315, %316 : vector<16x32xf32>
    %318 = vector.broadcast %187 : vector<1x32xf32> to vector<16x32xf32>
    %319 = arith.addf %317, %318 : vector<16x32xf32>
    %cst_103 = arith.constant dense<0.000000e+00> : vector<16x16xf32>
    %320 = tpu.matmul %319, %4, %cst_103 {dimension_numbers = #tpu.dot_dimension_numbers<[1], [0], [0], [1], [0, 0, 1, 1], [], []>} : vector<16x32xf32>, vector<32x16xf32>, vector<16x16xf32> -> vector<16x16xf32>
    %321 = vector.broadcast %10 : vector<1x16xf32> to vector<16x16xf32>
    %322 = arith.addf %320, %321 : vector<16x16xf32>
    %cst_104 = arith.constant dense<0.000000e+00> : vector<16x16xf32>
    %323 = tpu.matmul %322, %5, %cst_104 {dimension_numbers = #tpu.dot_dimension_numbers<[1], [1], [0], [0], [0, 0, 1, 0], [], []>} : vector<16x16xf32>, vector<16x16xf32>, vector<16x16xf32> -> vector<16x16xf32>
    %324 = arith.mulf %322, %322 : vector<16x16xf32>
    %cst_105 = arith.constant dense<0.000000e+00> : vector<16xf32>
    %325 = vector.multi_reduction <add>, %324, %cst_105 [1] : vector<16x16xf32> to vector<16xf32>
    %326 = vector.shape_cast %325 : vector<16xf32> to vector<16x1xf32>
    %cst_106 = arith.constant 2.000000e+00 : f32
    %327 = vector.broadcast %cst_106 : f32 to vector<16x16xf32>
    %328 = arith.mulf %327, %323 : vector<16x16xf32>
    %329 = vector.broadcast %326 : vector<16x1xf32> to vector<16x16xf32>
    %330 = arith.subf %329, %328 : vector<16x16xf32>
    %331 = vector.broadcast %9 : vector<1x16xf32> to vector<16x16xf32>
    %332 = arith.addf %330, %331 : vector<16x16xf32>
    %cst_107 = arith.constant dense<0x7F800000> : vector<16xf32>
    %333 = vector.multi_reduction <minimumf>, %332, %cst_107 [1] : vector<16x16xf32> to vector<16xf32>
    %334 = vector.shape_cast %333 : vector<16xf32> to vector<16x1xf32>
    %335 = tpu.iota {dimensions = array<i32: 1>} : vector<16x16xi32>
    %336 = arith.sitofp %335 : vector<16x16xi32> to vector<16x16xf32>
    %337 = vector.broadcast %334 : vector<16x1xf32> to vector<16x16xf32>
    %338 = arith.cmpf ole, %332, %337 : vector<16x16xf32>
    %cst_108 = arith.constant 1.600000e+01 : f32
    %339 = vector.broadcast %cst_108 : f32 to vector<16x16xf32>
    %340 = arith.select %338, %336, %339 : vector<16x16xi1>, vector<16x16xf32>
    %cst_109 = arith.constant dense<0x7F800000> : vector<16xf32>
    %341 = vector.multi_reduction <minimumf>, %340, %cst_109 [1] : vector<16x16xf32> to vector<16xf32>
    %342 = vector.shape_cast %341 : vector<16xf32> to vector<16x1xf32>
    %343 = vector.broadcast %342 : vector<16x1xf32> to vector<16x16xf32>
    %344 = arith.cmpf oeq, %336, %343 : vector<16x16xf32>
    %345 = arith.extui %344 : vector<16x16xi1> to vector<16x16xi32>
    %346 = arith.sitofp %345 : vector<16x16xi32> to vector<16x16xf32>
    %347 = vector.broadcast %13 : vector<16x1xf32> to vector<16x16xf32>
    %348 = arith.mulf %346, %347 : vector<16x16xf32>
    %cst_110 = arith.constant dense<0.000000e+00> : vector<16xf32>
    %349 = vector.multi_reduction <add>, %348, %cst_110 [0] : vector<16x16xf32> to vector<16xf32>
    %350 = vector.shape_cast %349 : vector<16xf32> to vector<1x16xf32>
    %cst_111 = arith.constant dense<0.000000e+00> : vector<16x16xf32>
    %351 = tpu.matmul %346, %5, %cst_111 {dimension_numbers = #tpu.dot_dimension_numbers<[1], [0], [0], [1], [0, 0, 1, 1], [], []>} : vector<16x16xf32>, vector<16x16xf32>, vector<16x16xf32> -> vector<16x16xf32>
    %352 = arith.subf %351, %322 : vector<16x16xf32>
    %353 = arith.mulf %352, %352 : vector<16x16xf32>
    %cst_112 = arith.constant dense<0.000000e+00> : vector<16xf32>
    %354 = vector.multi_reduction <add>, %353, %cst_112 [1] : vector<16x16xf32> to vector<16xf32>
    %355 = vector.shape_cast %354 : vector<16xf32> to vector<16x1xf32>
    %cst_113 = arith.constant 1.600000e+01 : f32
    %356 = vector.broadcast %cst_113 : f32 to vector<16x1xf32>
    %357 = arith.divf %355, %356 : vector<16x1xf32>
    %358 = arith.mulf %357, %13 : vector<16x1xf32>
    %359 = vector.extract_strided_slice %358 {offsets = [0, 0], sizes = [8, 1], strides = [1, 1]} : vector<16x1xf32> to vector<8x1xf32>
    %cst_114 = arith.constant dense<0.000000e+00> : vector<1xf32>
    %360 = vector.multi_reduction <add>, %359, %cst_114 [0] : vector<8x1xf32> to vector<1xf32>
    %361 = vector.shape_cast %360 : vector<1xf32> to vector<1x1xf32>
    %362 = vector.extract_strided_slice %358 {offsets = [8, 0], sizes = [8, 1], strides = [1, 1]} : vector<16x1xf32> to vector<8x1xf32>
    %cst_115 = arith.constant dense<0.000000e+00> : vector<1xf32>
    %363 = vector.multi_reduction <add>, %362, %cst_115 [0] : vector<8x1xf32> to vector<1xf32>
    %364 = vector.shape_cast %363 : vector<1xf32> to vector<1x1xf32>
    %365 = tpu.concatenate %361, %364 in 0 : vector<1x1xf32>, vector<1x1xf32> -> vector<2x1xf32>
    %cst_116 = arith.constant 0.0357142873 : f32
    %366 = vector.broadcast %cst_116 : f32 to vector<2x1xf32>
    %367 = arith.mulf %365, %366 : vector<2x1xf32>
    %cst_117 = arith.constant dense<0.000000e+00> : vector<16x32xf32>
    %368 = tpu.matmul %351, %6, %cst_117 {dimension_numbers = #tpu.dot_dimension_numbers<[1], [0], [0], [1], [0, 0, 1, 1], [], []>} : vector<16x16xf32>, vector<16x32xf32>, vector<16x32xf32> -> vector<16x32xf32>
    %369 = vector.broadcast %11 : vector<1x32xf32> to vector<16x32xf32>
    %370 = arith.addf %368, %369 : vector<16x32xf32>
    %c8 = arith.constant 8 : index
    %c0_118 = arith.constant 0 : index
    %371 = vector.load %arg6[%c8, %c0_118] : memref<24x128xf32, #tpu.memory_space<vmem>>, vector<16x32xf32>
    tpu.vector_store %arg6[%c8, %c0_118], %370 {strides = array<i32>} : memref<24x128xf32, #tpu.memory_space<vmem>>, vector<16x32xf32>,
    %372 = arith.fptosi %342 : vector<16x1xf32> to vector<16x1xi32>
    %c0_119 = arith.constant 0 : index
    %c0_120 = arith.constant 0 : index
    %373 = vector.load %arg7[%c0_119, %c0_120] : memref<16x1xi32, #tpu.memory_space<vmem>>, vector<16x1xi32>
    tpu.vector_store %arg7[%c0_119, %c0_120], %372 {strides = array<i32>} : memref<16x1xi32, #tpu.memory_space<vmem>>, vector<16x1xi32>,
    %374 = arith.addf %370, %3 : vector<16x32xf32>
    %c2 = arith.constant 2 : index
    %c0_121 = arith.constant 0 : index
    %c0_122 = arith.constant 0 : index
    %375 = vector.load %arg1[%c2, %c0_121, %c0_122] : memref<4x32x512xf32, #tpu.memory_space<vmem>>, vector<1x32x96xf32>
    %376 = vector.shape_cast %375 : vector<1x32x96xf32> to vector<32x96xf32>
    %c2_123 = arith.constant 2 : index
    %c0_124 = arith.constant 0 : index
    %c128_125 = arith.constant 128 : index
    %377 = vector.load %arg1[%c2_123, %c0_124, %c128_125] : memref<4x32x512xf32, #tpu.memory_space<vmem>>, vector<1x32x32xf32>
    %378 = vector.shape_cast %377 : vector<1x32x32xf32> to vector<32x32xf32>
    %c2_126 = arith.constant 2 : index
    %c0_127 = arith.constant 0 : index
    %c256_128 = arith.constant 256 : index
    %379 = vector.load %arg1[%c2_126, %c0_127, %c256_128] : memref<4x32x512xf32, #tpu.memory_space<vmem>>, vector<1x32x64xf32>
    %380 = vector.shape_cast %379 : vector<1x32x64xf32> to vector<32x64xf32>
    %c2_129 = arith.constant 2 : index
    %c0_130 = arith.constant 0 : index
    %c384_131 = arith.constant 384 : index
    %381 = vector.load %arg1[%c2_129, %c0_130, %c384_131] : memref<4x32x512xf32, #tpu.memory_space<vmem>>, vector<1x32x64xf32>
    %382 = vector.shape_cast %381 : vector<1x32x64xf32> to vector<32x64xf32>
    %c2_132 = arith.constant 2 : index
    %c0_133 = arith.constant 0 : index
    %c0_134 = arith.constant 0 : index
    %383 = vector.load %arg2[%c2_132, %c0_133, %c0_134] : memref<4x8x128xf32, #tpu.memory_space<vmem>>, vector<1x8x128xf32>
    %384 = vector.shape_cast %383 : vector<1x8x128xf32> to vector<8x128xf32>
    %385 = vector.extract_strided_slice %384 {offsets = [0, 0], sizes = [1, 96], strides = [1, 1]} : vector<8x128xf32> to vector<1x96xf32>
    %386 = vector.extract_strided_slice %384 {offsets = [1, 0], sizes = [1, 32], strides = [1, 1]} : vector<8x128xf32> to vector<1x32xf32>
    %387 = vector.extract_strided_slice %384 {offsets = [2, 0], sizes = [1, 32], strides = [1, 1]} : vector<8x128xf32> to vector<1x32xf32>
    %388 = vector.extract_strided_slice %384 {offsets = [3, 0], sizes = [1, 32], strides = [1, 1]} : vector<8x128xf32> to vector<1x32xf32>
    %389 = vector.extract_strided_slice %384 {offsets = [4, 0], sizes = [1, 32], strides = [1, 1]} : vector<8x128xf32> to vector<1x32xf32>
    %390 = vector.extract_strided_slice %384 {offsets = [5, 0], sizes = [1, 32], strides = [1, 1]} : vector<8x128xf32> to vector<1x32xf32>
    %391 = vector.extract_strided_slice %384 {offsets = [6, 0], sizes = [1, 64], strides = [1, 1]} : vector<8x128xf32> to vector<1x64xf32>
    %392 = vector.extract_strided_slice %384 {offsets = [7, 0], sizes = [1, 32], strides = [1, 1]} : vector<8x128xf32> to vector<1x32xf32>
    %cst_135 = arith.constant dense<0.000000e+00> : vector<16x96xf32>
    %393 = tpu.matmul %374, %376, %cst_135 {dimension_numbers = #tpu.dot_dimension_numbers<[1], [0], [0], [1], [0, 0, 1, 1], [], []>} : vector<16x32xf32>, vector<32x96xf32>, vector<16x96xf32> -> vector<16x96xf32>
    %394 = vector.broadcast %385 : vector<1x96xf32> to vector<16x96xf32>
    %395 = arith.addf %393, %394 : vector<16x96xf32>
    %396 = vector.extract_strided_slice %395 {offsets = [0, 0], sizes = [16, 32], strides = [1, 1]} : vector<16x96xf32> to vector<16x32xf32>
    %cst_136 = arith.constant 0.353553385 : f32
    %397 = vector.broadcast %cst_136 : f32 to vector<16x32xf32>
    %398 = arith.mulf %396, %397 : vector<16x32xf32>
    %399 = vector.extract_strided_slice %395 {offsets = [0, 32], sizes = [16, 32], strides = [1, 1]} : vector<16x96xf32> to vector<16x32xf32>
    %400 = vector.extract_strided_slice %395 {offsets = [0, 64], sizes = [16, 32], strides = [1, 1]} : vector<16x96xf32> to vector<16x32xf32>
    %401 = vector.extract_strided_slice %398 {offsets = [0, 0], sizes = [16, 8], strides = [1, 1]} : vector<16x32xf32> to vector<16x8xf32>
    %402 = vector.extract_strided_slice %399 {offsets = [0, 0], sizes = [16, 8], strides = [1, 1]} : vector<16x32xf32> to vector<16x8xf32>
    %cst_137 = arith.constant dense<0.000000e+00> : vector<16x16xf32>
    %403 = tpu.matmul %401, %402, %cst_137 {dimension_numbers = #tpu.dot_dimension_numbers<[1], [1], [0], [0], [0, 0, 1, 0], [], []>} : vector<16x8xf32>, vector<16x8xf32>, vector<16x16xf32> -> vector<16x16xf32>
    %404 = arith.addf %403, %12 : vector<16x16xf32>
    %cst_138 = arith.constant dense<0xFF800000> : vector<16xf32>
    %405 = vector.multi_reduction <maximumf>, %404, %cst_138 [1] : vector<16x16xf32> to vector<16xf32>
    %406 = vector.shape_cast %405 : vector<16xf32> to vector<16x1xf32>
    %407 = vector.broadcast %406 : vector<16x1xf32> to vector<16x16xf32>
    %408 = arith.subf %404, %407 : vector<16x16xf32>
    %409 = math.exp %408 : vector<16x16xf32>
    %cst_139 = arith.constant dense<0.000000e+00> : vector<16xf32>
    %410 = vector.multi_reduction <add>, %409, %cst_139 [1] : vector<16x16xf32> to vector<16xf32>
    %411 = vector.shape_cast %410 : vector<16xf32> to vector<16x1xf32>
    %412 = tpu.reciprocal %411 {approx = true} : vector<16x1xf32> -> vector<16x1xf32>
    %413 = vector.broadcast %412 : vector<16x1xf32> to vector<16x16xf32>
    %414 = arith.mulf %409, %413 : vector<16x16xf32>
    %415 = vector.extract_strided_slice %400 {offsets = [0, 0], sizes = [16, 8], strides = [1, 1]} : vector<16x32xf32> to vector<16x8xf32>
    %cst_140 = arith.constant dense<0.000000e+00> : vector<16x8xf32>
    %416 = tpu.matmul %414, %415, %cst_140 {dimension_numbers = #tpu.dot_dimension_numbers<[1], [0], [0], [1], [0, 0, 1, 1], [], []>} : vector<16x16xf32>, vector<16x8xf32>, vector<16x8xf32> -> vector<16x8xf32>
    %417 = vector.extract_strided_slice %398 {offsets = [0, 8], sizes = [16, 8], strides = [1, 1]} : vector<16x32xf32> to vector<16x8xf32>
    %418 = vector.extract_strided_slice %399 {offsets = [0, 8], sizes = [16, 8], strides = [1, 1]} : vector<16x32xf32> to vector<16x8xf32>
    %cst_141 = arith.constant dense<0.000000e+00> : vector<16x16xf32>
    %419 = tpu.matmul %417, %418, %cst_141 {dimension_numbers = #tpu.dot_dimension_numbers<[1], [1], [0], [0], [0, 0, 1, 0], [], []>} : vector<16x8xf32>, vector<16x8xf32>, vector<16x16xf32> -> vector<16x16xf32>
    %420 = arith.addf %419, %12 : vector<16x16xf32>
    %cst_142 = arith.constant dense<0xFF800000> : vector<16xf32>
    %421 = vector.multi_reduction <maximumf>, %420, %cst_142 [1] : vector<16x16xf32> to vector<16xf32>
    %422 = vector.shape_cast %421 : vector<16xf32> to vector<16x1xf32>
    %423 = vector.broadcast %422 : vector<16x1xf32> to vector<16x16xf32>
    %424 = arith.subf %420, %423 : vector<16x16xf32>
    %425 = math.exp %424 : vector<16x16xf32>
    %cst_143 = arith.constant dense<0.000000e+00> : vector<16xf32>
    %426 = vector.multi_reduction <add>, %425, %cst_143 [1] : vector<16x16xf32> to vector<16xf32>
    %427 = vector.shape_cast %426 : vector<16xf32> to vector<16x1xf32>
    %428 = tpu.reciprocal %427 {approx = true} : vector<16x1xf32> -> vector<16x1xf32>
    %429 = vector.broadcast %428 : vector<16x1xf32> to vector<16x16xf32>
    %430 = arith.mulf %425, %429 : vector<16x16xf32>
    %431 = vector.extract_strided_slice %400 {offsets = [0, 8], sizes = [16, 8], strides = [1, 1]} : vector<16x32xf32> to vector<16x8xf32>
    %cst_144 = arith.constant dense<0.000000e+00> : vector<16x8xf32>
    %432 = tpu.matmul %430, %431, %cst_144 {dimension_numbers = #tpu.dot_dimension_numbers<[1], [0], [0], [1], [0, 0, 1, 1], [], []>} : vector<16x16xf32>, vector<16x8xf32>, vector<16x8xf32> -> vector<16x8xf32>
    %433 = vector.extract_strided_slice %398 {offsets = [0, 16], sizes = [16, 8], strides = [1, 1]} : vector<16x32xf32> to vector<16x8xf32>
    %434 = vector.extract_strided_slice %399 {offsets = [0, 16], sizes = [16, 8], strides = [1, 1]} : vector<16x32xf32> to vector<16x8xf32>
    %cst_145 = arith.constant dense<0.000000e+00> : vector<16x16xf32>
    %435 = tpu.matmul %433, %434, %cst_145 {dimension_numbers = #tpu.dot_dimension_numbers<[1], [1], [0], [0], [0, 0, 1, 0], [], []>} : vector<16x8xf32>, vector<16x8xf32>, vector<16x16xf32> -> vector<16x16xf32>
    %436 = arith.addf %435, %12 : vector<16x16xf32>
    %cst_146 = arith.constant dense<0xFF800000> : vector<16xf32>
    %437 = vector.multi_reduction <maximumf>, %436, %cst_146 [1] : vector<16x16xf32> to vector<16xf32>
    %438 = vector.shape_cast %437 : vector<16xf32> to vector<16x1xf32>
    %439 = vector.broadcast %438 : vector<16x1xf32> to vector<16x16xf32>
    %440 = arith.subf %436, %439 : vector<16x16xf32>
    %441 = math.exp %440 : vector<16x16xf32>
    %cst_147 = arith.constant dense<0.000000e+00> : vector<16xf32>
    %442 = vector.multi_reduction <add>, %441, %cst_147 [1] : vector<16x16xf32> to vector<16xf32>
    %443 = vector.shape_cast %442 : vector<16xf32> to vector<16x1xf32>
    %444 = tpu.reciprocal %443 {approx = true} : vector<16x1xf32> -> vector<16x1xf32>
    %445 = vector.broadcast %444 : vector<16x1xf32> to vector<16x16xf32>
    %446 = arith.mulf %441, %445 : vector<16x16xf32>
    %447 = vector.extract_strided_slice %400 {offsets = [0, 16], sizes = [16, 8], strides = [1, 1]} : vector<16x32xf32> to vector<16x8xf32>
    %cst_148 = arith.constant dense<0.000000e+00> : vector<16x8xf32>
    %448 = tpu.matmul %446, %447, %cst_148 {dimension_numbers = #tpu.dot_dimension_numbers<[1], [0], [0], [1], [0, 0, 1, 1], [], []>} : vector<16x16xf32>, vector<16x8xf32>, vector<16x8xf32> -> vector<16x8xf32>
    %449 = vector.extract_strided_slice %398 {offsets = [0, 24], sizes = [16, 8], strides = [1, 1]} : vector<16x32xf32> to vector<16x8xf32>
    %450 = vector.extract_strided_slice %399 {offsets = [0, 24], sizes = [16, 8], strides = [1, 1]} : vector<16x32xf32> to vector<16x8xf32>
    %cst_149 = arith.constant dense<0.000000e+00> : vector<16x16xf32>
    %451 = tpu.matmul %449, %450, %cst_149 {dimension_numbers = #tpu.dot_dimension_numbers<[1], [1], [0], [0], [0, 0, 1, 0], [], []>} : vector<16x8xf32>, vector<16x8xf32>, vector<16x16xf32> -> vector<16x16xf32>
    %452 = arith.addf %451, %12 : vector<16x16xf32>
    %cst_150 = arith.constant dense<0xFF800000> : vector<16xf32>
    %453 = vector.multi_reduction <maximumf>, %452, %cst_150 [1] : vector<16x16xf32> to vector<16xf32>
    %454 = vector.shape_cast %453 : vector<16xf32> to vector<16x1xf32>
    %455 = vector.broadcast %454 : vector<16x1xf32> to vector<16x16xf32>
    %456 = arith.subf %452, %455 : vector<16x16xf32>
    %457 = math.exp %456 : vector<16x16xf32>
    %cst_151 = arith.constant dense<0.000000e+00> : vector<16xf32>
    %458 = vector.multi_reduction <add>, %457, %cst_151 [1] : vector<16x16xf32> to vector<16xf32>
    %459 = vector.shape_cast %458 : vector<16xf32> to vector<16x1xf32>
    %460 = tpu.reciprocal %459 {approx = true} : vector<16x1xf32> -> vector<16x1xf32>
    %461 = vector.broadcast %460 : vector<16x1xf32> to vector<16x16xf32>
    %462 = arith.mulf %457, %461 : vector<16x16xf32>
    %463 = vector.extract_strided_slice %400 {offsets = [0, 24], sizes = [16, 8], strides = [1, 1]} : vector<16x32xf32> to vector<16x8xf32>
    %cst_152 = arith.constant dense<0.000000e+00> : vector<16x8xf32>
    %464 = tpu.matmul %462, %463, %cst_152 {dimension_numbers = #tpu.dot_dimension_numbers<[1], [0], [0], [1], [0, 0, 1, 1], [], []>} : vector<16x16xf32>, vector<16x8xf32>, vector<16x8xf32> -> vector<16x8xf32>
    %465 = tpu.concatenate %416, %432, %448, %464 in 1 : vector<16x8xf32>, vector<16x8xf32>, vector<16x8xf32>, vector<16x8xf32> -> vector<16x32xf32>
    %cst_153 = arith.constant dense<0.000000e+00> : vector<16x32xf32>
    %466 = tpu.matmul %465, %378, %cst_153 {dimension_numbers = #tpu.dot_dimension_numbers<[1], [0], [0], [1], [0, 0, 1, 1], [], []>} : vector<16x32xf32>, vector<32x32xf32>, vector<16x32xf32> -> vector<16x32xf32>
    %467 = vector.broadcast %386 : vector<1x32xf32> to vector<16x32xf32>
    %468 = arith.addf %466, %467 : vector<16x32xf32>
    %469 = arith.addf %374, %468 : vector<16x32xf32>
    %cst_154 = arith.constant dense<0.000000e+00> : vector<16xf32>
    %470 = vector.multi_reduction <add>, %469, %cst_154 [1] : vector<16x32xf32> to vector<16xf32>
    %471 = vector.shape_cast %470 : vector<16xf32> to vector<16x1xf32>
    %cst_155 = arith.constant 3.200000e+01 : f32
    %472 = vector.broadcast %cst_155 : f32 to vector<16x1xf32>
    %473 = arith.divf %471, %472 : vector<16x1xf32>
    %474 = vector.broadcast %473 : vector<16x1xf32> to vector<16x32xf32>
    %475 = arith.subf %469, %474 : vector<16x32xf32>
    %476 = arith.mulf %475, %475 : vector<16x32xf32>
    %cst_156 = arith.constant dense<0.000000e+00> : vector<16xf32>
    %477 = vector.multi_reduction <add>, %476, %cst_156 [1] : vector<16x32xf32> to vector<16xf32>
    %478 = vector.shape_cast %477 : vector<16xf32> to vector<16x1xf32>
    %cst_157 = arith.constant 3.200000e+01 : f32
    %479 = vector.broadcast %cst_157 : f32 to vector<16x1xf32>
    %480 = arith.divf %478, %479 : vector<16x1xf32>
    %481 = vector.broadcast %473 : vector<16x1xf32> to vector<16x32xf32>
    %482 = arith.subf %469, %481 : vector<16x32xf32>
    %cst_158 = arith.constant 9.99999997E-7 : f32
    %483 = vector.broadcast %cst_158 : f32 to vector<16x1xf32>
    %484 = arith.addf %480, %483 : vector<16x1xf32>
    %485 = math.rsqrt %484 : vector<16x1xf32>
    %486 = vector.broadcast %485 : vector<16x1xf32> to vector<16x32xf32>
    %487 = arith.mulf %482, %486 : vector<16x32xf32>
    %488 = vector.broadcast %387 : vector<1x32xf32> to vector<16x32xf32>
    %489 = arith.mulf %487, %488 : vector<16x32xf32>
    %490 = vector.broadcast %388 : vector<1x32xf32> to vector<16x32xf32>
    %491 = arith.addf %489, %490 : vector<16x32xf32>
    %cst_159 = arith.constant dense<0.000000e+00> : vector<16x64xf32>
    %492 = tpu.matmul %491, %380, %cst_159 {dimension_numbers = #tpu.dot_dimension_numbers<[1], [0], [0], [1], [0, 0, 1, 1], [], []>} : vector<16x32xf32>, vector<32x64xf32>, vector<16x64xf32> -> vector<16x64xf32>
    %493 = vector.broadcast %391 : vector<1x64xf32> to vector<16x64xf32>
    %494 = arith.addf %492, %493 : vector<16x64xf32>
    %cst_160 = arith.constant 0.000000e+00 : f32
    %495 = vector.broadcast %cst_160 : f32 to vector<16x64xf32>
    %496 = arith.maximumf %494, %495 : vector<16x64xf32>
    %cst_161 = arith.constant dense<0.000000e+00> : vector<16x32xf32>
    %497 = tpu.matmul %496, %382, %cst_161 {dimension_numbers = #tpu.dot_dimension_numbers<[1], [1], [0], [0], [0, 0, 1, 0], [], []>} : vector<16x64xf32>, vector<32x64xf32>, vector<16x32xf32> -> vector<16x32xf32>
    %498 = vector.broadcast %392 : vector<1x32xf32> to vector<16x32xf32>
    %499 = arith.addf %497, %498 : vector<16x32xf32>
    %500 = arith.addf %491, %499 : vector<16x32xf32>
    %cst_162 = arith.constant dense<0.000000e+00> : vector<16xf32>
    %501 = vector.multi_reduction <add>, %500, %cst_162 [1] : vector<16x32xf32> to vector<16xf32>
    %502 = vector.shape_cast %501 : vector<16xf32> to vector<16x1xf32>
    %cst_163 = arith.constant 3.200000e+01 : f32
    %503 = vector.broadcast %cst_163 : f32 to vector<16x1xf32>
    %504 = arith.divf %502, %503 : vector<16x1xf32>
    %505 = vector.broadcast %504 : vector<16x1xf32> to vector<16x32xf32>
    %506 = arith.subf %500, %505 : vector<16x32xf32>
    %507 = arith.mulf %506, %506 : vector<16x32xf32>
    %cst_164 = arith.constant dense<0.000000e+00> : vector<16xf32>
    %508 = vector.multi_reduction <add>, %507, %cst_164 [1] : vector<16x32xf32> to vector<16xf32>
    %509 = vector.shape_cast %508 : vector<16xf32> to vector<16x1xf32>
    %cst_165 = arith.constant 3.200000e+01 : f32
    %510 = vector.broadcast %cst_165 : f32 to vector<16x1xf32>
    %511 = arith.divf %509, %510 : vector<16x1xf32>
    %512 = vector.broadcast %504 : vector<16x1xf32> to vector<16x32xf32>
    %513 = arith.subf %500, %512 : vector<16x32xf32>
    %cst_166 = arith.constant 9.99999997E-7 : f32
    %514 = vector.broadcast %cst_166 : f32 to vector<16x1xf32>
    %515 = arith.addf %511, %514 : vector<16x1xf32>
    %516 = math.rsqrt %515 : vector<16x1xf32>
    %517 = vector.broadcast %516 : vector<16x1xf32> to vector<16x32xf32>
    %518 = arith.mulf %513, %517 : vector<16x32xf32>
    %519 = vector.broadcast %389 : vector<1x32xf32> to vector<16x32xf32>
    %520 = arith.mulf %518, %519 : vector<16x32xf32>
    %521 = vector.broadcast %390 : vector<1x32xf32> to vector<16x32xf32>
    %522 = arith.addf %520, %521 : vector<16x32xf32>
    %c3 = arith.constant 3 : index
    %c0_167 = arith.constant 0 : index
    %c0_168 = arith.constant 0 : index
    %523 = vector.load %arg1[%c3, %c0_167, %c0_168] : memref<4x32x512xf32, #tpu.memory_space<vmem>>, vector<1x32x96xf32>
    %524 = vector.shape_cast %523 : vector<1x32x96xf32> to vector<32x96xf32>
    %c3_169 = arith.constant 3 : index
    %c0_170 = arith.constant 0 : index
    %c128_171 = arith.constant 128 : index
    %525 = vector.load %arg1[%c3_169, %c0_170, %c128_171] : memref<4x32x512xf32, #tpu.memory_space<vmem>>, vector<1x32x32xf32>
    %526 = vector.shape_cast %525 : vector<1x32x32xf32> to vector<32x32xf32>
    %c3_172 = arith.constant 3 : index
    %c0_173 = arith.constant 0 : index
    %c256_174 = arith.constant 256 : index
    %527 = vector.load %arg1[%c3_172, %c0_173, %c256_174] : memref<4x32x512xf32, #tpu.memory_space<vmem>>, vector<1x32x64xf32>
    %528 = vector.shape_cast %527 : vector<1x32x64xf32> to vector<32x64xf32>
    %c3_175 = arith.constant 3 : index
    %c0_176 = arith.constant 0 : index
    %c384_177 = arith.constant 384 : index
    %529 = vector.load %arg1[%c3_175, %c0_176, %c384_177] : memref<4x32x512xf32, #tpu.memory_space<vmem>>, vector<1x32x64xf32>
    %530 = vector.shape_cast %529 : vector<1x32x64xf32> to vector<32x64xf32>
    %c3_178 = arith.constant 3 : index
    %c0_179 = arith.constant 0 : index
    %c0_180 = arith.constant 0 : index
    %531 = vector.load %arg2[%c3_178, %c0_179, %c0_180] : memref<4x8x128xf32, #tpu.memory_space<vmem>>, vector<1x8x128xf32>
    %532 = vector.shape_cast %531 : vector<1x8x128xf32> to vector<8x128xf32>
    %533 = vector.extract_strided_slice %532 {offsets = [0, 0], sizes = [1, 96], strides = [1, 1]} : vector<8x128xf32> to vector<1x96xf32>
    %534 = vector.extract_strided_slice %532 {offsets = [1, 0], sizes = [1, 32], strides = [1, 1]} : vector<8x128xf32> to vector<1x32xf32>
    %535 = vector.extract_strided_slice %532 {offsets = [2, 0], sizes = [1, 32], strides = [1, 1]} : vector<8x128xf32> to vector<1x32xf32>
    %536 = vector.extract_strided_slice %532 {offsets = [3, 0], sizes = [1, 32], strides = [1, 1]} : vector<8x128xf32> to vector<1x32xf32>
    %537 = vector.extract_strided_slice %532 {offsets = [4, 0], sizes = [1, 32], strides = [1, 1]} : vector<8x128xf32> to vector<1x32xf32>
    %538 = vector.extract_strided_slice %532 {offsets = [5, 0], sizes = [1, 32], strides = [1, 1]} : vector<8x128xf32> to vector<1x32xf32>
    %539 = vector.extract_strided_slice %532 {offsets = [6, 0], sizes = [1, 64], strides = [1, 1]} : vector<8x128xf32> to vector<1x64xf32>
    %540 = vector.extract_strided_slice %532 {offsets = [7, 0], sizes = [1, 32], strides = [1, 1]} : vector<8x128xf32> to vector<1x32xf32>
    %cst_181 = arith.constant dense<0.000000e+00> : vector<16x96xf32>
    %541 = tpu.matmul %522, %524, %cst_181 {dimension_numbers = #tpu.dot_dimension_numbers<[1], [0], [0], [1], [0, 0, 1, 1], [], []>} : vector<16x32xf32>, vector<32x96xf32>, vector<16x96xf32> -> vector<16x96xf32>
    %542 = vector.broadcast %533 : vector<1x96xf32> to vector<16x96xf32>
    %543 = arith.addf %541, %542 : vector<16x96xf32>
    %544 = vector.extract_strided_slice %543 {offsets = [0, 0], sizes = [16, 32], strides = [1, 1]} : vector<16x96xf32> to vector<16x32xf32>
    %cst_182 = arith.constant 0.353553385 : f32
    %545 = vector.broadcast %cst_182 : f32 to vector<16x32xf32>
    %546 = arith.mulf %544, %545 : vector<16x32xf32>
    %547 = vector.extract_strided_slice %543 {offsets = [0, 32], sizes = [16, 32], strides = [1, 1]} : vector<16x96xf32> to vector<16x32xf32>
    %548 = vector.extract_strided_slice %543 {offsets = [0, 64], sizes = [16, 32], strides = [1, 1]} : vector<16x96xf32> to vector<16x32xf32>
    %549 = vector.extract_strided_slice %546 {offsets = [0, 0], sizes = [16, 8], strides = [1, 1]} : vector<16x32xf32> to vector<16x8xf32>
    %550 = vector.extract_strided_slice %547 {offsets = [0, 0], sizes = [16, 8], strides = [1, 1]} : vector<16x32xf32> to vector<16x8xf32>
    %cst_183 = arith.constant dense<0.000000e+00> : vector<16x16xf32>
    %551 = tpu.matmul %549, %550, %cst_183 {dimension_numbers = #tpu.dot_dimension_numbers<[1], [1], [0], [0], [0, 0, 1, 0], [], []>} : vector<16x8xf32>, vector<16x8xf32>, vector<16x16xf32> -> vector<16x16xf32>
    %552 = arith.addf %551, %12 : vector<16x16xf32>
    %cst_184 = arith.constant dense<0xFF800000> : vector<16xf32>
    %553 = vector.multi_reduction <maximumf>, %552, %cst_184 [1] : vector<16x16xf32> to vector<16xf32>
    %554 = vector.shape_cast %553 : vector<16xf32> to vector<16x1xf32>
    %555 = vector.broadcast %554 : vector<16x1xf32> to vector<16x16xf32>
    %556 = arith.subf %552, %555 : vector<16x16xf32>
    %557 = math.exp %556 : vector<16x16xf32>
    %cst_185 = arith.constant dense<0.000000e+00> : vector<16xf32>
    %558 = vector.multi_reduction <add>, %557, %cst_185 [1] : vector<16x16xf32> to vector<16xf32>
    %559 = vector.shape_cast %558 : vector<16xf32> to vector<16x1xf32>
    %560 = tpu.reciprocal %559 {approx = true} : vector<16x1xf32> -> vector<16x1xf32>
    %561 = vector.broadcast %560 : vector<16x1xf32> to vector<16x16xf32>
    %562 = arith.mulf %557, %561 : vector<16x16xf32>
    %563 = vector.extract_strided_slice %548 {offsets = [0, 0], sizes = [16, 8], strides = [1, 1]} : vector<16x32xf32> to vector<16x8xf32>
    %cst_186 = arith.constant dense<0.000000e+00> : vector<16x8xf32>
    %564 = tpu.matmul %562, %563, %cst_186 {dimension_numbers = #tpu.dot_dimension_numbers<[1], [0], [0], [1], [0, 0, 1, 1], [], []>} : vector<16x16xf32>, vector<16x8xf32>, vector<16x8xf32> -> vector<16x8xf32>
    %565 = vector.extract_strided_slice %546 {offsets = [0, 8], sizes = [16, 8], strides = [1, 1]} : vector<16x32xf32> to vector<16x8xf32>
    %566 = vector.extract_strided_slice %547 {offsets = [0, 8], sizes = [16, 8], strides = [1, 1]} : vector<16x32xf32> to vector<16x8xf32>
    %cst_187 = arith.constant dense<0.000000e+00> : vector<16x16xf32>
    %567 = tpu.matmul %565, %566, %cst_187 {dimension_numbers = #tpu.dot_dimension_numbers<[1], [1], [0], [0], [0, 0, 1, 0], [], []>} : vector<16x8xf32>, vector<16x8xf32>, vector<16x16xf32> -> vector<16x16xf32>
    %568 = arith.addf %567, %12 : vector<16x16xf32>
    %cst_188 = arith.constant dense<0xFF800000> : vector<16xf32>
    %569 = vector.multi_reduction <maximumf>, %568, %cst_188 [1] : vector<16x16xf32> to vector<16xf32>
    %570 = vector.shape_cast %569 : vector<16xf32> to vector<16x1xf32>
    %571 = vector.broadcast %570 : vector<16x1xf32> to vector<16x16xf32>
    %572 = arith.subf %568, %571 : vector<16x16xf32>
    %573 = math.exp %572 : vector<16x16xf32>
    %cst_189 = arith.constant dense<0.000000e+00> : vector<16xf32>
    %574 = vector.multi_reduction <add>, %573, %cst_189 [1] : vector<16x16xf32> to vector<16xf32>
    %575 = vector.shape_cast %574 : vector<16xf32> to vector<16x1xf32>
    %576 = tpu.reciprocal %575 {approx = true} : vector<16x1xf32> -> vector<16x1xf32>
    %577 = vector.broadcast %576 : vector<16x1xf32> to vector<16x16xf32>
    %578 = arith.mulf %573, %577 : vector<16x16xf32>
    %579 = vector.extract_strided_slice %548 {offsets = [0, 8], sizes = [16, 8], strides = [1, 1]} : vector<16x32xf32> to vector<16x8xf32>
    %cst_190 = arith.constant dense<0.000000e+00> : vector<16x8xf32>
    %580 = tpu.matmul %578, %579, %cst_190 {dimension_numbers = #tpu.dot_dimension_numbers<[1], [0], [0], [1], [0, 0, 1, 1], [], []>} : vector<16x16xf32>, vector<16x8xf32>, vector<16x8xf32> -> vector<16x8xf32>
    %581 = vector.extract_strided_slice %546 {offsets = [0, 16], sizes = [16, 8], strides = [1, 1]} : vector<16x32xf32> to vector<16x8xf32>
    %582 = vector.extract_strided_slice %547 {offsets = [0, 16], sizes = [16, 8], strides = [1, 1]} : vector<16x32xf32> to vector<16x8xf32>
    %cst_191 = arith.constant dense<0.000000e+00> : vector<16x16xf32>
    %583 = tpu.matmul %581, %582, %cst_191 {dimension_numbers = #tpu.dot_dimension_numbers<[1], [1], [0], [0], [0, 0, 1, 0], [], []>} : vector<16x8xf32>, vector<16x8xf32>, vector<16x16xf32> -> vector<16x16xf32>
    %584 = arith.addf %583, %12 : vector<16x16xf32>
    %cst_192 = arith.constant dense<0xFF800000> : vector<16xf32>
    %585 = vector.multi_reduction <maximumf>, %584, %cst_192 [1] : vector<16x16xf32> to vector<16xf32>
    %586 = vector.shape_cast %585 : vector<16xf32> to vector<16x1xf32>
    %587 = vector.broadcast %586 : vector<16x1xf32> to vector<16x16xf32>
    %588 = arith.subf %584, %587 : vector<16x16xf32>
    %589 = math.exp %588 : vector<16x16xf32>
    %cst_193 = arith.constant dense<0.000000e+00> : vector<16xf32>
    %590 = vector.multi_reduction <add>, %589, %cst_193 [1] : vector<16x16xf32> to vector<16xf32>
    %591 = vector.shape_cast %590 : vector<16xf32> to vector<16x1xf32>
    %592 = tpu.reciprocal %591 {approx = true} : vector<16x1xf32> -> vector<16x1xf32>
    %593 = vector.broadcast %592 : vector<16x1xf32> to vector<16x16xf32>
    %594 = arith.mulf %589, %593 : vector<16x16xf32>
    %595 = vector.extract_strided_slice %548 {offsets = [0, 16], sizes = [16, 8], strides = [1, 1]} : vector<16x32xf32> to vector<16x8xf32>
    %cst_194 = arith.constant dense<0.000000e+00> : vector<16x8xf32>
    %596 = tpu.matmul %594, %595, %cst_194 {dimension_numbers = #tpu.dot_dimension_numbers<[1], [0], [0], [1], [0, 0, 1, 1], [], []>} : vector<16x16xf32>, vector<16x8xf32>, vector<16x8xf32> -> vector<16x8xf32>
    %597 = vector.extract_strided_slice %546 {offsets = [0, 24], sizes = [16, 8], strides = [1, 1]} : vector<16x32xf32> to vector<16x8xf32>
    %598 = vector.extract_strided_slice %547 {offsets = [0, 24], sizes = [16, 8], strides = [1, 1]} : vector<16x32xf32> to vector<16x8xf32>
    %cst_195 = arith.constant dense<0.000000e+00> : vector<16x16xf32>
    %599 = tpu.matmul %597, %598, %cst_195 {dimension_numbers = #tpu.dot_dimension_numbers<[1], [1], [0], [0], [0, 0, 1, 0], [], []>} : vector<16x8xf32>, vector<16x8xf32>, vector<16x16xf32> -> vector<16x16xf32>
    %600 = arith.addf %599, %12 : vector<16x16xf32>
    %cst_196 = arith.constant dense<0xFF800000> : vector<16xf32>
    %601 = vector.multi_reduction <maximumf>, %600, %cst_196 [1] : vector<16x16xf32> to vector<16xf32>
    %602 = vector.shape_cast %601 : vector<16xf32> to vector<16x1xf32>
    %603 = vector.broadcast %602 : vector<16x1xf32> to vector<16x16xf32>
    %604 = arith.subf %600, %603 : vector<16x16xf32>
    %605 = math.exp %604 : vector<16x16xf32>
    %cst_197 = arith.constant dense<0.000000e+00> : vector<16xf32>
    %606 = vector.multi_reduction <add>, %605, %cst_197 [1] : vector<16x16xf32> to vector<16xf32>
    %607 = vector.shape_cast %606 : vector<16xf32> to vector<16x1xf32>
    %608 = tpu.reciprocal %607 {approx = true} : vector<16x1xf32> -> vector<16x1xf32>
    %609 = vector.broadcast %608 : vector<16x1xf32> to vector<16x16xf32>
    %610 = arith.mulf %605, %609 : vector<16x16xf32>
    %611 = vector.extract_strided_slice %548 {offsets = [0, 24], sizes = [16, 8], strides = [1, 1]} : vector<16x32xf32> to vector<16x8xf32>
    %cst_198 = arith.constant dense<0.000000e+00> : vector<16x8xf32>
    %612 = tpu.matmul %610, %611, %cst_198 {dimension_numbers = #tpu.dot_dimension_numbers<[1], [0], [0], [1], [0, 0, 1, 1], [], []>} : vector<16x16xf32>, vector<16x8xf32>, vector<16x8xf32> -> vector<16x8xf32>
    %613 = tpu.concatenate %564, %580, %596, %612 in 1 : vector<16x8xf32>, vector<16x8xf32>, vector<16x8xf32>, vector<16x8xf32> -> vector<16x32xf32>
    %cst_199 = arith.constant dense<0.000000e+00> : vector<16x32xf32>
    %614 = tpu.matmul %613, %526, %cst_199 {dimension_numbers = #tpu.dot_dimension_numbers<[1], [0], [0], [1], [0, 0, 1, 1], [], []>} : vector<16x32xf32>, vector<32x32xf32>, vector<16x32xf32> -> vector<16x32xf32>
    %615 = vector.broadcast %534 : vector<1x32xf32> to vector<16x32xf32>
    %616 = arith.addf %614, %615 : vector<16x32xf32>
    %617 = arith.addf %522, %616 : vector<16x32xf32>
    %cst_200 = arith.constant dense<0.000000e+00> : vector<16xf32>
    %618 = vector.multi_reduction <add>, %617, %cst_200 [1] : vector<16x32xf32> to vector<16xf32>
    %619 = vector.shape_cast %618 : vector<16xf32> to vector<16x1xf32>
    %cst_201 = arith.constant 3.200000e+01 : f32
    %620 = vector.broadcast %cst_201 : f32 to vector<16x1xf32>
    %621 = arith.divf %619, %620 : vector<16x1xf32>
    %622 = vector.broadcast %621 : vector<16x1xf32> to vector<16x32xf32>
    %623 = arith.subf %617, %622 : vector<16x32xf32>
    %624 = arith.mulf %623, %623 : vector<16x32xf32>
    %cst_202 = arith.constant dense<0.000000e+00> : vector<16xf32>
    %625 = vector.multi_reduction <add>, %624, %cst_202 [1] : vector<16x32xf32> to vector<16xf32>
    %626 = vector.shape_cast %625 : vector<16xf32> to vector<16x1xf32>
    %cst_203 = arith.constant 3.200000e+01 : f32
    %627 = vector.broadcast %cst_203 : f32 to vector<16x1xf32>
    %628 = arith.divf %626, %627 : vector<16x1xf32>
    %629 = vector.broadcast %621 : vector<16x1xf32> to vector<16x32xf32>
    %630 = arith.subf %617, %629 : vector<16x32xf32>
    %cst_204 = arith.constant 9.99999997E-7 : f32
    %631 = vector.broadcast %cst_204 : f32 to vector<16x1xf32>
    %632 = arith.addf %628, %631 : vector<16x1xf32>
    %633 = math.rsqrt %632 : vector<16x1xf32>
    %634 = vector.broadcast %633 : vector<16x1xf32> to vector<16x32xf32>
    %635 = arith.mulf %630, %634 : vector<16x32xf32>
    %636 = vector.broadcast %535 : vector<1x32xf32> to vector<16x32xf32>
    %637 = arith.mulf %635, %636 : vector<16x32xf32>
    %638 = vector.broadcast %536 : vector<1x32xf32> to vector<16x32xf32>
    %639 = arith.addf %637, %638 : vector<16x32xf32>
    %cst_205 = arith.constant dense<0.000000e+00> : vector<16x64xf32>
    %640 = tpu.matmul %639, %528, %cst_205 {dimension_numbers = #tpu.dot_dimension_numbers<[1], [0], [0], [1], [0, 0, 1, 1], [], []>} : vector<16x32xf32>, vector<32x64xf32>, vector<16x64xf32> -> vector<16x64xf32>
    %641 = vector.broadcast %539 : vector<1x64xf32> to vector<16x64xf32>
    %642 = arith.addf %640, %641 : vector<16x64xf32>
    %cst_206 = arith.constant 0.000000e+00 : f32
    %643 = vector.broadcast %cst_206 : f32 to vector<16x64xf32>
    %644 = arith.maximumf %642, %643 : vector<16x64xf32>
    %cst_207 = arith.constant dense<0.000000e+00> : vector<16x32xf32>
    %645 = tpu.matmul %644, %530, %cst_207 {dimension_numbers = #tpu.dot_dimension_numbers<[1], [1], [0], [0], [0, 0, 1, 0], [], []>} : vector<16x64xf32>, vector<32x64xf32>, vector<16x32xf32> -> vector<16x32xf32>
    %646 = vector.broadcast %540 : vector<1x32xf32> to vector<16x32xf32>
    %647 = arith.addf %645, %646 : vector<16x32xf32>
    %648 = arith.addf %639, %647 : vector<16x32xf32>
    %cst_208 = arith.constant dense<0.000000e+00> : vector<16xf32>
    %649 = vector.multi_reduction <add>, %648, %cst_208 [1] : vector<16x32xf32> to vector<16xf32>
    %650 = vector.shape_cast %649 : vector<16xf32> to vector<16x1xf32>
    %cst_209 = arith.constant 3.200000e+01 : f32
    %651 = vector.broadcast %cst_209 : f32 to vector<16x1xf32>
    %652 = arith.divf %650, %651 : vector<16x1xf32>
    %653 = vector.broadcast %652 : vector<16x1xf32> to vector<16x32xf32>
    %654 = arith.subf %648, %653 : vector<16x32xf32>
    %655 = arith.mulf %654, %654 : vector<16x32xf32>
    %cst_210 = arith.constant dense<0.000000e+00> : vector<16xf32>
    %656 = vector.multi_reduction <add>, %655, %cst_210 [1] : vector<16x32xf32> to vector<16xf32>
    %657 = vector.shape_cast %656 : vector<16xf32> to vector<16x1xf32>
    %cst_211 = arith.constant 3.200000e+01 : f32
    %658 = vector.broadcast %cst_211 : f32 to vector<16x1xf32>
    %659 = arith.divf %657, %658 : vector<16x1xf32>
    %660 = vector.broadcast %652 : vector<16x1xf32> to vector<16x32xf32>
    %661 = arith.subf %648, %660 : vector<16x32xf32>
    %cst_212 = arith.constant 9.99999997E-7 : f32
    %662 = vector.broadcast %cst_212 : f32 to vector<16x1xf32>
    %663 = arith.addf %659, %662 : vector<16x1xf32>
    %664 = math.rsqrt %663 : vector<16x1xf32>
    %665 = vector.broadcast %664 : vector<16x1xf32> to vector<16x32xf32>
    %666 = arith.mulf %661, %665 : vector<16x32xf32>
    %667 = vector.broadcast %537 : vector<1x32xf32> to vector<16x32xf32>
    %668 = arith.mulf %666, %667 : vector<16x32xf32>
    %669 = vector.broadcast %538 : vector<1x32xf32> to vector<16x32xf32>
    %670 = arith.addf %668, %669 : vector<16x32xf32>
    %c0_213 = arith.constant 0 : index
    %c0_214 = arith.constant 0 : index
    %671 = vector.load %arg3[%c0_213, %c0_214] : memref<32x896xf32, #tpu.memory_space<vmem>>, vector<32x896xf32>
    %cst_215 = arith.constant dense<0.000000e+00> : vector<16x896xf32>
    %672 = tpu.matmul %670, %671, %cst_215 {dimension_numbers = #tpu.dot_dimension_numbers<[1], [0], [0], [1], [0, 0, 1, 1], [], []>} : vector<16x32xf32>, vector<32x896xf32>, vector<16x896xf32> -> vector<16x896xf32>
    %673 = vector.extract_strided_slice %672 {offsets = [0, 0], sizes = [1, 128], strides = [1, 1]} : vector<16x896xf32> to vector<1x128xf32>
    %674 = vector.extract_strided_slice %672 {offsets = [1, 128], sizes = [1, 128], strides = [1, 1]} : vector<16x896xf32> to vector<1x128xf32>
    %675 = vector.extract_strided_slice %672 {offsets = [2, 256], sizes = [1, 128], strides = [1, 1]} : vector<16x896xf32> to vector<1x128xf32>
    %676 = vector.extract_strided_slice %672 {offsets = [3, 384], sizes = [1, 128], strides = [1, 1]} : vector<16x896xf32> to vector<1x128xf32>
    %677 = vector.extract_strided_slice %672 {offsets = [4, 512], sizes = [1, 128], strides = [1, 1]} : vector<16x896xf32> to vector<1x128xf32>
    %678 = vector.extract_strided_slice %672 {offsets = [5, 640], sizes = [1, 128], strides = [1, 1]} : vector<16x896xf32> to vector<1x128xf32>
    %679 = vector.extract_strided_slice %672 {offsets = [6, 768], sizes = [1, 128], strides = [1, 1]} : vector<16x896xf32> to vector<1x128xf32>
    %680 = arith.addf %673, %674 : vector<1x128xf32>
    %681 = arith.addf %675, %676 : vector<1x128xf32>
    %682 = arith.addf %677, %678 : vector<1x128xf32>
    %683 = arith.addf %680, %681 : vector<1x128xf32>
    %684 = arith.addf %682, %679 : vector<1x128xf32>
    %685 = arith.addf %683, %684 : vector<1x128xf32>
    %686 = vector.extract_strided_slice %672 {offsets = [8, 0], sizes = [1, 128], strides = [1, 1]} : vector<16x896xf32> to vector<1x128xf32>
    %687 = vector.extract_strided_slice %672 {offsets = [9, 128], sizes = [1, 128], strides = [1, 1]} : vector<16x896xf32> to vector<1x128xf32>
    %688 = vector.extract_strided_slice %672 {offsets = [10, 256], sizes = [1, 128], strides = [1, 1]} : vector<16x896xf32> to vector<1x128xf32>
    %689 = vector.extract_strided_slice %672 {offsets = [11, 384], sizes = [1, 128], strides = [1, 1]} : vector<16x896xf32> to vector<1x128xf32>
    %690 = vector.extract_strided_slice %672 {offsets = [12, 512], sizes = [1, 128], strides = [1, 1]} : vector<16x896xf32> to vector<1x128xf32>
    %691 = vector.extract_strided_slice %672 {offsets = [13, 640], sizes = [1, 128], strides = [1, 1]} : vector<16x896xf32> to vector<1x128xf32>
    %692 = vector.extract_strided_slice %672 {offsets = [14, 768], sizes = [1, 128], strides = [1, 1]} : vector<16x896xf32> to vector<1x128xf32>
    %693 = arith.addf %686, %687 : vector<1x128xf32>
    %694 = arith.addf %688, %689 : vector<1x128xf32>
    %695 = arith.addf %690, %691 : vector<1x128xf32>
    %696 = arith.addf %693, %694 : vector<1x128xf32>
    %697 = arith.addf %695, %692 : vector<1x128xf32>
    %698 = arith.addf %696, %697 : vector<1x128xf32>
    %699 = tpu.concatenate %685, %698 in 0 : vector<1x128xf32>, vector<1x128xf32> -> vector<2x128xf32>
    %700 = vector.broadcast %15 : vector<1x128xf32> to vector<2x128xf32>
    %701 = arith.addf %699, %700 : vector<2x128xf32>
    %cst_216 = arith.constant dense<0xFF800000> : vector<2xf32>
    %702 = vector.multi_reduction <maximumf>, %701, %cst_216 [1] : vector<2x128xf32> to vector<2xf32>
    %703 = vector.shape_cast %702 : vector<2xf32> to vector<2x1xf32>
    %704 = vector.broadcast %703 : vector<2x1xf32> to vector<2x128xf32>
    %705 = arith.subf %701, %704 : vector<2x128xf32>
    %706 = math.exp %705 : vector<2x128xf32>
    %c0_217 = arith.constant 0 : index
    %c0_218 = arith.constant 0 : index
    %707 = vector.load %arg4[%c0_217, %c0_218] : memref<264x128xf32, #tpu.memory_space<vmem>>, vector<128x128xf32>
    %cst_219 = arith.constant dense<0.000000e+00> : vector<2x128xf32>
    %708 = tpu.matmul %706, %707, %cst_219 {dimension_numbers = #tpu.dot_dimension_numbers<[1], [0], [0], [1], [0, 0, 1, 1], [], []>} : vector<2x128xf32>, vector<128x128xf32>, vector<2x128xf32> -> vector<2x128xf32>
    %709 = arith.divf %706, %708 : vector<2x128xf32>
    %710 = arith.subf %709, %1 : vector<2x128xf32>
    %711 = arith.mulf %710, %710 : vector<2x128xf32>
    %c128_220 = arith.constant 128 : index
    %c0_221 = arith.constant 0 : index
    %712 = vector.load %arg4[%c128_220, %c0_221] : memref<264x128xf32, #tpu.memory_space<vmem>>, vector<128x128xf32>
    %cst_222 = arith.constant dense<0.000000e+00> : vector<2x128xf32>
    %713 = tpu.matmul %711, %712, %cst_222 {dimension_numbers = #tpu.dot_dimension_numbers<[1], [0], [0], [1], [0, 0, 1, 1], [], []>} : vector<2x128xf32>, vector<128x128xf32>, vector<2x128xf32> -> vector<2x128xf32>
    %cst_223 = arith.constant dense<0.000000e+00> : vector<2xf32>
    %714 = vector.multi_reduction <add>, %713, %cst_223 [1] : vector<2x128xf32> to vector<2xf32>
    %715 = vector.shape_cast %714 : vector<2xf32> to vector<2x1xf32>
    %cst_224 = arith.constant 6.250000e-02 : f32
    %716 = vector.broadcast %cst_224 : f32 to vector<2x1xf32>
    %717 = arith.mulf %715, %716 : vector<2x1xf32>
    %718 = arith.addf %717, %367 : vector<2x1xf32>
    %cst_225 = arith.constant 0.0714285746 : f32
    %719 = vector.broadcast %cst_225 : f32 to vector<1x16xf32>
    %720 = arith.mulf %350, %719 : vector<1x16xf32>
    %cst_226 = arith.constant 1.000000e-10 : f32
    %721 = vector.broadcast %cst_226 : f32 to vector<1x16xf32>
    %722 = arith.addf %720, %721 : vector<1x16xf32>
    %723 = math.log %722 : vector<1x16xf32>
    %724 = arith.mulf %720, %723 : vector<1x16xf32>
    %cst_227 = arith.constant dense<0.000000e+00> : vector<1xf32>
    %725 = vector.multi_reduction <add>, %724, %cst_227 [1] : vector<1x16xf32> to vector<1xf32>
    %726 = vector.shape_cast %725 : vector<1xf32> to vector<1x1xf32>
    %cst_228 = arith.constant 0.000000e+00 : f32
    %727 = vector.broadcast %cst_228 : f32 to vector<1x1xf32>
    %728 = arith.subf %727, %726 : vector<1x1xf32>
    %729 = math.exp %728 : vector<1x1xf32>
    %730 = vector.broadcast %717 : vector<2x1xf32> to vector<2x128xf32>
    %731 = vector.broadcast %16 : vector<1x128xf32> to vector<2x128xf32>
    %732 = arith.mulf %730, %731 : vector<2x128xf32>
    %733 = arith.addf %713, %732 : vector<2x128xf32>
    %734 = vector.broadcast %718 : vector<2x1xf32> to vector<2x128xf32>
    %735 = vector.broadcast %17 : vector<1x128xf32> to vector<2x128xf32>
    %736 = arith.mulf %734, %735 : vector<2x128xf32>
    %737 = arith.addf %733, %736 : vector<2x128xf32>
    %738 = vector.broadcast %367 : vector<2x1xf32> to vector<2x128xf32>
    %739 = vector.broadcast %18 : vector<1x128xf32> to vector<2x128xf32>
    %740 = arith.mulf %738, %739 : vector<2x128xf32>
    %741 = arith.addf %737, %740 : vector<2x128xf32>
    %742 = vector.broadcast %729 : vector<1x1xf32> to vector<1x128xf32>
    %743 = arith.mulf %742, %19 : vector<1x128xf32>
    %744 = vector.broadcast %743 : vector<1x128xf32> to vector<2x128xf32>
    %745 = arith.addf %741, %744 : vector<2x128xf32>
    %746 = tpu.concatenate %709, %711, %745 in 0 : vector<2x128xf32>, vector<2x128xf32>, vector<2x128xf32> -> vector<6x128xf32>
    %c0_229 = arith.constant 0 : index
    %c0_230 = arith.constant 0 : index
    %747 = vector.load %arg6[%c0_229, %c0_230] : memref<24x128xf32, #tpu.memory_space<vmem>>, vector<6x128xf32>
    tpu.vector_store %arg6[%c0_229, %c0_230], %746 {strides = array<i32>} : memref<24x128xf32, #tpu.memory_space<vmem>>, vector<6x128xf32>,
    return
  }
}

</mosaic_0001>

<llo_original>
// kernel: abnativ_forward.1
$region0: #{abnativ_forward.1}
  #allocation0 [shape = 'u32[]', space=smem, size = 0x4, offset = 0x4, fixed_abs, tag = 'smem constant byte address 0x4 - core index']
  #allocation1 [shape = 'u32[144,128]{1,0:T(1,128)}', space=vmem, size = 0x12000, scoped, tag = 'internal scratch']
  %s0 = inlined_call_operand.vmem [shape: f32[18,128], index: 0, kind: input, shape index: {}]
  %s1 = inlined_call_operand.vmem [shape: f32[4,32,512], index: 1, kind: input, shape index: {}]
  %s2 = inlined_call_operand.hbm [shape: f32[4,8,128], index: 2, kind: input, shape index: {}]
  %s3 = inlined_call_operand.vmem [shape: f32[32,896], index: 3, kind: input, shape index: {}]
  %s4 = inlined_call_operand.hbm [shape: f32[264,128], index: 4, kind: input, shape index: {}]
  %s5 = inlined_call_operand.vmem [shape: f32[152,32], index: 5, kind: input, shape index: {}]
  %s6 = inlined_call_operand.vmem [shape: f32[24,128], index: 6, kind: output, shape index: {0}]
  %s7 = inlined_call_operand.vmem [shape: s32[16,1], index: 7, kind: output, shape index: {1}]
  %8 = xla_tuple %s6, %s7
  %s9 = sld [smem:[#allocation0]]
  $region50: #{abnativ_forward.1} parent=0
    _
  %s11 = ssub.s32 1, %s9
  %s12 = scalar_select 0, %s11, %s9
  $region1: #{abnativ_forward.1} parent=0
    #allocation2 [shape = 'u8[16384]{0}', space=vmem, size = 0x4000, scoped, tag = 'input window, operand 2, single buffered']
    #allocation3 [shape = 's32[1]{0}', space=sflag, size = 0x4, scoped, tag = 'scoped memory for abnativ_forward.1']
    #allocation4 [shape = 'u8[135168]{0}', space=vmem, size = 0x21000, scoped, tag = 'input window, operand 4, single buffered']
    #allocation5 [shape = 's32[1]{0}', space=sflag, size = 0x4, scoped, tag = 'scoped memory for abnativ_forward.1']
    %13 = vsyncpa [#allocation3], 0
    %14 = vsyncpa [#allocation5], 0
    // Predicated region
    $region2: #{abnativ_forward.1} parent=1 // pred_check
      _
    $region3: #{abnativ_forward.1} parent=1 // pred_check_branch
      %16 = sbr.rel (0) target = $region5
    $region4: #{abnativ_forward.1} parent=1 // pred_region
      _
    $region5: #{abnativ_forward.1} parent=1 // pred_fallthru
      _
    // Predicated region
    $region6: #{abnativ_forward.1} parent=1 // pred_check
      _
    $region7: #{abnativ_forward.1} parent=1 // pred_check_branch
      %18 = sbr.rel (0) target = $region9
    $region8: #{abnativ_forward.1} parent=1 // pred_region
      _
    $region9: #{abnativ_forward.1} parent=1 // pred_fallthru
      _
    // Predicated region
    $region10: #{abnativ_forward.1} parent=1 // pred_check
      _
    $region11: #{abnativ_forward.1} parent=1 // pred_check_branch
      %20 = sbr.rel (0) target = $region13
    $region12: #{abnativ_forward.1} parent=1 // pred_region
      %s22 = ssub.s32 512, 512
      %23 = vsyncadd [#allocation3], %s22
      %s24 = sshll.u32 [#allocation2], 4
      %s25 = int_to_ptr.vmem [resolvable:$true] %s24
      %30 = dma.hbm_to_vmem [thread:$0]  %s2, 512, %s25, [#allocation3], 128, 128, 8
    $region13: #{abnativ_forward.1} parent=1 // pred_fallthru
      _
    // Predicated region
    $region14: #{abnativ_forward.1} parent=1 // pred_check
      _
    $region15: #{abnativ_forward.1} parent=1 // pred_check_branch
      %32 = sbr.rel (0) target = $region17
    $region16: #{abnativ_forward.1} parent=1 // pred_region
      _
    $region17: #{abnativ_forward.1} parent=1 // pred_fallthru
      _
    // Predicated region
    $region18: #{abnativ_forward.1} parent=1 // pred_check
      _
    $region19: #{abnativ_forward.1} parent=1 // pred_check_branch
      %34 = sbr.rel (0) target = $region21
    $region20: #{abnativ_forward.1} parent=1 // pred_region
      %s36 = ssub.s32 4224, 4224
      %37 = vsyncadd [#allocation5], %s36
      %s38 = sshll.u32 [#allocation4], 4
      %s39 = int_to_ptr.vmem [resolvable:$true] %s38
      %44 = dma.hbm_to_vmem [thread:$0]  %s4, 4224, %s39, [#allocation5], 128, 128, 8
    $region21: #{abnativ_forward.1} parent=1 // pred_fallthru
      _
    // Predicated region
    $region22: #{abnativ_forward.1} parent=1 // pred_check
      _
    $region23: #{abnativ_forward.1} parent=1 // pred_check_branch
      %46 = sbr.rel (0) target = $region25
    $region24: #{abnativ_forward.1} parent=1 // pred_region
      _
    $region25: #{abnativ_forward.1} parent=1 // pred_fallthru
      _
    // Predicated region
    $region26: #{abnativ_forward.1} parent=1 // pred_check
      _
    $region27: #{abnativ_forward.1} parent=1 // pred_check_branch
      %48 = sbr.rel (0) target = $region29
    $region28: #{abnativ_forward.1} parent=1 // pred_region
      %49 = dma.done [#allocation3], 512
    $region29: #{abnativ_forward.1} parent=1 // pred_fallthru
      _
    // Predicated region
    $region30: #{abnativ_forward.1} parent=1 // pred_check
      _
    $region31: #{abnativ_forward.1} parent=1 // pred_check_branch
      %51 = sbr.rel (0) target = $region33
    $region32: #{abnativ_forward.1} parent=1 // pred_region
      %52 = dma.done [#allocation5], 4224
    $region33: #{abnativ_forward.1} parent=1 // pred_fallthru
      _
    %v53 = vld [vmem:[%s0] sm:$0xff]
    %v54 = vld [vmem:[%s0 + $0x8] sm:$0xff]
    %v55 = vld [vmem:[%s0 + $0x10] sm:$0x3]
    %v56 = vld [vmem:[%s5] sm:$0xff]
    %v57 = vld [vmem:[%s5 + $0x8] sm:$0xff]
    %v58 = vld [vmem:[%s5 + $0x10] sm:$0xff]
    %v59 = vld [vmem:[%s5 + $0x18] sm:$0xff]
    %v60 = vld [vmem:[%s5 + $0x20] sm:$0xff]
    %v61 = vld [vmem:[%s5 + $0x28] sm:$0xff]
    %v62 = vld [vmem:[%s5 + $0x30] sm:$0xff]
    %v63 = vld [vmem:[%s5 + $0x38] sm:$0xff]
    %v64 = vld [vmem:[%s5 + $0x40] sm:$0xff]
    %v65 = vld [vmem:[%s5 + $0x48] sm:$0xff]
    %v66 = vld [vmem:[%s5 + $0x50] sm:$0xff]
    %v67 = vld [vmem:[%s5 + $0x58] sm:$0xff]
    %v68 = vld [vmem:[%s5 + $0x60] sm:$0xff]
    %v69 = vld [vmem:[%s5 + $0x68] sm:$0xff]
    %v70 = vld [vmem:[%s5 + $0x70] sm:$0xff]
    %v71 = vld [vmem:[%s5 + $0x78] sm:$0xff]
    %v72 = vld [vmem:[%s5 + $0x80] sm:$0xff]
    %v73 = vld [vmem:[%s5 + $0x88] sm:$0xff]
    %v74 = vld [vmem:[%s5 + $0x90] sm:$0xff]
    %v75 = vld [vmem:[#allocation4 + $0x100] sm:$0xff]
    %v76 = vlaneseq
    %v77 = vshrl.u32 %v76, 7
    %v78 = vsub.s32 0, %v77
    %v79 = vrot.slane %v70, %v78
    %vm80 = vcmask 261120
    %v82 = vsel %vm80, %v53, 0
    %v85 = vsel %vm80, %v54, 0
    %87 = vmatprep.subr.mxu0 0.0
    %88 = vmatpush1.msra.mxu0 %v56
    %89 = vmatprep.subr.mxu0 0.0
    %90 = vmatpush1.msra.mxu0 %v57
    %91 = vmatprep.subr.mxu0 0.0
    %92 = vmatpush1.msra.mxu0 %v58
    %93 = vmatprep.subr.mxu0 0.0
    %94 = vmatpush1.msra.mxu0 %v59
    %95 = vmatprep.subr.mxu0 0.0
    %96 = vmatpush1.msra.mxu0 0.0
    %97 = vmatprep.subr.mxu0 0.0
    %98 = vmatpush1.msra.mxu0 0.0
    %99 = vmatprep.subr.mxu0 0.0
    %100 = vmatpush1.msra.mxu0 0.0
    %101 = vmatprep.subr.mxu0 0.0
    %102 = vmatpush1.msra.mxu0 0.0
    %103 = vmatprep.subr.mxu0 0.0
    %104 = vmatpush1.msra.mxu0 0.0
    %105 = vmatprep.subr.mxu0 0.0
    %106 = vmatpush1.msra.mxu0 0.0
    %107 = vmatprep.subr.mxu0 0.0
    %108 = vmatpush1.msra.mxu0 0.0
    %109 = vmatprep.subr.mxu0 0.0
    %110 = vmatpush1.msra.mxu0 0.0
    %111 = vmatprep.subr.mxu0 0.0
    %112 = vmatpush1.msra.mxu0 0.0
    %113 = vmatprep.subr.mxu0 0.0
    %114 = vmatpush1.msra.mxu0 0.0
    %115 = vmatprep.subr.mxu0 0.0
    %116 = vmatpush1.msra.mxu0 0.0
    %117 = vmatprep.subr.mxu0 0.0
    %118 = vmatpush1.msra.mxu0 0.0
    %119 = vmatprep.subr.mxu0 0.0
    %120 = vmatpush1.msra.mxu0 0.0
    %121 = vmatprep.subr.mxu0 0.0
    %122 = vmatpush1.msra.mxu0 0.0
    %123 = vmatprep.subr.mxu0 0.0
    %124 = vmatpush1.msra.mxu0 0.0
    %125 = vmatprep.subr.mxu0 0.0
    %126 = vmatpush1.msra.mxu0 0.0
    %127 = vmatprep.subr.mxu0 0.0
    %128 = vmatpush1.msra.mxu0 0.0
    %129 = vmatprep.subr.mxu0 0.0
    %130 = vmatpush1.msra.mxu0 0.0
    %131 = vmatprep.subr.mxu0 0.0
    %132 = vmatpush1.msra.mxu0 0.0
    %133 = vmatprep.subr.mxu0 0.0
    %134 = vmatpush1.msra.mxu0 0.0
    %135 = vmatprep.subr.mxu0 0.0
    %136 = vmatpush1.msra.mxu0 0.0
    %137 = vmatprep.subr.mxu0 0.0
    %138 = vmatpush1.msra.mxu0 0.0
    %139 = vmatprep.subr.mxu0 0.0
    %140 = vmatpush1.msra.mxu0 0.0
    %141 = vmatprep.subr.mxu0 0.0
    %142 = vmatpush1.msra.mxu0 0.0
    %143 = vmatprep.subr.mxu0 0.0
    %144 = vmatpush1.msra.mxu0 0.0
    %145 = vmatprep.subr.mxu0 0.0
    %146 = vmatpush1.msra.mxu0 0.0
    %147 = vmatprep.subr.mxu0 0.0
    %148 = vmatpush1.msra.mxu0 0.0
    %149 = vmatprep.subr.mxu0 0.0
    %150 = vmatpush1.msra.mxu0 0.0
    %151 = vmatprep.mubr.f32.mxu0 0.0
    %152 = vmatmul.mubr.f32.gmra.mrb[0].mxu0 %v82
    %v153 = vpop.f32.mrb[0].mxu0
    %v154 = vadd.f32 %v79, %v153
    %v155 = vpop.f32.mrb[0].mxu0
    %156 = vmatprep.mubr.f32.mxu0 0.0
    %157 = vmatmul.mubr.f32.gmra.mrb[0].mxu0 %v85
    %v158 = vpop.f32.mrb[0].mxu0
    %v159 = vadd.f32 %v79, %v158
    %v160 = vpop.f32.mrb[0].mxu0
    %161 = vdwg.mxu0
    %v162 = vadd.f32 %v154, %v60
    %v163 = vadd.f32 %v159, %v61
    %v164 = vld [vmem:[%s1] sm:$0xff]
    %v165 = vld [vmem:[%s1 + $0x20] sm:$0xff]
    %v166 = vld [vmem:[%s1 + $0x40] sm:$0xff]
    %v167 = vld [vmem:[%s1 + $0x60] sm:$0xff]
    %v168 = vld [vmem:[%s1 + $0x8] sm:$0xff]
    %v169 = vld [vmem:[%s1 + $0x28] sm:$0xff]
    %v170 = vld [vmem:[%s1 + $0x48] sm:$0xff]
    %v171 = vld [vmem:[%s1 + $0x68] sm:$0xff]
    %v172 = vld [vmem:[%s1 + $0x10] sm:$0xff]
    %v173 = vld [vmem:[%s1 + $0x30] sm:$0xff]
    %v174 = vld [vmem:[%s1 + $0x50] sm:$0xff]
    %v175 = vld [vmem:[%s1 + $0x70] sm:$0xff]
    %v176 = vld [vmem:[%s1 + $0x18] sm:$0xff]
    %v177 = vld [vmem:[%s1 + $0x38] sm:$0xff]
    %v178 = vld [vmem:[%s1 + $0x58] sm:$0xff]
    %v179 = vld [vmem:[%s1 + $0x78] sm:$0xff]
    %v180 = vld [vmem:[#allocation2] sm:$0xff]
    %v181 = vlaneseq
    %v182 = vshrl.u32 %v181, 7
    %v183 = vsub.s32 0, %v182
    %v184 = vrot.slane %v180, %v183
    %v186 = vsel %vm80, %v162, 0
    %v189 = vsel %vm80, %v163, 0
    %191 = vmatprep.subr.mxu0 0.0
    %192 = vmatpush1.msra.mxu0 %v164
    %193 = vmatprep.subr.mxu0 0.0
    %194 = vmatpush1.msra.mxu0 %v165
    %195 = vmatprep.subr.mxu0 0.0
    %196 = vmatpush1.msra.mxu0 %v166
    %197 = vmatprep.subr.mxu0 0.0
    %198 = vmatpush1.msra.mxu0 %v167
    %199 = vmatprep.subr.mxu0 0.0
    %200 = vmatpush1.msra.mxu0 0.0
    %201 = vmatprep.subr.mxu0 0.0
    %202 = vmatpush1.msra.mxu0 0.0
    %203 = vmatprep.subr.mxu0 0.0
    %204 = vmatpush1.msra.mxu0 0.0
    %205 = vmatprep.subr.mxu0 0.0
    %206 = vmatpush1.msra.mxu0 0.0
    %207 = vmatprep.subr.mxu0 0.0
    %208 = vmatpush1.msra.mxu0 0.0
    %209 = vmatprep.subr.mxu0 0.0
    %210 = vmatpush1.msra.mxu0 0.0
    %211 = vmatprep.subr.mxu0 0.0
    %212 = vmatpush1.msra.mxu0 0.0
    %213 = vmatprep.subr.mxu0 0.0
    %214 = vmatpush1.msra.mxu0 0.0
    %215 = vmatprep.subr.mxu0 0.0
    %216 = vmatpush1.msra.mxu0 0.0
    %217 = vmatprep.subr.mxu0 0.0
    %218 = vmatpush1.msra.mxu0 0.0
    %219 = vmatprep.subr.mxu0 0.0
    %220 = vmatpush1.msra.mxu0 0.0
    %221 = vmatprep.subr.mxu0 0.0
    %222 = vmatpush1.msra.mxu0 0.0
    %223 = vmatprep.subr.mxu0 0.0
    %224 = vmatpush1.msra.mxu0 0.0
    %225 = vmatprep.subr.mxu0 0.0
    %226 = vmatpush1.msra.mxu0 0.0
    %227 = vmatprep.subr.mxu0 0.0
    %228 = vmatpush1.msra.mxu0 0.0
    %229 = vmatprep.subr.mxu0 0.0
    %230 = vmatpush1.msra.mxu0 0.0
    %231 = vmatprep.subr.mxu0 0.0
    %232 = vmatpush1.msra.mxu0 0.0
    %233 = vmatprep.subr.mxu0 0.0
    %234 = vmatpush1.msra.mxu0 0.0
    %235 = vmatprep.subr.mxu0 0.0
    %236 = vmatpush1.msra.mxu0 0.0
    %237 = vmatprep.subr.mxu0 0.0
    %238 = vmatpush1.msra.mxu0 0.0
    %239 = vmatprep.subr.mxu0 0.0
    %240 = vmatpush1.msra.mxu0 0.0
    %241 = vmatprep.subr.mxu0 0.0
    %242 = vmatpush1.msra.mxu0 0.0
    %243 = vmatprep.subr.mxu0 0.0
    %244 = vmatpush1.msra.mxu0 0.0
    %245 = vmatprep.subr.mxu0 0.0
    %246 = vmatpush1.msra.mxu0 0.0
    %247 = vmatprep.subr.mxu0 0.0
    %248 = vmatpush1.msra.mxu0 0.0
    %249 = vmatprep.subr.mxu0 0.0
    %250 = vmatpush1.msra.mxu0 0.0
    %251 = vmatprep.subr.mxu0 0.0
    %252 = vmatpush1.msra.mxu0 0.0
    %253 = vmatprep.subr.mxu0 0.0
    %254 = vmatpush1.msra.mxu0 0.0
    %255 = vmatprep.mubr.f32.mxu0 0.0
    %256 = vmatmul.mubr.f32.gmra.mrb[0].mxu0 %v186
    %v257 = vpop.f32.mrb[0].mxu0
    %v258 = vadd.f32 %v184, %v257
    %v259 = vpop.f32.mrb[0].mxu0
    %260 = vmatprep.mubr.f32.mxu0 0.0
    %261 = vmatmul.mubr.f32.gmra.mrb[0].mxu0 %v189
    %v262 = vpop.f32.mrb[0].mxu0
    %v263 = vadd.f32 %v184, %v262
    %v264 = vpop.f32.mrb[0].mxu0
    %265 = vdwg.mxu0
    %v266 = vmul.f32 %v258, 0.35355338
    %v267 = vmul.f32 %v263, 0.35355338
    %270 = vrot.lane.b32.xlu0 %v258, 96
    %v271 = vpop.permute.xlu0 %270
    %272 = vrot.lane.b32.xlu0 %v263, 96
    %v273 = vpop.permute.xlu0 %272
    %vm274 = vcmask 64512
    %v276 = vsel %vm274, %v266, 0
    %v279 = vsel %vm274, %v267, 0
    %v281 = vsel %vm274, %v271, 0
    %v283 = vsel %vm274, %v273, 0
    %285 = vmatprep.subr.mxu0 0.0
    %286 = vmatpush1.xpose.msra.mxu0 %v281
    %287 = vmatprep.subr.mxu0 0.0
    %288 = vmatpush1.xpose.msra.mxu0 %v283
    %289 = vmatprep.subr.mxu0 0.0
    %290 = vmatpush1.xpose.msra.mxu0 0.0
    %291 = vmatprep.subr.mxu0 0.0
    %292 = vmatpush1.xpose.msra.mxu0 0.0
    %293 = vmatprep.subr.mxu0 0.0
    %294 = vmatpush1.xpose.msra.mxu0 0.0
    %295 = vmatprep.subr.mxu0 0.0
    %296 = vmatpush1.xpose.msra.mxu0 0.0
    %297 = vmatprep.subr.mxu0 0.0
    %298 = vmatpush1.xpose.msra.mxu0 0.0
    %299 = vmatprep.subr.mxu0 0.0
    %300 = vmatpush1.xpose.msra.mxu0 0.0
    %301 = vmatprep.subr.mxu0 0.0
    %302 = vmatpush1.xpose.msra.mxu0 0.0
    %303 = vmatprep.subr.mxu0 0.0
    %304 = vmatpush1.xpose.msra.mxu0 0.0
    %305 = vmatprep.subr.mxu0 0.0
    %306 = vmatpush1.xpose.msra.mxu0 0.0
    %307 = vmatprep.subr.mxu0 0.0
    %308 = vmatpush1.xpose.msra.mxu0 0.0
    %309 = vmatprep.subr.mxu0 0.0
    %310 = vmatpush1.xpose.msra.mxu0 0.0
    %311 = vmatprep.subr.mxu0 0.0
    %312 = vmatpush1.xpose.msra.mxu0 0.0
    %313 = vmatprep.subr.mxu0 0.0
    %314 = vmatpush1.xpose.msra.mxu0 0.0
    %315 = vmatprep.subr.mxu0 0.0
    %316 = vmatpush1.xpose.msra.mxu0 0.0
    %317 = vmatprep.subr.mxu0 0.0
    %318 = vmatpush1.xpose.msra.mxu0 0.0
    %319 = vmatprep.subr.mxu0 0.0
    %320 = vmatpush1.xpose.msra.mxu0 0.0
    %321 = vmatprep.subr.mxu0 0.0
    %322 = vmatpush1.xpose.msra.mxu0 0.0
    %323 = vmatprep.subr.mxu0 0.0
    %324 = vmatpush1.xpose.msra.mxu0 0.0
    %325 = vmatprep.subr.mxu0 0.0
    %326 = vmatpush1.xpose.msra.mxu0 0.0
    %327 = vmatprep.subr.mxu0 0.0
    %328 = vmatpush1.xpose.msra.mxu0 0.0
    %329 = vmatprep.subr.mxu0 0.0
    %330 = vmatpush1.xpose.msra.mxu0 0.0
    %331 = vmatprep.subr.mxu0 0.0
    %332 = vmatpush1.xpose.msra.mxu0 0.0
    %333 = vmatprep.subr.mxu0 0.0
    %334 = vmatpush1.xpose.msra.mxu0 0.0
    %335 = vmatprep.subr.mxu0 0.0
    %336 = vmatpush1.xpose.msra.mxu0 0.0
    %337 = vmatprep.subr.mxu0 0.0
    %338 = vmatpush1.xpose.msra.mxu0 0.0
    %339 = vmatprep.subr.mxu0 0.0
    %340 = vmatpush1.xpose.msra.mxu0 0.0
    %341 = vmatprep.subr.mxu0 0.0
    %342 = vmatpush1.xpose.msra.mxu0 0.0
    %343 = vmatprep.subr.mxu0 0.0
    %344 = vmatpush1.xpose.msra.mxu0 0.0
    %345 = vmatprep.subr.mxu0 0.0
    %346 = vmatpush1.xpose.msra.mxu0 0.0
    %347 = vmatprep.subr.mxu0 0.0
    %348 = vmatpush1.xpose.msra.mxu0 0.0
    %349 = vmatprep.mubr.f32.mxu0 0.0
    %350 = vmatmul.mubr.f32.gmra.mrb[0].mxu0 %v276
    %v351 = vpop.f32.mrb[0].mxu0
    %v352 = vadd.f32 %v71, %v351
    %v353 = vpop.f32.mrb[0].mxu0
    %354 = vmatprep.mubr.f32.mxu0 0.0
    %355 = vmatmul.mubr.f32.gmra.mrb[0].mxu0 %v279
    %v356 = vpop.f32.mrb[0].mxu0
    %v357 = vadd.f32 %v72, %v356
    %v358 = vpop.f32.mrb[0].mxu0
    %359 = vdwg.mxu0
    %vm360 = vcmask 130048
    %v361 = vsel %vm360, %v352, -inf
    %362 = vmax.xlane.f32.xlu0 %v361
    %v363 = vpop.xlane.xlu0 %362
    %v364 = vsel %vm360, %v357, -inf
    %365 = vmax.xlane.f32.xlu0 %v364
    %v366 = vpop.xlane.xlu0 %365
    %v367 = vsub.f32 %v352, %v363
    %v368 = vsub.f32 %v357, %v366
    %v369 = vmul.f32 %v367, 1.442695
    %v370 = vpow.pop %v369
    %v371 = vmul.f32 %v368, 1.442695
    %v372 = vpow.pop %v371
    %v373 = vsel %vm360, %v370, 0.0
    %374 = vadd.xlane.f32.xlu0 %v373
    %v375 = vpop.xlane.xlu0 %374
    %v376 = vsel %vm360, %v372, 0.0
    %377 = vadd.xlane.f32.xlu0 %v376
    %v378 = vpop.xlane.xlu0 %377
    %v379 = vrcp.pop %v375
    %v380 = vrcp.pop %v378
    %v381 = vmul.f32 %v370, %v379
    %v382 = vmul.f32 %v372, %v380
    %383 = vrot.lane.b32.xlu0 %v258, 64
    %v384 = vpop.permute.xlu0 %383
    %385 = vrot.lane.b32.xlu0 %v263, 64
    %v386 = vpop.permute.xlu0 %385
    %v390 = vsel %vm360, %v381, 0
    %v393 = vsel %vm360, %v382, 0
    %395 = vmatprep.subr.mxu0 0.0
    %396 = vmatpush1.msra.mxu0 %v384
    %397 = vmatprep.subr.mxu0 0.0
    %398 = vmatpush1.msra.mxu0 %v386
    %399 = vmatprep.subr.mxu0 0.0
    %400 = vmatpush1.msra.mxu0 0.0
    %401 = vmatprep.subr.mxu0 0.0
    %402 = vmatpush1.msra.mxu0 0.0
    %403 = vmatprep.subr.mxu0 0.0
    %404 = vmatpush1.msra.mxu0 0.0
    %405 = vmatprep.subr.mxu0 0.0
    %406 = vmatpush1.msra.mxu0 0.0
    %407 = vmatprep.subr.mxu0 0.0
    %408 = vmatpush1.msra.mxu0 0.0
    %409 = vmatprep.subr.mxu0 0.0
    %410 = vmatpush1.msra.mxu0 0.0
    %411 = vmatprep.subr.mxu0 0.0
    %412 = vmatpush1.msra.mxu0 0.0
    %413 = vmatprep.subr.mxu0 0.0
    %414 = vmatpush1.msra.mxu0 0.0
    %415 = vmatprep.subr.mxu0 0.0
    %416 = vmatpush1.msra.mxu0 0.0
    %417 = vmatprep.subr.mxu0 0.0
    %418 = vmatpush1.msra.mxu0 0.0
    %419 = vmatprep.subr.mxu0 0.0
    %420 = vmatpush1.msra.mxu0 0.0
    %421 = vmatprep.subr.mxu0 0.0
    %422 = vmatpush1.msra.mxu0 0.0
    %423 = vmatprep.subr.mxu0 0.0
    %424 = vmatpush1.msra.mxu0 0.0
    %425 = vmatprep.subr.mxu0 0.0
    %426 = vmatpush1.msra.mxu0 0.0
    %427 = vmatprep.subr.mxu0 0.0
    %428 = vmatpush1.msra.mxu0 0.0
    %429 = vmatprep.subr.mxu0 0.0
    %430 = vmatpush1.msra.mxu0 0.0
    %431 = vmatprep.subr.mxu0 0.0
    %432 = vmatpush1.msra.mxu0 0.0
    %433 = vmatprep.subr.mxu0 0.0
    %434 = vmatpush1.msra.mxu0 0.0
    %435 = vmatprep.subr.mxu0 0.0
    %436 = vmatpush1.msra.mxu0 0.0
    %437 = vmatprep.subr.mxu0 0.0
    %438 = vmatpush1.msra.mxu0 0.0
    %439 = vmatprep.subr.mxu0 0.0
    %440 = vmatpush1.msra.mxu0 0.0
    %441 = vmatprep.subr.mxu0 0.0
    %442 = vmatpush1.msra.mxu0 0.0
    %443 = vmatprep.subr.mxu0 0.0
    %444 = vmatpush1.msra.mxu0 0.0
    %445 = vmatprep.subr.mxu0 0.0
    %446 = vmatpush1.msra.mxu0 0.0
    %447 = vmatprep.subr.mxu0 0.0
    %448 = vmatpush1.msra.mxu0 0.0
    %449 = vmatprep.subr.mxu0 0.0
    %450 = vmatpush1.msra.mxu0 0.0
    %451 = vmatprep.subr.mxu0 0.0
    %452 = vmatpush1.msra.mxu0 0.0
    %453 = vmatprep.subr.mxu0 0.0
    %454 = vmatpush1.msra.mxu0 0.0
    %455 = vmatprep.subr.mxu0 0.0
    %456 = vmatpush1.msra.mxu0 0.0
    %457 = vmatprep.subr.mxu0 0.0
    %458 = vmatpush1.msra.mxu0 0.0
    %459 = vmatprep.mubr.f32.mxu0 0.0
    %460 = vmatmul.mubr.f32.gmra.mrb[0].mxu0 %v390
    %v461 = vpop.f32.mrb[0].mxu0
    %v462 = vadd.f32 0.0, %v461
    %v463 = vpop.f32.mrb[0].mxu0
    %464 = vmatprep.mubr.f32.mxu0 0.0
    %465 = vmatmul.mubr.f32.gmra.mrb[0].mxu0 %v393
    %v466 = vpop.f32.mrb[0].mxu0
    %v467 = vadd.f32 0.0, %v466
    %v468 = vpop.f32.mrb[0].mxu0
    %469 = vdwg.mxu0
    %470 = vrot.lane.b32.xlu0 %v266, 120
    %v471 = vpop.permute.xlu0 %470
    %472 = vrot.lane.b32.xlu0 %v267, 120
    %v473 = vpop.permute.xlu0 %472
    %474 = vrot.lane.b32.xlu0 %v258, 88
    %v475 = vpop.permute.xlu0 %474
    %476 = vrot.lane.b32.xlu0 %v263, 88
    %v477 = vpop.permute.xlu0 %476
    %v478 = vsel %vm274, %v471, 0
    %v480 = vsel %vm274, %v473, 0
    %v482 = vsel %vm274, %v475, 0
    %v484 = vsel %vm274, %v477, 0
    %486 = vmatprep.subr.mxu0 0.0
    %487 = vmatpush1.xpose.msra.mxu0 %v482
    %488 = vmatprep.subr.mxu0 0.0
    %489 = vmatpush1.xpose.msra.mxu0 %v484
    %490 = vmatprep.subr.mxu0 0.0
    %491 = vmatpush1.xpose.msra.mxu0 0.0
    %492 = vmatprep.subr.mxu0 0.0
    %493 = vmatpush1.xpose.msra.mxu0 0.0
    %494 = vmatprep.subr.mxu0 0.0
    %495 = vmatpush1.xpose.msra.mxu0 0.0
    %496 = vmatprep.subr.mxu0 0.0
    %497 = vmatpush1.xpose.msra.mxu0 0.0
    %498 = vmatprep.subr.mxu0 0.0
    %499 = vmatpush1.xpose.msra.mxu0 0.0
    %500 = vmatprep.subr.mxu0 0.0
    %501 = vmatpush1.xpose.msra.mxu0 0.0
    %502 = vmatprep.subr.mxu0 0.0
    %503 = vmatpush1.xpose.msra.mxu0 0.0
    %504 = vmatprep.subr.mxu0 0.0
    %505 = vmatpush1.xpose.msra.mxu0 0.0
    %506 = vmatprep.subr.mxu0 0.0
    %507 = vmatpush1.xpose.msra.mxu0 0.0
    %508 = vmatprep.subr.mxu0 0.0
    %509 = vmatpush1.xpose.msra.mxu0 0.0
    %510 = vmatprep.subr.mxu0 0.0
    %511 = vmatpush1.xpose.msra.mxu0 0.0
    %512 = vmatprep.subr.mxu0 0.0
    %513 = vmatpush1.xpose.msra.mxu0 0.0
    %514 = vmatprep.subr.mxu0 0.0
    %515 = vmatpush1.xpose.msra.mxu0 0.0
    %516 = vmatprep.subr.mxu0 0.0
    %517 = vmatpush1.xpose.msra.mxu0 0.0
    %518 = vmatprep.subr.mxu0 0.0
    %519 = vmatpush1.xpose.msra.mxu0 0.0
    %520 = vmatprep.subr.mxu0 0.0
    %521 = vmatpush1.xpose.msra.mxu0 0.0
    %522 = vmatprep.subr.mxu0 0.0
    %523 = vmatpush1.xpose.msra.mxu0 0.0
    %524 = vmatprep.subr.mxu0 0.0
    %525 = vmatpush1.xpose.msra.mxu0 0.0
    %526 = vmatprep.subr.mxu0 0.0
    %527 = vmatpush1.xpose.msra.mxu0 0.0
    %528 = vmatprep.subr.mxu0 0.0
    %529 = vmatpush1.xpose.msra.mxu0 0.0
    %530 = vmatprep.subr.mxu0 0.0
    %531 = vmatpush1.xpose.msra.mxu0 0.0
    %532 = vmatprep.subr.mxu0 0.0
    %533 = vmatpush1.xpose.msra.mxu0 0.0
    %534 = vmatprep.subr.mxu0 0.0
    %535 = vmatpush1.xpose.msra.mxu0 0.0
    %536 = vmatprep.subr.mxu0 0.0
    %537 = vmatpush1.xpose.msra.mxu0 0.0
    %538 = vmatprep.subr.mxu0 0.0
    %539 = vmatpush1.xpose.msra.mxu0 0.0
    %540 = vmatprep.subr.mxu0 0.0
    %541 = vmatpush1.xpose.msra.mxu0 0.0
    %542 = vmatprep.subr.mxu0 0.0
    %543 = vmatpush1.xpose.msra.mxu0 0.0
    %544 = vmatprep.subr.mxu0 0.0
    %545 = vmatpush1.xpose.msra.mxu0 0.0
    %546 = vmatprep.subr.mxu0 0.0
    %547 = vmatpush1.xpose.msra.mxu0 0.0
    %548 = vmatprep.subr.mxu0 0.0
    %549 = vmatpush1.xpose.msra.mxu0 0.0
    %550 = vmatprep.mubr.f32.mxu0 0.0
    %551 = vmatmul.mubr.f32.gmra.mrb[0].mxu0 %v478
    %v552 = vpop.f32.mrb[0].mxu0
    %v553 = vadd.f32 %v71, %v552
    %v554 = vpop.f32.mrb[0].mxu0
    %555 = vmatprep.mubr.f32.mxu0 0.0
    %556 = vmatmul.mubr.f32.gmra.mrb[0].mxu0 %v480
    %v557 = vpop.f32.mrb[0].mxu0
    %v558 = vadd.f32 %v72, %v557
    %v559 = vpop.f32.mrb[0].mxu0
    %560 = vdwg.mxu0
    %v561 = vsel %vm360, %v553, -inf
    %562 = vmax.xlane.f32.xlu0 %v561
    %v563 = vpop.xlane.xlu0 %562
    %v564 = vsel %vm360, %v558, -inf
    %565 = vmax.xlane.f32.xlu0 %v564
    %v566 = vpop.xlane.xlu0 %565
    %v567 = vsub.f32 %v553, %v563
    %v568 = vsub.f32 %v558, %v566
    %v569 = vmul.f32 %v567, 1.442695
    %v570 = vpow.pop %v569
    %v571 = vmul.f32 %v568, 1.442695
    %v572 = vpow.pop %v571
    %v573 = vsel %vm360, %v570, 0.0
    %574 = vadd.xlane.f32.xlu0 %v573
    %v575 = vpop.xlane.xlu0 %574
    %v576 = vsel %vm360, %v572, 0.0
    %577 = vadd.xlane.f32.xlu0 %v576
    %v578 = vpop.xlane.xlu0 %577
    %v579 = vrcp.pop %v575
    %v580 = vrcp.pop %v578
    %v581 = vmul.f32 %v570, %v579
    %v582 = vmul.f32 %v572, %v580
    %583 = vrot.lane.b32.xlu0 %v258, 56
    %v584 = vpop.permute.xlu0 %583
    %585 = vrot.lane.b32.xlu0 %v263, 56
    %v586 = vpop.permute.xlu0 %585
    %v590 = vsel %vm360, %v581, 0
    %v593 = vsel %vm360, %v582, 0
    %595 = vmatprep.subr.mxu0 0.0
    %596 = vmatpush1.msra.mxu0 %v584
    %597 = vmatprep.subr.mxu0 0.0
    %598 = vmatpush1.msra.mxu0 %v586
    %599 = vmatprep.subr.mxu0 0.0
    %600 = vmatpush1.msra.mxu0 0.0
    %601 = vmatprep.subr.mxu0 0.0
    %602 = vmatpush1.msra.mxu0 0.0
    %603 = vmatprep.subr.mxu0 0.0
    %604 = vmatpush1.msra.mxu0 0.0
    %605 = vmatprep.subr.mxu0 0.0
    %606 = vmatpush1.msra.mxu0 0.0
    %607 = vmatprep.subr.mxu0 0.0
    %608 = vmatpush1.msra.mxu0 0.0
    %609 = vmatprep.subr.mxu0 0.0
    %610 = vmatpush1.msra.mxu0 0.0
    %611 = vmatprep.subr.mxu0 0.0
    %612 = vmatpush1.msra.mxu0 0.0
    %613 = vmatprep.subr.mxu0 0.0
    %614 = vmatpush1.msra.mxu0 0.0
    %615 = vmatprep.subr.mxu0 0.0
    %616 = vmatpush1.msra.mxu0 0.0
    %617 = vmatprep.subr.mxu0 0.0
    %618 = vmatpush1.msra.mxu0 0.0
    %619 = vmatprep.subr.mxu0 0.0
    %620 = vmatpush1.msra.mxu0 0.0
    %621 = vmatprep.subr.mxu0 0.0
    %622 = vmatpush1.msra.mxu0 0.0
    %623 = vmatprep.subr.mxu0 0.0
    %624 = vmatpush1.msra.mxu0 0.0
    %625 = vmatprep.subr.mxu0 0.0
    %626 = vmatpush1.msra.mxu0 0.0
    %627 = vmatprep.subr.mxu0 0.0
    %628 = vmatpush1.msra.mxu0 0.0
    %629 = vmatprep.subr.mxu0 0.0
    %630 = vmatpush1.msra.mxu0 0.0
    %631 = vmatprep.subr.mxu0 0.0
    %632 = vmatpush1.msra.mxu0 0.0
    %633 = vmatprep.subr.mxu0 0.0
    %634 = vmatpush1.msra.mxu0 0.0
    %635 = vmatprep.subr.mxu0 0.0
    %636 = vmatpush1.msra.mxu0 0.0
    %637 = vmatprep.subr.mxu0 0.0
    %638 = vmatpush1.msra.mxu0 0.0
    %639 = vmatprep.subr.mxu0 0.0
    %640 = vmatpush1.msra.mxu0 0.0
    %641 = vmatprep.subr.mxu0 0.0
    %642 = vmatpush1.msra.mxu0 0.0
    %643 = vmatprep.subr.mxu0 0.0
    %644 = vmatpush1.msra.mxu0 0.0
    %645 = vmatprep.subr.mxu0 0.0
    %646 = vmatpush1.msra.mxu0 0.0
    %647 = vmatprep.subr.mxu0 0.0
    %648 = vmatpush1.msra.mxu0 0.0
    %649 = vmatprep.subr.mxu0 0.0
    %650 = vmatpush1.msra.mxu0 0.0
    %651 = vmatprep.subr.mxu0 0.0
    %652 = vmatpush1.msra.mxu0 0.0
    %653 = vmatprep.subr.mxu0 0.0
    %654 = vmatpush1.msra.mxu0 0.0
    %655 = vmatprep.subr.mxu0 0.0
    %656 = vmatpush1.msra.mxu0 0.0
    %657 = vmatprep.subr.mxu0 0.0
    %658 = vmatpush1.msra.mxu0 0.0
    %659 = vmatprep.mubr.f32.mxu0 0.0
    %660 = vmatmul.mubr.f32.gmra.mrb[0].mxu0 %v590
    %v661 = vpop.f32.mrb[0].mxu0
    %v662 = vadd.f32 0.0, %v661
    %v663 = vpop.f32.mrb[0].mxu0
    %664 = vmatprep.mubr.f32.mxu0 0.0
    %665 = vmatmul.mubr.f32.gmra.mrb[0].mxu0 %v593
    %v666 = vpop.f32.mrb[0].mxu0
    %v667 = vadd.f32 0.0, %v666
    %v668 = vpop.f32.mrb[0].mxu0
    %669 = vdwg.mxu0
    %670 = vrot.lane.b32.xlu0 %v266, 112
    %v671 = vpop.permute.xlu0 %670
    %672 = vrot.lane.b32.xlu0 %v267, 112
    %v673 = vpop.permute.xlu0 %672
    %674 = vrot.lane.b32.xlu0 %v258, 80
    %v675 = vpop.permute.xlu0 %674
    %676 = vrot.lane.b32.xlu0 %v263, 80
    %v677 = vpop.permute.xlu0 %676
    %v678 = vsel %vm274, %v671, 0
    %v680 = vsel %vm274, %v673, 0
    %v682 = vsel %vm274, %v675, 0
    %v684 = vsel %vm274, %v677, 0
    %686 = vmatprep.subr.mxu0 0.0
    %687 = vmatpush1.xpose.msra.mxu0 %v682
    %688 = vmatprep.subr.mxu0 0.0
    %689 = vmatpush1.xpose.msra.mxu0 %v684
    %690 = vmatprep.subr.mxu0 0.0
    %691 = vmatpush1.xpose.msra.mxu0 0.0
    %692 = vmatprep.subr.mxu0 0.0
    %693 = vmatpush1.xpose.msra.mxu0 0.0
    %694 = vmatprep.subr.mxu0 0.0
    %695 = vmatpush1.xpose.msra.mxu0 0.0
    %696 = vmatprep.subr.mxu0 0.0
    %697 = vmatpush1.xpose.msra.mxu0 0.0
    %698 = vmatprep.subr.mxu0 0.0
    %699 = vmatpush1.xpose.msra.mxu0 0.0
    %700 = vmatprep.subr.mxu0 0.0
    %701 = vmatpush1.xpose.msra.mxu0 0.0
    %702 = vmatprep.subr.mxu0 0.0
    %703 = vmatpush1.xpose.msra.mxu0 0.0
    %704 = vmatprep.subr.mxu0 0.0
    %705 = vmatpush1.xpose.msra.mxu0 0.0
    %706 = vmatprep.subr.mxu0 0.0
    %707 = vmatpush1.xpose.msra.mxu0 0.0
    %708 = vmatprep.subr.mxu0 0.0
    %709 = vmatpush1.xpose.msra.mxu0 0.0
    %710 = vmatprep.subr.mxu0 0.0
    %711 = vmatpush1.xpose.msra.mxu0 0.0
    %712 = vmatprep.subr.mxu0 0.0
    %713 = vmatpush1.xpose.msra.mxu0 0.0
    %714 = vmatprep.subr.mxu0 0.0
    %715 = vmatpush1.xpose.msra.mxu0 0.0
    %716 = vmatprep.subr.mxu0 0.0
    %717 = vmatpush1.xpose.msra.mxu0 0.0
    %718 = vmatprep.subr.mxu0 0.0
    %719 = vmatpush1.xpose.msra.mxu0 0.0
    %720 = vmatprep.subr.mxu0 0.0
    %721 = vmatpush1.xpose.msra.mxu0 0.0
    %722 = vmatprep.subr.mxu0 0.0
    %723 = vmatpush1.xpose.msra.mxu0 0.0
    %724 = vmatprep.subr.mxu0 0.0
    %725 = vmatpush1.xpose.msra.mxu0 0.0
    %726 = vmatprep.subr.mxu0 0.0
    %727 = vmatpush1.xpose.msra.mxu0 0.0
    %728 = vmatprep.subr.mxu0 0.0
    %729 = vmatpush1.xpose.msra.mxu0 0.0
    %730 = vmatprep.subr.mxu0 0.0
    %731 = vmatpush1.xpose.msra.mxu0 0.0
    %732 = vmatprep.subr.mxu0 0.0
    %733 = vmatpush1.xpose.msra.mxu0 0.0
    %734 = vmatprep.subr.mxu0 0.0
    %735 = vmatpush1.xpose.msra.mxu0 0.0
    %736 = vmatprep.subr.mxu0 0.0
    %737 = vmatpush1.xpose.msra.mxu0 0.0
    %738 = vmatprep.subr.mxu0 0.0
    %739 = vmatpush1.xpose.msra.mxu0 0.0
    %740 = vmatprep.subr.mxu0 0.0
    %741 = vmatpush1.xpose.msra.mxu0 0.0
    %742 = vmatprep.subr.mxu0 0.0
    %743 = vmatpush1.xpose.msra.mxu0 0.0
    %744 = vmatprep.subr.mxu0 0.0
    %745 = vmatpush1.xpose.msra.mxu0 0.0
    %746 = vmatprep.subr.mxu0 0.0
    %747 = vmatpush1.xpose.msra.mxu0 0.0
    %748 = vmatprep.subr.mxu0 0.0
    %749 = vmatpush1.xpose.msra.mxu0 0.0
    %750 = vmatprep.mubr.f32.mxu0 0.0
    %751 = vmatmul.mubr.f32.gmra.mrb[0].mxu0 %v678
    %v752 = vpop.f32.mrb[0].mxu0
    %v753 = vadd.f32 %v71, %v752
    %v754 = vpop.f32.mrb[0].mxu0
    %755 = vmatprep.mubr.f32.mxu0 0.0
    %756 = vmatmul.mubr.f32.gmra.mrb[0].mxu0 %v680
    %v757 = vpop.f32.mrb[0].mxu0
    %v758 = vadd.f32 %v72, %v757
    %v759 = vpop.f32.mrb[0].mxu0
    %760 = vdwg.mxu0
    %v761 = vsel %vm360, %v753, -inf
    %762 = vmax.xlane.f32.xlu0 %v761
    %v763 = vpop.xlane.xlu0 %762
    %v764 = vsel %vm360, %v758, -inf
    %765 = vmax.xlane.f32.xlu0 %v764
    %v766 = vpop.xlane.xlu0 %765
    %v767 = vsub.f32 %v753, %v763
    %v768 = vsub.f32 %v758, %v766
    %v769 = vmul.f32 %v767, 1.442695
    %v770 = vpow.pop %v769
    %v771 = vmul.f32 %v768, 1.442695
    %v772 = vpow.pop %v771
    %v773 = vsel %vm360, %v770, 0.0
    %774 = vadd.xlane.f32.xlu0 %v773
    %v775 = vpop.xlane.xlu0 %774
    %v776 = vsel %vm360, %v772, 0.0
    %777 = vadd.xlane.f32.xlu0 %v776
    %v778 = vpop.xlane.xlu0 %777
    %v779 = vrcp.pop %v775
    %v780 = vrcp.pop %v778
    %v781 = vmul.f32 %v770, %v779
    %v782 = vmul.f32 %v772, %v780
    %783 = vrot.lane.b32.xlu0 %v258, 48
    %v784 = vpop.permute.xlu0 %783
    %785 = vrot.lane.b32.xlu0 %v263, 48
    %v786 = vpop.permute.xlu0 %785
    %v790 = vsel %vm360, %v781, 0
    %v793 = vsel %vm360, %v782, 0
    %795 = vmatprep.subr.mxu0 0.0
    %796 = vmatpush1.msra.mxu0 %v784
    %797 = vmatprep.subr.mxu0 0.0
    %798 = vmatpush1.msra.mxu0 %v786
    %799 = vmatprep.subr.mxu0 0.0
    %800 = vmatpush1.msra.mxu0 0.0
    %801 = vmatprep.subr.mxu0 0.0
    %802 = vmatpush1.msra.mxu0 0.0
    %803 = vmatprep.subr.mxu0 0.0
    %804 = vmatpush1.msra.mxu0 0.0
    %805 = vmatprep.subr.mxu0 0.0
    %806 = vmatpush1.msra.mxu0 0.0
    %807 = vmatprep.subr.mxu0 0.0
    %808 = vmatpush1.msra.mxu0 0.0
    %809 = vmatprep.subr.mxu0 0.0
    %810 = vmatpush1.msra.mxu0 0.0
    %811 = vmatprep.subr.mxu0 0.0
    %812 = vmatpush1.msra.mxu0 0.0
    %813 = vmatprep.subr.mxu0 0.0
    %814 = vmatpush1.msra.mxu0 0.0
    %815 = vmatprep.subr.mxu0 0.0
    %816 = vmatpush1.msra.mxu0 0.0
    %817 = vmatprep.subr.mxu0 0.0
    %818 = vmatpush1.msra.mxu0 0.0
    %819 = vmatprep.subr.mxu0 0.0
    %820 = vmatpush1.msra.mxu0 0.0
    %821 = vmatprep.subr.mxu0 0.0
    %822 = vmatpush1.msra.mxu0 0.0
    %823 = vmatprep.subr.mxu0 0.0
    %824 = vmatpush1.msra.mxu0 0.0
    %825 = vmatprep.subr.mxu0 0.0
    %826 = vmatpush1.msra.mxu0 0.0
    %827 = vmatprep.subr.mxu0 0.0
    %828 = vmatpush1.msra.mxu0 0.0
    %829 = vmatprep.subr.mxu0 0.0
    %830 = vmatpush1.msra.mxu0 0.0
    %831 = vmatprep.subr.mxu0 0.0
    %832 = vmatpush1.msra.mxu0 0.0
    %833 = vmatprep.subr.mxu0 0.0
    %834 = vmatpush1.msra.mxu0 0.0
    %835 = vmatprep.subr.mxu0 0.0
    %836 = vmatpush1.msra.mxu0 0.0
    %837 = vmatprep.subr.mxu0 0.0
    %838 = vmatpush1.msra.mxu0 0.0
    %839 = vmatprep.subr.mxu0 0.0
    %840 = vmatpush1.msra.mxu0 0.0
    %841 = vmatprep.subr.mxu0 0.0
    %842 = vmatpush1.msra.mxu0 0.0
    %843 = vmatprep.subr.mxu0 0.0
    %844 = vmatpush1.msra.mxu0 0.0
    %845 = vmatprep.subr.mxu0 0.0
    %846 = vmatpush1.msra.mxu0 0.0
    %847 = vmatprep.subr.mxu0 0.0
    %848 = vmatpush1.msra.mxu0 0.0
    %849 = vmatprep.subr.mxu0 0.0
    %850 = vmatpush1.msra.mxu0 0.0
    %851 = vmatprep.subr.mxu0 0.0
    %852 = vmatpush1.msra.mxu0 0.0
    %853 = vmatprep.subr.mxu0 0.0
    %854 = vmatpush1.msra.mxu0 0.0
    %855 = vmatprep.subr.mxu0 0.0
    %856 = vmatpush1.msra.mxu0 0.0
    %857 = vmatprep.subr.mxu0 0.0
    %858 = vmatpush1.msra.mxu0 0.0
    %859 = vmatprep.mubr.f32.mxu0 0.0
    %860 = vmatmul.mubr.f32.gmra.mrb[0].mxu0 %v790
    %v861 = vpop.f32.mrb[0].mxu0
    %v862 = vadd.f32 0.0, %v861
    %v863 = vpop.f32.mrb[0].mxu0
    %864 = vmatprep.mubr.f32.mxu0 0.0
    %865 = vmatmul.mubr.f32.gmra.mrb[0].mxu0 %v793
    %v866 = vpop.f32.mrb[0].mxu0
    %v867 = vadd.f32 0.0, %v866
    %v868 = vpop.f32.mrb[0].mxu0
    %869 = vdwg.mxu0
    %870 = vrot.lane.b32.xlu0 %v266, 104
    %v871 = vpop.permute.xlu0 %870
    %872 = vrot.lane.b32.xlu0 %v267, 104
    %v873 = vpop.permute.xlu0 %872
    %874 = vrot.lane.b32.xlu0 %v258, 72
    %v875 = vpop.permute.xlu0 %874
    %876 = vrot.lane.b32.xlu0 %v263, 72
    %v877 = vpop.permute.xlu0 %876
    %v878 = vsel %vm274, %v871, 0
    %v880 = vsel %vm274, %v873, 0
    %v882 = vsel %vm274, %v875, 0
    %v884 = vsel %vm274, %v877, 0
    %886 = vmatprep.subr.mxu0 0.0
    %887 = vmatpush1.xpose.msra.mxu0 %v882
    %888 = vmatprep.subr.mxu0 0.0
    %889 = vmatpush1.xpose.msra.mxu0 %v884
    %890 = vmatprep.subr.mxu0 0.0
    %891 = vmatpush1.xpose.msra.mxu0 0.0
    %892 = vmatprep.subr.mxu0 0.0
    %893 = vmatpush1.xpose.msra.mxu0 0.0
    %894 = vmatprep.subr.mxu0 0.0
    %895 = vmatpush1.xpose.msra.mxu0 0.0
    %896 = vmatprep.subr.mxu0 0.0
    %897 = vmatpush1.xpose.msra.mxu0 0.0
    %898 = vmatprep.subr.mxu0 0.0
    %899 = vmatpush1.xpose.msra.mxu0 0.0
    %900 = vmatprep.subr.mxu0 0.0
    %901 = vmatpush1.xpose.msra.mxu0 0.0
    %902 = vmatprep.subr.mxu0 0.0
    %903 = vmatpush1.xpose.msra.mxu0 0.0
    %904 = vmatprep.subr.mxu0 0.0
    %905 = vmatpush1.xpose.msra.mxu0 0.0
    %906 = vmatprep.subr.mxu0 0.0
    %907 = vmatpush1.xpose.msra.mxu0 0.0
    %908 = vmatprep.subr.mxu0 0.0
    %909 = vmatpush1.xpose.msra.mxu0 0.0
    %910 = vmatprep.subr.mxu0 0.0
    %911 = vmatpush1.xpose.msra.mxu0 0.0
    %912 = vmatprep.subr.mxu0 0.0
    %913 = vmatpush1.xpose.msra.mxu0 0.0
    %914 = vmatprep.subr.mxu0 0.0
    %915 = vmatpush1.xpose.msra.mxu0 0.0
    %916 = vmatprep.subr.mxu0 0.0
    %917 = vmatpush1.xpose.msra.mxu0 0.0
    %918 = vmatprep.subr.mxu0 0.0
    %919 = vmatpush1.xpose.msra.mxu0 0.0
    %920 = vmatprep.subr.mxu0 0.0
    %921 = vmatpush1.xpose.msra.mxu0 0.0
    %922 = vmatprep.subr.mxu0 0.0
    %923 = vmatpush1.xpose.msra.mxu0 0.0
    %924 = vmatprep.subr.mxu0 0.0
    %925 = vmatpush1.xpose.msra.mxu0 0.0
    %926 = vmatprep.subr.mxu0 0.0
    %927 = vmatpush1.xpose.msra.mxu0 0.0
    %928 = vmatprep.subr.mxu0 0.0
    %929 = vmatpush1.xpose.msra.mxu0 0.0
    %930 = vmatprep.subr.mxu0 0.0
    %931 = vmatpush1.xpose.msra.mxu0 0.0
    %932 = vmatprep.subr.mxu0 0.0
    %933 = vmatpush1.xpose.msra.mxu0 0.0
    %934 = vmatprep.subr.mxu0 0.0
    %935 = vmatpush1.xpose.msra.mxu0 0.0
    %936 = vmatprep.subr.mxu0 0.0
    %937 = vmatpush1.xpose.msra.mxu0 0.0
    %938 = vmatprep.subr.mxu0 0.0
    %939 = vmatpush1.xpose.msra.mxu0 0.0
    %940 = vmatprep.subr.mxu0 0.0
    %941 = vmatpush1.xpose.msra.mxu0 0.0
    %942 = vmatprep.subr.mxu0 0.0
    %943 = vmatpush1.xpose.msra.mxu0 0.0
    %944 = vmatprep.subr.mxu0 0.0
    %945 = vmatpush1.xpose.msra.mxu0 0.0
    %946 = vmatprep.subr.mxu0 0.0
    %947 = vmatpush1.xpose.msra.mxu0 0.0
    %948 = vmatprep.subr.mxu0 0.0
    %949 = vmatpush1.xpose.msra.mxu0 0.0
    %950 = vmatprep.mubr.f32.mxu0 0.0
    %951 = vmatmul.mubr.f32.gmra.mrb[0].mxu0 %v878
    %v952 = vpop.f32.mrb[0].mxu0
    %v953 = vadd.f32 %v71, %v952
    %v954 = vpop.f32.mrb[0].mxu0
    %955 = vmatprep.mubr.f32.mxu0 0.0
    %956 = vmatmul.mubr.f32.gmra.mrb[0].mxu0 %v880
    %v957 = vpop.f32.mrb[0].mxu0
    %v958 = vadd.f32 %v72, %v957
    %v959 = vpop.f32.mrb[0].mxu0
    %960 = vdwg.mxu0
    %v961 = vsel %vm360, %v953, -inf
    %962 = vmax.xlane.f32.xlu0 %v961
    %v963 = vpop.xlane.xlu0 %962
    %v964 = vsel %vm360, %v958, -inf
    %965 = vmax.xlane.f32.xlu0 %v964
    %v966 = vpop.xlane.xlu0 %965
    %v967 = vsub.f32 %v953, %v963
    %v968 = vsub.f32 %v958, %v966
    %v969 = vmul.f32 %v967, 1.442695
    %v970 = vpow.pop %v969
    %v971 = vmul.f32 %v968, 1.442695
    %v972 = vpow.pop %v971
    %v973 = vsel %vm360, %v970, 0.0
    %974 = vadd.xlane.f32.xlu0 %v973
    %v975 = vpop.xlane.xlu0 %974
    %v976 = vsel %vm360, %v972, 0.0
    %977 = vadd.xlane.f32.xlu0 %v976
    %v978 = vpop.xlane.xlu0 %977
    %v979 = vrcp.pop %v975
    %v980 = vrcp.pop %v978
    %v981 = vmul.f32 %v970, %v979
    %v982 = vmul.f32 %v972, %v980
    %983 = vrot.lane.b32.xlu0 %v258, 40
    %v984 = vpop.permute.xlu0 %983
    %985 = vrot.lane.b32.xlu0 %v263, 40
    %v986 = vpop.permute.xlu0 %985
    %v990 = vsel %vm360, %v981, 0
    %v993 = vsel %vm360, %v982, 0
    %995 = vmatprep.subr.mxu0 0.0
    %996 = vmatpush1.msra.mxu0 %v984
    %997 = vmatprep.subr.mxu0 0.0
    %998 = vmatpush1.msra.mxu0 %v986
    %999 = vmatprep.subr.mxu0 0.0
    %1000 = vmatpush1.msra.mxu0 0.0
    %1001 = vmatprep.subr.mxu0 0.0
    %1002 = vmatpush1.msra.mxu0 0.0
    %1003 = vmatprep.subr.mxu0 0.0
    %1004 = vmatpush1.msra.mxu0 0.0
    %1005 = vmatprep.subr.mxu0 0.0
    %1006 = vmatpush1.msra.mxu0 0.0
    %1007 = vmatprep.subr.mxu0 0.0
    %1008 = vmatpush1.msra.mxu0 0.0
    %1009 = vmatprep.subr.mxu0 0.0
    %1010 = vmatpush1.msra.mxu0 0.0
    %1011 = vmatprep.subr.mxu0 0.0
    %1012 = vmatpush1.msra.mxu0 0.0
    %1013 = vmatprep.subr.mxu0 0.0
    %1014 = vmatpush1.msra.mxu0 0.0
    %1015 = vmatprep.subr.mxu0 0.0
    %1016 = vmatpush1.msra.mxu0 0.0
    %1017 = vmatprep.subr.mxu0 0.0
    %1018 = vmatpush1.msra.mxu0 0.0
    %1019 = vmatprep.subr.mxu0 0.0
    %1020 = vmatpush1.msra.mxu0 0.0
    %1021 = vmatprep.subr.mxu0 0.0
    %1022 = vmatpush1.msra.mxu0 0.0
    %1023 = vmatprep.subr.mxu0 0.0
    %1024 = vmatpush1.msra.mxu0 0.0
    %1025 = vmatprep.subr.mxu0 0.0
    %1026 = vmatpush1.msra.mxu0 0.0
    %1027 = vmatprep.subr.mxu0 0.0
    %1028 = vmatpush1.msra.mxu0 0.0
    %1029 = vmatprep.subr.mxu0 0.0
    %1030 = vmatpush1.msra.mxu0 0.0
    %1031 = vmatprep.subr.mxu0 0.0
    %1032 = vmatpush1.msra.mxu0 0.0
    %1033 = vmatprep.subr.mxu0 0.0
    %1034 = vmatpush1.msra.mxu0 0.0
    %1035 = vmatprep.subr.mxu0 0.0
    %1036 = vmatpush1.msra.mxu0 0.0
    %1037 = vmatprep.subr.mxu0 0.0
    %1038 = vmatpush1.msra.mxu0 0.0
    %1039 = vmatprep.subr.mxu0 0.0
    %1040 = vmatpush1.msra.mxu0 0.0
    %1041 = vmatprep.subr.mxu0 0.0
    %1042 = vmatpush1.msra.mxu0 0.0
    %1043 = vmatprep.subr.mxu0 0.0
    %1044 = vmatpush1.msra.mxu0 0.0
    %1045 = vmatprep.subr.mxu0 0.0
    %1046 = vmatpush1.msra.mxu0 0.0
    %1047 = vmatprep.subr.mxu0 0.0
    %1048 = vmatpush1.msra.mxu0 0.0
    %1049 = vmatprep.subr.mxu0 0.0
    %1050 = vmatpush1.msra.mxu0 0.0
    %1051 = vmatprep.subr.mxu0 0.0
    %1052 = vmatpush1.msra.mxu0 0.0
    %1053 = vmatprep.subr.mxu0 0.0
    %1054 = vmatpush1.msra.mxu0 0.0
    %1055 = vmatprep.subr.mxu0 0.0
    %1056 = vmatpush1.msra.mxu0 0.0
    %1057 = vmatprep.subr.mxu0 0.0
    %1058 = vmatpush1.msra.mxu0 0.0
    %1059 = vmatprep.mubr.f32.mxu0 0.0
    %1060 = vmatmul.mubr.f32.gmra.mrb[0].mxu0 %v990
    %v1061 = vpop.f32.mrb[0].mxu0
    %v1062 = vadd.f32 0.0, %v1061
    %v1063 = vpop.f32.mrb[0].mxu0
    %1064 = vmatprep.mubr.f32.mxu0 0.0
    %1065 = vmatmul.mubr.f32.gmra.mrb[0].mxu0 %v993
    %v1066 = vpop.f32.mrb[0].mxu0
    %v1067 = vadd.f32 0.0, %v1066
    %v1068 = vpop.f32.mrb[0].mxu0
    %1069 = vdwg.mxu0
    %1072 = vrot.lane.b32.xlu0 %v662, 8
    %v1073 = vpop.permute.xlu0 %1072
    %1074 = vrot.lane.b32.xlu0 %v667, 8
    %v1075 = vpop.permute.xlu0 %1074
    %1080 = vrot.lane.b32.xlu0 %v862, 16
    %v1081 = vpop.permute.xlu0 %1080
    %1082 = vrot.lane.b32.xlu0 %v867, 16
    %v1083 = vpop.permute.xlu0 %1082
    %1088 = vrot.lane.b32.xlu0 %v1062, 24
    %v1089 = vpop.permute.xlu0 %1088
    %1090 = vrot.lane.b32.xlu0 %v1067, 24
    %v1091 = vpop.permute.xlu0 %1090
    %v1094 = vsel %vm274, %v462, %v1073
    %v1095 = vsel %vm274, %v467, %v1075
    %v1096 = vsel %vm360, %v1094, %v1081
    %v1097 = vsel %vm360, %v1095, %v1083
    %vm1098 = vcmask 195584
    %v1099 = vsel %vm1098, %v1096, %v1089
    %v1100 = vsel %vm1098, %v1097, %v1091
    %v1101 = vlaneseq
    %v1102 = vshrl.u32 %v1101, 7
    %v1103 = vsub.s32 1, %v1102
    %v1104 = vrot.slane %v180, %v1103
    %v1106 = vsel %vm80, %v1099, 0
    %v1109 = vsel %vm80, %v1100, 0
    %1111 = vmatprep.subr.mxu0 0.0
    %1112 = vmatpush1.msra.mxu0 %v168
    %1113 = vmatprep.subr.mxu0 0.0
    %1114 = vmatpush1.msra.mxu0 %v169
    %1115 = vmatprep.subr.mxu0 0.0
    %1116 = vmatpush1.msra.mxu0 %v170
    %1117 = vmatprep.subr.mxu0 0.0
    %1118 = vmatpush1.msra.mxu0 %v171
    %1119 = vmatprep.subr.mxu0 0.0
    %1120 = vmatpush1.msra.mxu0 0.0
    %1121 = vmatprep.subr.mxu0 0.0
    %1122 = vmatpush1.msra.mxu0 0.0
    %1123 = vmatprep.subr.mxu0 0.0
    %1124 = vmatpush1.msra.mxu0 0.0
    %1125 = vmatprep.subr.mxu0 0.0
    %1126 = vmatpush1.msra.mxu0 0.0
    %1127 = vmatprep.subr.mxu0 0.0
    %1128 = vmatpush1.msra.mxu0 0.0
    %1129 = vmatprep.subr.mxu0 0.0
    %1130 = vmatpush1.msra.mxu0 0.0
    %1131 = vmatprep.subr.mxu0 0.0
    %1132 = vmatpush1.msra.mxu0 0.0
    %1133 = vmatprep.subr.mxu0 0.0
    %1134 = vmatpush1.msra.mxu0 0.0
    %1135 = vmatprep.subr.mxu0 0.0
    %1136 = vmatpush1.msra.mxu0 0.0
    %1137 = vmatprep.subr.mxu0 0.0
    %1138 = vmatpush1.msra.mxu0 0.0
    %1139 = vmatprep.subr.mxu0 0.0
    %1140 = vmatpush1.msra.mxu0 0.0
    %1141 = vmatprep.subr.mxu0 0.0
    %1142 = vmatpush1.msra.mxu0 0.0
    %1143 = vmatprep.subr.mxu0 0.0
    %1144 = vmatpush1.msra.mxu0 0.0
    %1145 = vmatprep.subr.mxu0 0.0
    %1146 = vmatpush1.msra.mxu0 0.0
    %1147 = vmatprep.subr.mxu0 0.0
    %1148 = vmatpush1.msra.mxu0 0.0
    %1149 = vmatprep.subr.mxu0 0.0
    %1150 = vmatpush1.msra.mxu0 0.0
    %1151 = vmatprep.subr.mxu0 0.0
    %1152 = vmatpush1.msra.mxu0 0.0
    %1153 = vmatprep.subr.mxu0 0.0
    %1154 = vmatpush1.msra.mxu0 0.0
    %1155 = vmatprep.subr.mxu0 0.0
    %1156 = vmatpush1.msra.mxu0 0.0
    %1157 = vmatprep.subr.mxu0 0.0
    %1158 = vmatpush1.msra.mxu0 0.0
    %1159 = vmatprep.subr.mxu0 0.0
    %1160 = vmatpush1.msra.mxu0 0.0
    %1161 = vmatprep.subr.mxu0 0.0
    %1162 = vmatpush1.msra.mxu0 0.0
    %1163 = vmatprep.subr.mxu0 0.0
    %1164 = vmatpush1.msra.mxu0 0.0
    %1165 = vmatprep.subr.mxu0 0.0
    %1166 = vmatpush1.msra.mxu0 0.0
    %1167 = vmatprep.subr.mxu0 0.0
    %1168 = vmatpush1.msra.mxu0 0.0
    %1169 = vmatprep.subr.mxu0 0.0
    %1170 = vmatpush1.msra.mxu0 0.0
    %1171 = vmatprep.subr.mxu0 0.0
    %1172 = vmatpush1.msra.mxu0 0.0
    %1173 = vmatprep.subr.mxu0 0.0
    %1174 = vmatpush1.msra.mxu0 0.0
    %1175 = vmatprep.mubr.f32.mxu0 0.0
    %1176 = vmatmul.mubr.f32.gmra.mrb[0].mxu0 %v1106
    %v1177 = vpop.f32.mrb[0].mxu0
    %v1178 = vadd.f32 %v1104, %v1177
    %v1179 = vpop.f32.mrb[0].mxu0
    %1180 = vmatprep.mubr.f32.mxu0 0.0
    %1181 = vmatmul.mubr.f32.gmra.mrb[0].mxu0 %v1109
    %v1182 = vpop.f32.mrb[0].mxu0
    %v1183 = vadd.f32 %v1104, %v1182
    %v1184 = vpop.f32.mrb[0].mxu0
    %1185 = vdwg.mxu0
    %v1186 = vadd.f32 %v162, %v1178
    %v1187 = vadd.f32 %v163, %v1183
    %v1188 = vsel %vm80, %v1186, 0.0
    %1189 = vadd.xlane.f32.xlu0 %v1188
    %v1190 = vpop.xlane.xlu0 %1189
    %v1191 = vsel %vm80, %v1187, 0.0
    %1192 = vadd.xlane.f32.xlu0 %v1191
    %v1193 = vpop.xlane.xlu0 %1192
    %v1194 = vrcp.pop 32.0
    %v1195 = vmul.f32 %v1190, %v1194
    %v1196 = vmul.f32 %v1193, %v1194
    %v1197 = vsub.f32 %v1186, %v1195
    %v1198 = vsub.f32 %v1187, %v1196
    %v1199 = vmul.f32 %v1197, %v1197
    %v1200 = vmul.f32 %v1198, %v1198
    %v1201 = vsel %vm80, %v1199, 0.0
    %1202 = vadd.xlane.f32.xlu0 %v1201
    %v1203 = vpop.xlane.xlu0 %1202
    %v1204 = vsel %vm80, %v1200, 0.0
    %1205 = vadd.xlane.f32.xlu0 %v1204
    %v1206 = vpop.xlane.xlu0 %1205
    %v1207 = vmul.f32 %v1203, %v1194
    %v1208 = vmul.f32 %v1206, %v1194
    %v1209 = vadd.f32 %v1207, 1e-06
    %v1210 = vadd.f32 %v1208, 1e-06
    %v1211 = vrsqrt.pop %v1209
    %v1212 = vrsqrt.pop %v1210
    %v1213 = vmul.f32 %v1197, %v1211
    %v1214 = vmul.f32 %v1198, %v1212
    %v1215 = vlaneseq
    %v1216 = vshrl.u32 %v1215, 7
    %v1217 = vsub.s32 2, %v1216
    %v1218 = vrot.slane %v180, %v1217
    %v1219 = vmul.f32 %v1213, %v1218
    %v1220 = vmul.f32 %v1214, %v1218
    %v1221 = vlaneseq
    %v1222 = vshrl.u32 %v1221, 7
    %v1223 = vsub.s32 3, %v1222
    %v1224 = vrot.slane %v180, %v1223
    %v1225 = vadd.f32 %v1219, %v1224
    %v1226 = vadd.f32 %v1220, %v1224
    %v1227 = vlaneseq
    %v1228 = vshrl.u32 %v1227, 7
    %v1229 = vsub.s32 6, %v1228
    %v1230 = vrot.slane %v180, %v1229
    %v1232 = vsel %vm80, %v1225, 0
    %v1235 = vsel %vm80, %v1226, 0
    %1237 = vmatprep.subr.mxu0 0.0
    %1238 = vmatpush1.msra.mxu0 %v172
    %1239 = vmatprep.subr.mxu0 0.0
    %1240 = vmatpush1.msra.mxu0 %v173
    %1241 = vmatprep.subr.mxu0 0.0
    %1242 = vmatpush1.msra.mxu0 %v174
    %1243 = vmatprep.subr.mxu0 0.0
    %1244 = vmatpush1.msra.mxu0 %v175
    %1245 = vmatprep.subr.mxu0 0.0
    %1246 = vmatpush1.msra.mxu0 0.0
    %1247 = vmatprep.subr.mxu0 0.0
    %1248 = vmatpush1.msra.mxu0 0.0
    %1249 = vmatprep.subr.mxu0 0.0
    %1250 = vmatpush1.msra.mxu0 0.0
    %1251 = vmatprep.subr.mxu0 0.0
    %1252 = vmatpush1.msra.mxu0 0.0
    %1253 = vmatprep.subr.mxu0 0.0
    %1254 = vmatpush1.msra.mxu0 0.0
    %1255 = vmatprep.subr.mxu0 0.0
    %1256 = vmatpush1.msra.mxu0 0.0
    %1257 = vmatprep.subr.mxu0 0.0
    %1258 = vmatpush1.msra.mxu0 0.0
    %1259 = vmatprep.subr.mxu0 0.0
    %1260 = vmatpush1.msra.mxu0 0.0
    %1261 = vmatprep.subr.mxu0 0.0
    %1262 = vmatpush1.msra.mxu0 0.0
    %1263 = vmatprep.subr.mxu0 0.0
    %1264 = vmatpush1.msra.mxu0 0.0
    %1265 = vmatprep.subr.mxu0 0.0
    %1266 = vmatpush1.msra.mxu0 0.0
    %1267 = vmatprep.subr.mxu0 0.0
    %1268 = vmatpush1.msra.mxu0 0.0
    %1269 = vmatprep.subr.mxu0 0.0
    %1270 = vmatpush1.msra.mxu0 0.0
    %1271 = vmatprep.subr.mxu0 0.0
    %1272 = vmatpush1.msra.mxu0 0.0
    %1273 = vmatprep.subr.mxu0 0.0
    %1274 = vmatpush1.msra.mxu0 0.0
    %1275 = vmatprep.subr.mxu0 0.0
    %1276 = vmatpush1.msra.mxu0 0.0
    %1277 = vmatprep.subr.mxu0 0.0
    %1278 = vmatpush1.msra.mxu0 0.0
    %1279 = vmatprep.subr.mxu0 0.0
    %1280 = vmatpush1.msra.mxu0 0.0
    %1281 = vmatprep.subr.mxu0 0.0
    %1282 = vmatpush1.msra.mxu0 0.0
    %1283 = vmatprep.subr.mxu0 0.0
    %1284 = vmatpush1.msra.mxu0 0.0
    %1285 = vmatprep.subr.mxu0 0.0
    %1286 = vmatpush1.msra.mxu0 0.0
    %1287 = vmatprep.subr.mxu0 0.0
    %1288 = vmatpush1.msra.mxu0 0.0
    %1289 = vmatprep.subr.mxu0 0.0
    %1290 = vmatpush1.msra.mxu0 0.0
    %1291 = vmatprep.subr.mxu0 0.0
    %1292 = vmatpush1.msra.mxu0 0.0
    %1293 = vmatprep.subr.mxu0 0.0
    %1294 = vmatpush1.msra.mxu0 0.0
    %1295 = vmatprep.subr.mxu0 0.0
    %1296 = vmatpush1.msra.mxu0 0.0
    %1297 = vmatprep.subr.mxu0 0.0
    %1298 = vmatpush1.msra.mxu0 0.0
    %1299 = vmatprep.subr.mxu0 0.0
    %1300 = vmatpush1.msra.mxu0 0.0
    %1301 = vmatprep.mubr.f32.mxu0 0.0
    %1302 = vmatmul.mubr.f32.gmra.mrb[0].mxu0 %v1232
    %v1303 = vpop.f32.mrb[0].mxu0
    %v1304 = vadd.f32 %v1230, %v1303
    %v1305 = vpop.f32.mrb[0].mxu0
    %1306 = vmatprep.mubr.f32.mxu0 0.0
    %1307 = vmatmul.mubr.f32.gmra.mrb[0].mxu0 %v1235
    %v1308 = vpop.f32.mrb[0].mxu0
    %v1309 = vadd.f32 %v1230, %v1308
    %v1310 = vpop.f32.mrb[0].mxu0
    %1311 = vdwg.mxu0
    %v1312 = vmax.f32 %v1304, 0.0
    %v1313 = vmax.f32 %v1309, 0.0
    %v1314 = vlaneseq
    %v1315 = vshrl.u32 %v1314, 7
    %v1316 = vsub.s32 7, %v1315
    %v1317 = vrot.slane %v180, %v1316
    %vm1318 = vcmask 523264
    %v1320 = vsel %vm1318, %v1312, 0
    %v1323 = vsel %vm1318, %v1313, 0
    %v1326 = vsel %vm1318, %v176, 0
    %v1329 = vsel %vm1318, %v177, 0
    %v1332 = vsel %vm1318, %v178, 0
    %v1335 = vsel %vm1318, %v179, 0
    %1337 = vmatprep.subr.mxu0 0.0
    %1338 = vmatpush1.xpose.msra.mxu0 %v1326
    %1339 = vmatprep.subr.mxu0 0.0
    %1340 = vmatpush1.xpose.msra.mxu0 %v1329
    %1341 = vmatprep.subr.mxu0 0.0
    %1342 = vmatpush1.xpose.msra.mxu0 %v1332
    %1343 = vmatprep.subr.mxu0 0.0
    %1344 = vmatpush1.xpose.msra.mxu0 %v1335
    %1345 = vmatprep.subr.mxu0 0.0
    %1346 = vmatpush1.xpose.msra.mxu0 0.0
    %1347 = vmatprep.subr.mxu0 0.0
    %1348 = vmatpush1.xpose.msra.mxu0 0.0
    %1349 = vmatprep.subr.mxu0 0.0
    %1350 = vmatpush1.xpose.msra.mxu0 0.0
    %1351 = vmatprep.subr.mxu0 0.0
    %1352 = vmatpush1.xpose.msra.mxu0 0.0
    %1353 = vmatprep.subr.mxu0 0.0
    %1354 = vmatpush1.xpose.msra.mxu0 0.0
    %1355 = vmatprep.subr.mxu0 0.0
    %1356 = vmatpush1.xpose.msra.mxu0 0.0
    %1357 = vmatprep.subr.mxu0 0.0
    %1358 = vmatpush1.xpose.msra.mxu0 0.0
    %1359 = vmatprep.subr.mxu0 0.0
    %1360 = vmatpush1.xpose.msra.mxu0 0.0
    %1361 = vmatprep.subr.mxu0 0.0
    %1362 = vmatpush1.xpose.msra.mxu0 0.0
    %1363 = vmatprep.subr.mxu0 0.0
    %1364 = vmatpush1.xpose.msra.mxu0 0.0
    %1365 = vmatprep.subr.mxu0 0.0
    %1366 = vmatpush1.xpose.msra.mxu0 0.0
    %1367 = vmatprep.subr.mxu0 0.0
    %1368 = vmatpush1.xpose.msra.mxu0 0.0
    %1369 = vmatprep.subr.mxu0 0.0
    %1370 = vmatpush1.xpose.msra.mxu0 0.0
    %1371 = vmatprep.subr.mxu0 0.0
    %1372 = vmatpush1.xpose.msra.mxu0 0.0
    %1373 = vmatprep.subr.mxu0 0.0
    %1374 = vmatpush1.xpose.msra.mxu0 0.0
    %1375 = vmatprep.subr.mxu0 0.0
    %1376 = vmatpush1.xpose.msra.mxu0 0.0
    %1377 = vmatprep.subr.mxu0 0.0
    %1378 = vmatpush1.xpose.msra.mxu0 0.0
    %1379 = vmatprep.subr.mxu0 0.0
    %1380 = vmatpush1.xpose.msra.mxu0 0.0
    %1381 = vmatprep.subr.mxu0 0.0
    %1382 = vmatpush1.xpose.msra.mxu0 0.0
    %1383 = vmatprep.subr.mxu0 0.0
    %1384 = vmatpush1.xpose.msra.mxu0 0.0
    %1385 = vmatprep.subr.mxu0 0.0
    %1386 = vmatpush1.xpose.msra.mxu0 0.0
    %1387 = vmatprep.subr.mxu0 0.0
    %1388 = vmatpush1.xpose.msra.mxu0 0.0
    %1389 = vmatprep.subr.mxu0 0.0
    %1390 = vmatpush1.xpose.msra.mxu0 0.0
    %1391 = vmatprep.subr.mxu0 0.0
    %1392 = vmatpush1.xpose.msra.mxu0 0.0
    %1393 = vmatprep.subr.mxu0 0.0
    %1394 = vmatpush1.xpose.msra.mxu0 0.0
    %1395 = vmatprep.subr.mxu0 0.0
    %1396 = vmatpush1.xpose.msra.mxu0 0.0
    %1397 = vmatprep.subr.mxu0 0.0
    %1398 = vmatpush1.xpose.msra.mxu0 0.0
    %1399 = vmatprep.subr.mxu0 0.0
    %1400 = vmatpush1.xpose.msra.mxu0 0.0
    %1401 = vmatprep.mubr.f32.mxu0 0.0
    %1402 = vmatmul.mubr.f32.gmra.mrb[0].mxu0 %v1320
    %v1403 = vpop.f32.mrb[0].mxu0
    %v1404 = vadd.f32 %v1317, %v1403
    %v1405 = vpop.f32.mrb[0].mxu0
    %1406 = vmatprep.mubr.f32.mxu0 0.0
    %1407 = vmatmul.mubr.f32.gmra.mrb[0].mxu0 %v1323
    %v1408 = vpop.f32.mrb[0].mxu0
    %v1409 = vadd.f32 %v1317, %v1408
    %v1410 = vpop.f32.mrb[0].mxu0
    %1411 = vdwg.mxu0
    %v1412 = vadd.f32 %v1225, %v1404
    %v1413 = vadd.f32 %v1226, %v1409
    %v1414 = vsel %vm80, %v1412, 0.0
    %1415 = vadd.xlane.f32.xlu0 %v1414
    %v1416 = vpop.xlane.xlu0 %1415
    %v1417 = vsel %vm80, %v1413, 0.0
    %1418 = vadd.xlane.f32.xlu0 %v1417
    %v1419 = vpop.xlane.xlu0 %1418
    %v1420 = vmul.f32 %v1416, %v1194
    %v1421 = vmul.f32 %v1419, %v1194
    %v1422 = vsub.f32 %v1412, %v1420
    %v1423 = vsub.f32 %v1413, %v1421
    %v1424 = vmul.f32 %v1422, %v1422
    %v1425 = vmul.f32 %v1423, %v1423
    %v1426 = vsel %vm80, %v1424, 0.0
    %1427 = vadd.xlane.f32.xlu0 %v1426
    %v1428 = vpop.xlane.xlu0 %1427
    %v1429 = vsel %vm80, %v1425, 0.0
    %1430 = vadd.xlane.f32.xlu0 %v1429
    %v1431 = vpop.xlane.xlu0 %1430
    %v1432 = vmul.f32 %v1428, %v1194
    %v1433 = vmul.f32 %v1431, %v1194
    %v1434 = vadd.f32 %v1432, 1e-06
    %v1435 = vadd.f32 %v1433, 1e-06
    %v1436 = vrsqrt.pop %v1434
    %v1437 = vrsqrt.pop %v1435
    %v1438 = vmul.f32 %v1422, %v1436
    %v1439 = vmul.f32 %v1423, %v1437
    %v1440 = vlaneseq
    %v1441 = vshrl.u32 %v1440, 7
    %v1442 = vsub.s32 4, %v1441
    %v1443 = vrot.slane %v180, %v1442
    %v1444 = vmul.f32 %v1438, %v1443
    %v1445 = vmul.f32 %v1439, %v1443
    %v1446 = vlaneseq
    %v1447 = vshrl.u32 %v1446, 7
    %v1448 = vsub.s32 5, %v1447
    %v1449 = vrot.slane %v180, %v1448
    %v1450 = vadd.f32 %v1444, %v1449
    %v1451 = vadd.f32 %v1445, %v1449
    %s1452 = scalar_lea.vmem %s1, 128
    %v1453 = vld [vmem:[%s1452] sm:$0xff]
    %v1454 = vld [vmem:[%s1452 + $0x20] sm:$0xff]
    %v1455 = vld [vmem:[%s1452 + $0x40] sm:$0xff]
    %v1456 = vld [vmem:[%s1452 + $0x60] sm:$0xff]
    %v1457 = vld [vmem:[%s1452 + $0x8] sm:$0xff]
    %v1458 = vld [vmem:[%s1452 + $0x28] sm:$0xff]
    %v1459 = vld [vmem:[%s1452 + $0x48] sm:$0xff]
    %v1460 = vld [vmem:[%s1452 + $0x68] sm:$0xff]
    %v1461 = vld [vmem:[%s1452 + $0x10] sm:$0xff]
    %v1462 = vld [vmem:[%s1452 + $0x30] sm:$0xff]
    %v1463 = vld [vmem:[%s1452 + $0x50] sm:$0xff]
    %v1464 = vld [vmem:[%s1452 + $0x70] sm:$0xff]
    %v1465 = vld [vmem:[%s1452 + $0x18] sm:$0xff]
    %v1466 = vld [vmem:[%s1452 + $0x38] sm:$0xff]
    %v1467 = vld [vmem:[%s1452 + $0x58] sm:$0xff]
    %v1468 = vld [vmem:[%s1452 + $0x78] sm:$0xff]
    %s1469 = scalar_lea.vmem [#allocation2], 8
    %v1470 = vld [vmem:[%s1469] sm:$0xff]
    %v1471 = vlaneseq
    %v1472 = vshrl.u32 %v1471, 7
    %v1473 = vsub.s32 0, %v1472
    %v1474 = vrot.slane %v1470, %v1473
    %v1476 = vsel %vm80, %v1450, 0
    %v1479 = vsel %vm80, %v1451, 0
    %1481 = vmatprep.subr.mxu0 0.0
    %1482 = vmatpush1.msra.mxu0 %v1453
    %1483 = vmatprep.subr.mxu0 0.0
    %1484 = vmatpush1.msra.mxu0 %v1454
    %1485 = vmatprep.subr.mxu0 0.0
    %1486 = vmatpush1.msra.mxu0 %v1455
    %1487 = vmatprep.subr.mxu0 0.0
    %1488 = vmatpush1.msra.mxu0 %v1456
    %1489 = vmatprep.subr.mxu0 0.0
    %1490 = vmatpush1.msra.mxu0 0.0
    %1491 = vmatprep.subr.mxu0 0.0
    %1492 = vmatpush1.msra.mxu0 0.0
    %1493 = vmatprep.subr.mxu0 0.0
    %1494 = vmatpush1.msra.mxu0 0.0
    %1495 = vmatprep.subr.mxu0 0.0
    %1496 = vmatpush1.msra.mxu0 0.0
    %1497 = vmatprep.subr.mxu0 0.0
    %1498 = vmatpush1.msra.mxu0 0.0
    %1499 = vmatprep.subr.mxu0 0.0
    %1500 = vmatpush1.msra.mxu0 0.0
    %1501 = vmatprep.subr.mxu0 0.0
    %1502 = vmatpush1.msra.mxu0 0.0
    %1503 = vmatprep.subr.mxu0 0.0
    %1504 = vmatpush1.msra.mxu0 0.0
    %1505 = vmatprep.subr.mxu0 0.0
    %1506 = vmatpush1.msra.mxu0 0.0
    %1507 = vmatprep.subr.mxu0 0.0
    %1508 = vmatpush1.msra.mxu0 0.0
    %1509 = vmatprep.subr.mxu0 0.0
    %1510 = vmatpush1.msra.mxu0 0.0
    %1511 = vmatprep.subr.mxu0 0.0
    %1512 = vmatpush1.msra.mxu0 0.0
    %1513 = vmatprep.subr.mxu0 0.0
    %1514 = vmatpush1.msra.mxu0 0.0
    %1515 = vmatprep.subr.mxu0 0.0
    %1516 = vmatpush1.msra.mxu0 0.0
    %1517 = vmatprep.subr.mxu0 0.0
    %1518 = vmatpush1.msra.mxu0 0.0
    %1519 = vmatprep.subr.mxu0 0.0
    %1520 = vmatpush1.msra.mxu0 0.0
    %1521 = vmatprep.subr.mxu0 0.0
    %1522 = vmatpush1.msra.mxu0 0.0
    %1523 = vmatprep.subr.mxu0 0.0
    %1524 = vmatpush1.msra.mxu0 0.0
    %1525 = vmatprep.subr.mxu0 0.0
    %1526 = vmatpush1.msra.mxu0 0.0
    %1527 = vmatprep.subr.mxu0 0.0
    %1528 = vmatpush1.msra.mxu0 0.0
    %1529 = vmatprep.subr.mxu0 0.0
    %1530 = vmatpush1.msra.mxu0 0.0
    %1531 = vmatprep.subr.mxu0 0.0
    %1532 = vmatpush1.msra.mxu0 0.0
    %1533 = vmatprep.subr.mxu0 0.0
    %1534 = vmatpush1.msra.mxu0 0.0
    %1535 = vmatprep.subr.mxu0 0.0
    %1536 = vmatpush1.msra.mxu0 0.0
    %1537 = vmatprep.subr.mxu0 0.0
    %1538 = vmatpush1.msra.mxu0 0.0
    %1539 = vmatprep.subr.mxu0 0.0
    %1540 = vmatpush1.msra.mxu0 0.0
    %1541 = vmatprep.subr.mxu0 0.0
    %1542 = vmatpush1.msra.mxu0 0.0
    %1543 = vmatprep.subr.mxu0 0.0
    %1544 = vmatpush1.msra.mxu0 0.0
    %1545 = vmatprep.mubr.f32.mxu0 0.0
    %1546 = vmatmul.mubr.f32.gmra.mrb[0].mxu0 %v1476
    %v1547 = vpop.f32.mrb[0].mxu0
    %v1548 = vadd.f32 %v1474, %v1547
    %v1549 = vpop.f32.mrb[0].mxu0
    %1550 = vmatprep.mubr.f32.mxu0 0.0
    %1551 = vmatmul.mubr.f32.gmra.mrb[0].mxu0 %v1479
    %v1552 = vpop.f32.mrb[0].mxu0
    %v1553 = vadd.f32 %v1474, %v1552
    %v1554 = vpop.f32.mrb[0].mxu0
    %1555 = vdwg.mxu0
    %v1556 = vmul.f32 %v1548, 0.35355338
    %v1557 = vmul.f32 %v1553, 0.35355338
    %1560 = vrot.lane.b32.xlu0 %v1548, 96
    %v1561 = vpop.permute.xlu0 %1560
    %1562 = vrot.lane.b32.xlu0 %v1553, 96
    %v1563 = vpop.permute.xlu0 %1562
    %v1565 = vsel %vm274, %v1556, 0
    %v1568 = vsel %vm274, %v1557, 0
    %v1570 = vsel %vm274, %v1561, 0
    %v1572 = vsel %vm274, %v1563, 0
    %1574 = vmatprep.subr.mxu0 0.0
    %1575 = vmatpush1.xpose.msra.mxu0 %v1570
    %1576 = vmatprep.subr.mxu0 0.0
    %1577 = vmatpush1.xpose.msra.mxu0 %v1572
    %1578 = vmatprep.subr.mxu0 0.0
    %1579 = vmatpush1.xpose.msra.mxu0 0.0
    %1580 = vmatprep.subr.mxu0 0.0
    %1581 = vmatpush1.xpose.msra.mxu0 0.0
    %1582 = vmatprep.subr.mxu0 0.0
    %1583 = vmatpush1.xpose.msra.mxu0 0.0
    %1584 = vmatprep.subr.mxu0 0.0
    %1585 = vmatpush1.xpose.msra.mxu0 0.0
    %1586 = vmatprep.subr.mxu0 0.0
    %1587 = vmatpush1.xpose.msra.mxu0 0.0
    %1588 = vmatprep.subr.mxu0 0.0
    %1589 = vmatpush1.xpose.msra.mxu0 0.0
    %1590 = vmatprep.subr.mxu0 0.0
    %1591 = vmatpush1.xpose.msra.mxu0 0.0
    %1592 = vmatprep.subr.mxu0 0.0
    %1593 = vmatpush1.xpose.msra.mxu0 0.0
    %1594 = vmatprep.subr.mxu0 0.0
    %1595 = vmatpush1.xpose.msra.mxu0 0.0
    %1596 = vmatprep.subr.mxu0 0.0
    %1597 = vmatpush1.xpose.msra.mxu0 0.0
    %1598 = vmatprep.subr.mxu0 0.0
    %1599 = vmatpush1.xpose.msra.mxu0 0.0
    %1600 = vmatprep.subr.mxu0 0.0
    %1601 = vmatpush1.xpose.msra.mxu0 0.0
    %1602 = vmatprep.subr.mxu0 0.0
    %1603 = vmatpush1.xpose.msra.mxu0 0.0
    %1604 = vmatprep.subr.mxu0 0.0
    %1605 = vmatpush1.xpose.msra.mxu0 0.0
    %1606 = vmatprep.subr.mxu0 0.0
    %1607 = vmatpush1.xpose.msra.mxu0 0.0
    %1608 = vmatprep.subr.mxu0 0.0
    %1609 = vmatpush1.xpose.msra.mxu0 0.0
    %1610 = vmatprep.subr.mxu0 0.0
    %1611 = vmatpush1.xpose.msra.mxu0 0.0
    %1612 = vmatprep.subr.mxu0 0.0
    %1613 = vmatpush1.xpose.msra.mxu0 0.0
    %1614 = vmatprep.subr.mxu0 0.0
    %1615 = vmatpush1.xpose.msra.mxu0 0.0
    %1616 = vmatprep.subr.mxu0 0.0
    %1617 = vmatpush1.xpose.msra.mxu0 0.0
    %1618 = vmatprep.subr.mxu0 0.0
    %1619 = vmatpush1.xpose.msra.mxu0 0.0
    %1620 = vmatprep.subr.mxu0 0.0
    %1621 = vmatpush1.xpose.msra.mxu0 0.0
    %1622 = vmatprep.subr.mxu0 0.0
    %1623 = vmatpush1.xpose.msra.mxu0 0.0
    %1624 = vmatprep.subr.mxu0 0.0
    %1625 = vmatpush1.xpose.msra.mxu0 0.0
    %1626 = vmatprep.subr.mxu0 0.0
    %1627 = vmatpush1.xpose.msra.mxu0 0.0
    %1628 = vmatprep.subr.mxu0 0.0
    %1629 = vmatpush1.xpose.msra.mxu0 0.0
    %1630 = vmatprep.subr.mxu0 0.0
    %1631 = vmatpush1.xpose.msra.mxu0 0.0
    %1632 = vmatprep.subr.mxu0 0.0
    %1633 = vmatpush1.xpose.msra.mxu0 0.0
    %1634 = vmatprep.subr.mxu0 0.0
    %1635 = vmatpush1.xpose.msra.mxu0 0.0
    %1636 = vmatprep.subr.mxu0 0.0
    %1637 = vmatpush1.xpose.msra.mxu0 0.0
    %1638 = vmatprep.mubr.f32.mxu0 0.0
    %1639 = vmatmul.mubr.f32.gmra.mrb[0].mxu0 %v1565
    %v1640 = vpop.f32.mrb[0].mxu0
    %v1641 = vadd.f32 %v71, %v1640
    %v1642 = vpop.f32.mrb[0].mxu0
    %1643 = vmatprep.mubr.f32.mxu0 0.0
    %1644 = vmatmul.mubr.f32.gmra.mrb[0].mxu0 %v1568
    %v1645 = vpop.f32.mrb[0].mxu0
    %v1646 = vadd.f32 %v72, %v1645
    %v1647 = vpop.f32.mrb[0].mxu0
    %1648 = vdwg.mxu0
    %v1649 = vsel %vm360, %v1641, -inf
    %1650 = vmax.xlane.f32.xlu0 %v1649
    %v1651 = vpop.xlane.xlu0 %1650
    %v1652 = vsel %vm360, %v1646, -inf
    %1653 = vmax.xlane.f32.xlu0 %v1652
    %v1654 = vpop.xlane.xlu0 %1653
    %v1655 = vsub.f32 %v1641, %v1651
    %v1656 = vsub.f32 %v1646, %v1654
    %v1657 = vmul.f32 %v1655, 1.442695
    %v1658 = vpow.pop %v1657
    %v1659 = vmul.f32 %v1656, 1.442695
    %v1660 = vpow.pop %v1659
    %v1661 = vsel %vm360, %v1658, 0.0
    %1662 = vadd.xlane.f32.xlu0 %v1661
    %v1663 = vpop.xlane.xlu0 %1662
    %v1664 = vsel %vm360, %v1660, 0.0
    %1665 = vadd.xlane.f32.xlu0 %v1664
    %v1666 = vpop.xlane.xlu0 %1665
    %v1667 = vrcp.pop %v1663
    %v1668 = vrcp.pop %v1666
    %v1669 = vmul.f32 %v1658, %v1667
    %v1670 = vmul.f32 %v1660, %v1668
    %1671 = vrot.lane.b32.xlu0 %v1548, 64
    %v1672 = vpop.permute.xlu0 %1671
    %1673 = vrot.lane.b32.xlu0 %v1553, 64
    %v1674 = vpop.permute.xlu0 %1673
    %v1678 = vsel %vm360, %v1669, 0
    %v1681 = vsel %vm360, %v1670, 0
    %1683 = vmatprep.subr.mxu0 0.0
    %1684 = vmatpush1.msra.mxu0 %v1672
    %1685 = vmatprep.subr.mxu0 0.0
    %1686 = vmatpush1.msra.mxu0 %v1674
    %1687 = vmatprep.subr.mxu0 0.0
    %1688 = vmatpush1.msra.mxu0 0.0
    %1689 = vmatprep.subr.mxu0 0.0
    %1690 = vmatpush1.msra.mxu0 0.0
    %1691 = vmatprep.subr.mxu0 0.0
    %1692 = vmatpush1.msra.mxu0 0.0
    %1693 = vmatprep.subr.mxu0 0.0
    %1694 = vmatpush1.msra.mxu0 0.0
    %1695 = vmatprep.subr.mxu0 0.0
    %1696 = vmatpush1.msra.mxu0 0.0
    %1697 = vmatprep.subr.mxu0 0.0
    %1698 = vmatpush1.msra.mxu0 0.0
    %1699 = vmatprep.subr.mxu0 0.0
    %1700 = vmatpush1.msra.mxu0 0.0
    %1701 = vmatprep.subr.mxu0 0.0
    %1702 = vmatpush1.msra.mxu0 0.0
    %1703 = vmatprep.subr.mxu0 0.0
    %1704 = vmatpush1.msra.mxu0 0.0
    %1705 = vmatprep.subr.mxu0 0.0
    %1706 = vmatpush1.msra.mxu0 0.0
    %1707 = vmatprep.subr.mxu0 0.0
    %1708 = vmatpush1.msra.mxu0 0.0
    %1709 = vmatprep.subr.mxu0 0.0
    %1710 = vmatpush1.msra.mxu0 0.0
    %1711 = vmatprep.subr.mxu0 0.0
    %1712 = vmatpush1.msra.mxu0 0.0
    %1713 = vmatprep.subr.mxu0 0.0
    %1714 = vmatpush1.msra.mxu0 0.0
    %1715 = vmatprep.subr.mxu0 0.0
    %1716 = vmatpush1.msra.mxu0 0.0
    %1717 = vmatprep.subr.mxu0 0.0
    %1718 = vmatpush1.msra.mxu0 0.0
    %1719 = vmatprep.subr.mxu0 0.0
    %1720 = vmatpush1.msra.mxu0 0.0
    %1721 = vmatprep.subr.mxu0 0.0
    %1722 = vmatpush1.msra.mxu0 0.0
    %1723 = vmatprep.subr.mxu0 0.0
    %1724 = vmatpush1.msra.mxu0 0.0
    %1725 = vmatprep.subr.mxu0 0.0
    %1726 = vmatpush1.msra.mxu0 0.0
    %1727 = vmatprep.subr.mxu0 0.0
    %1728 = vmatpush1.msra.mxu0 0.0
    %1729 = vmatprep.subr.mxu0 0.0
    %1730 = vmatpush1.msra.mxu0 0.0
    %1731 = vmatprep.subr.mxu0 0.0
    %1732 = vmatpush1.msra.mxu0 0.0
    %1733 = vmatprep.subr.mxu0 0.0
    %1734 = vmatpush1.msra.mxu0 0.0
    %1735 = vmatprep.subr.mxu0 0.0
    %1736 = vmatpush1.msra.mxu0 0.0
    %1737 = vmatprep.subr.mxu0 0.0
    %1738 = vmatpush1.msra.mxu0 0.0
    %1739 = vmatprep.subr.mxu0 0.0
    %1740 = vmatpush1.msra.mxu0 0.0
    %1741 = vmatprep.subr.mxu0 0.0
    %1742 = vmatpush1.msra.mxu0 0.0
    %1743 = vmatprep.subr.mxu0 0.0
    %1744 = vmatpush1.msra.mxu0 0.0
    %1745 = vmatprep.subr.mxu0 0.0
    %1746 = vmatpush1.msra.mxu0 0.0
    %1747 = vmatprep.mubr.f32.mxu0 0.0
    %1748 = vmatmul.mubr.f32.gmra.mrb[0].mxu0 %v1678
    %v1749 = vpop.f32.mrb[0].mxu0
    %v1750 = vadd.f32 0.0, %v1749
    %v1751 = vpop.f32.mrb[0].mxu0
    %1752 = vmatprep.mubr.f32.mxu0 0.0
    %1753 = vmatmul.mubr.f32.gmra.mrb[0].mxu0 %v1681
    %v1754 = vpop.f32.mrb[0].mxu0
    %v1755 = vadd.f32 0.0, %v1754
    %v1756 = vpop.f32.mrb[0].mxu0
    %1757 = vdwg.mxu0
    %1758 = vrot.lane.b32.xlu0 %v1556, 120
    %v1759 = vpop.permute.xlu0 %1758
    %1760 = vrot.lane.b32.xlu0 %v1557, 120
    %v1761 = vpop.permute.xlu0 %1760
    %1762 = vrot.lane.b32.xlu0 %v1548, 88
    %v1763 = vpop.permute.xlu0 %1762
    %1764 = vrot.lane.b32.xlu0 %v1553, 88
    %v1765 = vpop.permute.xlu0 %1764
    %v1766 = vsel %vm274, %v1759, 0
    %v1768 = vsel %vm274, %v1761, 0
    %v1770 = vsel %vm274, %v1763, 0
    %v1772 = vsel %vm274, %v1765, 0
    %1774 = vmatprep.subr.mxu0 0.0
    %1775 = vmatpush1.xpose.msra.mxu0 %v1770
    %1776 = vmatprep.subr.mxu0 0.0
    %1777 = vmatpush1.xpose.msra.mxu0 %v1772
    %1778 = vmatprep.subr.mxu0 0.0
    %1779 = vmatpush1.xpose.msra.mxu0 0.0
    %1780 = vmatprep.subr.mxu0 0.0
    %1781 = vmatpush1.xpose.msra.mxu0 0.0
    %1782 = vmatprep.subr.mxu0 0.0
    %1783 = vmatpush1.xpose.msra.mxu0 0.0
    %1784 = vmatprep.subr.mxu0 0.0
    %1785 = vmatpush1.xpose.msra.mxu0 0.0
    %1786 = vmatprep.subr.mxu0 0.0
    %1787 = vmatpush1.xpose.msra.mxu0 0.0
    %1788 = vmatprep.subr.mxu0 0.0
    %1789 = vmatpush1.xpose.msra.mxu0 0.0
    %1790 = vmatprep.subr.mxu0 0.0
    %1791 = vmatpush1.xpose.msra.mxu0 0.0
    %1792 = vmatprep.subr.mxu0 0.0
    %1793 = vmatpush1.xpose.msra.mxu0 0.0
    %1794 = vmatprep.subr.mxu0 0.0
    %1795 = vmatpush1.xpose.msra.mxu0 0.0
    %1796 = vmatprep.subr.mxu0 0.0
    %1797 = vmatpush1.xpose.msra.mxu0 0.0
    %1798 = vmatprep.subr.mxu0 0.0
    %1799 = vmatpush1.xpose.msra.mxu0 0.0
    %1800 = vmatprep.subr.mxu0 0.0
    %1801 = vmatpush1.xpose.msra.mxu0 0.0
    %1802 = vmatprep.subr.mxu0 0.0
    %1803 = vmatpush1.xpose.msra.mxu0 0.0
    %1804 = vmatprep.subr.mxu0 0.0
    %1805 = vmatpush1.xpose.msra.mxu0 0.0
    %1806 = vmatprep.subr.mxu0 0.0
    %1807 = vmatpush1.xpose.msra.mxu0 0.0
    %1808 = vmatprep.subr.mxu0 0.0
    %1809 = vmatpush1.xpose.msra.mxu0 0.0
    %1810 = vmatprep.subr.mxu0 0.0
    %1811 = vmatpush1.xpose.msra.mxu0 0.0
    %1812 = vmatprep.subr.mxu0 0.0
    %1813 = vmatpush1.xpose.msra.mxu0 0.0
    %1814 = vmatprep.subr.mxu0 0.0
    %1815 = vmatpush1.xpose.msra.mxu0 0.0
    %1816 = vmatprep.subr.mxu0 0.0
    %1817 = vmatpush1.xpose.msra.mxu0 0.0
    %1818 = vmatprep.subr.mxu0 0.0
    %1819 = vmatpush1.xpose.msra.mxu0 0.0
    %1820 = vmatprep.subr.mxu0 0.0
    %1821 = vmatpush1.xpose.msra.mxu0 0.0
    %1822 = vmatprep.subr.mxu0 0.0
    %1823 = vmatpush1.xpose.msra.mxu0 0.0
    %1824 = vmatprep.subr.mxu0 0.0
    %1825 = vmatpush1.xpose.msra.mxu0 0.0
    %1826 = vmatprep.subr.mxu0 0.0
    %1827 = vmatpush1.xpose.msra.mxu0 0.0
    %1828 = vmatprep.subr.mxu0 0.0
    %1829 = vmatpush1.xpose.msra.mxu0 0.0
    %1830 = vmatprep.subr.mxu0 0.0
    %1831 = vmatpush1.xpose.msra.mxu0 0.0
    %1832 = vmatprep.subr.mxu0 0.0
    %1833 = vmatpush1.xpose.msra.mxu0 0.0
    %1834 = vmatprep.subr.mxu0 0.0
    %1835 = vmatpush1.xpose.msra.mxu0 0.0
    %1836 = vmatprep.subr.mxu0 0.0
    %1837 = vmatpush1.xpose.msra.mxu0 0.0
    %1838 = vmatprep.mubr.f32.mxu0 0.0
    %1839 = vmatmul.mubr.f32.gmra.mrb[0].mxu0 %v1766
    %v1840 = vpop.f32.mrb[0].mxu0
    %v1841 = vadd.f32 %v71, %v1840
    %v1842 = vpop.f32.mrb[0].mxu0
    %1843 = vmatprep.mubr.f32.mxu0 0.0
    %1844 = vmatmul.mubr.f32.gmra.mrb[0].mxu0 %v1768
    %v1845 = vpop.f32.mrb[0].mxu0
    %v1846 = vadd.f32 %v72, %v1845
    %v1847 = vpop.f32.mrb[0].mxu0
    %1848 = vdwg.mxu0
    %v1849 = vsel %vm360, %v1841, -inf
    %1850 = vmax.xlane.f32.xlu0 %v1849
    %v1851 = vpop.xlane.xlu0 %1850
    %v1852 = vsel %vm360, %v1846, -inf
    %1853 = vmax.xlane.f32.xlu0 %v1852
    %v1854 = vpop.xlane.xlu0 %1853
    %v1855 = vsub.f32 %v1841, %v1851
    %v1856 = vsub.f32 %v1846, %v1854
    %v1857 = vmul.f32 %v1855, 1.442695
    %v1858 = vpow.pop %v1857
    %v1859 = vmul.f32 %v1856, 1.442695
    %v1860 = vpow.pop %v1859
    %v1861 = vsel %vm360, %v1858, 0.0
    %1862 = vadd.xlane.f32.xlu0 %v1861
    %v1863 = vpop.xlane.xlu0 %1862
    %v1864 = vsel %vm360, %v1860, 0.0
    %1865 = vadd.xlane.f32.xlu0 %v1864
    %v1866 = vpop.xlane.xlu0 %1865
    %v1867 = vrcp.pop %v1863
    %v1868 = vrcp.pop %v1866
    %v1869 = vmul.f32 %v1858, %v1867
    %v1870 = vmul.f32 %v1860, %v1868
    %1871 = vrot.lane.b32.xlu0 %v1548, 56
    %v1872 = vpop.permute.xlu0 %1871
    %1873 = vrot.lane.b32.xlu0 %v1553, 56
    %v1874 = vpop.permute.xlu0 %1873
    %v1878 = vsel %vm360, %v1869, 0
    %v1881 = vsel %vm360, %v1870, 0
    %1883 = vmatprep.subr.mxu0 0.0
    %1884 = vmatpush1.msra.mxu0 %v1872
    %1885 = vmatprep.subr.mxu0 0.0
    %1886 = vmatpush1.msra.mxu0 %v1874
    %1887 = vmatprep.subr.mxu0 0.0
    %1888 = vmatpush1.msra.mxu0 0.0
    %1889 = vmatprep.subr.mxu0 0.0
    %1890 = vmatpush1.msra.mxu0 0.0
    %1891 = vmatprep.subr.mxu0 0.0
    %1892 = vmatpush1.msra.mxu0 0.0
    %1893 = vmatprep.subr.mxu0 0.0
    %1894 = vmatpush1.msra.mxu0 0.0
    %1895 = vmatprep.subr.mxu0 0.0
    %1896 = vmatpush1.msra.mxu0 0.0
    %1897 = vmatprep.subr.mxu0 0.0
    %1898 = vmatpush1.msra.mxu0 0.0
    %1899 = vmatprep.subr.mxu0 0.0
    %1900 = vmatpush1.msra.mxu0 0.0
    %1901 = vmatprep.subr.mxu0 0.0
    %1902 = vmatpush1.msra.mxu0 0.0
    %1903 = vmatprep.subr.mxu0 0.0
    %1904 = vmatpush1.msra.mxu0 0.0
    %1905 = vmatprep.subr.mxu0 0.0
    %1906 = vmatpush1.msra.mxu0 0.0
    %1907 = vmatprep.subr.mxu0 0.0
    %1908 = vmatpush1.msra.mxu0 0.0
    %1909 = vmatprep.subr.mxu0 0.0
    %1910 = vmatpush1.msra.mxu0 0.0
    %1911 = vmatprep.subr.mxu0 0.0
    %1912 = vmatpush1.msra.mxu0 0.0
    %1913 = vmatprep.subr.mxu0 0.0
    %1914 = vmatpush1.msra.mxu0 0.0
    %1915 = vmatprep.subr.mxu0 0.0
    %1916 = vmatpush1.msra.mxu0 0.0
    %1917 = vmatprep.subr.mxu0 0.0
    %1918 = vmatpush1.msra.mxu0 0.0
    %1919 = vmatprep.subr.mxu0 0.0
    %1920 = vmatpush1.msra.mxu0 0.0
    %1921 = vmatprep.subr.mxu0 0.0
    %1922 = vmatpush1.msra.mxu0 0.0
    %1923 = vmatprep.subr.mxu0 0.0
    %1924 = vmatpush1.msra.mxu0 0.0
    %1925 = vmatprep.subr.mxu0 0.0
    %1926 = vmatpush1.msra.mxu0 0.0
    %1927 = vmatprep.subr.mxu0 0.0
    %1928 = vmatpush1.msra.mxu0 0.0
    %1929 = vmatprep.subr.mxu0 0.0
    %1930 = vmatpush1.msra.mxu0 0.0
    %1931 = vmatprep.subr.mxu0 0.0
    %1932 = vmatpush1.msra.mxu0 0.0
    %1933 = vmatprep.subr.mxu0 0.0
    %1934 = vmatpush1.msra.mxu0 0.0
    %1935 = vmatprep.subr.mxu0 0.0
    %1936 = vmatpush1.msra.mxu0 0.0
    %1937 = vmatprep.subr.mxu0 0.0
    %1938 = vmatpush1.msra.mxu0 0.0
    %1939 = vmatprep.subr.mxu0 0.0
    %1940 = vmatpush1.msra.mxu0 0.0
    %1941 = vmatprep.subr.mxu0 0.0
    %1942 = vmatpush1.msra.mxu0 0.0
    %1943 = vmatprep.subr.mxu0 0.0
    %1944 = vmatpush1.msra.mxu0 0.0
    %1945 = vmatprep.subr.mxu0 0.0
    %1946 = vmatpush1.msra.mxu0 0.0
    %1947 = vmatprep.mubr.f32.mxu0 0.0
    %1948 = vmatmul.mubr.f32.gmra.mrb[0].mxu0 %v1878
    %v1949 = vpop.f32.mrb[0].mxu0
    %v1950 = vadd.f32 0.0, %v1949
    %v1951 = vpop.f32.mrb[0].mxu0
    %1952 = vmatprep.mubr.f32.mxu0 0.0
    %1953 = vmatmul.mubr.f32.gmra.mrb[0].mxu0 %v1881
    %v1954 = vpop.f32.mrb[0].mxu0
    %v1955 = vadd.f32 0.0, %v1954
    %v1956 = vpop.f32.mrb[0].mxu0
    %1957 = vdwg.mxu0
    %1958 = vrot.lane.b32.xlu0 %v1556, 112
    %v1959 = vpop.permute.xlu0 %1958
    %1960 = vrot.lane.b32.xlu0 %v1557, 112
    %v1961 = vpop.permute.xlu0 %1960
    %1962 = vrot.lane.b32.xlu0 %v1548, 80
    %v1963 = vpop.permute.xlu0 %1962
    %1964 = vrot.lane.b32.xlu0 %v1553, 80
    %v1965 = vpop.permute.xlu0 %1964
    %v1966 = vsel %vm274, %v1959, 0
    %v1968 = vsel %vm274, %v1961, 0
    %v1970 = vsel %vm274, %v1963, 0
    %v1972 = vsel %vm274, %v1965, 0
    %1974 = vmatprep.subr.mxu0 0.0
    %1975 = vmatpush1.xpose.msra.mxu0 %v1970
    %1976 = vmatprep.subr.mxu0 0.0
    %1977 = vmatpush1.xpose.msra.mxu0 %v1972
    %1978 = vmatprep.subr.mxu0 0.0
    %1979 = vmatpush1.xpose.msra.mxu0 0.0
    %1980 = vmatprep.subr.mxu0 0.0
    %1981 = vmatpush1.xpose.msra.mxu0 0.0
    %1982 = vmatprep.subr.mxu0 0.0
    %1983 = vmatpush1.xpose.msra.mxu0 0.0
    %1984 = vmatprep.subr.mxu0 0.0
    %1985 = vmatpush1.xpose.msra.mxu0 0.0
    %1986 = vmatprep.subr.mxu0 0.0
    %1987 = vmatpush1.xpose.msra.mxu0 0.0
    %1988 = vmatprep.subr.mxu0 0.0
    %1989 = vmatpush1.xpose.msra.mxu0 0.0
    %1990 = vmatprep.subr.mxu0 0.0
    %1991 = vmatpush1.xpose.msra.mxu0 0.0
    %1992 = vmatprep.subr.mxu0 0.0
    %1993 = vmatpush1.xpose.msra.mxu0 0.0
    %1994 = vmatprep.subr.mxu0 0.0
    %1995 = vmatpush1.xpose.msra.mxu0 0.0
    %1996 = vmatprep.subr.mxu0 0.0
    %1997 = vmatpush1.xpose.msra.mxu0 0.0
    %1998 = vmatprep.subr.mxu0 0.0
    %1999 = vmatpush1.xpose.msra.mxu0 0.0
    %2000 = vmatprep.subr.mxu0 0.0
    %2001 = vmatpush1.xpose.msra.mxu0 0.0
    %2002 = vmatprep.subr.mxu0 0.0
    %2003 = vmatpush1.xpose.msra.mxu0 0.0
    %2004 = vmatprep.subr.mxu0 0.0
    %2005 = vmatpush1.xpose.msra.mxu0 0.0
    %2006 = vmatprep.subr.mxu0 0.0
    %2007 = vmatpush1.xpose.msra.mxu0 0.0
    %2008 = vmatprep.subr.mxu0 0.0
    %2009 = vmatpush1.xpose.msra.mxu0 0.0
    %2010 = vmatprep.subr.mxu0 0.0
    %2011 = vmatpush1.xpose.msra.mxu0 0.0
    %2012 = vmatprep.subr.mxu0 0.0
    %2013 = vmatpush1.xpose.msra.mxu0 0.0
    %2014 = vmatprep.subr.mxu0 0.0
    %2015 = vmatpush1.xpose.msra.mxu0 0.0
    %2016 = vmatprep.subr.mxu0 0.0
    %2017 = vmatpush1.xpose.msra.mxu0 0.0
    %2018 = vmatprep.subr.mxu0 0.0
    %2019 = vmatpush1.xpose.msra.mxu0 0.0
    %2020 = vmatprep.subr.mxu0 0.0
    %2021 = vmatpush1.xpose.msra.mxu0 0.0
    %2022 = vmatprep.subr.mxu0 0.0
    %2023 = vmatpush1.xpose.msra.mxu0 0.0
    %2024 = vmatprep.subr.mxu0 0.0
    %2025 = vmatpush1.xpose.msra.mxu0 0.0
    %2026 = vmatprep.subr.mxu0 0.0
    %2027 = vmatpush1.xpose.msra.mxu0 0.0
    %2028 = vmatprep.subr.mxu0 0.0
    %2029 = vmatpush1.xpose.msra.mxu0 0.0
    %2030 = vmatprep.subr.mxu0 0.0
    %2031 = vmatpush1.xpose.msra.mxu0 0.0
    %2032 = vmatprep.subr.mxu0 0.0
    %2033 = vmatpush1.xpose.msra.mxu0 0.0
    %2034 = vmatprep.subr.mxu0 0.0
    %2035 = vmatpush1.xpose.msra.mxu0 0.0
    %2036 = vmatprep.subr.mxu0 0.0
    %2037 = vmatpush1.xpose.msra.mxu0 0.0
    %2038 = vmatprep.mubr.f32.mxu0 0.0
    %2039 = vmatmul.mubr.f32.gmra.mrb[0].mxu0 %v1966
    %v2040 = vpop.f32.mrb[0].mxu0
    %v2041 = vadd.f32 %v71, %v2040
    %v2042 = vpop.f32.mrb[0].mxu0
    %2043 = vmatprep.mubr.f32.mxu0 0.0
    %2044 = vmatmul.mubr.f32.gmra.mrb[0].mxu0 %v1968
    %v2045 = vpop.f32.mrb[0].mxu0
    %v2046 = vadd.f32 %v72, %v2045
    %v2047 = vpop.f32.mrb[0].mxu0
    %2048 = vdwg.mxu0
    %v2049 = vsel %vm360, %v2041, -inf
    %2050 = vmax.xlane.f32.xlu0 %v2049
    %v2051 = vpop.xlane.xlu0 %2050
    %v2052 = vsel %vm360, %v2046, -inf
    %2053 = vmax.xlane.f32.xlu0 %v2052
    %v2054 = vpop.xlane.xlu0 %2053
    %v2055 = vsub.f32 %v2041, %v2051
    %v2056 = vsub.f32 %v2046, %v2054
    %v2057 = vmul.f32 %v2055, 1.442695
    %v2058 = vpow.pop %v2057
    %v2059 = vmul.f32 %v2056, 1.442695
    %v2060 = vpow.pop %v2059
    %v2061 = vsel %vm360, %v2058, 0.0
    %2062 = vadd.xlane.f32.xlu0 %v2061
    %v2063 = vpop.xlane.xlu0 %2062
    %v2064 = vsel %vm360, %v2060, 0.0
    %2065 = vadd.xlane.f32.xlu0 %v2064
    %v2066 = vpop.xlane.xlu0 %2065
    %v2067 = vrcp.pop %v2063
    %v2068 = vrcp.pop %v2066
    %v2069 = vmul.f32 %v2058, %v2067
    %v2070 = vmul.f32 %v2060, %v2068
    %2071 = vrot.lane.b32.xlu0 %v1548, 48
    %v2072 = vpop.permute.xlu0 %2071
    %2073 = vrot.lane.b32.xlu0 %v1553, 48
    %v2074 = vpop.permute.xlu0 %2073
    %v2078 = vsel %vm360, %v2069, 0
    %v2081 = vsel %vm360, %v2070, 0
    %2083 = vmatprep.subr.mxu0 0.0
    %2084 = vmatpush1.msra.mxu0 %v2072
    %2085 = vmatprep.subr.mxu0 0.0
    %2086 = vmatpush1.msra.mxu0 %v2074
    %2087 = vmatprep.subr.mxu0 0.0
    %2088 = vmatpush1.msra.mxu0 0.0
    %2089 = vmatprep.subr.mxu0 0.0
    %2090 = vmatpush1.msra.mxu0 0.0
    %2091 = vmatprep.subr.mxu0 0.0
    %2092 = vmatpush1.msra.mxu0 0.0
    %2093 = vmatprep.subr.mxu0 0.0
    %2094 = vmatpush1.msra.mxu0 0.0
    %2095 = vmatprep.subr.mxu0 0.0
    %2096 = vmatpush1.msra.mxu0 0.0
    %2097 = vmatprep.subr.mxu0 0.0
    %2098 = vmatpush1.msra.mxu0 0.0
    %2099 = vmatprep.subr.mxu0 0.0
    %2100 = vmatpush1.msra.mxu0 0.0
    %2101 = vmatprep.subr.mxu0 0.0
    %2102 = vmatpush1.msra.mxu0 0.0
    %2103 = vmatprep.subr.mxu0 0.0
    %2104 = vmatpush1.msra.mxu0 0.0
    %2105 = vmatprep.subr.mxu0 0.0
    %2106 = vmatpush1.msra.mxu0 0.0
    %2107 = vmatprep.subr.mxu0 0.0
    %2108 = vmatpush1.msra.mxu0 0.0
    %2109 = vmatprep.subr.mxu0 0.0
    %2110 = vmatpush1.msra.mxu0 0.0
    %2111 = vmatprep.subr.mxu0 0.0
    %2112 = vmatpush1.msra.mxu0 0.0
    %2113 = vmatprep.subr.mxu0 0.0
    %2114 = vmatpush1.msra.mxu0 0.0
    %2115 = vmatprep.subr.mxu0 0.0
    %2116 = vmatpush1.msra.mxu0 0.0
    %2117 = vmatprep.subr.mxu0 0.0
    %2118 = vmatpush1.msra.mxu0 0.0
    %2119 = vmatprep.subr.mxu0 0.0
    %2120 = vmatpush1.msra.mxu0 0.0
    %2121 = vmatprep.subr.mxu0 0.0
    %2122 = vmatpush1.msra.mxu0 0.0
    %2123 = vmatprep.subr.mxu0 0.0
    %2124 = vmatpush1.msra.mxu0 0.0
    %2125 = vmatprep.subr.mxu0 0.0
    %2126 = vmatpush1.msra.mxu0 0.0
    %2127 = vmatprep.subr.mxu0 0.0
    %2128 = vmatpush1.msra.mxu0 0.0
    %2129 = vmatprep.subr.mxu0 0.0
    %2130 = vmatpush1.msra.mxu0 0.0
    %2131 = vmatprep.subr.mxu0 0.0
    %2132 = vmatpush1.msra.mxu0 0.0
    %2133 = vmatprep.subr.mxu0 0.0
    %2134 = vmatpush1.msra.mxu0 0.0
    %2135 = vmatprep.subr.mxu0 0.0
    %2136 = vmatpush1.msra.mxu0 0.0
    %2137 = vmatprep.subr.mxu0 0.0
    %2138 = vmatpush1.msra.mxu0 0.0
    %2139 = vmatprep.subr.mxu0 0.0
    %2140 = vmatpush1.msra.mxu0 0.0
    %2141 = vmatprep.subr.mxu0 0.0
    %2142 = vmatpush1.msra.mxu0 0.0
    %2143 = vmatprep.subr.mxu0 0.0
    %2144 = vmatpush1.msra.mxu0 0.0
    %2145 = vmatprep.subr.mxu0 0.0
    %2146 = vmatpush1.msra.mxu0 0.0
    %2147 = vmatprep.mubr.f32.mxu0 0.0
    %2148 = vmatmul.mubr.f32.gmra.mrb[0].mxu0 %v2078
    %v2149 = vpop.f32.mrb[0].mxu0
    %v2150 = vadd.f32 0.0, %v2149
    %v2151 = vpop.f32.mrb[0].mxu0
    %2152 = vmatprep.mubr.f32.mxu0 0.0
    %2153 = vmatmul.mubr.f32.gmra.mrb[0].mxu0 %v2081
    %v2154 = vpop.f32.mrb[0].mxu0
    %v2155 = vadd.f32 0.0, %v2154
    %v2156 = vpop.f32.mrb[0].mxu0
    %2157 = vdwg.mxu0
    %2158 = vrot.lane.b32.xlu0 %v1556, 104
    %v2159 = vpop.permute.xlu0 %2158
    %2160 = vrot.lane.b32.xlu0 %v1557, 104
    %v2161 = vpop.permute.xlu0 %2160
    %2162 = vrot.lane.b32.xlu0 %v1548, 72
    %v2163 = vpop.permute.xlu0 %2162
    %2164 = vrot.lane.b32.xlu0 %v1553, 72
    %v2165 = vpop.permute.xlu0 %2164
    %v2166 = vsel %vm274, %v2159, 0
    %v2168 = vsel %vm274, %v2161, 0
    %v2170 = vsel %vm274, %v2163, 0
    %v2172 = vsel %vm274, %v2165, 0
    %2174 = vmatprep.subr.mxu0 0.0
    %2175 = vmatpush1.xpose.msra.mxu0 %v2170
    %2176 = vmatprep.subr.mxu0 0.0
    %2177 = vmatpush1.xpose.msra.mxu0 %v2172
    %2178 = vmatprep.subr.mxu0 0.0
    %2179 = vmatpush1.xpose.msra.mxu0 0.0
    %2180 = vmatprep.subr.mxu0 0.0
    %2181 = vmatpush1.xpose.msra.mxu0 0.0
    %2182 = vmatprep.subr.mxu0 0.0
    %2183 = vmatpush1.xpose.msra.mxu0 0.0
    %2184 = vmatprep.subr.mxu0 0.0
    %2185 = vmatpush1.xpose.msra.mxu0 0.0
    %2186 = vmatprep.subr.mxu0 0.0
    %2187 = vmatpush1.xpose.msra.mxu0 0.0
    %2188 = vmatprep.subr.mxu0 0.0
    %2189 = vmatpush1.xpose.msra.mxu0 0.0
    %2190 = vmatprep.subr.mxu0 0.0
    %2191 = vmatpush1.xpose.msra.mxu0 0.0
    %2192 = vmatprep.subr.mxu0 0.0
    %2193 = vmatpush1.xpose.msra.mxu0 0.0
    %2194 = vmatprep.subr.mxu0 0.0
    %2195 = vmatpush1.xpose.msra.mxu0 0.0
    %2196 = vmatprep.subr.mxu0 0.0
    %2197 = vmatpush1.xpose.msra.mxu0 0.0
    %2198 = vmatprep.subr.mxu0 0.0
    %2199 = vmatpush1.xpose.msra.mxu0 0.0
    %2200 = vmatprep.subr.mxu0 0.0
    %2201 = vmatpush1.xpose.msra.mxu0 0.0
    %2202 = vmatprep.subr.mxu0 0.0
    %2203 = vmatpush1.xpose.msra.mxu0 0.0
    %2204 = vmatprep.subr.mxu0 0.0
    %2205 = vmatpush1.xpose.msra.mxu0 0.0
    %2206 = vmatprep.subr.mxu0 0.0
    %2207 = vmatpush1.xpose.msra.mxu0 0.0
    %2208 = vmatprep.subr.mxu0 0.0
    %2209 = vmatpush1.xpose.msra.mxu0 0.0
    %2210 = vmatprep.subr.mxu0 0.0
    %2211 = vmatpush1.xpose.msra.mxu0 0.0
    %2212 = vmatprep.subr.mxu0 0.0
    %2213 = vmatpush1.xpose.msra.mxu0 0.0
    %2214 = vmatprep.subr.mxu0 0.0
    %2215 = vmatpush1.xpose.msra.mxu0 0.0
    %2216 = vmatprep.subr.mxu0 0.0
    %2217 = vmatpush1.xpose.msra.mxu0 0.0
    %2218 = vmatprep.subr.mxu0 0.0
    %2219 = vmatpush1.xpose.msra.mxu0 0.0
    %2220 = vmatprep.subr.mxu0 0.0
    %2221 = vmatpush1.xpose.msra.mxu0 0.0
    %2222 = vmatprep.subr.mxu0 0.0
    %2223 = vmatpush1.xpose.msra.mxu0 0.0
    %2224 = vmatprep.subr.mxu0 0.0
    %2225 = vmatpush1.xpose.msra.mxu0 0.0
    %2226 = vmatprep.subr.mxu0 0.0
    %2227 = vmatpush1.xpose.msra.mxu0 0.0
    %2228 = vmatprep.subr.mxu0 0.0
    %2229 = vmatpush1.xpose.msra.mxu0 0.0
    %2230 = vmatprep.subr.mxu0 0.0
    %2231 = vmatpush1.xpose.msra.mxu0 0.0
    %2232 = vmatprep.subr.mxu0 0.0
    %2233 = vmatpush1.xpose.msra.mxu0 0.0
    %2234 = vmatprep.subr.mxu0 0.0
    %2235 = vmatpush1.xpose.msra.mxu0 0.0
    %2236 = vmatprep.subr.mxu0 0.0
    %2237 = vmatpush1.xpose.msra.mxu0 0.0
    %2238 = vmatprep.mubr.f32.mxu0 0.0
    %2239 = vmatmul.mubr.f32.gmra.mrb[0].mxu0 %v2166
    %v2240 = vpop.f32.mrb[0].mxu0
    %v2241 = vadd.f32 %v71, %v2240
    %v2242 = vpop.f32.mrb[0].mxu0
    %2243 = vmatprep.mubr.f32.mxu0 0.0
    %2244 = vmatmul.mubr.f32.gmra.mrb[0].mxu0 %v2168
    %v2245 = vpop.f32.mrb[0].mxu0
    %v2246 = vadd.f32 %v72, %v2245
    %v2247 = vpop.f32.mrb[0].mxu0
    %2248 = vdwg.mxu0
    %v2249 = vsel %vm360, %v2241, -inf
    %2250 = vmax.xlane.f32.xlu0 %v2249
    %v2251 = vpop.xlane.xlu0 %2250
    %v2252 = vsel %vm360, %v2246, -inf
    %2253 = vmax.xlane.f32.xlu0 %v2252
    %v2254 = vpop.xlane.xlu0 %2253
    %v2255 = vsub.f32 %v2241, %v2251
    %v2256 = vsub.f32 %v2246, %v2254
    %v2257 = vmul.f32 %v2255, 1.442695
    %v2258 = vpow.pop %v2257
    %v2259 = vmul.f32 %v2256, 1.442695
    %v2260 = vpow.pop %v2259
    %v2261 = vsel %vm360, %v2258, 0.0
    %2262 = vadd.xlane.f32.xlu0 %v2261
    %v2263 = vpop.xlane.xlu0 %2262
    %v2264 = vsel %vm360, %v2260, 0.0
    %2265 = vadd.xlane.f32.xlu0 %v2264
    %v2266 = vpop.xlane.xlu0 %2265
    %v2267 = vrcp.pop %v2263
    %v2268 = vrcp.pop %v2266
    %v2269 = vmul.f32 %v2258, %v2267
    %v2270 = vmul.f32 %v2260, %v2268
    %2271 = vrot.lane.b32.xlu0 %v1548, 40
    %v2272 = vpop.permute.xlu0 %2271
    %2273 = vrot.lane.b32.xlu0 %v1553, 40
    %v2274 = vpop.permute.xlu0 %2273
    %v2278 = vsel %vm360, %v2269, 0
    %v2281 = vsel %vm360, %v2270, 0
    %2283 = vmatprep.subr.mxu0 0.0
    %2284 = vmatpush1.msra.mxu0 %v2272
    %2285 = vmatprep.subr.mxu0 0.0
    %2286 = vmatpush1.msra.mxu0 %v2274
    %2287 = vmatprep.subr.mxu0 0.0
    %2288 = vmatpush1.msra.mxu0 0.0
    %2289 = vmatprep.subr.mxu0 0.0
    %2290 = vmatpush1.msra.mxu0 0.0
    %2291 = vmatprep.subr.mxu0 0.0
    %2292 = vmatpush1.msra.mxu0 0.0
    %2293 = vmatprep.subr.mxu0 0.0
    %2294 = vmatpush1.msra.mxu0 0.0
    %2295 = vmatprep.subr.mxu0 0.0
    %2296 = vmatpush1.msra.mxu0 0.0
    %2297 = vmatprep.subr.mxu0 0.0
    %2298 = vmatpush1.msra.mxu0 0.0
    %2299 = vmatprep.subr.mxu0 0.0
    %2300 = vmatpush1.msra.mxu0 0.0
    %2301 = vmatprep.subr.mxu0 0.0
    %2302 = vmatpush1.msra.mxu0 0.0
    %2303 = vmatprep.subr.mxu0 0.0
    %2304 = vmatpush1.msra.mxu0 0.0
    %2305 = vmatprep.subr.mxu0 0.0
    %2306 = vmatpush1.msra.mxu0 0.0
    %2307 = vmatprep.subr.mxu0 0.0
    %2308 = vmatpush1.msra.mxu0 0.0
    %2309 = vmatprep.subr.mxu0 0.0
    %2310 = vmatpush1.msra.mxu0 0.0
    %2311 = vmatprep.subr.mxu0 0.0
    %2312 = vmatpush1.msra.mxu0 0.0
    %2313 = vmatprep.subr.mxu0 0.0
    %2314 = vmatpush1.msra.mxu0 0.0
    %2315 = vmatprep.subr.mxu0 0.0
    %2316 = vmatpush1.msra.mxu0 0.0
    %2317 = vmatprep.subr.mxu0 0.0
    %2318 = vmatpush1.msra.mxu0 0.0
    %2319 = vmatprep.subr.mxu0 0.0
    %2320 = vmatpush1.msra.mxu0 0.0
    %2321 = vmatprep.subr.mxu0 0.0
    %2322 = vmatpush1.msra.mxu0 0.0
    %2323 = vmatprep.subr.mxu0 0.0
    %2324 = vmatpush1.msra.mxu0 0.0
    %2325 = vmatprep.subr.mxu0 0.0
    %2326 = vmatpush1.msra.mxu0 0.0
    %2327 = vmatprep.subr.mxu0 0.0
    %2328 = vmatpush1.msra.mxu0 0.0
    %2329 = vmatprep.subr.mxu0 0.0
    %2330 = vmatpush1.msra.mxu0 0.0
    %2331 = vmatprep.subr.mxu0 0.0
    %2332 = vmatpush1.msra.mxu0 0.0
    %2333 = vmatprep.subr.mxu0 0.0
    %2334 = vmatpush1.msra.mxu0 0.0
    %2335 = vmatprep.subr.mxu0 0.0
    %2336 = vmatpush1.msra.mxu0 0.0
    %2337 = vmatprep.subr.mxu0 0.0
    %2338 = vmatpush1.msra.mxu0 0.0
    %2339 = vmatprep.subr.mxu0 0.0
    %2340 = vmatpush1.msra.mxu0 0.0
    %2341 = vmatprep.subr.mxu0 0.0
    %2342 = vmatpush1.msra.mxu0 0.0
    %2343 = vmatprep.subr.mxu0 0.0
    %2344 = vmatpush1.msra.mxu0 0.0
    %2345 = vmatprep.subr.mxu0 0.0
    %2346 = vmatpush1.msra.mxu0 0.0
    %2347 = vmatprep.mubr.f32.mxu0 0.0
    %2348 = vmatmul.mubr.f32.gmra.mrb[0].mxu0 %v2278
    %v2349 = vpop.f32.mrb[0].mxu0
    %v2350 = vadd.f32 0.0, %v2349
    %v2351 = vpop.f32.mrb[0].mxu0
    %2352 = vmatprep.mubr.f32.mxu0 0.0
    %2353 = vmatmul.mubr.f32.gmra.mrb[0].mxu0 %v2281
    %v2354 = vpop.f32.mrb[0].mxu0
    %v2355 = vadd.f32 0.0, %v2354
    %v2356 = vpop.f32.mrb[0].mxu0
    %2357 = vdwg.mxu0
    %2360 = vrot.lane.b32.xlu0 %v1950, 8
    %v2361 = vpop.permute.xlu0 %2360
    %2362 = vrot.lane.b32.xlu0 %v1955, 8
    %v2363 = vpop.permute.xlu0 %2362
    %2368 = vrot.lane.b32.xlu0 %v2150, 16
    %v2369 = vpop.permute.xlu0 %2368
    %2370 = vrot.lane.b32.xlu0 %v2155, 16
    %v2371 = vpop.permute.xlu0 %2370
    %2376 = vrot.lane.b32.xlu0 %v2350, 24
    %v2377 = vpop.permute.xlu0 %2376
    %2378 = vrot.lane.b32.xlu0 %v2355, 24
    %v2379 = vpop.permute.xlu0 %2378
    %v2382 = vsel %vm274, %v1750, %v2361
    %v2383 = vsel %vm274, %v1755, %v2363
    %v2384 = vsel %vm360, %v2382, %v2369
    %v2385 = vsel %vm360, %v2383, %v2371
    %v2386 = vsel %vm1098, %v2384, %v2377
    %v2387 = vsel %vm1098, %v2385, %v2379
    %v2388 = vlaneseq
    %v2389 = vshrl.u32 %v2388, 7
    %v2390 = vsub.s32 1, %v2389
    %v2391 = vrot.slane %v1470, %v2390
    %v2393 = vsel %vm80, %v2386, 0
    %v2396 = vsel %vm80, %v2387, 0
    %2398 = vmatprep.subr.mxu0 0.0
    %2399 = vmatpush1.msra.mxu0 %v1457
    %2400 = vmatprep.subr.mxu0 0.0
    %2401 = vmatpush1.msra.mxu0 %v1458
    %2402 = vmatprep.subr.mxu0 0.0
    %2403 = vmatpush1.msra.mxu0 %v1459
    %2404 = vmatprep.subr.mxu0 0.0
    %2405 = vmatpush1.msra.mxu0 %v1460
    %2406 = vmatprep.subr.mxu0 0.0
    %2407 = vmatpush1.msra.mxu0 0.0
    %2408 = vmatprep.subr.mxu0 0.0
    %2409 = vmatpush1.msra.mxu0 0.0
    %2410 = vmatprep.subr.mxu0 0.0
    %2411 = vmatpush1.msra.mxu0 0.0
    %2412 = vmatprep.subr.mxu0 0.0
    %2413 = vmatpush1.msra.mxu0 0.0
    %2414 = vmatprep.subr.mxu0 0.0
    %2415 = vmatpush1.msra.mxu0 0.0
    %2416 = vmatprep.subr.mxu0 0.0
    %2417 = vmatpush1.msra.mxu0 0.0
    %2418 = vmatprep.subr.mxu0 0.0
    %2419 = vmatpush1.msra.mxu0 0.0
    %2420 = vmatprep.subr.mxu0 0.0
    %2421 = vmatpush1.msra.mxu0 0.0
    %2422 = vmatprep.subr.mxu0 0.0
    %2423 = vmatpush1.msra.mxu0 0.0
    %2424 = vmatprep.subr.mxu0 0.0
    %2425 = vmatpush1.msra.mxu0 0.0
    %2426 = vmatprep.subr.mxu0 0.0
    %2427 = vmatpush1.msra.mxu0 0.0
    %2428 = vmatprep.subr.mxu0 0.0
    %2429 = vmatpush1.msra.mxu0 0.0
    %2430 = vmatprep.subr.mxu0 0.0
    %2431 = vmatpush1.msra.mxu0 0.0
    %2432 = vmatprep.subr.mxu0 0.0
    %2433 = vmatpush1.msra.mxu0 0.0
    %2434 = vmatprep.subr.mxu0 0.0
    %2435 = vmatpush1.msra.mxu0 0.0
    %2436 = vmatprep.subr.mxu0 0.0
    %2437 = vmatpush1.msra.mxu0 0.0
    %2438 = vmatprep.subr.mxu0 0.0
    %2439 = vmatpush1.msra.mxu0 0.0
    %2440 = vmatprep.subr.mxu0 0.0
    %2441 = vmatpush1.msra.mxu0 0.0
    %2442 = vmatprep.subr.mxu0 0.0
    %2443 = vmatpush1.msra.mxu0 0.0
    %2444 = vmatprep.subr.mxu0 0.0
    %2445 = vmatpush1.msra.mxu0 0.0
    %2446 = vmatprep.subr.mxu0 0.0
    %2447 = vmatpush1.msra.mxu0 0.0
    %2448 = vmatprep.subr.mxu0 0.0
    %2449 = vmatpush1.msra.mxu0 0.0
    %2450 = vmatprep.subr.mxu0 0.0
    %2451 = vmatpush1.msra.mxu0 0.0
    %2452 = vmatprep.subr.mxu0 0.0
    %2453 = vmatpush1.msra.mxu0 0.0
    %2454 = vmatprep.subr.mxu0 0.0
    %2455 = vmatpush1.msra.mxu0 0.0
    %2456 = vmatprep.subr.mxu0 0.0
    %2457 = vmatpush1.msra.mxu0 0.0
    %2458 = vmatprep.subr.mxu0 0.0
    %2459 = vmatpush1.msra.mxu0 0.0
    %2460 = vmatprep.subr.mxu0 0.0
    %2461 = vmatpush1.msra.mxu0 0.0
    %2462 = vmatprep.mubr.f32.mxu0 0.0
    %2463 = vmatmul.mubr.f32.gmra.mrb[0].mxu0 %v2393
    %v2464 = vpop.f32.mrb[0].mxu0
    %v2465 = vadd.f32 %v2391, %v2464
    %v2466 = vpop.f32.mrb[0].mxu0
    %2467 = vmatprep.mubr.f32.mxu0 0.0
    %2468 = vmatmul.mubr.f32.gmra.mrb[0].mxu0 %v2396
    %v2469 = vpop.f32.mrb[0].mxu0
    %v2470 = vadd.f32 %v2391, %v2469
    %v2471 = vpop.f32.mrb[0].mxu0
    %2472 = vdwg.mxu0
    %v2473 = vadd.f32 %v1450, %v2465
    %v2474 = vadd.f32 %v1451, %v2470
    %v2475 = vsel %vm80, %v2473, 0.0
    %2476 = vadd.xlane.f32.xlu0 %v2475
    %v2477 = vpop.xlane.xlu0 %2476
    %v2478 = vsel %vm80, %v2474, 0.0
    %2479 = vadd.xlane.f32.xlu0 %v2478
    %v2480 = vpop.xlane.xlu0 %2479
    %v2481 = vmul.f32 %v2477, %v1194
    %v2482 = vmul.f32 %v2480, %v1194
    %v2483 = vsub.f32 %v2473, %v2481
    %v2484 = vsub.f32 %v2474, %v2482
    %v2485 = vmul.f32 %v2483, %v2483
    %v2486 = vmul.f32 %v2484, %v2484
    %v2487 = vsel %vm80, %v2485, 0.0
    %2488 = vadd.xlane.f32.xlu0 %v2487
    %v2489 = vpop.xlane.xlu0 %2488
    %v2490 = vsel %vm80, %v2486, 0.0
    %2491 = vadd.xlane.f32.xlu0 %v2490
    %v2492 = vpop.xlane.xlu0 %2491
    %v2493 = vmul.f32 %v2489, %v1194
    %v2494 = vmul.f32 %v2492, %v1194
    %v2495 = vadd.f32 %v2493, 1e-06
    %v2496 = vadd.f32 %v2494, 1e-06
    %v2497 = vrsqrt.pop %v2495
    %v2498 = vrsqrt.pop %v2496
    %v2499 = vmul.f32 %v2483, %v2497
    %v2500 = vmul.f32 %v2484, %v2498
    %v2501 = vlaneseq
    %v2502 = vshrl.u32 %v2501, 7
    %v2503 = vsub.s32 2, %v2502
    %v2504 = vrot.slane %v1470, %v2503
    %v2505 = vmul.f32 %v2499, %v2504
    %v2506 = vmul.f32 %v2500, %v2504
    %v2507 = vlaneseq
    %v2508 = vshrl.u32 %v2507, 7
    %v2509 = vsub.s32 3, %v2508
    %v2510 = vrot.slane %v1470, %v2509
    %v2511 = vadd.f32 %v2505, %v2510
    %v2512 = vadd.f32 %v2506, %v2510
    %v2513 = vlaneseq
    %v2514 = vshrl.u32 %v2513, 7
    %v2515 = vsub.s32 6, %v2514
    %v2516 = vrot.slane %v1470, %v2515
    %v2518 = vsel %vm80, %v2511, 0
    %v2521 = vsel %vm80, %v2512, 0
    %2523 = vmatprep.subr.mxu0 0.0
    %2524 = vmatpush1.msra.mxu0 %v1461
    %2525 = vmatprep.subr.mxu0 0.0
    %2526 = vmatpush1.msra.mxu0 %v1462
    %2527 = vmatprep.subr.mxu0 0.0
    %2528 = vmatpush1.msra.mxu0 %v1463
    %2529 = vmatprep.subr.mxu0 0.0
    %2530 = vmatpush1.msra.mxu0 %v1464
    %2531 = vmatprep.subr.mxu0 0.0
    %2532 = vmatpush1.msra.mxu0 0.0
    %2533 = vmatprep.subr.mxu0 0.0
    %2534 = vmatpush1.msra.mxu0 0.0
    %2535 = vmatprep.subr.mxu0 0.0
    %2536 = vmatpush1.msra.mxu0 0.0
    %2537 = vmatprep.subr.mxu0 0.0
    %2538 = vmatpush1.msra.mxu0 0.0
    %2539 = vmatprep.subr.mxu0 0.0
    %2540 = vmatpush1.msra.mxu0 0.0
    %2541 = vmatprep.subr.mxu0 0.0
    %2542 = vmatpush1.msra.mxu0 0.0
    %2543 = vmatprep.subr.mxu0 0.0
    %2544 = vmatpush1.msra.mxu0 0.0
    %2545 = vmatprep.subr.mxu0 0.0
    %2546 = vmatpush1.msra.mxu0 0.0
    %2547 = vmatprep.subr.mxu0 0.0
    %2548 = vmatpush1.msra.mxu0 0.0
    %2549 = vmatprep.subr.mxu0 0.0
    %2550 = vmatpush1.msra.mxu0 0.0
    %2551 = vmatprep.subr.mxu0 0.0
    %2552 = vmatpush1.msra.mxu0 0.0
    %2553 = vmatprep.subr.mxu0 0.0
    %2554 = vmatpush1.msra.mxu0 0.0
    %2555 = vmatprep.subr.mxu0 0.0
    %2556 = vmatpush1.msra.mxu0 0.0
    %2557 = vmatprep.subr.mxu0 0.0
    %2558 = vmatpush1.msra.mxu0 0.0
    %2559 = vmatprep.subr.mxu0 0.0
    %2560 = vmatpush1.msra.mxu0 0.0
    %2561 = vmatprep.subr.mxu0 0.0
    %2562 = vmatpush1.msra.mxu0 0.0
    %2563 = vmatprep.subr.mxu0 0.0
    %2564 = vmatpush1.msra.mxu0 0.0
    %2565 = vmatprep.subr.mxu0 0.0
    %2566 = vmatpush1.msra.mxu0 0.0
    %2567 = vmatprep.subr.mxu0 0.0
    %2568 = vmatpush1.msra.mxu0 0.0
    %2569 = vmatprep.subr.mxu0 0.0
    %2570 = vmatpush1.msra.mxu0 0.0
    %2571 = vmatprep.subr.mxu0 0.0
    %2572 = vmatpush1.msra.mxu0 0.0
    %2573 = vmatprep.subr.mxu0 0.0
    %2574 = vmatpush1.msra.mxu0 0.0
    %2575 = vmatprep.subr.mxu0 0.0
    %2576 = vmatpush1.msra.mxu0 0.0
    %2577 = vmatprep.subr.mxu0 0.0
    %2578 = vmatpush1.msra.mxu0 0.0
    %2579 = vmatprep.subr.mxu0 0.0
    %2580 = vmatpush1.msra.mxu0 0.0
    %2581 = vmatprep.subr.mxu0 0.0
    %2582 = vmatpush1.msra.mxu0 0.0
    %2583 = vmatprep.subr.mxu0 0.0
    %2584 = vmatpush1.msra.mxu0 0.0
    %2585 = vmatprep.subr.mxu0 0.0
    %2586 = vmatpush1.msra.mxu0 0.0
    %2587 = vmatprep.mubr.f32.mxu0 0.0
    %2588 = vmatmul.mubr.f32.gmra.mrb[0].mxu0 %v2518
    %v2589 = vpop.f32.mrb[0].mxu0
    %v2590 = vadd.f32 %v2516, %v2589
    %v2591 = vpop.f32.mrb[0].mxu0
    %2592 = vmatprep.mubr.f32.mxu0 0.0
    %2593 = vmatmul.mubr.f32.gmra.mrb[0].mxu0 %v2521
    %v2594 = vpop.f32.mrb[0].mxu0
    %v2595 = vadd.f32 %v2516, %v2594
    %v2596 = vpop.f32.mrb[0].mxu0
    %2597 = vdwg.mxu0
    %v2598 = vmax.f32 %v2590, 0.0
    %v2599 = vmax.f32 %v2595, 0.0
    %v2600 = vlaneseq
    %v2601 = vshrl.u32 %v2600, 7
    %v2602 = vsub.s32 7, %v2601
    %v2603 = vrot.slane %v1470, %v2602
    %v2605 = vsel %vm1318, %v2598, 0
    %v2608 = vsel %vm1318, %v2599, 0
    %v2611 = vsel %vm1318, %v1465, 0
    %v2614 = vsel %vm1318, %v1466, 0
    %v2617 = vsel %vm1318, %v1467, 0
    %v2620 = vsel %vm1318, %v1468, 0
    %2622 = vmatprep.subr.mxu0 0.0
    %2623 = vmatpush1.xpose.msra.mxu0 %v2611
    %2624 = vmatprep.subr.mxu0 0.0
    %2625 = vmatpush1.xpose.msra.mxu0 %v2614
    %2626 = vmatprep.subr.mxu0 0.0
    %2627 = vmatpush1.xpose.msra.mxu0 %v2617
    %2628 = vmatprep.subr.mxu0 0.0
    %2629 = vmatpush1.xpose.msra.mxu0 %v2620
    %2630 = vmatprep.subr.mxu0 0.0
    %2631 = vmatpush1.xpose.msra.mxu0 0.0
    %2632 = vmatprep.subr.mxu0 0.0
    %2633 = vmatpush1.xpose.msra.mxu0 0.0
    %2634 = vmatprep.subr.mxu0 0.0
    %2635 = vmatpush1.xpose.msra.mxu0 0.0
    %2636 = vmatprep.subr.mxu0 0.0
    %2637 = vmatpush1.xpose.msra.mxu0 0.0
    %2638 = vmatprep.subr.mxu0 0.0
    %2639 = vmatpush1.xpose.msra.mxu0 0.0
    %2640 = vmatprep.subr.mxu0 0.0
    %2641 = vmatpush1.xpose.msra.mxu0 0.0
    %2642 = vmatprep.subr.mxu0 0.0
    %2643 = vmatpush1.xpose.msra.mxu0 0.0
    %2644 = vmatprep.subr.mxu0 0.0
    %2645 = vmatpush1.xpose.msra.mxu0 0.0
    %2646 = vmatprep.subr.mxu0 0.0
    %2647 = vmatpush1.xpose.msra.mxu0 0.0
    %2648 = vmatprep.subr.mxu0 0.0
    %2649 = vmatpush1.xpose.msra.mxu0 0.0
    %2650 = vmatprep.subr.mxu0 0.0
    %2651 = vmatpush1.xpose.msra.mxu0 0.0
    %2652 = vmatprep.subr.mxu0 0.0
    %2653 = vmatpush1.xpose.msra.mxu0 0.0
    %2654 = vmatprep.subr.mxu0 0.0
    %2655 = vmatpush1.xpose.msra.mxu0 0.0
    %2656 = vmatprep.subr.mxu0 0.0
    %2657 = vmatpush1.xpose.msra.mxu0 0.0
    %2658 = vmatprep.subr.mxu0 0.0
    %2659 = vmatpush1.xpose.msra.mxu0 0.0
    %2660 = vmatprep.subr.mxu0 0.0
    %2661 = vmatpush1.xpose.msra.mxu0 0.0
    %2662 = vmatprep.subr.mxu0 0.0
    %2663 = vmatpush1.xpose.msra.mxu0 0.0
    %2664 = vmatprep.subr.mxu0 0.0
    %2665 = vmatpush1.xpose.msra.mxu0 0.0
    %2666 = vmatprep.subr.mxu0 0.0
    %2667 = vmatpush1.xpose.msra.mxu0 0.0
    %2668 = vmatprep.subr.mxu0 0.0
    %2669 = vmatpush1.xpose.msra.mxu0 0.0
    %2670 = vmatprep.subr.mxu0 0.0
    %2671 = vmatpush1.xpose.msra.mxu0 0.0
    %2672 = vmatprep.subr.mxu0 0.0
    %2673 = vmatpush1.xpose.msra.mxu0 0.0
    %2674 = vmatprep.subr.mxu0 0.0
    %2675 = vmatpush1.xpose.msra.mxu0 0.0
    %2676 = vmatprep.subr.mxu0 0.0
    %2677 = vmatpush1.xpose.msra.mxu0 0.0
    %2678 = vmatprep.subr.mxu0 0.0
    %2679 = vmatpush1.xpose.msra.mxu0 0.0
    %2680 = vmatprep.subr.mxu0 0.0
    %2681 = vmatpush1.xpose.msra.mxu0 0.0
    %2682 = vmatprep.subr.mxu0 0.0
    %2683 = vmatpush1.xpose.msra.mxu0 0.0
    %2684 = vmatprep.subr.mxu0 0.0
    %2685 = vmatpush1.xpose.msra.mxu0 0.0
    %2686 = vmatprep.mubr.f32.mxu0 0.0
    %2687 = vmatmul.mubr.f32.gmra.mrb[0].mxu0 %v2605
    %v2688 = vpop.f32.mrb[0].mxu0
    %v2689 = vadd.f32 %v2603, %v2688
    %v2690 = vpop.f32.mrb[0].mxu0
    %2691 = vmatprep.mubr.f32.mxu0 0.0
    %2692 = vmatmul.mubr.f32.gmra.mrb[0].mxu0 %v2608
    %v2693 = vpop.f32.mrb[0].mxu0
    %v2694 = vadd.f32 %v2603, %v2693
    %v2695 = vpop.f32.mrb[0].mxu0
    %2696 = vdwg.mxu0
    %v2697 = vadd.f32 %v2511, %v2689
    %v2698 = vadd.f32 %v2512, %v2694
    %v2699 = vsel %vm80, %v2697, 0.0
    %2700 = vadd.xlane.f32.xlu0 %v2699
    %v2701 = vpop.xlane.xlu0 %2700
    %v2702 = vsel %vm80, %v2698, 0.0
    %2703 = vadd.xlane.f32.xlu0 %v2702
    %v2704 = vpop.xlane.xlu0 %2703
    %v2705 = vmul.f32 %v2701, %v1194
    %v2706 = vmul.f32 %v2704, %v1194
    %v2707 = vsub.f32 %v2697, %v2705
    %v2708 = vsub.f32 %v2698, %v2706
    %v2709 = vmul.f32 %v2707, %v2707
    %v2710 = vmul.f32 %v2708, %v2708
    %v2711 = vsel %vm80, %v2709, 0.0
    %2712 = vadd.xlane.f32.xlu0 %v2711
    %v2713 = vpop.xlane.xlu0 %2712
    %v2714 = vsel %vm80, %v2710, 0.0
    %2715 = vadd.xlane.f32.xlu0 %v2714
    %v2716 = vpop.xlane.xlu0 %2715
    %v2717 = vmul.f32 %v2713, %v1194
    %v2718 = vmul.f32 %v2716, %v1194
    %v2719 = vadd.f32 %v2717, 1e-06
    %v2720 = vadd.f32 %v2718, 1e-06
    %v2721 = vrsqrt.pop %v2719
    %v2722 = vrsqrt.pop %v2720
    %v2723 = vmul.f32 %v2707, %v2721
    %v2724 = vmul.f32 %v2708, %v2722
    %v2725 = vlaneseq
    %v2726 = vshrl.u32 %v2725, 7
    %v2727 = vsub.s32 4, %v2726
    %v2728 = vrot.slane %v1470, %v2727
    %v2729 = vmul.f32 %v2723, %v2728
    %v2730 = vmul.f32 %v2724, %v2728
    %v2731 = vlaneseq
    %v2732 = vshrl.u32 %v2731, 7
    %v2733 = vsub.s32 5, %v2732
    %v2734 = vrot.slane %v1470, %v2733
    %v2735 = vadd.f32 %v2729, %v2734
    %v2736 = vadd.f32 %v2730, %v2734
    %v2737 = vlaneseq
    %v2738 = vshrl.u32 %v2737, 7
    %v2739 = vsub.s32 2, %v2738
    %v2740 = vrot.slane %v70, %v2739
    %v2742 = vsel %vm80, %v2735, 0
    %v2745 = vsel %vm80, %v2736, 0
    %2747 = vmatprep.subr.mxu0 0.0
    %2748 = vmatpush1.msra.mxu0 %v62
    %2749 = vmatprep.subr.mxu0 0.0
    %2750 = vmatpush1.msra.mxu0 %v63
    %2751 = vmatprep.subr.mxu0 0.0
    %2752 = vmatpush1.msra.mxu0 %v64
    %2753 = vmatprep.subr.mxu0 0.0
    %2754 = vmatpush1.msra.mxu0 %v65
    %2755 = vmatprep.subr.mxu0 0.0
    %2756 = vmatpush1.msra.mxu0 0.0
    %2757 = vmatprep.subr.mxu0 0.0
    %2758 = vmatpush1.msra.mxu0 0.0
    %2759 = vmatprep.subr.mxu0 0.0
    %2760 = vmatpush1.msra.mxu0 0.0
    %2761 = vmatprep.subr.mxu0 0.0
    %2762 = vmatpush1.msra.mxu0 0.0
    %2763 = vmatprep.subr.mxu0 0.0
    %2764 = vmatpush1.msra.mxu0 0.0
    %2765 = vmatprep.subr.mxu0 0.0
    %2766 = vmatpush1.msra.mxu0 0.0
    %2767 = vmatprep.subr.mxu0 0.0
    %2768 = vmatpush1.msra.mxu0 0.0
    %2769 = vmatprep.subr.mxu0 0.0
    %2770 = vmatpush1.msra.mxu0 0.0
    %2771 = vmatprep.subr.mxu0 0.0
    %2772 = vmatpush1.msra.mxu0 0.0
    %2773 = vmatprep.subr.mxu0 0.0
    %2774 = vmatpush1.msra.mxu0 0.0
    %2775 = vmatprep.subr.mxu0 0.0
    %2776 = vmatpush1.msra.mxu0 0.0
    %2777 = vmatprep.subr.mxu0 0.0
    %2778 = vmatpush1.msra.mxu0 0.0
    %2779 = vmatprep.subr.mxu0 0.0
    %2780 = vmatpush1.msra.mxu0 0.0
    %2781 = vmatprep.subr.mxu0 0.0
    %2782 = vmatpush1.msra.mxu0 0.0
    %2783 = vmatprep.subr.mxu0 0.0
    %2784 = vmatpush1.msra.mxu0 0.0
    %2785 = vmatprep.subr.mxu0 0.0
    %2786 = vmatpush1.msra.mxu0 0.0
    %2787 = vmatprep.subr.mxu0 0.0
    %2788 = vmatpush1.msra.mxu0 0.0
    %2789 = vmatprep.subr.mxu0 0.0
    %2790 = vmatpush1.msra.mxu0 0.0
    %2791 = vmatprep.subr.mxu0 0.0
    %2792 = vmatpush1.msra.mxu0 0.0
    %2793 = vmatprep.subr.mxu0 0.0
    %2794 = vmatpush1.msra.mxu0 0.0
    %2795 = vmatprep.subr.mxu0 0.0
    %2796 = vmatpush1.msra.mxu0 0.0
    %2797 = vmatprep.subr.mxu0 0.0
    %2798 = vmatpush1.msra.mxu0 0.0
    %2799 = vmatprep.subr.mxu0 0.0
    %2800 = vmatpush1.msra.mxu0 0.0
    %2801 = vmatprep.subr.mxu0 0.0
    %2802 = vmatpush1.msra.mxu0 0.0
    %2803 = vmatprep.subr.mxu0 0.0
    %2804 = vmatpush1.msra.mxu0 0.0
    %2805 = vmatprep.subr.mxu0 0.0
    %2806 = vmatpush1.msra.mxu0 0.0
    %2807 = vmatprep.subr.mxu0 0.0
    %2808 = vmatpush1.msra.mxu0 0.0
    %2809 = vmatprep.subr.mxu0 0.0
    %2810 = vmatpush1.msra.mxu0 0.0
    %2811 = vmatprep.mubr.f32.mxu0 0.0
    %2812 = vmatmul.mubr.f32.gmra.mrb[0].mxu0 %v2742
    %v2813 = vpop.f32.mrb[0].mxu0
    %v2814 = vadd.f32 %v2740, %v2813
    %v2815 = vpop.f32.mrb[0].mxu0
    %2816 = vmatprep.mubr.f32.mxu0 0.0
    %2817 = vmatmul.mubr.f32.gmra.mrb[0].mxu0 %v2745
    %v2818 = vpop.f32.mrb[0].mxu0
    %v2819 = vadd.f32 %v2740, %v2818
    %v2820 = vpop.f32.mrb[0].mxu0
    %2821 = vdwg.mxu0
    %v2823 = vsel %vm360, %v2814, 0
    %v2826 = vsel %vm360, %v2819, 0
    %v2829 = vsel %vm360, %v66, 0
    %v2832 = vsel %vm360, %v67, 0
    %2834 = vmatprep.subr.mxu0 0.0
    %2835 = vmatpush1.xpose.msra.mxu0 %v2829
    %2836 = vmatprep.subr.mxu0 0.0
    %2837 = vmatpush1.xpose.msra.mxu0 %v2832
    %2838 = vmatprep.subr.mxu0 0.0
    %2839 = vmatpush1.xpose.msra.mxu0 0.0
    %2840 = vmatprep.subr.mxu0 0.0
    %2841 = vmatpush1.xpose.msra.mxu0 0.0
    %2842 = vmatprep.subr.mxu0 0.0
    %2843 = vmatpush1.xpose.msra.mxu0 0.0
    %2844 = vmatprep.subr.mxu0 0.0
    %2845 = vmatpush1.xpose.msra.mxu0 0.0
    %2846 = vmatprep.subr.mxu0 0.0
    %2847 = vmatpush1.xpose.msra.mxu0 0.0
    %2848 = vmatprep.subr.mxu0 0.0
    %2849 = vmatpush1.xpose.msra.mxu0 0.0
    %2850 = vmatprep.subr.mxu0 0.0
    %2851 = vmatpush1.xpose.msra.mxu0 0.0
    %2852 = vmatprep.subr.mxu0 0.0
    %2853 = vmatpush1.xpose.msra.mxu0 0.0
    %2854 = vmatprep.subr.mxu0 0.0
    %2855 = vmatpush1.xpose.msra.mxu0 0.0
    %2856 = vmatprep.subr.mxu0 0.0
    %2857 = vmatpush1.xpose.msra.mxu0 0.0
    %2858 = vmatprep.subr.mxu0 0.0
    %2859 = vmatpush1.xpose.msra.mxu0 0.0
    %2860 = vmatprep.subr.mxu0 0.0
    %2861 = vmatpush1.xpose.msra.mxu0 0.0
    %2862 = vmatprep.subr.mxu0 0.0
    %2863 = vmatpush1.xpose.msra.mxu0 0.0
    %2864 = vmatprep.subr.mxu0 0.0
    %2865 = vmatpush1.xpose.msra.mxu0 0.0
    %2866 = vmatprep.subr.mxu0 0.0
    %2867 = vmatpush1.xpose.msra.mxu0 0.0
    %2868 = vmatprep.subr.mxu0 0.0
    %2869 = vmatpush1.xpose.msra.mxu0 0.0
    %2870 = vmatprep.subr.mxu0 0.0
    %2871 = vmatpush1.xpose.msra.mxu0 0.0
    %2872 = vmatprep.subr.mxu0 0.0
    %2873 = vmatpush1.xpose.msra.mxu0 0.0
    %2874 = vmatprep.subr.mxu0 0.0
    %2875 = vmatpush1.xpose.msra.mxu0 0.0
    %2876 = vmatprep.subr.mxu0 0.0
    %2877 = vmatpush1.xpose.msra.mxu0 0.0
    %2878 = vmatprep.subr.mxu0 0.0
    %2879 = vmatpush1.xpose.msra.mxu0 0.0
    %2880 = vmatprep.subr.mxu0 0.0
    %2881 = vmatpush1.xpose.msra.mxu0 0.0
    %2882 = vmatprep.subr.mxu0 0.0
    %2883 = vmatpush1.xpose.msra.mxu0 0.0
    %2884 = vmatprep.subr.mxu0 0.0
    %2885 = vmatpush1.xpose.msra.mxu0 0.0
    %2886 = vmatprep.subr.mxu0 0.0
    %2887 = vmatpush1.xpose.msra.mxu0 0.0
    %2888 = vmatprep.subr.mxu0 0.0
    %2889 = vmatpush1.xpose.msra.mxu0 0.0
    %2890 = vmatprep.subr.mxu0 0.0
    %2891 = vmatpush1.xpose.msra.mxu0 0.0
    %2892 = vmatprep.subr.mxu0 0.0
    %2893 = vmatpush1.xpose.msra.mxu0 0.0
    %2894 = vmatprep.subr.mxu0 0.0
    %2895 = vmatpush1.xpose.msra.mxu0 0.0
    %2896 = vmatprep.subr.mxu0 0.0
    %2897 = vmatpush1.xpose.msra.mxu0 0.0
    %2898 = vmatprep.mubr.f32.mxu0 0.0
    %2899 = vmatmul.mubr.f32.gmra.mrb[0].mxu0 %v2823
    %v2900 = vpop.f32.mrb[0].mxu0
    %v2901 = vadd.f32 0.0, %v2900
    %v2902 = vpop.f32.mrb[0].mxu0
    %2903 = vmatprep.mubr.f32.mxu0 0.0
    %2904 = vmatmul.mubr.f32.gmra.mrb[0].mxu0 %v2826
    %v2905 = vpop.f32.mrb[0].mxu0
    %v2906 = vadd.f32 0.0, %v2905
    %v2907 = vpop.f32.mrb[0].mxu0
    %2908 = vdwg.mxu0
    %v2909 = vmul.f32 %v2814, %v2814
    %v2910 = vmul.f32 %v2819, %v2819
    %v2911 = vsel %vm360, %v2909, 0.0
    %2912 = vadd.xlane.f32.xlu0 %v2911
    %v2913 = vpop.xlane.xlu0 %2912
    %v2914 = vsel %vm360, %v2910, 0.0
    %2915 = vadd.xlane.f32.xlu0 %v2914
    %v2916 = vpop.xlane.xlu0 %2915
    %v2917 = vmul.f32 %v2901, 2.0
    %v2918 = vmul.f32 %v2906, 2.0
    %v2919 = vsub.f32 %v2913, %v2917
    %v2920 = vsub.f32 %v2916, %v2918
    %v2921 = vlaneseq
    %v2922 = vshrl.u32 %v2921, 7
    %v2923 = vsub.s32 1, %v2922
    %v2924 = vrot.slane %v70, %v2923
    %v2925 = vadd.f32 %v2919, %v2924
    %v2926 = vadd.f32 %v2920, %v2924
    %v2927 = vsel %vm360, %v2925, inf
    %2928 = vmin.xlane.f32.xlu0 %v2927
    %v2929 = vpop.xlane.xlu0 %2928
    %v2930 = vsel %vm360, %v2926, inf
    %2931 = vmin.xlane.f32.xlu0 %v2930
    %v2932 = vpop.xlane.xlu0 %2931
    %v2933 = vlaneseq
    %v2934 = vand.u32 %v2933, 127
    %v2935 = vcvt.s32.f32 %v2934
    %vm2936 = vcmp.le.f32.partialorder %v2925, %v2929
    %vm2937 = vcmp.le.f32.partialorder %v2926, %v2932
    %v2938 = vsel %vm2936, %v2935, 16.0
    %v2939 = vsel %vm2937, %v2935, 16.0
    %v2940 = vsel %vm360, %v2938, inf
    %2941 = vmin.xlane.f32.xlu0 %v2940
    %v2942 = vpop.xlane.xlu0 %2941
    %v2943 = vsel %vm360, %v2939, inf
    %2944 = vmin.xlane.f32.xlu0 %v2943
    %v2945 = vpop.xlane.xlu0 %2944
    %vm2946 = vcmp.eq.f32.partialorder %v2935, %v2942
    %vm2947 = vcmp.eq.f32.partialorder %v2935, %v2945
    %v2948 = vsel %vm2946, 1, 0
    %v2949 = vsel %vm2947, 1, 0
    %v2950 = vcvt.s32.f32 %v2948
    %v2951 = vcvt.s32.f32 %v2949
    %2953 = vset.pattern.permute.xlu0 0
    %2954 = vperm.xlu0 %2953, %v73
    %v2955 = vpop.permute.xlu0 %2954
    %2958 = vset.pattern.permute.xlu0 0
    %2959 = vperm.xlu0 %2958, %v74
    %v2960 = vpop.permute.xlu0 %2959
    %v2962 = vmul.f32 %v2950, %v2955
    %v2963 = vmul.f32 %v2951, %v2960
    %v2964 = vsel %vm360, %v2962, 0.0
    %v2965 = vsel %vm360, %v2963, 0.0
    %v2966 = vadd.f32 %v2964, %v2965
    %v2967 = vrot.slane %v2966, 4
    %v2968 = vadd.f32 %v2966, %v2967
    %v2969 = vrot.slane %v2968, 2
    %v2970 = vadd.f32 %v2968, %v2969
    %v2971 = vrot.slane %v2970, 1
    %v2972 = vadd.f32 %v2970, %v2971
    %v2974 = vsel %vm360, %v2950, 0
    %v2977 = vsel %vm360, %v2951, 0
    %2979 = vmatprep.subr.mxu0 0.0
    %2980 = vmatpush1.msra.mxu0 %v66
    %2981 = vmatprep.subr.mxu0 0.0
    %2982 = vmatpush1.msra.mxu0 %v67
    %2983 = vmatprep.subr.mxu0 0.0
    %2984 = vmatpush1.msra.mxu0 0.0
    %2985 = vmatprep.subr.mxu0 0.0
    %2986 = vmatpush1.msra.mxu0 0.0
    %2987 = vmatprep.subr.mxu0 0.0
    %2988 = vmatpush1.msra.mxu0 0.0
    %2989 = vmatprep.subr.mxu0 0.0
    %2990 = vmatpush1.msra.mxu0 0.0
    %2991 = vmatprep.subr.mxu0 0.0
    %2992 = vmatpush1.msra.mxu0 0.0
    %2993 = vmatprep.subr.mxu0 0.0
    %2994 = vmatpush1.msra.mxu0 0.0
    %2995 = vmatprep.subr.mxu0 0.0
    %2996 = vmatpush1.msra.mxu0 0.0
    %2997 = vmatprep.subr.mxu0 0.0
    %2998 = vmatpush1.msra.mxu0 0.0
    %2999 = vmatprep.subr.mxu0 0.0
    %3000 = vmatpush1.msra.mxu0 0.0
    %3001 = vmatprep.subr.mxu0 0.0
    %3002 = vmatpush1.msra.mxu0 0.0
    %3003 = vmatprep.subr.mxu0 0.0
    %3004 = vmatpush1.msra.mxu0 0.0
    %3005 = vmatprep.subr.mxu0 0.0
    %3006 = vmatpush1.msra.mxu0 0.0
    %3007 = vmatprep.subr.mxu0 0.0
    %3008 = vmatpush1.msra.mxu0 0.0
    %3009 = vmatprep.subr.mxu0 0.0
    %3010 = vmatpush1.msra.mxu0 0.0
    %3011 = vmatprep.subr.mxu0 0.0
    %3012 = vmatpush1.msra.mxu0 0.0
    %3013 = vmatprep.subr.mxu0 0.0
    %3014 = vmatpush1.msra.mxu0 0.0
    %3015 = vmatprep.subr.mxu0 0.0
    %3016 = vmatpush1.msra.mxu0 0.0
    %3017 = vmatprep.subr.mxu0 0.0
    %3018 = vmatpush1.msra.mxu0 0.0
    %3019 = vmatprep.subr.mxu0 0.0
    %3020 = vmatpush1.msra.mxu0 0.0
    %3021 = vmatprep.subr.mxu0 0.0
    %3022 = vmatpush1.msra.mxu0 0.0
    %3023 = vmatprep.subr.mxu0 0.0
    %3024 = vmatpush1.msra.mxu0 0.0
    %3025 = vmatprep.subr.mxu0 0.0
    %3026 = vmatpush1.msra.mxu0 0.0
    %3027 = vmatprep.subr.mxu0 0.0
    %3028 = vmatpush1.msra.mxu0 0.0
    %3029 = vmatprep.subr.mxu0 0.0
    %3030 = vmatpush1.msra.mxu0 0.0
    %3031 = vmatprep.subr.mxu0 0.0
    %3032 = vmatpush1.msra.mxu0 0.0
    %3033 = vmatprep.subr.mxu0 0.0
    %3034 = vmatpush1.msra.mxu0 0.0
    %3035 = vmatprep.subr.mxu0 0.0
    %3036 = vmatpush1.msra.mxu0 0.0
    %3037 = vmatprep.subr.mxu0 0.0
    %3038 = vmatpush1.msra.mxu0 0.0
    %3039 = vmatprep.subr.mxu0 0.0
    %3040 = vmatpush1.msra.mxu0 0.0
    %3041 = vmatprep.subr.mxu0 0.0
    %3042 = vmatpush1.msra.mxu0 0.0
    %3043 = vmatprep.mubr.f32.mxu0 0.0
    %3044 = vmatmul.mubr.f32.gmra.mrb[0].mxu0 %v2974
    %v3045 = vpop.f32.mrb[0].mxu0
    %v3046 = vadd.f32 0.0, %v3045
    %v3047 = vpop.f32.mrb[0].mxu0
    %3048 = vmatprep.mubr.f32.mxu0 0.0
    %3049 = vmatmul.mubr.f32.gmra.mrb[0].mxu0 %v2977
    %v3050 = vpop.f32.mrb[0].mxu0
    %v3051 = vadd.f32 0.0, %v3050
    %v3052 = vpop.f32.mrb[0].mxu0
    %3053 = vdwg.mxu0
    %v3054 = vsub.f32 %v3046, %v2814
    %v3055 = vsub.f32 %v3051, %v2819
    %v3056 = vmul.f32 %v3054, %v3054
    %v3057 = vmul.f32 %v3055, %v3055
    %v3058 = vsel %vm360, %v3056, 0.0
    %3059 = vadd.xlane.f32.xlu0 %v3058
    %v3060 = vpop.xlane.xlu0 %3059
    %v3061 = vsel %vm360, %v3057, 0.0
    %3062 = vadd.xlane.f32.xlu0 %v3061
    %v3063 = vpop.xlane.xlu0 %3062
    %v3064 = vrcp.pop 16.0
    %v3065 = vmul.f32 %v3060, %v3064
    %v3066 = vmul.f32 %v3063, %v3064
    %v3067 = vmul.f32 %v3065, %v73
    %v3068 = vmul.f32 %v3066, %v74
    %vm3069 = vcmask 7168
    %v3070 = vsel %vm3069, %v3067, 0.0
    %v3071 = vrot.slane %v3070, 4
    %v3072 = vadd.f32 %v3070, %v3071
    %v3073 = vrot.slane %v3072, 2
    %v3074 = vadd.f32 %v3072, %v3073
    %v3075 = vrot.slane %v3074, 1
    %v3076 = vadd.f32 %v3074, %v3075
    %v3077 = vsel %vm3069, %v3068, 0.0
    %v3078 = vrot.slane %v3077, 4
    %v3079 = vadd.f32 %v3077, %v3078
    %v3080 = vrot.slane %v3079, 2
    %v3081 = vadd.f32 %v3079, %v3080
    %v3082 = vrot.slane %v3081, 1
    %v3083 = vadd.f32 %v3081, %v3082
    %vm3084 = vcmask 1040384
    %v3085 = vsel %vm3084, %v3076, %v3083
    %v3086 = vmul.f32 %v3085, 0.035714287
    %v3087 = vlaneseq
    %v3088 = vshrl.u32 %v3087, 7
    %v3089 = vsub.s32 3, %v3088
    %v3090 = vrot.slane %v70, %v3089
    %v3092 = vsel %vm360, %v3046, 0
    %v3095 = vsel %vm360, %v3051, 0
    %3097 = vmatprep.subr.mxu0 0.0
    %3098 = vmatpush1.msra.mxu0 %v68
    %3099 = vmatprep.subr.mxu0 0.0
    %3100 = vmatpush1.msra.mxu0 %v69
    %3101 = vmatprep.subr.mxu0 0.0
    %3102 = vmatpush1.msra.mxu0 0.0
    %3103 = vmatprep.subr.mxu0 0.0
    %3104 = vmatpush1.msra.mxu0 0.0
    %3105 = vmatprep.subr.mxu0 0.0
    %3106 = vmatpush1.msra.mxu0 0.0
    %3107 = vmatprep.subr.mxu0 0.0
    %3108 = vmatpush1.msra.mxu0 0.0
    %3109 = vmatprep.subr.mxu0 0.0
    %3110 = vmatpush1.msra.mxu0 0.0
    %3111 = vmatprep.subr.mxu0 0.0
    %3112 = vmatpush1.msra.mxu0 0.0
    %3113 = vmatprep.subr.mxu0 0.0
    %3114 = vmatpush1.msra.mxu0 0.0
    %3115 = vmatprep.subr.mxu0 0.0
    %3116 = vmatpush1.msra.mxu0 0.0
    %3117 = vmatprep.subr.mxu0 0.0
    %3118 = vmatpush1.msra.mxu0 0.0
    %3119 = vmatprep.subr.mxu0 0.0
    %3120 = vmatpush1.msra.mxu0 0.0
    %3121 = vmatprep.subr.mxu0 0.0
    %3122 = vmatpush1.msra.mxu0 0.0
    %3123 = vmatprep.subr.mxu0 0.0
    %3124 = vmatpush1.msra.mxu0 0.0
    %3125 = vmatprep.subr.mxu0 0.0
    %3126 = vmatpush1.msra.mxu0 0.0
    %3127 = vmatprep.subr.mxu0 0.0
    %3128 = vmatpush1.msra.mxu0 0.0
    %3129 = vmatprep.subr.mxu0 0.0
    %3130 = vmatpush1.msra.mxu0 0.0
    %3131 = vmatprep.subr.mxu0 0.0
    %3132 = vmatpush1.msra.mxu0 0.0
    %3133 = vmatprep.subr.mxu0 0.0
    %3134 = vmatpush1.msra.mxu0 0.0
    %3135 = vmatprep.subr.mxu0 0.0
    %3136 = vmatpush1.msra.mxu0 0.0
    %3137 = vmatprep.subr.mxu0 0.0
    %3138 = vmatpush1.msra.mxu0 0.0
    %3139 = vmatprep.subr.mxu0 0.0
    %3140 = vmatpush1.msra.mxu0 0.0
    %3141 = vmatprep.subr.mxu0 0.0
    %3142 = vmatpush1.msra.mxu0 0.0
    %3143 = vmatprep.subr.mxu0 0.0
    %3144 = vmatpush1.msra.mxu0 0.0
    %3145 = vmatprep.subr.mxu0 0.0
    %3146 = vmatpush1.msra.mxu0 0.0
    %3147 = vmatprep.subr.mxu0 0.0
    %3148 = vmatpush1.msra.mxu0 0.0
    %3149 = vmatprep.subr.mxu0 0.0
    %3150 = vmatpush1.msra.mxu0 0.0
    %3151 = vmatprep.subr.mxu0 0.0
    %3152 = vmatpush1.msra.mxu0 0.0
    %3153 = vmatprep.subr.mxu0 0.0
    %3154 = vmatpush1.msra.mxu0 0.0
    %3155 = vmatprep.subr.mxu0 0.0
    %3156 = vmatpush1.msra.mxu0 0.0
    %3157 = vmatprep.subr.mxu0 0.0
    %3158 = vmatpush1.msra.mxu0 0.0
    %3159 = vmatprep.subr.mxu0 0.0
    %3160 = vmatpush1.msra.mxu0 0.0
    %3161 = vmatprep.mubr.f32.mxu0 0.0
    %3162 = vmatmul.mubr.f32.gmra.mrb[0].mxu0 %v3092
    %v3163 = vpop.f32.mrb[0].mxu0
    %v3164 = vadd.f32 %v3090, %v3163
    %v3165 = vpop.f32.mrb[0].mxu0
    %3166 = vmatprep.mubr.f32.mxu0 0.0
    %3167 = vmatmul.mubr.f32.gmra.mrb[0].mxu0 %v3095
    %v3168 = vpop.f32.mrb[0].mxu0
    %v3169 = vadd.f32 %v3090, %v3168
    %v3170 = vpop.f32.mrb[0].mxu0
    %3171 = vdwg.mxu0
    %3172 = vst.msk [vmem:[%s6 + $0x8] sm:$0xff] %vm80, %v3164
    %3173 = vst.msk [vmem:[%s6 + $0x10] sm:$0xff] %vm80, %v3169
    %v3174 = vcvt.f32.s32.to.zero.pseudo %v2942
    %v3175 = vcvt.f32.s32.to.zero.pseudo %v2945
    %3176 = vst.msk [vmem:[%s7] sm:$0xff] %vm3069, %v3174
    %3177 = vst.msk [vmem:[%s7 + $0x8] sm:$0xff] %vm3069, %v3175
    %v3178 = vadd.f32 %v3164, %v60
    %v3179 = vadd.f32 %v3169, %v61
    %s3180 = scalar_lea.vmem %s1, 256
    %v3181 = vld [vmem:[%s3180] sm:$0xff]
    %v3182 = vld [vmem:[%s3180 + $0x20] sm:$0xff]
    %v3183 = vld [vmem:[%s3180 + $0x40] sm:$0xff]
    %v3184 = vld [vmem:[%s3180 + $0x60] sm:$0xff]
    %v3185 = vld [vmem:[%s3180 + $0x8] sm:$0xff]
    %v3186 = vld [vmem:[%s3180 + $0x28] sm:$0xff]
    %v3187 = vld [vmem:[%s3180 + $0x48] sm:$0xff]
    %v3188 = vld [vmem:[%s3180 + $0x68] sm:$0xff]
    %v3189 = vld [vmem:[%s3180 + $0x10] sm:$0xff]
    %v3190 = vld [vmem:[%s3180 + $0x30] sm:$0xff]
    %v3191 = vld [vmem:[%s3180 + $0x50] sm:$0xff]
    %v3192 = vld [vmem:[%s3180 + $0x70] sm:$0xff]
    %v3193 = vld [vmem:[%s3180 + $0x18] sm:$0xff]
    %v3194 = vld [vmem:[%s3180 + $0x38] sm:$0xff]
    %v3195 = vld [vmem:[%s3180 + $0x58] sm:$0xff]
    %v3196 = vld [vmem:[%s3180 + $0x78] sm:$0xff]
    %s3197 = scalar_lea.vmem [#allocation2], 16
    %v3198 = vld [vmem:[%s3197] sm:$0xff]
    %v3199 = vlaneseq
    %v3200 = vshrl.u32 %v3199, 7
    %v3201 = vsub.s32 0, %v3200
    %v3202 = vrot.slane %v3198, %v3201
    %v3204 = vsel %vm80, %v3178, 0
    %v3207 = vsel %vm80, %v3179, 0
    %3209 = vmatprep.subr.mxu0 0.0
    %3210 = vmatpush1.msra.mxu0 %v3181
    %3211 = vmatprep.subr.mxu0 0.0
    %3212 = vmatpush1.msra.mxu0 %v3182
    %3213 = vmatprep.subr.mxu0 0.0
    %3214 = vmatpush1.msra.mxu0 %v3183
    %3215 = vmatprep.subr.mxu0 0.0
    %3216 = vmatpush1.msra.mxu0 %v3184
    %3217 = vmatprep.subr.mxu0 0.0
    %3218 = vmatpush1.msra.mxu0 0.0
    %3219 = vmatprep.subr.mxu0 0.0
    %3220 = vmatpush1.msra.mxu0 0.0
    %3221 = vmatprep.subr.mxu0 0.0
    %3222 = vmatpush1.msra.mxu0 0.0
    %3223 = vmatprep.subr.mxu0 0.0
    %3224 = vmatpush1.msra.mxu0 0.0
    %3225 = vmatprep.subr.mxu0 0.0
    %3226 = vmatpush1.msra.mxu0 0.0
    %3227 = vmatprep.subr.mxu0 0.0
    %3228 = vmatpush1.msra.mxu0 0.0
    %3229 = vmatprep.subr.mxu0 0.0
    %3230 = vmatpush1.msra.mxu0 0.0
    %3231 = vmatprep.subr.mxu0 0.0
    %3232 = vmatpush1.msra.mxu0 0.0
    %3233 = vmatprep.subr.mxu0 0.0
    %3234 = vmatpush1.msra.mxu0 0.0
    %3235 = vmatprep.subr.mxu0 0.0
    %3236 = vmatpush1.msra.mxu0 0.0
    %3237 = vmatprep.subr.mxu0 0.0
    %3238 = vmatpush1.msra.mxu0 0.0
    %3239 = vmatprep.subr.mxu0 0.0
    %3240 = vmatpush1.msra.mxu0 0.0
    %3241 = vmatprep.subr.mxu0 0.0
    %3242 = vmatpush1.msra.mxu0 0.0
    %3243 = vmatprep.subr.mxu0 0.0
    %3244 = vmatpush1.msra.mxu0 0.0
    %3245 = vmatprep.subr.mxu0 0.0
    %3246 = vmatpush1.msra.mxu0 0.0
    %3247 = vmatprep.subr.mxu0 0.0
    %3248 = vmatpush1.msra.mxu0 0.0
    %3249 = vmatprep.subr.mxu0 0.0
    %3250 = vmatpush1.msra.mxu0 0.0
    %3251 = vmatprep.subr.mxu0 0.0
    %3252 = vmatpush1.msra.mxu0 0.0
    %3253 = vmatprep.subr.mxu0 0.0
    %3254 = vmatpush1.msra.mxu0 0.0
    %3255 = vmatprep.subr.mxu0 0.0
    %3256 = vmatpush1.msra.mxu0 0.0
    %3257 = vmatprep.subr.mxu0 0.0
    %3258 = vmatpush1.msra.mxu0 0.0
    %3259 = vmatprep.subr.mxu0 0.0
    %3260 = vmatpush1.msra.mxu0 0.0
    %3261 = vmatprep.subr.mxu0 0.0
    %3262 = vmatpush1.msra.mxu0 0.0
    %3263 = vmatprep.subr.mxu0 0.0
    %3264 = vmatpush1.msra.mxu0 0.0
    %3265 = vmatprep.subr.mxu0 0.0
    %3266 = vmatpush1.msra.mxu0 0.0
    %3267 = vmatprep.subr.mxu0 0.0
    %3268 = vmatpush1.msra.mxu0 0.0
    %3269 = vmatprep.subr.mxu0 0.0
    %3270 = vmatpush1.msra.mxu0 0.0
    %3271 = vmatprep.subr.mxu0 0.0
    %3272 = vmatpush1.msra.mxu0 0.0
    %3273 = vmatprep.mubr.f32.mxu0 0.0
    %3274 = vmatmul.mubr.f32.gmra.mrb[0].mxu0 %v3204
    %v3275 = vpop.f32.mrb[0].mxu0
    %v3276 = vadd.f32 %v3202, %v3275
    %v3277 = vpop.f32.mrb[0].mxu0
    %3278 = vmatprep.mubr.f32.mxu0 0.0
    %3279 = vmatmul.mubr.f32.gmra.mrb[0].mxu0 %v3207
    %v3280 = vpop.f32.mrb[0].mxu0
    %v3281 = vadd.f32 %v3202, %v3280
    %v3282 = vpop.f32.mrb[0].mxu0
    %3283 = vdwg.mxu0
    %v3284 = vmul.f32 %v3276, 0.35355338
    %v3285 = vmul.f32 %v3281, 0.35355338
    %3288 = vrot.lane.b32.xlu0 %v3276, 96
    %v3289 = vpop.permute.xlu0 %3288
    %3290 = vrot.lane.b32.xlu0 %v3281, 96
    %v3291 = vpop.permute.xlu0 %3290
    %v3293 = vsel %vm274, %v3284, 0
    %v3296 = vsel %vm274, %v3285, 0
    %v3298 = vsel %vm274, %v3289, 0
    %v3300 = vsel %vm274, %v3291, 0
    %3302 = vmatprep.subr.mxu0 0.0
    %3303 = vmatpush1.xpose.msra.mxu0 %v3298
    %3304 = vmatprep.subr.mxu0 0.0
    %3305 = vmatpush1.xpose.msra.mxu0 %v3300
    %3306 = vmatprep.subr.mxu0 0.0
    %3307 = vmatpush1.xpose.msra.mxu0 0.0
    %3308 = vmatprep.subr.mxu0 0.0
    %3309 = vmatpush1.xpose.msra.mxu0 0.0
    %3310 = vmatprep.subr.mxu0 0.0
    %3311 = vmatpush1.xpose.msra.mxu0 0.0
    %3312 = vmatprep.subr.mxu0 0.0
    %3313 = vmatpush1.xpose.msra.mxu0 0.0
    %3314 = vmatprep.subr.mxu0 0.0
    %3315 = vmatpush1.xpose.msra.mxu0 0.0
    %3316 = vmatprep.subr.mxu0 0.0
    %3317 = vmatpush1.xpose.msra.mxu0 0.0
    %3318 = vmatprep.subr.mxu0 0.0
    %3319 = vmatpush1.xpose.msra.mxu0 0.0
    %3320 = vmatprep.subr.mxu0 0.0
    %3321 = vmatpush1.xpose.msra.mxu0 0.0
    %3322 = vmatprep.subr.mxu0 0.0
    %3323 = vmatpush1.xpose.msra.mxu0 0.0
    %3324 = vmatprep.subr.mxu0 0.0
    %3325 = vmatpush1.xpose.msra.mxu0 0.0
    %3326 = vmatprep.subr.mxu0 0.0
    %3327 = vmatpush1.xpose.msra.mxu0 0.0
    %3328 = vmatprep.subr.mxu0 0.0
    %3329 = vmatpush1.xpose.msra.mxu0 0.0
    %3330 = vmatprep.subr.mxu0 0.0
    %3331 = vmatpush1.xpose.msra.mxu0 0.0
    %3332 = vmatprep.subr.mxu0 0.0
    %3333 = vmatpush1.xpose.msra.mxu0 0.0
    %3334 = vmatprep.subr.mxu0 0.0
    %3335 = vmatpush1.xpose.msra.mxu0 0.0
    %3336 = vmatprep.subr.mxu0 0.0
    %3337 = vmatpush1.xpose.msra.mxu0 0.0
    %3338 = vmatprep.subr.mxu0 0.0
    %3339 = vmatpush1.xpose.msra.mxu0 0.0
    %3340 = vmatprep.subr.mxu0 0.0
    %3341 = vmatpush1.xpose.msra.mxu0 0.0
    %3342 = vmatprep.subr.mxu0 0.0
    %3343 = vmatpush1.xpose.msra.mxu0 0.0
    %3344 = vmatprep.subr.mxu0 0.0
    %3345 = vmatpush1.xpose.msra.mxu0 0.0
    %3346 = vmatprep.subr.mxu0 0.0
    %3347 = vmatpush1.xpose.msra.mxu0 0.0
    %3348 = vmatprep.subr.mxu0 0.0
    %3349 = vmatpush1.xpose.msra.mxu0 0.0
    %3350 = vmatprep.subr.mxu0 0.0
    %3351 = vmatpush1.xpose.msra.mxu0 0.0
    %3352 = vmatprep.subr.mxu0 0.0
    %3353 = vmatpush1.xpose.msra.mxu0 0.0
    %3354 = vmatprep.subr.mxu0 0.0
    %3355 = vmatpush1.xpose.msra.mxu0 0.0
    %3356 = vmatprep.subr.mxu0 0.0
    %3357 = vmatpush1.xpose.msra.mxu0 0.0
    %3358 = vmatprep.subr.mxu0 0.0
    %3359 = vmatpush1.xpose.msra.mxu0 0.0
    %3360 = vmatprep.subr.mxu0 0.0
    %3361 = vmatpush1.xpose.msra.mxu0 0.0
    %3362 = vmatprep.subr.mxu0 0.0
    %3363 = vmatpush1.xpose.msra.mxu0 0.0
    %3364 = vmatprep.subr.mxu0 0.0
    %3365 = vmatpush1.xpose.msra.mxu0 0.0
    %3366 = vmatprep.mubr.f32.mxu0 0.0
    %3367 = vmatmul.mubr.f32.gmra.mrb[0].mxu0 %v3293
    %v3368 = vpop.f32.mrb[0].mxu0
    %v3369 = vadd.f32 %v71, %v3368
    %v3370 = vpop.f32.mrb[0].mxu0
    %3371 = vmatprep.mubr.f32.mxu0 0.0
    %3372 = vmatmul.mubr.f32.gmra.mrb[0].mxu0 %v3296
    %v3373 = vpop.f32.mrb[0].mxu0
    %v3374 = vadd.f32 %v72, %v3373
    %v3375 = vpop.f32.mrb[0].mxu0
    %3376 = vdwg.mxu0
    %v3377 = vsel %vm360, %v3369, -inf
    %3378 = vmax.xlane.f32.xlu0 %v3377
    %v3379 = vpop.xlane.xlu0 %3378
    %v3380 = vsel %vm360, %v3374, -inf
    %3381 = vmax.xlane.f32.xlu0 %v3380
    %v3382 = vpop.xlane.xlu0 %3381
    %v3383 = vsub.f32 %v3369, %v3379
    %v3384 = vsub.f32 %v3374, %v3382
    %v3385 = vmul.f32 %v3383, 1.442695
    %v3386 = vpow.pop %v3385
    %v3387 = vmul.f32 %v3384, 1.442695
    %v3388 = vpow.pop %v3387
    %v3389 = vsel %vm360, %v3386, 0.0
    %3390 = vadd.xlane.f32.xlu0 %v3389
    %v3391 = vpop.xlane.xlu0 %3390
    %v3392 = vsel %vm360, %v3388, 0.0
    %3393 = vadd.xlane.f32.xlu0 %v3392
    %v3394 = vpop.xlane.xlu0 %3393
    %v3395 = vrcp.pop %v3391
    %v3396 = vrcp.pop %v3394
    %v3397 = vmul.f32 %v3386, %v3395
    %v3398 = vmul.f32 %v3388, %v3396
    %3399 = vrot.lane.b32.xlu0 %v3276, 64
    %v3400 = vpop.permute.xlu0 %3399
    %3401 = vrot.lane.b32.xlu0 %v3281, 64
    %v3402 = vpop.permute.xlu0 %3401
    %v3406 = vsel %vm360, %v3397, 0
    %v3409 = vsel %vm360, %v3398, 0
    %3411 = vmatprep.subr.mxu0 0.0
    %3412 = vmatpush1.msra.mxu0 %v3400
    %3413 = vmatprep.subr.mxu0 0.0
    %3414 = vmatpush1.msra.mxu0 %v3402
    %3415 = vmatprep.subr.mxu0 0.0
    %3416 = vmatpush1.msra.mxu0 0.0
    %3417 = vmatprep.subr.mxu0 0.0
    %3418 = vmatpush1.msra.mxu0 0.0
    %3419 = vmatprep.subr.mxu0 0.0
    %3420 = vmatpush1.msra.mxu0 0.0
    %3421 = vmatprep.subr.mxu0 0.0
    %3422 = vmatpush1.msra.mxu0 0.0
    %3423 = vmatprep.subr.mxu0 0.0
    %3424 = vmatpush1.msra.mxu0 0.0
    %3425 = vmatprep.subr.mxu0 0.0
    %3426 = vmatpush1.msra.mxu0 0.0
    %3427 = vmatprep.subr.mxu0 0.0
    %3428 = vmatpush1.msra.mxu0 0.0
    %3429 = vmatprep.subr.mxu0 0.0
    %3430 = vmatpush1.msra.mxu0 0.0
    %3431 = vmatprep.subr.mxu0 0.0
    %3432 = vmatpush1.msra.mxu0 0.0
    %3433 = vmatprep.subr.mxu0 0.0
    %3434 = vmatpush1.msra.mxu0 0.0
    %3435 = vmatprep.subr.mxu0 0.0
    %3436 = vmatpush1.msra.mxu0 0.0
    %3437 = vmatprep.subr.mxu0 0.0
    %3438 = vmatpush1.msra.mxu0 0.0
    %3439 = vmatprep.subr.mxu0 0.0
    %3440 = vmatpush1.msra.mxu0 0.0
    %3441 = vmatprep.subr.mxu0 0.0
    %3442 = vmatpush1.msra.mxu0 0.0
    %3443 = vmatprep.subr.mxu0 0.0
    %3444 = vmatpush1.msra.mxu0 0.0
    %3445 = vmatprep.subr.mxu0 0.0
    %3446 = vmatpush1.msra.mxu0 0.0
    %3447 = vmatprep.subr.mxu0 0.0
    %3448 = vmatpush1.msra.mxu0 0.0
    %3449 = vmatprep.subr.mxu0 0.0
    %3450 = vmatpush1.msra.mxu0 0.0
    %3451 = vmatprep.subr.mxu0 0.0
    %3452 = vmatpush1.msra.mxu0 0.0
    %3453 = vmatprep.subr.mxu0 0.0
    %3454 = vmatpush1.msra.mxu0 0.0
    %3455 = vmatprep.subr.mxu0 0.0
    %3456 = vmatpush1.msra.mxu0 0.0
    %3457 = vmatprep.subr.mxu0 0.0
    %3458 = vmatpush1.msra.mxu0 0.0
    %3459 = vmatprep.subr.mxu0 0.0
    %3460 = vmatpush1.msra.mxu0 0.0
    %3461 = vmatprep.subr.mxu0 0.0
    %3462 = vmatpush1.msra.mxu0 0.0
    %3463 = vmatprep.subr.mxu0 0.0
    %3464 = vmatpush1.msra.mxu0 0.0
    %3465 = vmatprep.subr.mxu0 0.0
    %3466 = vmatpush1.msra.mxu0 0.0
    %3467 = vmatprep.subr.mxu0 0.0
    %3468 = vmatpush1.msra.mxu0 0.0
    %3469 = vmatprep.subr.mxu0 0.0
    %3470 = vmatpush1.msra.mxu0 0.0
    %3471 = vmatprep.subr.mxu0 0.0
    %3472 = vmatpush1.msra.mxu0 0.0
    %3473 = vmatprep.subr.mxu0 0.0
    %3474 = vmatpush1.msra.mxu0 0.0
    %3475 = vmatprep.mubr.f32.mxu0 0.0
    %3476 = vmatmul.mubr.f32.gmra.mrb[0].mxu0 %v3406
    %v3477 = vpop.f32.mrb[0].mxu0
    %v3478 = vadd.f32 0.0, %v3477
    %v3479 = vpop.f32.mrb[0].mxu0
    %3480 = vmatprep.mubr.f32.mxu0 0.0
    %3481 = vmatmul.mubr.f32.gmra.mrb[0].mxu0 %v3409
    %v3482 = vpop.f32.mrb[0].mxu0
    %v3483 = vadd.f32 0.0, %v3482
    %v3484 = vpop.f32.mrb[0].mxu0
    %3485 = vdwg.mxu0
    %3486 = vrot.lane.b32.xlu0 %v3284, 120
    %v3487 = vpop.permute.xlu0 %3486
    %3488 = vrot.lane.b32.xlu0 %v3285, 120
    %v3489 = vpop.permute.xlu0 %3488
    %3490 = vrot.lane.b32.xlu0 %v3276, 88
    %v3491 = vpop.permute.xlu0 %3490
    %3492 = vrot.lane.b32.xlu0 %v3281, 88
    %v3493 = vpop.permute.xlu0 %3492
    %v3494 = vsel %vm274, %v3487, 0
    %v3496 = vsel %vm274, %v3489, 0
    %v3498 = vsel %vm274, %v3491, 0
    %v3500 = vsel %vm274, %v3493, 0
    %3502 = vmatprep.subr.mxu0 0.0
    %3503 = vmatpush1.xpose.msra.mxu0 %v3498
    %3504 = vmatprep.subr.mxu0 0.0
    %3505 = vmatpush1.xpose.msra.mxu0 %v3500
    %3506 = vmatprep.subr.mxu0 0.0
    %3507 = vmatpush1.xpose.msra.mxu0 0.0
    %3508 = vmatprep.subr.mxu0 0.0
    %3509 = vmatpush1.xpose.msra.mxu0 0.0
    %3510 = vmatprep.subr.mxu0 0.0
    %3511 = vmatpush1.xpose.msra.mxu0 0.0
    %3512 = vmatprep.subr.mxu0 0.0
    %3513 = vmatpush1.xpose.msra.mxu0 0.0
    %3514 = vmatprep.subr.mxu0 0.0
    %3515 = vmatpush1.xpose.msra.mxu0 0.0
    %3516 = vmatprep.subr.mxu0 0.0
    %3517 = vmatpush1.xpose.msra.mxu0 0.0
    %3518 = vmatprep.subr.mxu0 0.0
    %3519 = vmatpush1.xpose.msra.mxu0 0.0
    %3520 = vmatprep.subr.mxu0 0.0
    %3521 = vmatpush1.xpose.msra.mxu0 0.0
    %3522 = vmatprep.subr.mxu0 0.0
    %3523 = vmatpush1.xpose.msra.mxu0 0.0
    %3524 = vmatprep.subr.mxu0 0.0
    %3525 = vmatpush1.xpose.msra.mxu0 0.0
    %3526 = vmatprep.subr.mxu0 0.0
    %3527 = vmatpush1.xpose.msra.mxu0 0.0
    %3528 = vmatprep.subr.mxu0 0.0
    %3529 = vmatpush1.xpose.msra.mxu0 0.0
    %3530 = vmatprep.subr.mxu0 0.0
    %3531 = vmatpush1.xpose.msra.mxu0 0.0
    %3532 = vmatprep.subr.mxu0 0.0
    %3533 = vmatpush1.xpose.msra.mxu0 0.0
    %3534 = vmatprep.subr.mxu0 0.0
    %3535 = vmatpush1.xpose.msra.mxu0 0.0
    %3536 = vmatprep.subr.mxu0 0.0
    %3537 = vmatpush1.xpose.msra.mxu0 0.0
    %3538 = vmatprep.subr.mxu0 0.0
    %3539 = vmatpush1.xpose.msra.mxu0 0.0
    %3540 = vmatprep.subr.mxu0 0.0
    %3541 = vmatpush1.xpose.msra.mxu0 0.0
    %3542 = vmatprep.subr.mxu0 0.0
    %3543 = vmatpush1.xpose.msra.mxu0 0.0
    %3544 = vmatprep.subr.mxu0 0.0
    %3545 = vmatpush1.xpose.msra.mxu0 0.0
    %3546 = vmatprep.subr.mxu0 0.0
    %3547 = vmatpush1.xpose.msra.mxu0 0.0
    %3548 = vmatprep.subr.mxu0 0.0
    %3549 = vmatpush1.xpose.msra.mxu0 0.0
    %3550 = vmatprep.subr.mxu0 0.0
    %3551 = vmatpush1.xpose.msra.mxu0 0.0
    %3552 = vmatprep.subr.mxu0 0.0
    %3553 = vmatpush1.xpose.msra.mxu0 0.0
    %3554 = vmatprep.subr.mxu0 0.0
    %3555 = vmatpush1.xpose.msra.mxu0 0.0
    %3556 = vmatprep.subr.mxu0 0.0
    %3557 = vmatpush1.xpose.msra.mxu0 0.0
    %3558 = vmatprep.subr.mxu0 0.0
    %3559 = vmatpush1.xpose.msra.mxu0 0.0
    %3560 = vmatprep.subr.mxu0 0.0
    %3561 = vmatpush1.xpose.msra.mxu0 0.0
    %3562 = vmatprep.subr.mxu0 0.0
    %3563 = vmatpush1.xpose.msra.mxu0 0.0
    %3564 = vmatprep.subr.mxu0 0.0
    %3565 = vmatpush1.xpose.msra.mxu0 0.0
    %3566 = vmatprep.mubr.f32.mxu0 0.0
    %3567 = vmatmul.mubr.f32.gmra.mrb[0].mxu0 %v3494
    %v3568 = vpop.f32.mrb[0].mxu0
    %v3569 = vadd.f32 %v71, %v3568
    %v3570 = vpop.f32.mrb[0].mxu0
    %3571 = vmatprep.mubr.f32.mxu0 0.0
    %3572 = vmatmul.mubr.f32.gmra.mrb[0].mxu0 %v3496
    %v3573 = vpop.f32.mrb[0].mxu0
    %v3574 = vadd.f32 %v72, %v3573
    %v3575 = vpop.f32.mrb[0].mxu0
    %3576 = vdwg.mxu0
    %v3577 = vsel %vm360, %v3569, -inf
    %3578 = vmax.xlane.f32.xlu0 %v3577
    %v3579 = vpop.xlane.xlu0 %3578
    %v3580 = vsel %vm360, %v3574, -inf
    %3581 = vmax.xlane.f32.xlu0 %v3580
    %v3582 = vpop.xlane.xlu0 %3581
    %v3583 = vsub.f32 %v3569, %v3579
    %v3584 = vsub.f32 %v3574, %v3582
    %v3585 = vmul.f32 %v3583, 1.442695
    %v3586 = vpow.pop %v3585
    %v3587 = vmul.f32 %v3584, 1.442695
    %v3588 = vpow.pop %v3587
    %v3589 = vsel %vm360, %v3586, 0.0
    %3590 = vadd.xlane.f32.xlu0 %v3589
    %v3591 = vpop.xlane.xlu0 %3590
    %v3592 = vsel %vm360, %v3588, 0.0
    %3593 = vadd.xlane.f32.xlu0 %v3592
    %v3594 = vpop.xlane.xlu0 %3593
    %v3595 = vrcp.pop %v3591
    %v3596 = vrcp.pop %v3594
    %v3597 = vmul.f32 %v3586, %v3595
    %v3598 = vmul.f32 %v3588, %v3596
    %3599 = vrot.lane.b32.xlu0 %v3276, 56
    %v3600 = vpop.permute.xlu0 %3599
    %3601 = vrot.lane.b32.xlu0 %v3281, 56
    %v3602 = vpop.permute.xlu0 %3601
    %v3606 = vsel %vm360, %v3597, 0
    %v3609 = vsel %vm360, %v3598, 0
    %3611 = vmatprep.subr.mxu0 0.0
    %3612 = vmatpush1.msra.mxu0 %v3600
    %3613 = vmatprep.subr.mxu0 0.0
    %3614 = vmatpush1.msra.mxu0 %v3602
    %3615 = vmatprep.subr.mxu0 0.0
    %3616 = vmatpush1.msra.mxu0 0.0
    %3617 = vmatprep.subr.mxu0 0.0
    %3618 = vmatpush1.msra.mxu0 0.0
    %3619 = vmatprep.subr.mxu0 0.0
    %3620 = vmatpush1.msra.mxu0 0.0
    %3621 = vmatprep.subr.mxu0 0.0
    %3622 = vmatpush1.msra.mxu0 0.0
    %3623 = vmatprep.subr.mxu0 0.0
    %3624 = vmatpush1.msra.mxu0 0.0
    %3625 = vmatprep.subr.mxu0 0.0
    %3626 = vmatpush1.msra.mxu0 0.0
    %3627 = vmatprep.subr.mxu0 0.0
    %3628 = vmatpush1.msra.mxu0 0.0
    %3629 = vmatprep.subr.mxu0 0.0
    %3630 = vmatpush1.msra.mxu0 0.0
    %3631 = vmatprep.subr.mxu0 0.0
    %3632 = vmatpush1.msra.mxu0 0.0
    %3633 = vmatprep.subr.mxu0 0.0
    %3634 = vmatpush1.msra.mxu0 0.0
    %3635 = vmatprep.subr.mxu0 0.0
    %3636 = vmatpush1.msra.mxu0 0.0
    %3637 = vmatprep.subr.mxu0 0.0
    %3638 = vmatpush1.msra.mxu0 0.0
    %3639 = vmatprep.subr.mxu0 0.0
    %3640 = vmatpush1.msra.mxu0 0.0
    %3641 = vmatprep.subr.mxu0 0.0
    %3642 = vmatpush1.msra.mxu0 0.0
    %3643 = vmatprep.subr.mxu0 0.0
    %3644 = vmatpush1.msra.mxu0 0.0
    %3645 = vmatprep.subr.mxu0 0.0
    %3646 = vmatpush1.msra.mxu0 0.0
    %3647 = vmatprep.subr.mxu0 0.0
    %3648 = vmatpush1.msra.mxu0 0.0
    %3649 = vmatprep.subr.mxu0 0.0
    %3650 = vmatpush1.msra.mxu0 0.0
    %3651 = vmatprep.subr.mxu0 0.0
    %3652 = vmatpush1.msra.mxu0 0.0
    %3653 = vmatprep.subr.mxu0 0.0
    %3654 = vmatpush1.msra.mxu0 0.0
    %3655 = vmatprep.subr.mxu0 0.0
    %3656 = vmatpush1.msra.mxu0 0.0
    %3657 = vmatprep.subr.mxu0 0.0
    %3658 = vmatpush1.msra.mxu0 0.0
    %3659 = vmatprep.subr.mxu0 0.0
    %3660 = vmatpush1.msra.mxu0 0.0
    %3661 = vmatprep.subr.mxu0 0.0
    %3662 = vmatpush1.msra.mxu0 0.0
    %3663 = vmatprep.subr.mxu0 0.0
    %3664 = vmatpush1.msra.mxu0 0.0
    %3665 = vmatprep.subr.mxu0 0.0
    %3666 = vmatpush1.msra.mxu0 0.0
    %3667 = vmatprep.subr.mxu0 0.0
    %3668 = vmatpush1.msra.mxu0 0.0
    %3669 = vmatprep.subr.mxu0 0.0
    %3670 = vmatpush1.msra.mxu0 0.0
    %3671 = vmatprep.subr.mxu0 0.0
    %3672 = vmatpush1.msra.mxu0 0.0
    %3673 = vmatprep.subr.mxu0 0.0
    %3674 = vmatpush1.msra.mxu0 0.0
    %3675 = vmatprep.mubr.f32.mxu0 0.0
    %3676 = vmatmul.mubr.f32.gmra.mrb[0].mxu0 %v3606
    %v3677 = vpop.f32.mrb[0].mxu0
    %v3678 = vadd.f32 0.0, %v3677
    %v3679 = vpop.f32.mrb[0].mxu0
    %3680 = vmatprep.mubr.f32.mxu0 0.0
    %3681 = vmatmul.mubr.f32.gmra.mrb[0].mxu0 %v3609
    %v3682 = vpop.f32.mrb[0].mxu0
    %v3683 = vadd.f32 0.0, %v3682
    %v3684 = vpop.f32.mrb[0].mxu0
    %3685 = vdwg.mxu0
    %3686 = vrot.lane.b32.xlu0 %v3284, 112
    %v3687 = vpop.permute.xlu0 %3686
    %3688 = vrot.lane.b32.xlu0 %v3285, 112
    %v3689 = vpop.permute.xlu0 %3688
    %3690 = vrot.lane.b32.xlu0 %v3276, 80
    %v3691 = vpop.permute.xlu0 %3690
    %3692 = vrot.lane.b32.xlu0 %v3281, 80
    %v3693 = vpop.permute.xlu0 %3692
    %v3694 = vsel %vm274, %v3687, 0
    %v3696 = vsel %vm274, %v3689, 0
    %v3698 = vsel %vm274, %v3691, 0
    %v3700 = vsel %vm274, %v3693, 0
    %3702 = vmatprep.subr.mxu0 0.0
    %3703 = vmatpush1.xpose.msra.mxu0 %v3698
    %3704 = vmatprep.subr.mxu0 0.0
    %3705 = vmatpush1.xpose.msra.mxu0 %v3700
    %3706 = vmatprep.subr.mxu0 0.0
    %3707 = vmatpush1.xpose.msra.mxu0 0.0
    %3708 = vmatprep.subr.mxu0 0.0
    %3709 = vmatpush1.xpose.msra.mxu0 0.0
    %3710 = vmatprep.subr.mxu0 0.0
    %3711 = vmatpush1.xpose.msra.mxu0 0.0
    %3712 = vmatprep.subr.mxu0 0.0
    %3713 = vmatpush1.xpose.msra.mxu0 0.0
    %3714 = vmatprep.subr.mxu0 0.0
    %3715 = vmatpush1.xpose.msra.mxu0 0.0
    %3716 = vmatprep.subr.mxu0 0.0
    %3717 = vmatpush1.xpose.msra.mxu0 0.0
    %3718 = vmatprep.subr.mxu0 0.0
    %3719 = vmatpush1.xpose.msra.mxu0 0.0
    %3720 = vmatprep.subr.mxu0 0.0
    %3721 = vmatpush1.xpose.msra.mxu0 0.0
    %3722 = vmatprep.subr.mxu0 0.0
    %3723 = vmatpush1.xpose.msra.mxu0 0.0
    %3724 = vmatprep.subr.mxu0 0.0
    %3725 = vmatpush1.xpose.msra.mxu0 0.0
    %3726 = vmatprep.subr.mxu0 0.0
    %3727 = vmatpush1.xpose.msra.mxu0 0.0
    %3728 = vmatprep.subr.mxu0 0.0
    %3729 = vmatpush1.xpose.msra.mxu0 0.0
    %3730 = vmatprep.subr.mxu0 0.0
    %3731 = vmatpush1.xpose.msra.mxu0 0.0
    %3732 = vmatprep.subr.mxu0 0.0
    %3733 = vmatpush1.xpose.msra.mxu0 0.0
    %3734 = vmatprep.subr.mxu0 0.0
    %3735 = vmatpush1.xpose.msra.mxu0 0.0
    %3736 = vmatprep.subr.mxu0 0.0
    %3737 = vmatpush1.xpose.msra.mxu0 0.0
    %3738 = vmatprep.subr.mxu0 0.0
    %3739 = vmatpush1.xpose.msra.mxu0 0.0
    %3740 = vmatprep.subr.mxu0 0.0
    %3741 = vmatpush1.xpose.msra.mxu0 0.0
    %3742 = vmatprep.subr.mxu0 0.0
    %3743 = vmatpush1.xpose.msra.mxu0 0.0
    %3744 = vmatprep.subr.mxu0 0.0
    %3745 = vmatpush1.xpose.msra.mxu0 0.0
    %3746 = vmatprep.subr.mxu0 0.0
    %3747 = vmatpush1.xpose.msra.mxu0 0.0
    %3748 = vmatprep.subr.mxu0 0.0
    %3749 = vmatpush1.xpose.msra.mxu0 0.0
    %3750 = vmatprep.subr.mxu0 0.0
    %3751 = vmatpush1.xpose.msra.mxu0 0.0
    %3752 = vmatprep.subr.mxu0 0.0
    %3753 = vmatpush1.xpose.msra.mxu0 0.0
    %3754 = vmatprep.subr.mxu0 0.0
    %3755 = vmatpush1.xpose.msra.mxu0 0.0
    %3756 = vmatprep.subr.mxu0 0.0
    %3757 = vmatpush1.xpose.msra.mxu0 0.0
    %3758 = vmatprep.subr.mxu0 0.0
    %3759 = vmatpush1.xpose.msra.mxu0 0.0
    %3760 = vmatprep.subr.mxu0 0.0
    %3761 = vmatpush1.xpose.msra.mxu0 0.0
    %3762 = vmatprep.subr.mxu0 0.0
    %3763 = vmatpush1.xpose.msra.mxu0 0.0
    %3764 = vmatprep.subr.mxu0 0.0
    %3765 = vmatpush1.xpose.msra.mxu0 0.0
    %3766 = vmatprep.mubr.f32.mxu0 0.0
    %3767 = vmatmul.mubr.f32.gmra.mrb[0].mxu0 %v3694
    %v3768 = vpop.f32.mrb[0].mxu0
    %v3769 = vadd.f32 %v71, %v3768
    %v3770 = vpop.f32.mrb[0].mxu0
    %3771 = vmatprep.mubr.f32.mxu0 0.0
    %3772 = vmatmul.mubr.f32.gmra.mrb[0].mxu0 %v3696
    %v3773 = vpop.f32.mrb[0].mxu0
    %v3774 = vadd.f32 %v72, %v3773
    %v3775 = vpop.f32.mrb[0].mxu0
    %3776 = vdwg.mxu0
    %v3777 = vsel %vm360, %v3769, -inf
    %3778 = vmax.xlane.f32.xlu0 %v3777
    %v3779 = vpop.xlane.xlu0 %3778
    %v3780 = vsel %vm360, %v3774, -inf
    %3781 = vmax.xlane.f32.xlu0 %v3780
    %v3782 = vpop.xlane.xlu0 %3781
    %v3783 = vsub.f32 %v3769, %v3779
    %v3784 = vsub.f32 %v3774, %v3782
    %v3785 = vmul.f32 %v3783, 1.442695
    %v3786 = vpow.pop %v3785
    %v3787 = vmul.f32 %v3784, 1.442695
    %v3788 = vpow.pop %v3787
    %v3789 = vsel %vm360, %v3786, 0.0
    %3790 = vadd.xlane.f32.xlu0 %v3789
    %v3791 = vpop.xlane.xlu0 %3790
    %v3792 = vsel %vm360, %v3788, 0.0
    %3793 = vadd.xlane.f32.xlu0 %v3792
    %v3794 = vpop.xlane.xlu0 %3793
    %v3795 = vrcp.pop %v3791
    %v3796 = vrcp.pop %v3794
    %v3797 = vmul.f32 %v3786, %v3795
    %v3798 = vmul.f32 %v3788, %v3796
    %3799 = vrot.lane.b32.xlu0 %v3276, 48
    %v3800 = vpop.permute.xlu0 %3799
    %3801 = vrot.lane.b32.xlu0 %v3281, 48
    %v3802 = vpop.permute.xlu0 %3801
    %v3806 = vsel %vm360, %v3797, 0
    %v3809 = vsel %vm360, %v3798, 0
    %3811 = vmatprep.subr.mxu0 0.0
    %3812 = vmatpush1.msra.mxu0 %v3800
    %3813 = vmatprep.subr.mxu0 0.0
    %3814 = vmatpush1.msra.mxu0 %v3802
    %3815 = vmatprep.subr.mxu0 0.0
    %3816 = vmatpush1.msra.mxu0 0.0
    %3817 = vmatprep.subr.mxu0 0.0
    %3818 = vmatpush1.msra.mxu0 0.0
    %3819 = vmatprep.subr.mxu0 0.0
    %3820 = vmatpush1.msra.mxu0 0.0
    %3821 = vmatprep.subr.mxu0 0.0
    %3822 = vmatpush1.msra.mxu0 0.0
    %3823 = vmatprep.subr.mxu0 0.0
    %3824 = vmatpush1.msra.mxu0 0.0
    %3825 = vmatprep.subr.mxu0 0.0
    %3826 = vmatpush1.msra.mxu0 0.0
    %3827 = vmatprep.subr.mxu0 0.0
    %3828 = vmatpush1.msra.mxu0 0.0
    %3829 = vmatprep.subr.mxu0 0.0
    %3830 = vmatpush1.msra.mxu0 0.0
    %3831 = vmatprep.subr.mxu0 0.0
    %3832 = vmatpush1.msra.mxu0 0.0
    %3833 = vmatprep.subr.mxu0 0.0
    %3834 = vmatpush1.msra.mxu0 0.0
    %3835 = vmatprep.subr.mxu0 0.0
    %3836 = vmatpush1.msra.mxu0 0.0
    %3837 = vmatprep.subr.mxu0 0.0
    %3838 = vmatpush1.msra.mxu0 0.0
    %3839 = vmatprep.subr.mxu0 0.0
    %3840 = vmatpush1.msra.mxu0 0.0
    %3841 = vmatprep.subr.mxu0 0.0
    %3842 = vmatpush1.msra.mxu0 0.0
    %3843 = vmatprep.subr.mxu0 0.0
    %3844 = vmatpush1.msra.mxu0 0.0
    %3845 = vmatprep.subr.mxu0 0.0
    %3846 = vmatpush1.msra.mxu0 0.0
    %3847 = vmatprep.subr.mxu0 0.0
    %3848 = vmatpush1.msra.mxu0 0.0
    %3849 = vmatprep.subr.mxu0 0.0
    %3850 = vmatpush1.msra.mxu0 0.0
    %3851 = vmatprep.subr.mxu0 0.0
    %3852 = vmatpush1.msra.mxu0 0.0
    %3853 = vmatprep.subr.mxu0 0.0
    %3854 = vmatpush1.msra.mxu0 0.0
    %3855 = vmatprep.subr.mxu0 0.0
    %3856 = vmatpush1.msra.mxu0 0.0
    %3857 = vmatprep.subr.mxu0 0.0
    %3858 = vmatpush1.msra.mxu0 0.0
    %3859 = vmatprep.subr.mxu0 0.0
    %3860 = vmatpush1.msra.mxu0 0.0
    %3861 = vmatprep.subr.mxu0 0.0
    %3862 = vmatpush1.msra.mxu0 0.0
    %3863 = vmatprep.subr.mxu0 0.0
    %3864 = vmatpush1.msra.mxu0 0.0
    %3865 = vmatprep.subr.mxu0 0.0
    %3866 = vmatpush1.msra.mxu0 0.0
    %3867 = vmatprep.subr.mxu0 0.0
    %3868 = vmatpush1.msra.mxu0 0.0
    %3869 = vmatprep.subr.mxu0 0.0
    %3870 = vmatpush1.msra.mxu0 0.0
    %3871 = vmatprep.subr.mxu0 0.0
    %3872 = vmatpush1.msra.mxu0 0.0
    %3873 = vmatprep.subr.mxu0 0.0
    %3874 = vmatpush1.msra.mxu0 0.0
    %3875 = vmatprep.mubr.f32.mxu0 0.0
    %3876 = vmatmul.mubr.f32.gmra.mrb[0].mxu0 %v3806
    %v3877 = vpop.f32.mrb[0].mxu0
    %v3878 = vadd.f32 0.0, %v3877
    %v3879 = vpop.f32.mrb[0].mxu0
    %3880 = vmatprep.mubr.f32.mxu0 0.0
    %3881 = vmatmul.mubr.f32.gmra.mrb[0].mxu0 %v3809
    %v3882 = vpop.f32.mrb[0].mxu0
    %v3883 = vadd.f32 0.0, %v3882
    %v3884 = vpop.f32.mrb[0].mxu0
    %3885 = vdwg.mxu0
    %3886 = vrot.lane.b32.xlu0 %v3284, 104
    %v3887 = vpop.permute.xlu0 %3886
    %3888 = vrot.lane.b32.xlu0 %v3285, 104
    %v3889 = vpop.permute.xlu0 %3888
    %3890 = vrot.lane.b32.xlu0 %v3276, 72
    %v3891 = vpop.permute.xlu0 %3890
    %3892 = vrot.lane.b32.xlu0 %v3281, 72
    %v3893 = vpop.permute.xlu0 %3892
    %v3894 = vsel %vm274, %v3887, 0
    %v3896 = vsel %vm274, %v3889, 0
    %v3898 = vsel %vm274, %v3891, 0
    %v3900 = vsel %vm274, %v3893, 0
    %3902 = vmatprep.subr.mxu0 0.0
    %3903 = vmatpush1.xpose.msra.mxu0 %v3898
    %3904 = vmatprep.subr.mxu0 0.0
    %3905 = vmatpush1.xpose.msra.mxu0 %v3900
    %3906 = vmatprep.subr.mxu0 0.0
    %3907 = vmatpush1.xpose.msra.mxu0 0.0
    %3908 = vmatprep.subr.mxu0 0.0
    %3909 = vmatpush1.xpose.msra.mxu0 0.0
    %3910 = vmatprep.subr.mxu0 0.0
    %3911 = vmatpush1.xpose.msra.mxu0 0.0
    %3912 = vmatprep.subr.mxu0 0.0
    %3913 = vmatpush1.xpose.msra.mxu0 0.0
    %3914 = vmatprep.subr.mxu0 0.0
    %3915 = vmatpush1.xpose.msra.mxu0 0.0
    %3916 = vmatprep.subr.mxu0 0.0
    %3917 = vmatpush1.xpose.msra.mxu0 0.0
    %3918 = vmatprep.subr.mxu0 0.0
    %3919 = vmatpush1.xpose.msra.mxu0 0.0
    %3920 = vmatprep.subr.mxu0 0.0
    %3921 = vmatpush1.xpose.msra.mxu0 0.0
    %3922 = vmatprep.subr.mxu0 0.0
    %3923 = vmatpush1.xpose.msra.mxu0 0.0
    %3924 = vmatprep.subr.mxu0 0.0
    %3925 = vmatpush1.xpose.msra.mxu0 0.0
    %3926 = vmatprep.subr.mxu0 0.0
    %3927 = vmatpush1.xpose.msra.mxu0 0.0
    %3928 = vmatprep.subr.mxu0 0.0
    %3929 = vmatpush1.xpose.msra.mxu0 0.0
    %3930 = vmatprep.subr.mxu0 0.0
    %3931 = vmatpush1.xpose.msra.mxu0 0.0
    %3932 = vmatprep.subr.mxu0 0.0
    %3933 = vmatpush1.xpose.msra.mxu0 0.0
    %3934 = vmatprep.subr.mxu0 0.0
    %3935 = vmatpush1.xpose.msra.mxu0 0.0
    %3936 = vmatprep.subr.mxu0 0.0
    %3937 = vmatpush1.xpose.msra.mxu0 0.0
    %3938 = vmatprep.subr.mxu0 0.0
    %3939 = vmatpush1.xpose.msra.mxu0 0.0
    %3940 = vmatprep.subr.mxu0 0.0
    %3941 = vmatpush1.xpose.msra.mxu0 0.0
    %3942 = vmatprep.subr.mxu0 0.0
    %3943 = vmatpush1.xpose.msra.mxu0 0.0
    %3944 = vmatprep.subr.mxu0 0.0
    %3945 = vmatpush1.xpose.msra.mxu0 0.0
    %3946 = vmatprep.subr.mxu0 0.0
    %3947 = vmatpush1.xpose.msra.mxu0 0.0
    %3948 = vmatprep.subr.mxu0 0.0
    %3949 = vmatpush1.xpose.msra.mxu0 0.0
    %3950 = vmatprep.subr.mxu0 0.0
    %3951 = vmatpush1.xpose.msra.mxu0 0.0
    %3952 = vmatprep.subr.mxu0 0.0
    %3953 = vmatpush1.xpose.msra.mxu0 0.0
    %3954 = vmatprep.subr.mxu0 0.0
    %3955 = vmatpush1.xpose.msra.mxu0 0.0
    %3956 = vmatprep.subr.mxu0 0.0
    %3957 = vmatpush1.xpose.msra.mxu0 0.0
    %3958 = vmatprep.subr.mxu0 0.0
    %3959 = vmatpush1.xpose.msra.mxu0 0.0
    %3960 = vmatprep.subr.mxu0 0.0
    %3961 = vmatpush1.xpose.msra.mxu0 0.0
    %3962 = vmatprep.subr.mxu0 0.0
    %3963 = vmatpush1.xpose.msra.mxu0 0.0
    %3964 = vmatprep.subr.mxu0 0.0
    %3965 = vmatpush1.xpose.msra.mxu0 0.0
    %3966 = vmatprep.mubr.f32.mxu0 0.0
    %3967 = vmatmul.mubr.f32.gmra.mrb[0].mxu0 %v3894
    %v3968 = vpop.f32.mrb[0].mxu0
    %v3969 = vadd.f32 %v71, %v3968
    %v3970 = vpop.f32.mrb[0].mxu0
    %3971 = vmatprep.mubr.f32.mxu0 0.0
    %3972 = vmatmul.mubr.f32.gmra.mrb[0].mxu0 %v3896
    %v3973 = vpop.f32.mrb[0].mxu0
    %v3974 = vadd.f32 %v72, %v3973
    %v3975 = vpop.f32.mrb[0].mxu0
    %3976 = vdwg.mxu0
    %v3977 = vsel %vm360, %v3969, -inf
    %3978 = vmax.xlane.f32.xlu0 %v3977
    %v3979 = vpop.xlane.xlu0 %3978
    %v3980 = vsel %vm360, %v3974, -inf
    %3981 = vmax.xlane.f32.xlu0 %v3980
    %v3982 = vpop.xlane.xlu0 %3981
    %v3983 = vsub.f32 %v3969, %v3979
    %v3984 = vsub.f32 %v3974, %v3982
    %v3985 = vmul.f32 %v3983, 1.442695
    %v3986 = vpow.pop %v3985
    %v3987 = vmul.f32 %v3984, 1.442695
    %v3988 = vpow.pop %v3987
    %v3989 = vsel %vm360, %v3986, 0.0
    %3990 = vadd.xlane.f32.xlu0 %v3989
    %v3991 = vpop.xlane.xlu0 %3990
    %v3992 = vsel %vm360, %v3988, 0.0
    %3993 = vadd.xlane.f32.xlu0 %v3992
    %v3994 = vpop.xlane.xlu0 %3993
    %v3995 = vrcp.pop %v3991
    %v3996 = vrcp.pop %v3994
    %v3997 = vmul.f32 %v3986, %v3995
    %v3998 = vmul.f32 %v3988, %v3996
    %3999 = vrot.lane.b32.xlu0 %v3276, 40
    %v4000 = vpop.permute.xlu0 %3999
    %4001 = vrot.lane.b32.xlu0 %v3281, 40
    %v4002 = vpop.permute.xlu0 %4001
    %v4006 = vsel %vm360, %v3997, 0
    %v4009 = vsel %vm360, %v3998, 0
    %4011 = vmatprep.subr.mxu0 0.0
    %4012 = vmatpush1.msra.mxu0 %v4000
    %4013 = vmatprep.subr.mxu0 0.0
    %4014 = vmatpush1.msra.mxu0 %v4002
    %4015 = vmatprep.subr.mxu0 0.0
    %4016 = vmatpush1.msra.mxu0 0.0
    %4017 = vmatprep.subr.mxu0 0.0
    %4018 = vmatpush1.msra.mxu0 0.0
    %4019 = vmatprep.subr.mxu0 0.0
    %4020 = vmatpush1.msra.mxu0 0.0
    %4021 = vmatprep.subr.mxu0 0.0
    %4022 = vmatpush1.msra.mxu0 0.0
    %4023 = vmatprep.subr.mxu0 0.0
    %4024 = vmatpush1.msra.mxu0 0.0
    %4025 = vmatprep.subr.mxu0 0.0
    %4026 = vmatpush1.msra.mxu0 0.0
    %4027 = vmatprep.subr.mxu0 0.0
    %4028 = vmatpush1.msra.mxu0 0.0
    %4029 = vmatprep.subr.mxu0 0.0
    %4030 = vmatpush1.msra.mxu0 0.0
    %4031 = vmatprep.subr.mxu0 0.0
    %4032 = vmatpush1.msra.mxu0 0.0
    %4033 = vmatprep.subr.mxu0 0.0
    %4034 = vmatpush1.msra.mxu0 0.0
    %4035 = vmatprep.subr.mxu0 0.0
    %4036 = vmatpush1.msra.mxu0 0.0
    %4037 = vmatprep.subr.mxu0 0.0
    %4038 = vmatpush1.msra.mxu0 0.0
    %4039 = vmatprep.subr.mxu0 0.0
    %4040 = vmatpush1.msra.mxu0 0.0
    %4041 = vmatprep.subr.mxu0 0.0
    %4042 = vmatpush1.msra.mxu0 0.0
    %4043 = vmatprep.subr.mxu0 0.0
    %4044 = vmatpush1.msra.mxu0 0.0
    %4045 = vmatprep.subr.mxu0 0.0
    %4046 = vmatpush1.msra.mxu0 0.0
    %4047 = vmatprep.subr.mxu0 0.0
    %4048 = vmatpush1.msra.mxu0 0.0
    %4049 = vmatprep.subr.mxu0 0.0
    %4050 = vmatpush1.msra.mxu0 0.0
    %4051 = vmatprep.subr.mxu0 0.0
    %4052 = vmatpush1.msra.mxu0 0.0
    %4053 = vmatprep.subr.mxu0 0.0
    %4054 = vmatpush1.msra.mxu0 0.0
    %4055 = vmatprep.subr.mxu0 0.0
    %4056 = vmatpush1.msra.mxu0 0.0
    %4057 = vmatprep.subr.mxu0 0.0
    %4058 = vmatpush1.msra.mxu0 0.0
    %4059 = vmatprep.subr.mxu0 0.0
    %4060 = vmatpush1.msra.mxu0 0.0
    %4061 = vmatprep.subr.mxu0 0.0
    %4062 = vmatpush1.msra.mxu0 0.0
    %4063 = vmatprep.subr.mxu0 0.0
    %4064 = vmatpush1.msra.mxu0 0.0
    %4065 = vmatprep.subr.mxu0 0.0
    %4066 = vmatpush1.msra.mxu0 0.0
    %4067 = vmatprep.subr.mxu0 0.0
    %4068 = vmatpush1.msra.mxu0 0.0
    %4069 = vmatprep.subr.mxu0 0.0
    %4070 = vmatpush1.msra.mxu0 0.0
    %4071 = vmatprep.subr.mxu0 0.0
    %4072 = vmatpush1.msra.mxu0 0.0
    %4073 = vmatprep.subr.mxu0 0.0
    %4074 = vmatpush1.msra.mxu0 0.0
    %4075 = vmatprep.mubr.f32.mxu0 0.0
    %4076 = vmatmul.mubr.f32.gmra.mrb[0].mxu0 %v4006
    %v4077 = vpop.f32.mrb[0].mxu0
    %v4078 = vadd.f32 0.0, %v4077
    %v4079 = vpop.f32.mrb[0].mxu0
    %4080 = vmatprep.mubr.f32.mxu0 0.0
    %4081 = vmatmul.mubr.f32.gmra.mrb[0].mxu0 %v4009
    %v4082 = vpop.f32.mrb[0].mxu0
    %v4083 = vadd.f32 0.0, %v4082
    %v4084 = vpop.f32.mrb[0].mxu0
    %4085 = vdwg.mxu0
    %4088 = vrot.lane.b32.xlu0 %v3678, 8
    %v4089 = vpop.permute.xlu0 %4088
    %4090 = vrot.lane.b32.xlu0 %v3683, 8
    %v4091 = vpop.permute.xlu0 %4090
    %4096 = vrot.lane.b32.xlu0 %v3878, 16
    %v4097 = vpop.permute.xlu0 %4096
    %4098 = vrot.lane.b32.xlu0 %v3883, 16
    %v4099 = vpop.permute.xlu0 %4098
    %4104 = vrot.lane.b32.xlu0 %v4078, 24
    %v4105 = vpop.permute.xlu0 %4104
    %4106 = vrot.lane.b32.xlu0 %v4083, 24
    %v4107 = vpop.permute.xlu0 %4106
    %v4110 = vsel %vm274, %v3478, %v4089
    %v4111 = vsel %vm274, %v3483, %v4091
    %v4112 = vsel %vm360, %v4110, %v4097
    %v4113 = vsel %vm360, %v4111, %v4099
    %v4114 = vsel %vm1098, %v4112, %v4105
    %v4115 = vsel %vm1098, %v4113, %v4107
    %v4116 = vlaneseq
    %v4117 = vshrl.u32 %v4116, 7
    %v4118 = vsub.s32 1, %v4117
    %v4119 = vrot.slane %v3198, %v4118
    %v4121 = vsel %vm80, %v4114, 0
    %v4124 = vsel %vm80, %v4115, 0
    %4126 = vmatprep.subr.mxu0 0.0
    %4127 = vmatpush1.msra.mxu0 %v3185
    %4128 = vmatprep.subr.mxu0 0.0
    %4129 = vmatpush1.msra.mxu0 %v3186
    %4130 = vmatprep.subr.mxu0 0.0
    %4131 = vmatpush1.msra.mxu0 %v3187
    %4132 = vmatprep.subr.mxu0 0.0
    %4133 = vmatpush1.msra.mxu0 %v3188
    %4134 = vmatprep.subr.mxu0 0.0
    %4135 = vmatpush1.msra.mxu0 0.0
    %4136 = vmatprep.subr.mxu0 0.0
    %4137 = vmatpush1.msra.mxu0 0.0
    %4138 = vmatprep.subr.mxu0 0.0
    %4139 = vmatpush1.msra.mxu0 0.0
    %4140 = vmatprep.subr.mxu0 0.0
    %4141 = vmatpush1.msra.mxu0 0.0
    %4142 = vmatprep.subr.mxu0 0.0
    %4143 = vmatpush1.msra.mxu0 0.0
    %4144 = vmatprep.subr.mxu0 0.0
    %4145 = vmatpush1.msra.mxu0 0.0
    %4146 = vmatprep.subr.mxu0 0.0
    %4147 = vmatpush1.msra.mxu0 0.0
    %4148 = vmatprep.subr.mxu0 0.0
    %4149 = vmatpush1.msra.mxu0 0.0
    %4150 = vmatprep.subr.mxu0 0.0
    %4151 = vmatpush1.msra.mxu0 0.0
    %4152 = vmatprep.subr.mxu0 0.0
    %4153 = vmatpush1.msra.mxu0 0.0
    %4154 = vmatprep.subr.mxu0 0.0
    %4155 = vmatpush1.msra.mxu0 0.0
    %4156 = vmatprep.subr.mxu0 0.0
    %4157 = vmatpush1.msra.mxu0 0.0
    %4158 = vmatprep.subr.mxu0 0.0
    %4159 = vmatpush1.msra.mxu0 0.0
    %4160 = vmatprep.subr.mxu0 0.0
    %4161 = vmatpush1.msra.mxu0 0.0
    %4162 = vmatprep.subr.mxu0 0.0
    %4163 = vmatpush1.msra.mxu0 0.0
    %4164 = vmatprep.subr.mxu0 0.0
    %4165 = vmatpush1.msra.mxu0 0.0
    %4166 = vmatprep.subr.mxu0 0.0
    %4167 = vmatpush1.msra.mxu0 0.0
    %4168 = vmatprep.subr.mxu0 0.0
    %4169 = vmatpush1.msra.mxu0 0.0
    %4170 = vmatprep.subr.mxu0 0.0
    %4171 = vmatpush1.msra.mxu0 0.0
    %4172 = vmatprep.subr.mxu0 0.0
    %4173 = vmatpush1.msra.mxu0 0.0
    %4174 = vmatprep.subr.mxu0 0.0
    %4175 = vmatpush1.msra.mxu0 0.0
    %4176 = vmatprep.subr.mxu0 0.0
    %4177 = vmatpush1.msra.mxu0 0.0
    %4178 = vmatprep.subr.mxu0 0.0
    %4179 = vmatpush1.msra.mxu0 0.0
    %4180 = vmatprep.subr.mxu0 0.0
    %4181 = vmatpush1.msra.mxu0 0.0
    %4182 = vmatprep.subr.mxu0 0.0
    %4183 = vmatpush1.msra.mxu0 0.0
    %4184 = vmatprep.subr.mxu0 0.0
    %4185 = vmatpush1.msra.mxu0 0.0
    %4186 = vmatprep.subr.mxu0 0.0
    %4187 = vmatpush1.msra.mxu0 0.0
    %4188 = vmatprep.subr.mxu0 0.0
    %4189 = vmatpush1.msra.mxu0 0.0
    %4190 = vmatprep.mubr.f32.mxu0 0.0
    %4191 = vmatmul.mubr.f32.gmra.mrb[0].mxu0 %v4121
    %v4192 = vpop.f32.mrb[0].mxu0
    %v4193 = vadd.f32 %v4119, %v4192
    %v4194 = vpop.f32.mrb[0].mxu0
    %4195 = vmatprep.mubr.f32.mxu0 0.0
    %4196 = vmatmul.mubr.f32.gmra.mrb[0].mxu0 %v4124
    %v4197 = vpop.f32.mrb[0].mxu0
    %v4198 = vadd.f32 %v4119, %v4197
    %v4199 = vpop.f32.mrb[0].mxu0
    %4200 = vdwg.mxu0
    %v4201 = vadd.f32 %v3178, %v4193
    %v4202 = vadd.f32 %v3179, %v4198
    %v4203 = vsel %vm80, %v4201, 0.0
    %4204 = vadd.xlane.f32.xlu0 %v4203
    %v4205 = vpop.xlane.xlu0 %4204
    %v4206 = vsel %vm80, %v4202, 0.0
    %4207 = vadd.xlane.f32.xlu0 %v4206
    %v4208 = vpop.xlane.xlu0 %4207
    %v4209 = vmul.f32 %v4205, %v1194
    %v4210 = vmul.f32 %v4208, %v1194
    %v4211 = vsub.f32 %v4201, %v4209
    %v4212 = vsub.f32 %v4202, %v4210
    %v4213 = vmul.f32 %v4211, %v4211
    %v4214 = vmul.f32 %v4212, %v4212
    %v4215 = vsel %vm80, %v4213, 0.0
    %4216 = vadd.xlane.f32.xlu0 %v4215
    %v4217 = vpop.xlane.xlu0 %4216
    %v4218 = vsel %vm80, %v4214, 0.0
    %4219 = vadd.xlane.f32.xlu0 %v4218
    %v4220 = vpop.xlane.xlu0 %4219
    %v4221 = vmul.f32 %v4217, %v1194
    %v4222 = vmul.f32 %v4220, %v1194
    %v4223 = vadd.f32 %v4221, 1e-06
    %v4224 = vadd.f32 %v4222, 1e-06
    %v4225 = vrsqrt.pop %v4223
    %v4226 = vrsqrt.pop %v4224
    %v4227 = vmul.f32 %v4211, %v4225
    %v4228 = vmul.f32 %v4212, %v4226
    %v4229 = vlaneseq
    %v4230 = vshrl.u32 %v4229, 7
    %v4231 = vsub.s32 2, %v4230
    %v4232 = vrot.slane %v3198, %v4231
    %v4233 = vmul.f32 %v4227, %v4232
    %v4234 = vmul.f32 %v4228, %v4232
    %v4235 = vlaneseq
    %v4236 = vshrl.u32 %v4235, 7
    %v4237 = vsub.s32 3, %v4236
    %v4238 = vrot.slane %v3198, %v4237
    %v4239 = vadd.f32 %v4233, %v4238
    %v4240 = vadd.f32 %v4234, %v4238
    %v4241 = vlaneseq
    %v4242 = vshrl.u32 %v4241, 7
    %v4243 = vsub.s32 6, %v4242
    %v4244 = vrot.slane %v3198, %v4243
    %v4246 = vsel %vm80, %v4239, 0
    %v4249 = vsel %vm80, %v4240, 0
    %4251 = vmatprep.subr.mxu0 0.0
    %4252 = vmatpush1.msra.mxu0 %v3189
    %4253 = vmatprep.subr.mxu0 0.0
    %4254 = vmatpush1.msra.mxu0 %v3190
    %4255 = vmatprep.subr.mxu0 0.0
    %4256 = vmatpush1.msra.mxu0 %v3191
    %4257 = vmatprep.subr.mxu0 0.0
    %4258 = vmatpush1.msra.mxu0 %v3192
    %4259 = vmatprep.subr.mxu0 0.0
    %4260 = vmatpush1.msra.mxu0 0.0
    %4261 = vmatprep.subr.mxu0 0.0
    %4262 = vmatpush1.msra.mxu0 0.0
    %4263 = vmatprep.subr.mxu0 0.0
    %4264 = vmatpush1.msra.mxu0 0.0
    %4265 = vmatprep.subr.mxu0 0.0
    %4266 = vmatpush1.msra.mxu0 0.0
    %4267 = vmatprep.subr.mxu0 0.0
    %4268 = vmatpush1.msra.mxu0 0.0
    %4269 = vmatprep.subr.mxu0 0.0
    %4270 = vmatpush1.msra.mxu0 0.0
    %4271 = vmatprep.subr.mxu0 0.0
    %4272 = vmatpush1.msra.mxu0 0.0
    %4273 = vmatprep.subr.mxu0 0.0
    %4274 = vmatpush1.msra.mxu0 0.0
    %4275 = vmatprep.subr.mxu0 0.0
    %4276 = vmatpush1.msra.mxu0 0.0
    %4277 = vmatprep.subr.mxu0 0.0
    %4278 = vmatpush1.msra.mxu0 0.0
    %4279 = vmatprep.subr.mxu0 0.0
    %4280 = vmatpush1.msra.mxu0 0.0
    %4281 = vmatprep.subr.mxu0 0.0
    %4282 = vmatpush1.msra.mxu0 0.0
    %4283 = vmatprep.subr.mxu0 0.0
    %4284 = vmatpush1.msra.mxu0 0.0
    %4285 = vmatprep.subr.mxu0 0.0
    %4286 = vmatpush1.msra.mxu0 0.0
    %4287 = vmatprep.subr.mxu0 0.0
    %4288 = vmatpush1.msra.mxu0 0.0
    %4289 = vmatprep.subr.mxu0 0.0
    %4290 = vmatpush1.msra.mxu0 0.0
    %4291 = vmatprep.subr.mxu0 0.0
    %4292 = vmatpush1.msra.mxu0 0.0
    %4293 = vmatprep.subr.mxu0 0.0
    %4294 = vmatpush1.msra.mxu0 0.0
    %4295 = vmatprep.subr.mxu0 0.0
    %4296 = vmatpush1.msra.mxu0 0.0
    %4297 = vmatprep.subr.mxu0 0.0
    %4298 = vmatpush1.msra.mxu0 0.0
    %4299 = vmatprep.subr.mxu0 0.0
    %4300 = vmatpush1.msra.mxu0 0.0
    %4301 = vmatprep.subr.mxu0 0.0
    %4302 = vmatpush1.msra.mxu0 0.0
    %4303 = vmatprep.subr.mxu0 0.0
    %4304 = vmatpush1.msra.mxu0 0.0
    %4305 = vmatprep.subr.mxu0 0.0
    %4306 = vmatpush1.msra.mxu0 0.0
    %4307 = vmatprep.subr.mxu0 0.0
    %4308 = vmatpush1.msra.mxu0 0.0
    %4309 = vmatprep.subr.mxu0 0.0
    %4310 = vmatpush1.msra.mxu0 0.0
    %4311 = vmatprep.subr.mxu0 0.0
    %4312 = vmatpush1.msra.mxu0 0.0
    %4313 = vmatprep.subr.mxu0 0.0
    %4314 = vmatpush1.msra.mxu0 0.0
    %4315 = vmatprep.mubr.f32.mxu0 0.0
    %4316 = vmatmul.mubr.f32.gmra.mrb[0].mxu0 %v4246
    %v4317 = vpop.f32.mrb[0].mxu0
    %v4318 = vadd.f32 %v4244, %v4317
    %v4319 = vpop.f32.mrb[0].mxu0
    %4320 = vmatprep.mubr.f32.mxu0 0.0
    %4321 = vmatmul.mubr.f32.gmra.mrb[0].mxu0 %v4249
    %v4322 = vpop.f32.mrb[0].mxu0
    %v4323 = vadd.f32 %v4244, %v4322
    %v4324 = vpop.f32.mrb[0].mxu0
    %4325 = vdwg.mxu0
    %v4326 = vmax.f32 %v4318, 0.0
    %v4327 = vmax.f32 %v4323, 0.0
    %v4328 = vlaneseq
    %v4329 = vshrl.u32 %v4328, 7
    %v4330 = vsub.s32 7, %v4329
    %v4331 = vrot.slane %v3198, %v4330
    %v4333 = vsel %vm1318, %v4326, 0
    %v4336 = vsel %vm1318, %v4327, 0
    %v4339 = vsel %vm1318, %v3193, 0
    %v4342 = vsel %vm1318, %v3194, 0
    %v4345 = vsel %vm1318, %v3195, 0
    %v4348 = vsel %vm1318, %v3196, 0
    %4350 = vmatprep.subr.mxu0 0.0
    %4351 = vmatpush1.xpose.msra.mxu0 %v4339
    %4352 = vmatprep.subr.mxu0 0.0
    %4353 = vmatpush1.xpose.msra.mxu0 %v4342
    %4354 = vmatprep.subr.mxu0 0.0
    %4355 = vmatpush1.xpose.msra.mxu0 %v4345
    %4356 = vmatprep.subr.mxu0 0.0
    %4357 = vmatpush1.xpose.msra.mxu0 %v4348
    %4358 = vmatprep.subr.mxu0 0.0
    %4359 = vmatpush1.xpose.msra.mxu0 0.0
    %4360 = vmatprep.subr.mxu0 0.0
    %4361 = vmatpush1.xpose.msra.mxu0 0.0
    %4362 = vmatprep.subr.mxu0 0.0
    %4363 = vmatpush1.xpose.msra.mxu0 0.0
    %4364 = vmatprep.subr.mxu0 0.0
    %4365 = vmatpush1.xpose.msra.mxu0 0.0
    %4366 = vmatprep.subr.mxu0 0.0
    %4367 = vmatpush1.xpose.msra.mxu0 0.0
    %4368 = vmatprep.subr.mxu0 0.0
    %4369 = vmatpush1.xpose.msra.mxu0 0.0
    %4370 = vmatprep.subr.mxu0 0.0
    %4371 = vmatpush1.xpose.msra.mxu0 0.0
    %4372 = vmatprep.subr.mxu0 0.0
    %4373 = vmatpush1.xpose.msra.mxu0 0.0
    %4374 = vmatprep.subr.mxu0 0.0
    %4375 = vmatpush1.xpose.msra.mxu0 0.0
    %4376 = vmatprep.subr.mxu0 0.0
    %4377 = vmatpush1.xpose.msra.mxu0 0.0
    %4378 = vmatprep.subr.mxu0 0.0
    %4379 = vmatpush1.xpose.msra.mxu0 0.0
    %4380 = vmatprep.subr.mxu0 0.0
    %4381 = vmatpush1.xpose.msra.mxu0 0.0
    %4382 = vmatprep.subr.mxu0 0.0
    %4383 = vmatpush1.xpose.msra.mxu0 0.0
    %4384 = vmatprep.subr.mxu0 0.0
    %4385 = vmatpush1.xpose.msra.mxu0 0.0
    %4386 = vmatprep.subr.mxu0 0.0
    %4387 = vmatpush1.xpose.msra.mxu0 0.0
    %4388 = vmatprep.subr.mxu0 0.0
    %4389 = vmatpush1.xpose.msra.mxu0 0.0
    %4390 = vmatprep.subr.mxu0 0.0
    %4391 = vmatpush1.xpose.msra.mxu0 0.0
    %4392 = vmatprep.subr.mxu0 0.0
    %4393 = vmatpush1.xpose.msra.mxu0 0.0
    %4394 = vmatprep.subr.mxu0 0.0
    %4395 = vmatpush1.xpose.msra.mxu0 0.0
    %4396 = vmatprep.subr.mxu0 0.0
    %4397 = vmatpush1.xpose.msra.mxu0 0.0
    %4398 = vmatprep.subr.mxu0 0.0
    %4399 = vmatpush1.xpose.msra.mxu0 0.0
    %4400 = vmatprep.subr.mxu0 0.0
    %4401 = vmatpush1.xpose.msra.mxu0 0.0
    %4402 = vmatprep.subr.mxu0 0.0
    %4403 = vmatpush1.xpose.msra.mxu0 0.0
    %4404 = vmatprep.subr.mxu0 0.0
    %4405 = vmatpush1.xpose.msra.mxu0 0.0
    %4406 = vmatprep.subr.mxu0 0.0
    %4407 = vmatpush1.xpose.msra.mxu0 0.0
    %4408 = vmatprep.subr.mxu0 0.0
    %4409 = vmatpush1.xpose.msra.mxu0 0.0
    %4410 = vmatprep.subr.mxu0 0.0
    %4411 = vmatpush1.xpose.msra.mxu0 0.0
    %4412 = vmatprep.subr.mxu0 0.0
    %4413 = vmatpush1.xpose.msra.mxu0 0.0
    %4414 = vmatprep.mubr.f32.mxu0 0.0
    %4415 = vmatmul.mubr.f32.gmra.mrb[0].mxu0 %v4333
    %v4416 = vpop.f32.mrb[0].mxu0
    %v4417 = vadd.f32 %v4331, %v4416
    %v4418 = vpop.f32.mrb[0].mxu0
    %4419 = vmatprep.mubr.f32.mxu0 0.0
    %4420 = vmatmul.mubr.f32.gmra.mrb[0].mxu0 %v4336
    %v4421 = vpop.f32.mrb[0].mxu0
    %v4422 = vadd.f32 %v4331, %v4421
    %v4423 = vpop.f32.mrb[0].mxu0
    %4424 = vdwg.mxu0
    %v4425 = vadd.f32 %v4239, %v4417
    %v4426 = vadd.f32 %v4240, %v4422
    %v4427 = vsel %vm80, %v4425, 0.0
    %4428 = vadd.xlane.f32.xlu0 %v4427
    %v4429 = vpop.xlane.xlu0 %4428
    %v4430 = vsel %vm80, %v4426, 0.0
    %4431 = vadd.xlane.f32.xlu0 %v4430
    %v4432 = vpop.xlane.xlu0 %4431
    %v4433 = vmul.f32 %v4429, %v1194
    %v4434 = vmul.f32 %v4432, %v1194
    %v4435 = vsub.f32 %v4425, %v4433
    %v4436 = vsub.f32 %v4426, %v4434
    %v4437 = vmul.f32 %v4435, %v4435
    %v4438 = vmul.f32 %v4436, %v4436
    %v4439 = vsel %vm80, %v4437, 0.0
    %4440 = vadd.xlane.f32.xlu0 %v4439
    %v4441 = vpop.xlane.xlu0 %4440
    %v4442 = vsel %vm80, %v4438, 0.0
    %4443 = vadd.xlane.f32.xlu0 %v4442
    %v4444 = vpop.xlane.xlu0 %4443
    %v4445 = vmul.f32 %v4441, %v1194
    %v4446 = vmul.f32 %v4444, %v1194
    %v4447 = vadd.f32 %v4445, 1e-06
    %v4448 = vadd.f32 %v4446, 1e-06
    %v4449 = vrsqrt.pop %v4447
    %v4450 = vrsqrt.pop %v4448
    %v4451 = vmul.f32 %v4435, %v4449
    %v4452 = vmul.f32 %v4436, %v4450
    %v4453 = vlaneseq
    %v4454 = vshrl.u32 %v4453, 7
    %v4455 = vsub.s32 4, %v4454
    %v4456 = vrot.slane %v3198, %v4455
    %v4457 = vmul.f32 %v4451, %v4456
    %v4458 = vmul.f32 %v4452, %v4456
    %v4459 = vlaneseq
    %v4460 = vshrl.u32 %v4459, 7
    %v4461 = vsub.s32 5, %v4460
    %v4462 = vrot.slane %v3198, %v4461
    %v4463 = vadd.f32 %v4457, %v4462
    %v4464 = vadd.f32 %v4458, %v4462
    %s4465 = scalar_lea.vmem %s1, 384
    %v4466 = vld [vmem:[%s4465] sm:$0xff]
    %v4467 = vld [vmem:[%s4465 + $0x20] sm:$0xff]
    %v4468 = vld [vmem:[%s4465 + $0x40] sm:$0xff]
    %v4469 = vld [vmem:[%s4465 + $0x60] sm:$0xff]
    %v4470 = vld [vmem:[%s4465 + $0x8] sm:$0xff]
    %v4471 = vld [vmem:[%s4465 + $0x28] sm:$0xff]
    %v4472 = vld [vmem:[%s4465 + $0x48] sm:$0xff]
    %v4473 = vld [vmem:[%s4465 + $0x68] sm:$0xff]
    %v4474 = vld [vmem:[%s4465 + $0x10] sm:$0xff]
    %v4475 = vld [vmem:[%s4465 + $0x30] sm:$0xff]
    %v4476 = vld [vmem:[%s4465 + $0x50] sm:$0xff]
    %v4477 = vld [vmem:[%s4465 + $0x70] sm:$0xff]
    %v4478 = vld [vmem:[%s4465 + $0x18] sm:$0xff]
    %v4479 = vld [vmem:[%s4465 + $0x38] sm:$0xff]
    %v4480 = vld [vmem:[%s4465 + $0x58] sm:$0xff]
    %v4481 = vld [vmem:[%s4465 + $0x78] sm:$0xff]
    %s4482 = scalar_lea.vmem [#allocation2], 24
    %v4483 = vld [vmem:[%s4482] sm:$0xff]
    %v4484 = vlaneseq
    %v4485 = vshrl.u32 %v4484, 7
    %v4486 = vsub.s32 0, %v4485
    %v4487 = vrot.slane %v4483, %v4486
    %v4489 = vsel %vm80, %v4463, 0
    %v4492 = vsel %vm80, %v4464, 0
    %4494 = vmatprep.subr.mxu0 0.0
    %4495 = vmatpush1.msra.mxu0 %v4466
    %4496 = vmatprep.subr.mxu0 0.0
    %4497 = vmatpush1.msra.mxu0 %v4467
    %4498 = vmatprep.subr.mxu0 0.0
    %4499 = vmatpush1.msra.mxu0 %v4468
    %4500 = vmatprep.subr.mxu0 0.0
    %4501 = vmatpush1.msra.mxu0 %v4469
    %4502 = vmatprep.subr.mxu0 0.0
    %4503 = vmatpush1.msra.mxu0 0.0
    %4504 = vmatprep.subr.mxu0 0.0
    %4505 = vmatpush1.msra.mxu0 0.0
    %4506 = vmatprep.subr.mxu0 0.0
    %4507 = vmatpush1.msra.mxu0 0.0
    %4508 = vmatprep.subr.mxu0 0.0
    %4509 = vmatpush1.msra.mxu0 0.0
    %4510 = vmatprep.subr.mxu0 0.0
    %4511 = vmatpush1.msra.mxu0 0.0
    %4512 = vmatprep.subr.mxu0 0.0
    %4513 = vmatpush1.msra.mxu0 0.0
    %4514 = vmatprep.subr.mxu0 0.0
    %4515 = vmatpush1.msra.mxu0 0.0
    %4516 = vmatprep.subr.mxu0 0.0
    %4517 = vmatpush1.msra.mxu0 0.0
    %4518 = vmatprep.subr.mxu0 0.0
    %4519 = vmatpush1.msra.mxu0 0.0
    %4520 = vmatprep.subr.mxu0 0.0
    %4521 = vmatpush1.msra.mxu0 0.0
    %4522 = vmatprep.subr.mxu0 0.0
    %4523 = vmatpush1.msra.mxu0 0.0
    %4524 = vmatprep.subr.mxu0 0.0
    %4525 = vmatpush1.msra.mxu0 0.0
    %4526 = vmatprep.subr.mxu0 0.0
    %4527 = vmatpush1.msra.mxu0 0.0
    %4528 = vmatprep.subr.mxu0 0.0
    %4529 = vmatpush1.msra.mxu0 0.0
    %4530 = vmatprep.subr.mxu0 0.0
    %4531 = vmatpush1.msra.mxu0 0.0
    %4532 = vmatprep.subr.mxu0 0.0
    %4533 = vmatpush1.msra.mxu0 0.0
    %4534 = vmatprep.subr.mxu0 0.0
    %4535 = vmatpush1.msra.mxu0 0.0
    %4536 = vmatprep.subr.mxu0 0.0
    %4537 = vmatpush1.msra.mxu0 0.0
    %4538 = vmatprep.subr.mxu0 0.0
    %4539 = vmatpush1.msra.mxu0 0.0
    %4540 = vmatprep.subr.mxu0 0.0
    %4541 = vmatpush1.msra.mxu0 0.0
    %4542 = vmatprep.subr.mxu0 0.0
    %4543 = vmatpush1.msra.mxu0 0.0
    %4544 = vmatprep.subr.mxu0 0.0
    %4545 = vmatpush1.msra.mxu0 0.0
    %4546 = vmatprep.subr.mxu0 0.0
    %4547 = vmatpush1.msra.mxu0 0.0
    %4548 = vmatprep.subr.mxu0 0.0
    %4549 = vmatpush1.msra.mxu0 0.0
    %4550 = vmatprep.subr.mxu0 0.0
    %4551 = vmatpush1.msra.mxu0 0.0
    %4552 = vmatprep.subr.mxu0 0.0
    %4553 = vmatpush1.msra.mxu0 0.0
    %4554 = vmatprep.subr.mxu0 0.0
    %4555 = vmatpush1.msra.mxu0 0.0
    %4556 = vmatprep.subr.mxu0 0.0
    %4557 = vmatpush1.msra.mxu0 0.0
    %4558 = vmatprep.mubr.f32.mxu0 0.0
    %4559 = vmatmul.mubr.f32.gmra.mrb[0].mxu0 %v4489
    %v4560 = vpop.f32.mrb[0].mxu0
    %v4561 = vadd.f32 %v4487, %v4560
    %v4562 = vpop.f32.mrb[0].mxu0
    %4563 = vmatprep.mubr.f32.mxu0 0.0
    %4564 = vmatmul.mubr.f32.gmra.mrb[0].mxu0 %v4492
    %v4565 = vpop.f32.mrb[0].mxu0
    %v4566 = vadd.f32 %v4487, %v4565
    %v4567 = vpop.f32.mrb[0].mxu0
    %4568 = vdwg.mxu0
    %v4569 = vmul.f32 %v4561, 0.35355338
    %v4570 = vmul.f32 %v4566, 0.35355338
    %4573 = vrot.lane.b32.xlu0 %v4561, 96
    %v4574 = vpop.permute.xlu0 %4573
    %4575 = vrot.lane.b32.xlu0 %v4566, 96
    %v4576 = vpop.permute.xlu0 %4575
    %v4578 = vsel %vm274, %v4569, 0
    %v4581 = vsel %vm274, %v4570, 0
    %v4583 = vsel %vm274, %v4574, 0
    %v4585 = vsel %vm274, %v4576, 0
    %4587 = vmatprep.subr.mxu0 0.0
    %4588 = vmatpush1.xpose.msra.mxu0 %v4583
    %4589 = vmatprep.subr.mxu0 0.0
    %4590 = vmatpush1.xpose.msra.mxu0 %v4585
    %4591 = vmatprep.subr.mxu0 0.0
    %4592 = vmatpush1.xpose.msra.mxu0 0.0
    %4593 = vmatprep.subr.mxu0 0.0
    %4594 = vmatpush1.xpose.msra.mxu0 0.0
    %4595 = vmatprep.subr.mxu0 0.0
    %4596 = vmatpush1.xpose.msra.mxu0 0.0
    %4597 = vmatprep.subr.mxu0 0.0
    %4598 = vmatpush1.xpose.msra.mxu0 0.0
    %4599 = vmatprep.subr.mxu0 0.0
    %4600 = vmatpush1.xpose.msra.mxu0 0.0
    %4601 = vmatprep.subr.mxu0 0.0
    %4602 = vmatpush1.xpose.msra.mxu0 0.0
    %4603 = vmatprep.subr.mxu0 0.0
    %4604 = vmatpush1.xpose.msra.mxu0 0.0
    %4605 = vmatprep.subr.mxu0 0.0
    %4606 = vmatpush1.xpose.msra.mxu0 0.0
    %4607 = vmatprep.subr.mxu0 0.0
    %4608 = vmatpush1.xpose.msra.mxu0 0.0
    %4609 = vmatprep.subr.mxu0 0.0
    %4610 = vmatpush1.xpose.msra.mxu0 0.0
    %4611 = vmatprep.subr.mxu0 0.0
    %4612 = vmatpush1.xpose.msra.mxu0 0.0
    %4613 = vmatprep.subr.mxu0 0.0
    %4614 = vmatpush1.xpose.msra.mxu0 0.0
    %4615 = vmatprep.subr.mxu0 0.0
    %4616 = vmatpush1.xpose.msra.mxu0 0.0
    %4617 = vmatprep.subr.mxu0 0.0
    %4618 = vmatpush1.xpose.msra.mxu0 0.0
    %4619 = vmatprep.subr.mxu0 0.0
    %4620 = vmatpush1.xpose.msra.mxu0 0.0
    %4621 = vmatprep.subr.mxu0 0.0
    %4622 = vmatpush1.xpose.msra.mxu0 0.0
    %4623 = vmatprep.subr.mxu0 0.0
    %4624 = vmatpush1.xpose.msra.mxu0 0.0
    %4625 = vmatprep.subr.mxu0 0.0
    %4626 = vmatpush1.xpose.msra.mxu0 0.0
    %4627 = vmatprep.subr.mxu0 0.0
    %4628 = vmatpush1.xpose.msra.mxu0 0.0
    %4629 = vmatprep.subr.mxu0 0.0
    %4630 = vmatpush1.xpose.msra.mxu0 0.0
    %4631 = vmatprep.subr.mxu0 0.0
    %4632 = vmatpush1.xpose.msra.mxu0 0.0
    %4633 = vmatprep.subr.mxu0 0.0
    %4634 = vmatpush1.xpose.msra.mxu0 0.0
    %4635 = vmatprep.subr.mxu0 0.0
    %4636 = vmatpush1.xpose.msra.mxu0 0.0
    %4637 = vmatprep.subr.mxu0 0.0
    %4638 = vmatpush1.xpose.msra.mxu0 0.0
    %4639 = vmatprep.subr.mxu0 0.0
    %4640 = vmatpush1.xpose.msra.mxu0 0.0
    %4641 = vmatprep.subr.mxu0 0.0
    %4642 = vmatpush1.xpose.msra.mxu0 0.0
    %4643 = vmatprep.subr.mxu0 0.0
    %4644 = vmatpush1.xpose.msra.mxu0 0.0
    %4645 = vmatprep.subr.mxu0 0.0
    %4646 = vmatpush1.xpose.msra.mxu0 0.0
    %4647 = vmatprep.subr.mxu0 0.0
    %4648 = vmatpush1.xpose.msra.mxu0 0.0
    %4649 = vmatprep.subr.mxu0 0.0
    %4650 = vmatpush1.xpose.msra.mxu0 0.0
    %4651 = vmatprep.mubr.f32.mxu0 0.0
    %4652 = vmatmul.mubr.f32.gmra.mrb[0].mxu0 %v4578
    %v4653 = vpop.f32.mrb[0].mxu0
    %v4654 = vadd.f32 %v71, %v4653
    %v4655 = vpop.f32.mrb[0].mxu0
    %4656 = vmatprep.mubr.f32.mxu0 0.0
    %4657 = vmatmul.mubr.f32.gmra.mrb[0].mxu0 %v4581
    %v4658 = vpop.f32.mrb[0].mxu0
    %v4659 = vadd.f32 %v72, %v4658
    %v4660 = vpop.f32.mrb[0].mxu0
    %4661 = vdwg.mxu0
    %v4662 = vsel %vm360, %v4654, -inf
    %4663 = vmax.xlane.f32.xlu0 %v4662
    %v4664 = vpop.xlane.xlu0 %4663
    %v4665 = vsel %vm360, %v4659, -inf
    %4666 = vmax.xlane.f32.xlu0 %v4665
    %v4667 = vpop.xlane.xlu0 %4666
    %v4668 = vsub.f32 %v4654, %v4664
    %v4669 = vsub.f32 %v4659, %v4667
    %v4670 = vmul.f32 %v4668, 1.442695
    %v4671 = vpow.pop %v4670
    %v4672 = vmul.f32 %v4669, 1.442695
    %v4673 = vpow.pop %v4672
    %v4674 = vsel %vm360, %v4671, 0.0
    %4675 = vadd.xlane.f32.xlu0 %v4674
    %v4676 = vpop.xlane.xlu0 %4675
    %v4677 = vsel %vm360, %v4673, 0.0
    %4678 = vadd.xlane.f32.xlu0 %v4677
    %v4679 = vpop.xlane.xlu0 %4678
    %v4680 = vrcp.pop %v4676
    %v4681 = vrcp.pop %v4679
    %v4682 = vmul.f32 %v4671, %v4680
    %v4683 = vmul.f32 %v4673, %v4681
    %4684 = vrot.lane.b32.xlu0 %v4561, 64
    %v4685 = vpop.permute.xlu0 %4684
    %4686 = vrot.lane.b32.xlu0 %v4566, 64
    %v4687 = vpop.permute.xlu0 %4686
    %v4691 = vsel %vm360, %v4682, 0
    %v4694 = vsel %vm360, %v4683, 0
    %4696 = vmatprep.subr.mxu0 0.0
    %4697 = vmatpush1.msra.mxu0 %v4685
    %4698 = vmatprep.subr.mxu0 0.0
    %4699 = vmatpush1.msra.mxu0 %v4687
    %4700 = vmatprep.subr.mxu0 0.0
    %4701 = vmatpush1.msra.mxu0 0.0
    %4702 = vmatprep.subr.mxu0 0.0
    %4703 = vmatpush1.msra.mxu0 0.0
    %4704 = vmatprep.subr.mxu0 0.0
    %4705 = vmatpush1.msra.mxu0 0.0
    %4706 = vmatprep.subr.mxu0 0.0
    %4707 = vmatpush1.msra.mxu0 0.0
    %4708 = vmatprep.subr.mxu0 0.0
    %4709 = vmatpush1.msra.mxu0 0.0
    %4710 = vmatprep.subr.mxu0 0.0
    %4711 = vmatpush1.msra.mxu0 0.0
    %4712 = vmatprep.subr.mxu0 0.0
    %4713 = vmatpush1.msra.mxu0 0.0
    %4714 = vmatprep.subr.mxu0 0.0
    %4715 = vmatpush1.msra.mxu0 0.0
    %4716 = vmatprep.subr.mxu0 0.0
    %4717 = vmatpush1.msra.mxu0 0.0
    %4718 = vmatprep.subr.mxu0 0.0
    %4719 = vmatpush1.msra.mxu0 0.0
    %4720 = vmatprep.subr.mxu0 0.0
    %4721 = vmatpush1.msra.mxu0 0.0
    %4722 = vmatprep.subr.mxu0 0.0
    %4723 = vmatpush1.msra.mxu0 0.0
    %4724 = vmatprep.subr.mxu0 0.0
    %4725 = vmatpush1.msra.mxu0 0.0
    %4726 = vmatprep.subr.mxu0 0.0
    %4727 = vmatpush1.msra.mxu0 0.0
    %4728 = vmatprep.subr.mxu0 0.0
    %4729 = vmatpush1.msra.mxu0 0.0
    %4730 = vmatprep.subr.mxu0 0.0
    %4731 = vmatpush1.msra.mxu0 0.0
    %4732 = vmatprep.subr.mxu0 0.0
    %4733 = vmatpush1.msra.mxu0 0.0
    %4734 = vmatprep.subr.mxu0 0.0
    %4735 = vmatpush1.msra.mxu0 0.0
    %4736 = vmatprep.subr.mxu0 0.0
    %4737 = vmatpush1.msra.mxu0 0.0
    %4738 = vmatprep.subr.mxu0 0.0
    %4739 = vmatpush1.msra.mxu0 0.0
    %4740 = vmatprep.subr.mxu0 0.0
    %4741 = vmatpush1.msra.mxu0 0.0
    %4742 = vmatprep.subr.mxu0 0.0
    %4743 = vmatpush1.msra.mxu0 0.0
    %4744 = vmatprep.subr.mxu0 0.0
    %4745 = vmatpush1.msra.mxu0 0.0
    %4746 = vmatprep.subr.mxu0 0.0
    %4747 = vmatpush1.msra.mxu0 0.0
    %4748 = vmatprep.subr.mxu0 0.0
    %4749 = vmatpush1.msra.mxu0 0.0
    %4750 = vmatprep.subr.mxu0 0.0
    %4751 = vmatpush1.msra.mxu0 0.0
    %4752 = vmatprep.subr.mxu0 0.0
    %4753 = vmatpush1.msra.mxu0 0.0
    %4754 = vmatprep.subr.mxu0 0.0
    %4755 = vmatpush1.msra.mxu0 0.0
    %4756 = vmatprep.subr.mxu0 0.0
    %4757 = vmatpush1.msra.mxu0 0.0
    %4758 = vmatprep.subr.mxu0 0.0
    %4759 = vmatpush1.msra.mxu0 0.0
    %4760 = vmatprep.mubr.f32.mxu0 0.0
    %4761 = vmatmul.mubr.f32.gmra.mrb[0].mxu0 %v4691
    %v4762 = vpop.f32.mrb[0].mxu0
    %v4763 = vadd.f32 0.0, %v4762
    %v4764 = vpop.f32.mrb[0].mxu0
    %4765 = vmatprep.mubr.f32.mxu0 0.0
    %4766 = vmatmul.mubr.f32.gmra.mrb[0].mxu0 %v4694
    %v4767 = vpop.f32.mrb[0].mxu0
    %v4768 = vadd.f32 0.0, %v4767
    %v4769 = vpop.f32.mrb[0].mxu0
    %4770 = vdwg.mxu0
    %4771 = vrot.lane.b32.xlu0 %v4569, 120
    %v4772 = vpop.permute.xlu0 %4771
    %4773 = vrot.lane.b32.xlu0 %v4570, 120
    %v4774 = vpop.permute.xlu0 %4773
    %4775 = vrot.lane.b32.xlu0 %v4561, 88
    %v4776 = vpop.permute.xlu0 %4775
    %4777 = vrot.lane.b32.xlu0 %v4566, 88
    %v4778 = vpop.permute.xlu0 %4777
    %v4779 = vsel %vm274, %v4772, 0
    %v4781 = vsel %vm274, %v4774, 0
    %v4783 = vsel %vm274, %v4776, 0
    %v4785 = vsel %vm274, %v4778, 0
    %4787 = vmatprep.subr.mxu0 0.0
    %4788 = vmatpush1.xpose.msra.mxu0 %v4783
    %4789 = vmatprep.subr.mxu0 0.0
    %4790 = vmatpush1.xpose.msra.mxu0 %v4785
    %4791 = vmatprep.subr.mxu0 0.0
    %4792 = vmatpush1.xpose.msra.mxu0 0.0
    %4793 = vmatprep.subr.mxu0 0.0
    %4794 = vmatpush1.xpose.msra.mxu0 0.0
    %4795 = vmatprep.subr.mxu0 0.0
    %4796 = vmatpush1.xpose.msra.mxu0 0.0
    %4797 = vmatprep.subr.mxu0 0.0
    %4798 = vmatpush1.xpose.msra.mxu0 0.0
    %4799 = vmatprep.subr.mxu0 0.0
    %4800 = vmatpush1.xpose.msra.mxu0 0.0
    %4801 = vmatprep.subr.mxu0 0.0
    %4802 = vmatpush1.xpose.msra.mxu0 0.0
    %4803 = vmatprep.subr.mxu0 0.0
    %4804 = vmatpush1.xpose.msra.mxu0 0.0
    %4805 = vmatprep.subr.mxu0 0.0
    %4806 = vmatpush1.xpose.msra.mxu0 0.0
    %4807 = vmatprep.subr.mxu0 0.0
    %4808 = vmatpush1.xpose.msra.mxu0 0.0
    %4809 = vmatprep.subr.mxu0 0.0
    %4810 = vmatpush1.xpose.msra.mxu0 0.0
    %4811 = vmatprep.subr.mxu0 0.0
    %4812 = vmatpush1.xpose.msra.mxu0 0.0
    %4813 = vmatprep.subr.mxu0 0.0
    %4814 = vmatpush1.xpose.msra.mxu0 0.0
    %4815 = vmatprep.subr.mxu0 0.0
    %4816 = vmatpush1.xpose.msra.mxu0 0.0
    %4817 = vmatprep.subr.mxu0 0.0
    %4818 = vmatpush1.xpose.msra.mxu0 0.0
    %4819 = vmatprep.subr.mxu0 0.0
    %4820 = vmatpush1.xpose.msra.mxu0 0.0
    %4821 = vmatprep.subr.mxu0 0.0
    %4822 = vmatpush1.xpose.msra.mxu0 0.0
    %4823 = vmatprep.subr.mxu0 0.0
    %4824 = vmatpush1.xpose.msra.mxu0 0.0
    %4825 = vmatprep.subr.mxu0 0.0
    %4826 = vmatpush1.xpose.msra.mxu0 0.0
    %4827 = vmatprep.subr.mxu0 0.0
    %4828 = vmatpush1.xpose.msra.mxu0 0.0
    %4829 = vmatprep.subr.mxu0 0.0
    %4830 = vmatpush1.xpose.msra.mxu0 0.0
    %4831 = vmatprep.subr.mxu0 0.0
    %4832 = vmatpush1.xpose.msra.mxu0 0.0
    %4833 = vmatprep.subr.mxu0 0.0
    %4834 = vmatpush1.xpose.msra.mxu0 0.0
    %4835 = vmatprep.subr.mxu0 0.0
    %4836 = vmatpush1.xpose.msra.mxu0 0.0
    %4837 = vmatprep.subr.mxu0 0.0
    %4838 = vmatpush1.xpose.msra.mxu0 0.0
    %4839 = vmatprep.subr.mxu0 0.0
    %4840 = vmatpush1.xpose.msra.mxu0 0.0
    %4841 = vmatprep.subr.mxu0 0.0
    %4842 = vmatpush1.xpose.msra.mxu0 0.0
    %4843 = vmatprep.subr.mxu0 0.0
    %4844 = vmatpush1.xpose.msra.mxu0 0.0
    %4845 = vmatprep.subr.mxu0 0.0
    %4846 = vmatpush1.xpose.msra.mxu0 0.0
    %4847 = vmatprep.subr.mxu0 0.0
    %4848 = vmatpush1.xpose.msra.mxu0 0.0
    %4849 = vmatprep.subr.mxu0 0.0
    %4850 = vmatpush1.xpose.msra.mxu0 0.0
    %4851 = vmatprep.mubr.f32.mxu0 0.0
    %4852 = vmatmul.mubr.f32.gmra.mrb[0].mxu0 %v4779
    %v4853 = vpop.f32.mrb[0].mxu0
    %v4854 = vadd.f32 %v71, %v4853
    %v4855 = vpop.f32.mrb[0].mxu0
    %4856 = vmatprep.mubr.f32.mxu0 0.0
    %4857 = vmatmul.mubr.f32.gmra.mrb[0].mxu0 %v4781
    %v4858 = vpop.f32.mrb[0].mxu0
    %v4859 = vadd.f32 %v72, %v4858
    %v4860 = vpop.f32.mrb[0].mxu0
    %4861 = vdwg.mxu0
    %v4862 = vsel %vm360, %v4854, -inf
    %4863 = vmax.xlane.f32.xlu0 %v4862
    %v4864 = vpop.xlane.xlu0 %4863
    %v4865 = vsel %vm360, %v4859, -inf
    %4866 = vmax.xlane.f32.xlu0 %v4865
    %v4867 = vpop.xlane.xlu0 %4866
    %v4868 = vsub.f32 %v4854, %v4864
    %v4869 = vsub.f32 %v4859, %v4867
    %v4870 = vmul.f32 %v4868, 1.442695
    %v4871 = vpow.pop %v4870
    %v4872 = vmul.f32 %v4869, 1.442695
    %v4873 = vpow.pop %v4872
    %v4874 = vsel %vm360, %v4871, 0.0
    %4875 = vadd.xlane.f32.xlu0 %v4874
    %v4876 = vpop.xlane.xlu0 %4875
    %v4877 = vsel %vm360, %v4873, 0.0
    %4878 = vadd.xlane.f32.xlu0 %v4877
    %v4879 = vpop.xlane.xlu0 %4878
    %v4880 = vrcp.pop %v4876
    %v4881 = vrcp.pop %v4879
    %v4882 = vmul.f32 %v4871, %v4880
    %v4883 = vmul.f32 %v4873, %v4881
    %4884 = vrot.lane.b32.xlu0 %v4561, 56
    %v4885 = vpop.permute.xlu0 %4884
    %4886 = vrot.lane.b32.xlu0 %v4566, 56
    %v4887 = vpop.permute.xlu0 %4886
    %v4891 = vsel %vm360, %v4882, 0
    %v4894 = vsel %vm360, %v4883, 0
    %4896 = vmatprep.subr.mxu0 0.0
    %4897 = vmatpush1.msra.mxu0 %v4885
    %4898 = vmatprep.subr.mxu0 0.0
    %4899 = vmatpush1.msra.mxu0 %v4887
    %4900 = vmatprep.subr.mxu0 0.0
    %4901 = vmatpush1.msra.mxu0 0.0
    %4902 = vmatprep.subr.mxu0 0.0
    %4903 = vmatpush1.msra.mxu0 0.0
    %4904 = vmatprep.subr.mxu0 0.0
    %4905 = vmatpush1.msra.mxu0 0.0
    %4906 = vmatprep.subr.mxu0 0.0
    %4907 = vmatpush1.msra.mxu0 0.0
    %4908 = vmatprep.subr.mxu0 0.0
    %4909 = vmatpush1.msra.mxu0 0.0
    %4910 = vmatprep.subr.mxu0 0.0
    %4911 = vmatpush1.msra.mxu0 0.0
    %4912 = vmatprep.subr.mxu0 0.0
    %4913 = vmatpush1.msra.mxu0 0.0
    %4914 = vmatprep.subr.mxu0 0.0
    %4915 = vmatpush1.msra.mxu0 0.0
    %4916 = vmatprep.subr.mxu0 0.0
    %4917 = vmatpush1.msra.mxu0 0.0
    %4918 = vmatprep.subr.mxu0 0.0
    %4919 = vmatpush1.msra.mxu0 0.0
    %4920 = vmatprep.subr.mxu0 0.0
    %4921 = vmatpush1.msra.mxu0 0.0
    %4922 = vmatprep.subr.mxu0 0.0
    %4923 = vmatpush1.msra.mxu0 0.0
    %4924 = vmatprep.subr.mxu0 0.0
    %4925 = vmatpush1.msra.mxu0 0.0
    %4926 = vmatprep.subr.mxu0 0.0
    %4927 = vmatpush1.msra.mxu0 0.0
    %4928 = vmatprep.subr.mxu0 0.0
    %4929 = vmatpush1.msra.mxu0 0.0
    %4930 = vmatprep.subr.mxu0 0.0
    %4931 = vmatpush1.msra.mxu0 0.0
    %4932 = vmatprep.subr.mxu0 0.0
    %4933 = vmatpush1.msra.mxu0 0.0
    %4934 = vmatprep.subr.mxu0 0.0
    %4935 = vmatpush1.msra.mxu0 0.0
    %4936 = vmatprep.subr.mxu0 0.0
    %4937 = vmatpush1.msra.mxu0 0.0
    %4938 = vmatprep.subr.mxu0 0.0
    %4939 = vmatpush1.msra.mxu0 0.0
    %4940 = vmatprep.subr.mxu0 0.0
    %4941 = vmatpush1.msra.mxu0 0.0
    %4942 = vmatprep.subr.mxu0 0.0
    %4943 = vmatpush1.msra.mxu0 0.0
    %4944 = vmatprep.subr.mxu0 0.0
    %4945 = vmatpush1.msra.mxu0 0.0
    %4946 = vmatprep.subr.mxu0 0.0
    %4947 = vmatpush1.msra.mxu0 0.0
    %4948 = vmatprep.subr.mxu0 0.0
    %4949 = vmatpush1.msra.mxu0 0.0
    %4950 = vmatprep.subr.mxu0 0.0
    %4951 = vmatpush1.msra.mxu0 0.0
    %4952 = vmatprep.subr.mxu0 0.0
    %4953 = vmatpush1.msra.mxu0 0.0
    %4954 = vmatprep.subr.mxu0 0.0
    %4955 = vmatpush1.msra.mxu0 0.0
    %4956 = vmatprep.subr.mxu0 0.0
    %4957 = vmatpush1.msra.mxu0 0.0
    %4958 = vmatprep.subr.mxu0 0.0
    %4959 = vmatpush1.msra.mxu0 0.0
    %4960 = vmatprep.mubr.f32.mxu0 0.0
    %4961 = vmatmul.mubr.f32.gmra.mrb[0].mxu0 %v4891
    %v4962 = vpop.f32.mrb[0].mxu0
    %v4963 = vadd.f32 0.0, %v4962
    %v4964 = vpop.f32.mrb[0].mxu0
    %4965 = vmatprep.mubr.f32.mxu0 0.0
    %4966 = vmatmul.mubr.f32.gmra.mrb[0].mxu0 %v4894
    %v4967 = vpop.f32.mrb[0].mxu0
    %v4968 = vadd.f32 0.0, %v4967
    %v4969 = vpop.f32.mrb[0].mxu0
    %4970 = vdwg.mxu0
    %4971 = vrot.lane.b32.xlu0 %v4569, 112
    %v4972 = vpop.permute.xlu0 %4971
    %4973 = vrot.lane.b32.xlu0 %v4570, 112
    %v4974 = vpop.permute.xlu0 %4973
    %4975 = vrot.lane.b32.xlu0 %v4561, 80
    %v4976 = vpop.permute.xlu0 %4975
    %4977 = vrot.lane.b32.xlu0 %v4566, 80
    %v4978 = vpop.permute.xlu0 %4977
    %v4979 = vsel %vm274, %v4972, 0
    %v4981 = vsel %vm274, %v4974, 0
    %v4983 = vsel %vm274, %v4976, 0
    %v4985 = vsel %vm274, %v4978, 0
    %4987 = vmatprep.subr.mxu0 0.0
    %4988 = vmatpush1.xpose.msra.mxu0 %v4983
    %4989 = vmatprep.subr.mxu0 0.0
    %4990 = vmatpush1.xpose.msra.mxu0 %v4985
    %4991 = vmatprep.subr.mxu0 0.0
    %4992 = vmatpush1.xpose.msra.mxu0 0.0
    %4993 = vmatprep.subr.mxu0 0.0
    %4994 = vmatpush1.xpose.msra.mxu0 0.0
    %4995 = vmatprep.subr.mxu0 0.0
    %4996 = vmatpush1.xpose.msra.mxu0 0.0
    %4997 = vmatprep.subr.mxu0 0.0
    %4998 = vmatpush1.xpose.msra.mxu0 0.0
    %4999 = vmatprep.subr.mxu0 0.0
    %5000 = vmatpush1.xpose.msra.mxu0 0.0
    %5001 = vmatprep.subr.mxu0 0.0
    %5002 = vmatpush1.xpose.msra.mxu0 0.0
    %5003 = vmatprep.subr.mxu0 0.0
    %5004 = vmatpush1.xpose.msra.mxu0 0.0
    %5005 = vmatprep.subr.mxu0 0.0
    %5006 = vmatpush1.xpose.msra.mxu0 0.0
    %5007 = vmatprep.subr.mxu0 0.0
    %5008 = vmatpush1.xpose.msra.mxu0 0.0
    %5009 = vmatprep.subr.mxu0 0.0
    %5010 = vmatpush1.xpose.msra.mxu0 0.0
    %5011 = vmatprep.subr.mxu0 0.0
    %5012 = vmatpush1.xpose.msra.mxu0 0.0
    %5013 = vmatprep.subr.mxu0 0.0
    %5014 = vmatpush1.xpose.msra.mxu0 0.0
    %5015 = vmatprep.subr.mxu0 0.0
    %5016 = vmatpush1.xpose.msra.mxu0 0.0
    %5017 = vmatprep.subr.mxu0 0.0
    %5018 = vmatpush1.xpose.msra.mxu0 0.0
    %5019 = vmatprep.subr.mxu0 0.0
    %5020 = vmatpush1.xpose.msra.mxu0 0.0
    %5021 = vmatprep.subr.mxu0 0.0
    %5022 = vmatpush1.xpose.msra.mxu0 0.0
    %5023 = vmatprep.subr.mxu0 0.0
    %5024 = vmatpush1.xpose.msra.mxu0 0.0
    %5025 = vmatprep.subr.mxu0 0.0
    %5026 = vmatpush1.xpose.msra.mxu0 0.0
    %5027 = vmatprep.subr.mxu0 0.0
    %5028 = vmatpush1.xpose.msra.mxu0 0.0
    %5029 = vmatprep.subr.mxu0 0.0
    %5030 = vmatpush1.xpose.msra.mxu0 0.0
    %5031 = vmatprep.subr.mxu0 0.0
    %5032 = vmatpush1.xpose.msra.mxu0 0.0
    %5033 = vmatprep.subr.mxu0 0.0
    %5034 = vmatpush1.xpose.msra.mxu0 0.0
    %5035 = vmatprep.subr.mxu0 0.0
    %5036 = vmatpush1.xpose.msra.mxu0 0.0
    %5037 = vmatprep.subr.mxu0 0.0
    %5038 = vmatpush1.xpose.msra.mxu0 0.0
    %5039 = vmatprep.subr.mxu0 0.0
    %5040 = vmatpush1.xpose.msra.mxu0 0.0
    %5041 = vmatprep.subr.mxu0 0.0
    %5042 = vmatpush1.xpose.msra.mxu0 0.0
    %5043 = vmatprep.subr.mxu0 0.0
    %5044 = vmatpush1.xpose.msra.mxu0 0.0
    %5045 = vmatprep.subr.mxu0 0.0
    %5046 = vmatpush1.xpose.msra.mxu0 0.0
    %5047 = vmatprep.subr.mxu0 0.0
    %5048 = vmatpush1.xpose.msra.mxu0 0.0
    %5049 = vmatprep.subr.mxu0 0.0
    %5050 = vmatpush1.xpose.msra.mxu0 0.0
    %5051 = vmatprep.mubr.f32.mxu0 0.0
    %5052 = vmatmul.mubr.f32.gmra.mrb[0].mxu0 %v4979
    %v5053 = vpop.f32.mrb[0].mxu0
    %v5054 = vadd.f32 %v71, %v5053
    %v5055 = vpop.f32.mrb[0].mxu0
    %5056 = vmatprep.mubr.f32.mxu0 0.0
    %5057 = vmatmul.mubr.f32.gmra.mrb[0].mxu0 %v4981
    %v5058 = vpop.f32.mrb[0].mxu0
    %v5059 = vadd.f32 %v72, %v5058
    %v5060 = vpop.f32.mrb[0].mxu0
    %5061 = vdwg.mxu0
    %v5062 = vsel %vm360, %v5054, -inf
    %5063 = vmax.xlane.f32.xlu0 %v5062
    %v5064 = vpop.xlane.xlu0 %5063
    %v5065 = vsel %vm360, %v5059, -inf
    %5066 = vmax.xlane.f32.xlu0 %v5065
    %v5067 = vpop.xlane.xlu0 %5066
    %v5068 = vsub.f32 %v5054, %v5064
    %v5069 = vsub.f32 %v5059, %v5067
    %v5070 = vmul.f32 %v5068, 1.442695
    %v5071 = vpow.pop %v5070
    %v5072 = vmul.f32 %v5069, 1.442695
    %v5073 = vpow.pop %v5072
    %v5074 = vsel %vm360, %v5071, 0.0
    %5075 = vadd.xlane.f32.xlu0 %v5074
    %v5076 = vpop.xlane.xlu0 %5075
    %v5077 = vsel %vm360, %v5073, 0.0
    %5078 = vadd.xlane.f32.xlu0 %v5077
    %v5079 = vpop.xlane.xlu0 %5078
    %v5080 = vrcp.pop %v5076
    %v5081 = vrcp.pop %v5079
    %v5082 = vmul.f32 %v5071, %v5080
    %v5083 = vmul.f32 %v5073, %v5081
    %5084 = vrot.lane.b32.xlu0 %v4561, 48
    %v5085 = vpop.permute.xlu0 %5084
    %5086 = vrot.lane.b32.xlu0 %v4566, 48
    %v5087 = vpop.permute.xlu0 %5086
    %v5091 = vsel %vm360, %v5082, 0
    %v5094 = vsel %vm360, %v5083, 0
    %5096 = vmatprep.subr.mxu0 0.0
    %5097 = vmatpush1.msra.mxu0 %v5085
    %5098 = vmatprep.subr.mxu0 0.0
    %5099 = vmatpush1.msra.mxu0 %v5087
    %5100 = vmatprep.subr.mxu0 0.0
    %5101 = vmatpush1.msra.mxu0 0.0
    %5102 = vmatprep.subr.mxu0 0.0
    %5103 = vmatpush1.msra.mxu0 0.0
    %5104 = vmatprep.subr.mxu0 0.0
    %5105 = vmatpush1.msra.mxu0 0.0
    %5106 = vmatprep.subr.mxu0 0.0
    %5107 = vmatpush1.msra.mxu0 0.0
    %5108 = vmatprep.subr.mxu0 0.0
    %5109 = vmatpush1.msra.mxu0 0.0
    %5110 = vmatprep.subr.mxu0 0.0
    %5111 = vmatpush1.msra.mxu0 0.0
    %5112 = vmatprep.subr.mxu0 0.0
    %5113 = vmatpush1.msra.mxu0 0.0
    %5114 = vmatprep.subr.mxu0 0.0
    %5115 = vmatpush1.msra.mxu0 0.0
    %5116 = vmatprep.subr.mxu0 0.0
    %5117 = vmatpush1.msra.mxu0 0.0
    %5118 = vmatprep.subr.mxu0 0.0
    %5119 = vmatpush1.msra.mxu0 0.0
    %5120 = vmatprep.subr.mxu0 0.0
    %5121 = vmatpush1.msra.mxu0 0.0
    %5122 = vmatprep.subr.mxu0 0.0
    %5123 = vmatpush1.msra.mxu0 0.0
    %5124 = vmatprep.subr.mxu0 0.0
    %5125 = vmatpush1.msra.mxu0 0.0
    %5126 = vmatprep.subr.mxu0 0.0
    %5127 = vmatpush1.msra.mxu0 0.0
    %5128 = vmatprep.subr.mxu0 0.0
    %5129 = vmatpush1.msra.mxu0 0.0
    %5130 = vmatprep.subr.mxu0 0.0
    %5131 = vmatpush1.msra.mxu0 0.0
    %5132 = vmatprep.subr.mxu0 0.0
    %5133 = vmatpush1.msra.mxu0 0.0
    %5134 = vmatprep.subr.mxu0 0.0
    %5135 = vmatpush1.msra.mxu0 0.0
    %5136 = vmatprep.subr.mxu0 0.0
    %5137 = vmatpush1.msra.mxu0 0.0
    %5138 = vmatprep.subr.mxu0 0.0
    %5139 = vmatpush1.msra.mxu0 0.0
    %5140 = vmatprep.subr.mxu0 0.0
    %5141 = vmatpush1.msra.mxu0 0.0
    %5142 = vmatprep.subr.mxu0 0.0
    %5143 = vmatpush1.msra.mxu0 0.0
    %5144 = vmatprep.subr.mxu0 0.0
    %5145 = vmatpush1.msra.mxu0 0.0
    %5146 = vmatprep.subr.mxu0 0.0
    %5147 = vmatpush1.msra.mxu0 0.0
    %5148 = vmatprep.subr.mxu0 0.0
    %5149 = vmatpush1.msra.mxu0 0.0
    %5150 = vmatprep.subr.mxu0 0.0
    %5151 = vmatpush1.msra.mxu0 0.0
    %5152 = vmatprep.subr.mxu0 0.0
    %5153 = vmatpush1.msra.mxu0 0.0
    %5154 = vmatprep.subr.mxu0 0.0
    %5155 = vmatpush1.msra.mxu0 0.0
    %5156 = vmatprep.subr.mxu0 0.0
    %5157 = vmatpush1.msra.mxu0 0.0
    %5158 = vmatprep.subr.mxu0 0.0
    %5159 = vmatpush1.msra.mxu0 0.0
    %5160 = vmatprep.mubr.f32.mxu0 0.0
    %5161 = vmatmul.mubr.f32.gmra.mrb[0].mxu0 %v5091
    %v5162 = vpop.f32.mrb[0].mxu0
    %v5163 = vadd.f32 0.0, %v5162
    %v5164 = vpop.f32.mrb[0].mxu0
    %5165 = vmatprep.mubr.f32.mxu0 0.0
    %5166 = vmatmul.mubr.f32.gmra.mrb[0].mxu0 %v5094
    %v5167 = vpop.f32.mrb[0].mxu0
    %v5168 = vadd.f32 0.0, %v5167
    %v5169 = vpop.f32.mrb[0].mxu0
    %5170 = vdwg.mxu0
    %5171 = vrot.lane.b32.xlu0 %v4569, 104
    %v5172 = vpop.permute.xlu0 %5171
    %5173 = vrot.lane.b32.xlu0 %v4570, 104
    %v5174 = vpop.permute.xlu0 %5173
    %5175 = vrot.lane.b32.xlu0 %v4561, 72
    %v5176 = vpop.permute.xlu0 %5175
    %5177 = vrot.lane.b32.xlu0 %v4566, 72
    %v5178 = vpop.permute.xlu0 %5177
    %v5179 = vsel %vm274, %v5172, 0
    %v5181 = vsel %vm274, %v5174, 0
    %v5183 = vsel %vm274, %v5176, 0
    %v5185 = vsel %vm274, %v5178, 0
    %5187 = vmatprep.subr.mxu0 0.0
    %5188 = vmatpush1.xpose.msra.mxu0 %v5183
    %5189 = vmatprep.subr.mxu0 0.0
    %5190 = vmatpush1.xpose.msra.mxu0 %v5185
    %5191 = vmatprep.subr.mxu0 0.0
    %5192 = vmatpush1.xpose.msra.mxu0 0.0
    %5193 = vmatprep.subr.mxu0 0.0
    %5194 = vmatpush1.xpose.msra.mxu0 0.0
    %5195 = vmatprep.subr.mxu0 0.0
    %5196 = vmatpush1.xpose.msra.mxu0 0.0
    %5197 = vmatprep.subr.mxu0 0.0
    %5198 = vmatpush1.xpose.msra.mxu0 0.0
    %5199 = vmatprep.subr.mxu0 0.0
    %5200 = vmatpush1.xpose.msra.mxu0 0.0
    %5201 = vmatprep.subr.mxu0 0.0
    %5202 = vmatpush1.xpose.msra.mxu0 0.0
    %5203 = vmatprep.subr.mxu0 0.0
    %5204 = vmatpush1.xpose.msra.mxu0 0.0
    %5205 = vmatprep.subr.mxu0 0.0
    %5206 = vmatpush1.xpose.msra.mxu0 0.0
    %5207 = vmatprep.subr.mxu0 0.0
    %5208 = vmatpush1.xpose.msra.mxu0 0.0
    %5209 = vmatprep.subr.mxu0 0.0
    %5210 = vmatpush1.xpose.msra.mxu0 0.0
    %5211 = vmatprep.subr.mxu0 0.0
    %5212 = vmatpush1.xpose.msra.mxu0 0.0
    %5213 = vmatprep.subr.mxu0 0.0
    %5214 = vmatpush1.xpose.msra.mxu0 0.0
    %5215 = vmatprep.subr.mxu0 0.0
    %5216 = vmatpush1.xpose.msra.mxu0 0.0
    %5217 = vmatprep.subr.mxu0 0.0
    %5218 = vmatpush1.xpose.msra.mxu0 0.0
    %5219 = vmatprep.subr.mxu0 0.0
    %5220 = vmatpush1.xpose.msra.mxu0 0.0
    %5221 = vmatprep.subr.mxu0 0.0
    %5222 = vmatpush1.xpose.msra.mxu0 0.0
    %5223 = vmatprep.subr.mxu0 0.0
    %5224 = vmatpush1.xpose.msra.mxu0 0.0
    %5225 = vmatprep.subr.mxu0 0.0
    %5226 = vmatpush1.xpose.msra.mxu0 0.0
    %5227 = vmatprep.subr.mxu0 0.0
    %5228 = vmatpush1.xpose.msra.mxu0 0.0
    %5229 = vmatprep.subr.mxu0 0.0
    %5230 = vmatpush1.xpose.msra.mxu0 0.0
    %5231 = vmatprep.subr.mxu0 0.0
    %5232 = vmatpush1.xpose.msra.mxu0 0.0
    %5233 = vmatprep.subr.mxu0 0.0
    %5234 = vmatpush1.xpose.msra.mxu0 0.0
    %5235 = vmatprep.subr.mxu0 0.0
    %5236 = vmatpush1.xpose.msra.mxu0 0.0
    %5237 = vmatprep.subr.mxu0 0.0
    %5238 = vmatpush1.xpose.msra.mxu0 0.0
    %5239 = vmatprep.subr.mxu0 0.0
    %5240 = vmatpush1.xpose.msra.mxu0 0.0
    %5241 = vmatprep.subr.mxu0 0.0
    %5242 = vmatpush1.xpose.msra.mxu0 0.0
    %5243 = vmatprep.subr.mxu0 0.0
    %5244 = vmatpush1.xpose.msra.mxu0 0.0
    %5245 = vmatprep.subr.mxu0 0.0
    %5246 = vmatpush1.xpose.msra.mxu0 0.0
    %5247 = vmatprep.subr.mxu0 0.0
    %5248 = vmatpush1.xpose.msra.mxu0 0.0
    %5249 = vmatprep.subr.mxu0 0.0
    %5250 = vmatpush1.xpose.msra.mxu0 0.0
    %5251 = vmatprep.mubr.f32.mxu0 0.0
    %5252 = vmatmul.mubr.f32.gmra.mrb[0].mxu0 %v5179
    %v5253 = vpop.f32.mrb[0].mxu0
    %v5254 = vadd.f32 %v71, %v5253
    %v5255 = vpop.f32.mrb[0].mxu0
    %5256 = vmatprep.mubr.f32.mxu0 0.0
    %5257 = vmatmul.mubr.f32.gmra.mrb[0].mxu0 %v5181
    %v5258 = vpop.f32.mrb[0].mxu0
    %v5259 = vadd.f32 %v72, %v5258
    %v5260 = vpop.f32.mrb[0].mxu0
    %5261 = vdwg.mxu0
    %v5262 = vsel %vm360, %v5254, -inf
    %5263 = vmax.xlane.f32.xlu0 %v5262
    %v5264 = vpop.xlane.xlu0 %5263
    %v5265 = vsel %vm360, %v5259, -inf
    %5266 = vmax.xlane.f32.xlu0 %v5265
    %v5267 = vpop.xlane.xlu0 %5266
    %v5268 = vsub.f32 %v5254, %v5264
    %v5269 = vsub.f32 %v5259, %v5267
    %v5270 = vmul.f32 %v5268, 1.442695
    %v5271 = vpow.pop %v5270
    %v5272 = vmul.f32 %v5269, 1.442695
    %v5273 = vpow.pop %v5272
    %v5274 = vsel %vm360, %v5271, 0.0
    %5275 = vadd.xlane.f32.xlu0 %v5274
    %v5276 = vpop.xlane.xlu0 %5275
    %v5277 = vsel %vm360, %v5273, 0.0
    %5278 = vadd.xlane.f32.xlu0 %v5277
    %v5279 = vpop.xlane.xlu0 %5278
    %v5280 = vrcp.pop %v5276
    %v5281 = vrcp.pop %v5279
    %v5282 = vmul.f32 %v5271, %v5280
    %v5283 = vmul.f32 %v5273, %v5281
    %5284 = vrot.lane.b32.xlu0 %v4561, 40
    %v5285 = vpop.permute.xlu0 %5284
    %5286 = vrot.lane.b32.xlu0 %v4566, 40
    %v5287 = vpop.permute.xlu0 %5286
    %v5291 = vsel %vm360, %v5282, 0
    %v5294 = vsel %vm360, %v5283, 0
    %5296 = vmatprep.subr.mxu0 0.0
    %5297 = vmatpush1.msra.mxu0 %v5285
    %5298 = vmatprep.subr.mxu0 0.0
    %5299 = vmatpush1.msra.mxu0 %v5287
    %5300 = vmatprep.subr.mxu0 0.0
    %5301 = vmatpush1.msra.mxu0 0.0
    %5302 = vmatprep.subr.mxu0 0.0
    %5303 = vmatpush1.msra.mxu0 0.0
    %5304 = vmatprep.subr.mxu0 0.0
    %5305 = vmatpush1.msra.mxu0 0.0
    %5306 = vmatprep.subr.mxu0 0.0
    %5307 = vmatpush1.msra.mxu0 0.0
    %5308 = vmatprep.subr.mxu0 0.0
    %5309 = vmatpush1.msra.mxu0 0.0
    %5310 = vmatprep.subr.mxu0 0.0
    %5311 = vmatpush1.msra.mxu0 0.0
    %5312 = vmatprep.subr.mxu0 0.0
    %5313 = vmatpush1.msra.mxu0 0.0
    %5314 = vmatprep.subr.mxu0 0.0
    %5315 = vmatpush1.msra.mxu0 0.0
    %5316 = vmatprep.subr.mxu0 0.0
    %5317 = vmatpush1.msra.mxu0 0.0
    %5318 = vmatprep.subr.mxu0 0.0
    %5319 = vmatpush1.msra.mxu0 0.0
    %5320 = vmatprep.subr.mxu0 0.0
    %5321 = vmatpush1.msra.mxu0 0.0
    %5322 = vmatprep.subr.mxu0 0.0
    %5323 = vmatpush1.msra.mxu0 0.0
    %5324 = vmatprep.subr.mxu0 0.0
    %5325 = vmatpush1.msra.mxu0 0.0
    %5326 = vmatprep.subr.mxu0 0.0
    %5327 = vmatpush1.msra.mxu0 0.0
    %5328 = vmatprep.subr.mxu0 0.0
    %5329 = vmatpush1.msra.mxu0 0.0
    %5330 = vmatprep.subr.mxu0 0.0
    %5331 = vmatpush1.msra.mxu0 0.0
    %5332 = vmatprep.subr.mxu0 0.0
    %5333 = vmatpush1.msra.mxu0 0.0
    %5334 = vmatprep.subr.mxu0 0.0
    %5335 = vmatpush1.msra.mxu0 0.0
    %5336 = vmatprep.subr.mxu0 0.0
    %5337 = vmatpush1.msra.mxu0 0.0
    %5338 = vmatprep.subr.mxu0 0.0
    %5339 = vmatpush1.msra.mxu0 0.0
    %5340 = vmatprep.subr.mxu0 0.0
    %5341 = vmatpush1.msra.mxu0 0.0
    %5342 = vmatprep.subr.mxu0 0.0
    %5343 = vmatpush1.msra.mxu0 0.0
    %5344 = vmatprep.subr.mxu0 0.0
    %5345 = vmatpush1.msra.mxu0 0.0
    %5346 = vmatprep.subr.mxu0 0.0
    %5347 = vmatpush1.msra.mxu0 0.0
    %5348 = vmatprep.subr.mxu0 0.0
    %5349 = vmatpush1.msra.mxu0 0.0
    %5350 = vmatprep.subr.mxu0 0.0
    %5351 = vmatpush1.msra.mxu0 0.0
    %5352 = vmatprep.subr.mxu0 0.0
    %5353 = vmatpush1.msra.mxu0 0.0
    %5354 = vmatprep.subr.mxu0 0.0
    %5355 = vmatpush1.msra.mxu0 0.0
    %5356 = vmatprep.subr.mxu0 0.0
    %5357 = vmatpush1.msra.mxu0 0.0
    %5358 = vmatprep.subr.mxu0 0.0
    %5359 = vmatpush1.msra.mxu0 0.0
    %5360 = vmatprep.mubr.f32.mxu0 0.0
    %5361 = vmatmul.mubr.f32.gmra.mrb[0].mxu0 %v5291
    %v5362 = vpop.f32.mrb[0].mxu0
    %v5363 = vadd.f32 0.0, %v5362
    %v5364 = vpop.f32.mrb[0].mxu0
    %5365 = vmatprep.mubr.f32.mxu0 0.0
    %5366 = vmatmul.mubr.f32.gmra.mrb[0].mxu0 %v5294
    %v5367 = vpop.f32.mrb[0].mxu0
    %v5368 = vadd.f32 0.0, %v5367
    %v5369 = vpop.f32.mrb[0].mxu0
    %5370 = vdwg.mxu0
    %5373 = vrot.lane.b32.xlu0 %v4963, 8
    %v5374 = vpop.permute.xlu0 %5373
    %5375 = vrot.lane.b32.xlu0 %v4968, 8
    %v5376 = vpop.permute.xlu0 %5375
    %5381 = vrot.lane.b32.xlu0 %v5163, 16
    %v5382 = vpop.permute.xlu0 %5381
    %5383 = vrot.lane.b32.xlu0 %v5168, 16
    %v5384 = vpop.permute.xlu0 %5383
    %5389 = vrot.lane.b32.xlu0 %v5363, 24
    %v5390 = vpop.permute.xlu0 %5389
    %5391 = vrot.lane.b32.xlu0 %v5368, 24
    %v5392 = vpop.permute.xlu0 %5391
    %v5395 = vsel %vm274, %v4763, %v5374
    %v5396 = vsel %vm274, %v4768, %v5376
    %v5397 = vsel %vm360, %v5395, %v5382
    %v5398 = vsel %vm360, %v5396, %v5384
    %v5399 = vsel %vm1098, %v5397, %v5390
    %v5400 = vsel %vm1098, %v5398, %v5392
    %v5401 = vlaneseq
    %v5402 = vshrl.u32 %v5401, 7
    %v5403 = vsub.s32 1, %v5402
    %v5404 = vrot.slane %v4483, %v5403
    %v5406 = vsel %vm80, %v5399, 0
    %v5409 = vsel %vm80, %v5400, 0
    %5411 = vmatprep.subr.mxu0 0.0
    %5412 = vmatpush1.msra.mxu0 %v4470
    %5413 = vmatprep.subr.mxu0 0.0
    %5414 = vmatpush1.msra.mxu0 %v4471
    %5415 = vmatprep.subr.mxu0 0.0
    %5416 = vmatpush1.msra.mxu0 %v4472
    %5417 = vmatprep.subr.mxu0 0.0
    %5418 = vmatpush1.msra.mxu0 %v4473
    %5419 = vmatprep.subr.mxu0 0.0
    %5420 = vmatpush1.msra.mxu0 0.0
    %5421 = vmatprep.subr.mxu0 0.0
    %5422 = vmatpush1.msra.mxu0 0.0
    %5423 = vmatprep.subr.mxu0 0.0
    %5424 = vmatpush1.msra.mxu0 0.0
    %5425 = vmatprep.subr.mxu0 0.0
    %5426 = vmatpush1.msra.mxu0 0.0
    %5427 = vmatprep.subr.mxu0 0.0
    %5428 = vmatpush1.msra.mxu0 0.0
    %5429 = vmatprep.subr.mxu0 0.0
    %5430 = vmatpush1.msra.mxu0 0.0
    %5431 = vmatprep.subr.mxu0 0.0
    %5432 = vmatpush1.msra.mxu0 0.0
    %5433 = vmatprep.subr.mxu0 0.0
    %5434 = vmatpush1.msra.mxu0 0.0
    %5435 = vmatprep.subr.mxu0 0.0
    %5436 = vmatpush1.msra.mxu0 0.0
    %5437 = vmatprep.subr.mxu0 0.0
    %5438 = vmatpush1.msra.mxu0 0.0
    %5439 = vmatprep.subr.mxu0 0.0
    %5440 = vmatpush1.msra.mxu0 0.0
    %5441 = vmatprep.subr.mxu0 0.0
    %5442 = vmatpush1.msra.mxu0 0.0
    %5443 = vmatprep.subr.mxu0 0.0
    %5444 = vmatpush1.msra.mxu0 0.0
    %5445 = vmatprep.subr.mxu0 0.0
    %5446 = vmatpush1.msra.mxu0 0.0
    %5447 = vmatprep.subr.mxu0 0.0
    %5448 = vmatpush1.msra.mxu0 0.0
    %5449 = vmatprep.subr.mxu0 0.0
    %5450 = vmatpush1.msra.mxu0 0.0
    %5451 = vmatprep.subr.mxu0 0.0
    %5452 = vmatpush1.msra.mxu0 0.0
    %5453 = vmatprep.subr.mxu0 0.0
    %5454 = vmatpush1.msra.mxu0 0.0
    %5455 = vmatprep.subr.mxu0 0.0
    %5456 = vmatpush1.msra.mxu0 0.0
    %5457 = vmatprep.subr.mxu0 0.0
    %5458 = vmatpush1.msra.mxu0 0.0
    %5459 = vmatprep.subr.mxu0 0.0
    %5460 = vmatpush1.msra.mxu0 0.0
    %5461 = vmatprep.subr.mxu0 0.0
    %5462 = vmatpush1.msra.mxu0 0.0
    %5463 = vmatprep.subr.mxu0 0.0
    %5464 = vmatpush1.msra.mxu0 0.0
    %5465 = vmatprep.subr.mxu0 0.0
    %5466 = vmatpush1.msra.mxu0 0.0
    %5467 = vmatprep.subr.mxu0 0.0
    %5468 = vmatpush1.msra.mxu0 0.0
    %5469 = vmatprep.subr.mxu0 0.0
    %5470 = vmatpush1.msra.mxu0 0.0
    %5471 = vmatprep.subr.mxu0 0.0
    %5472 = vmatpush1.msra.mxu0 0.0
    %5473 = vmatprep.subr.mxu0 0.0
    %5474 = vmatpush1.msra.mxu0 0.0
    %5475 = vmatprep.mubr.f32.mxu0 0.0
    %5476 = vmatmul.mubr.f32.gmra.mrb[0].mxu0 %v5406
    %v5477 = vpop.f32.mrb[0].mxu0
    %v5478 = vadd.f32 %v5404, %v5477
    %v5479 = vpop.f32.mrb[0].mxu0
    %5480 = vmatprep.mubr.f32.mxu0 0.0
    %5481 = vmatmul.mubr.f32.gmra.mrb[0].mxu0 %v5409
    %v5482 = vpop.f32.mrb[0].mxu0
    %v5483 = vadd.f32 %v5404, %v5482
    %v5484 = vpop.f32.mrb[0].mxu0
    %5485 = vdwg.mxu0
    %v5486 = vadd.f32 %v4463, %v5478
    %v5487 = vadd.f32 %v4464, %v5483
    %v5488 = vsel %vm80, %v5486, 0.0
    %5489 = vadd.xlane.f32.xlu0 %v5488
    %v5490 = vpop.xlane.xlu0 %5489
    %v5491 = vsel %vm80, %v5487, 0.0
    %5492 = vadd.xlane.f32.xlu0 %v5491
    %v5493 = vpop.xlane.xlu0 %5492
    %v5494 = vmul.f32 %v5490, %v1194
    %v5495 = vmul.f32 %v5493, %v1194
    %v5496 = vsub.f32 %v5486, %v5494
    %v5497 = vsub.f32 %v5487, %v5495
    %v5498 = vmul.f32 %v5496, %v5496
    %v5499 = vmul.f32 %v5497, %v5497
    %v5500 = vsel %vm80, %v5498, 0.0
    %5501 = vadd.xlane.f32.xlu0 %v5500
    %v5502 = vpop.xlane.xlu0 %5501
    %v5503 = vsel %vm80, %v5499, 0.0
    %5504 = vadd.xlane.f32.xlu0 %v5503
    %v5505 = vpop.xlane.xlu0 %5504
    %v5506 = vmul.f32 %v5502, %v1194
    %v5507 = vmul.f32 %v5505, %v1194
    %v5508 = vadd.f32 %v5506, 1e-06
    %v5509 = vadd.f32 %v5507, 1e-06
    %v5510 = vrsqrt.pop %v5508
    %v5511 = vrsqrt.pop %v5509
    %v5512 = vmul.f32 %v5496, %v5510
    %v5513 = vmul.f32 %v5497, %v5511
    %v5514 = vlaneseq
    %v5515 = vshrl.u32 %v5514, 7
    %v5516 = vsub.s32 2, %v5515
    %v5517 = vrot.slane %v4483, %v5516
    %v5518 = vmul.f32 %v5512, %v5517
    %v5519 = vmul.f32 %v5513, %v5517
    %v5520 = vlaneseq
    %v5521 = vshrl.u32 %v5520, 7
    %v5522 = vsub.s32 3, %v5521
    %v5523 = vrot.slane %v4483, %v5522
    %v5524 = vadd.f32 %v5518, %v5523
    %v5525 = vadd.f32 %v5519, %v5523
    %v5526 = vlaneseq
    %v5527 = vshrl.u32 %v5526, 7
    %v5528 = vsub.s32 6, %v5527
    %v5529 = vrot.slane %v4483, %v5528
    %v5531 = vsel %vm80, %v5524, 0
    %v5534 = vsel %vm80, %v5525, 0
    %5536 = vmatprep.subr.mxu0 0.0
    %5537 = vmatpush1.msra.mxu0 %v4474
    %5538 = vmatprep.subr.mxu0 0.0
    %5539 = vmatpush1.msra.mxu0 %v4475
    %5540 = vmatprep.subr.mxu0 0.0
    %5541 = vmatpush1.msra.mxu0 %v4476
    %5542 = vmatprep.subr.mxu0 0.0
    %5543 = vmatpush1.msra.mxu0 %v4477
    %5544 = vmatprep.subr.mxu0 0.0
    %5545 = vmatpush1.msra.mxu0 0.0
    %5546 = vmatprep.subr.mxu0 0.0
    %5547 = vmatpush1.msra.mxu0 0.0
    %5548 = vmatprep.subr.mxu0 0.0
    %5549 = vmatpush1.msra.mxu0 0.0
    %5550 = vmatprep.subr.mxu0 0.0
    %5551 = vmatpush1.msra.mxu0 0.0
    %5552 = vmatprep.subr.mxu0 0.0
    %5553 = vmatpush1.msra.mxu0 0.0
    %5554 = vmatprep.subr.mxu0 0.0
    %5555 = vmatpush1.msra.mxu0 0.0
    %5556 = vmatprep.subr.mxu0 0.0
    %5557 = vmatpush1.msra.mxu0 0.0
    %5558 = vmatprep.subr.mxu0 0.0
    %5559 = vmatpush1.msra.mxu0 0.0
    %5560 = vmatprep.subr.mxu0 0.0
    %5561 = vmatpush1.msra.mxu0 0.0
    %5562 = vmatprep.subr.mxu0 0.0
    %5563 = vmatpush1.msra.mxu0 0.0
    %5564 = vmatprep.subr.mxu0 0.0
    %5565 = vmatpush1.msra.mxu0 0.0
    %5566 = vmatprep.subr.mxu0 0.0
    %5567 = vmatpush1.msra.mxu0 0.0
    %5568 = vmatprep.subr.mxu0 0.0
    %5569 = vmatpush1.msra.mxu0 0.0
    %5570 = vmatprep.subr.mxu0 0.0
    %5571 = vmatpush1.msra.mxu0 0.0
    %5572 = vmatprep.subr.mxu0 0.0
    %5573 = vmatpush1.msra.mxu0 0.0
    %5574 = vmatprep.subr.mxu0 0.0
    %5575 = vmatpush1.msra.mxu0 0.0
    %5576 = vmatprep.subr.mxu0 0.0
    %5577 = vmatpush1.msra.mxu0 0.0
    %5578 = vmatprep.subr.mxu0 0.0
    %5579 = vmatpush1.msra.mxu0 0.0
    %5580 = vmatprep.subr.mxu0 0.0
    %5581 = vmatpush1.msra.mxu0 0.0
    %5582 = vmatprep.subr.mxu0 0.0
    %5583 = vmatpush1.msra.mxu0 0.0
    %5584 = vmatprep.subr.mxu0 0.0
    %5585 = vmatpush1.msra.mxu0 0.0
    %5586 = vmatprep.subr.mxu0 0.0
    %5587 = vmatpush1.msra.mxu0 0.0
    %5588 = vmatprep.subr.mxu0 0.0
    %5589 = vmatpush1.msra.mxu0 0.0
    %5590 = vmatprep.subr.mxu0 0.0
    %5591 = vmatpush1.msra.mxu0 0.0
    %5592 = vmatprep.subr.mxu0 0.0
    %5593 = vmatpush1.msra.mxu0 0.0
    %5594 = vmatprep.subr.mxu0 0.0
    %5595 = vmatpush1.msra.mxu0 0.0
    %5596 = vmatprep.subr.mxu0 0.0
    %5597 = vmatpush1.msra.mxu0 0.0
    %5598 = vmatprep.subr.mxu0 0.0
    %5599 = vmatpush1.msra.mxu0 0.0
    %5600 = vmatprep.mubr.f32.mxu0 0.0
    %5601 = vmatmul.mubr.f32.gmra.mrb[0].mxu0 %v5531
    %v5602 = vpop.f32.mrb[0].mxu0
    %v5603 = vadd.f32 %v5529, %v5602
    %v5604 = vpop.f32.mrb[0].mxu0
    %5605 = vmatprep.mubr.f32.mxu0 0.0
    %5606 = vmatmul.mubr.f32.gmra.mrb[0].mxu0 %v5534
    %v5607 = vpop.f32.mrb[0].mxu0
    %v5608 = vadd.f32 %v5529, %v5607
    %v5609 = vpop.f32.mrb[0].mxu0
    %5610 = vdwg.mxu0
    %v5611 = vmax.f32 %v5603, 0.0
    %v5612 = vmax.f32 %v5608, 0.0
    %v5613 = vlaneseq
    %v5614 = vshrl.u32 %v5613, 7
    %v5615 = vsub.s32 7, %v5614
    %v5616 = vrot.slane %v4483, %v5615
    %v5618 = vsel %vm1318, %v5611, 0
    %v5621 = vsel %vm1318, %v5612, 0
    %v5624 = vsel %vm1318, %v4478, 0
    %v5627 = vsel %vm1318, %v4479, 0
    %v5630 = vsel %vm1318, %v4480, 0
    %v5633 = vsel %vm1318, %v4481, 0
    %5635 = vmatprep.subr.mxu0 0.0
    %5636 = vmatpush1.xpose.msra.mxu0 %v5624
    %5637 = vmatprep.subr.mxu0 0.0
    %5638 = vmatpush1.xpose.msra.mxu0 %v5627
    %5639 = vmatprep.subr.mxu0 0.0
    %5640 = vmatpush1.xpose.msra.mxu0 %v5630
    %5641 = vmatprep.subr.mxu0 0.0
    %5642 = vmatpush1.xpose.msra.mxu0 %v5633
    %5643 = vmatprep.subr.mxu0 0.0
    %5644 = vmatpush1.xpose.msra.mxu0 0.0
    %5645 = vmatprep.subr.mxu0 0.0
    %5646 = vmatpush1.xpose.msra.mxu0 0.0
    %5647 = vmatprep.subr.mxu0 0.0
    %5648 = vmatpush1.xpose.msra.mxu0 0.0
    %5649 = vmatprep.subr.mxu0 0.0
    %5650 = vmatpush1.xpose.msra.mxu0 0.0
    %5651 = vmatprep.subr.mxu0 0.0
    %5652 = vmatpush1.xpose.msra.mxu0 0.0
    %5653 = vmatprep.subr.mxu0 0.0
    %5654 = vmatpush1.xpose.msra.mxu0 0.0
    %5655 = vmatprep.subr.mxu0 0.0
    %5656 = vmatpush1.xpose.msra.mxu0 0.0
    %5657 = vmatprep.subr.mxu0 0.0
    %5658 = vmatpush1.xpose.msra.mxu0 0.0
    %5659 = vmatprep.subr.mxu0 0.0
    %5660 = vmatpush1.xpose.msra.mxu0 0.0
    %5661 = vmatprep.subr.mxu0 0.0
    %5662 = vmatpush1.xpose.msra.mxu0 0.0
    %5663 = vmatprep.subr.mxu0 0.0
    %5664 = vmatpush1.xpose.msra.mxu0 0.0
    %5665 = vmatprep.subr.mxu0 0.0
    %5666 = vmatpush1.xpose.msra.mxu0 0.0
    %5667 = vmatprep.subr.mxu0 0.0
    %5668 = vmatpush1.xpose.msra.mxu0 0.0
    %5669 = vmatprep.subr.mxu0 0.0
    %5670 = vmatpush1.xpose.msra.mxu0 0.0
    %5671 = vmatprep.subr.mxu0 0.0
    %5672 = vmatpush1.xpose.msra.mxu0 0.0
    %5673 = vmatprep.subr.mxu0 0.0
    %5674 = vmatpush1.xpose.msra.mxu0 0.0
    %5675 = vmatprep.subr.mxu0 0.0
    %5676 = vmatpush1.xpose.msra.mxu0 0.0
    %5677 = vmatprep.subr.mxu0 0.0
    %5678 = vmatpush1.xpose.msra.mxu0 0.0
    %5679 = vmatprep.subr.mxu0 0.0
    %5680 = vmatpush1.xpose.msra.mxu0 0.0
    %5681 = vmatprep.subr.mxu0 0.0
    %5682 = vmatpush1.xpose.msra.mxu0 0.0
    %5683 = vmatprep.subr.mxu0 0.0
    %5684 = vmatpush1.xpose.msra.mxu0 0.0
    %5685 = vmatprep.subr.mxu0 0.0
    %5686 = vmatpush1.xpose.msra.mxu0 0.0
    %5687 = vmatprep.subr.mxu0 0.0
    %5688 = vmatpush1.xpose.msra.mxu0 0.0
    %5689 = vmatprep.subr.mxu0 0.0
    %5690 = vmatpush1.xpose.msra.mxu0 0.0
    %5691 = vmatprep.subr.mxu0 0.0
    %5692 = vmatpush1.xpose.msra.mxu0 0.0
    %5693 = vmatprep.subr.mxu0 0.0
    %5694 = vmatpush1.xpose.msra.mxu0 0.0
    %5695 = vmatprep.subr.mxu0 0.0
    %5696 = vmatpush1.xpose.msra.mxu0 0.0
    %5697 = vmatprep.subr.mxu0 0.0
    %5698 = vmatpush1.xpose.msra.mxu0 0.0
    %5699 = vmatprep.mubr.f32.mxu0 0.0
    %5700 = vmatmul.mubr.f32.gmra.mrb[0].mxu0 %v5618
    %v5701 = vpop.f32.mrb[0].mxu0
    %v5702 = vadd.f32 %v5616, %v5701
    %v5703 = vpop.f32.mrb[0].mxu0
    %5704 = vmatprep.mubr.f32.mxu0 0.0
    %5705 = vmatmul.mubr.f32.gmra.mrb[0].mxu0 %v5621
    %v5706 = vpop.f32.mrb[0].mxu0
    %v5707 = vadd.f32 %v5616, %v5706
    %v5708 = vpop.f32.mrb[0].mxu0
    %5709 = vdwg.mxu0
    %v5710 = vadd.f32 %v5524, %v5702
    %v5711 = vadd.f32 %v5525, %v5707
    %v5712 = vsel %vm80, %v5710, 0.0
    %5713 = vadd.xlane.f32.xlu0 %v5712
    %v5714 = vpop.xlane.xlu0 %5713
    %v5715 = vsel %vm80, %v5711, 0.0
    %5716 = vadd.xlane.f32.xlu0 %v5715
    %v5717 = vpop.xlane.xlu0 %5716
    %v5718 = vmul.f32 %v5714, %v1194
    %v5719 = vmul.f32 %v5717, %v1194
    %v5720 = vsub.f32 %v5710, %v5718
    %v5721 = vsub.f32 %v5711, %v5719
    %v5722 = vmul.f32 %v5720, %v5720
    %v5723 = vmul.f32 %v5721, %v5721
    %v5724 = vsel %vm80, %v5722, 0.0
    %5725 = vadd.xlane.f32.xlu0 %v5724
    %v5726 = vpop.xlane.xlu0 %5725
    %v5727 = vsel %vm80, %v5723, 0.0
    %5728 = vadd.xlane.f32.xlu0 %v5727
    %v5729 = vpop.xlane.xlu0 %5728
    %v5730 = vmul.f32 %v5726, %v1194
    %v5731 = vmul.f32 %v5729, %v1194
    %v5732 = vadd.f32 %v5730, 1e-06
    %v5733 = vadd.f32 %v5731, 1e-06
    %v5734 = vrsqrt.pop %v5732
    %v5735 = vrsqrt.pop %v5733
    %v5736 = vmul.f32 %v5720, %v5734
    %v5737 = vmul.f32 %v5721, %v5735
    %v5738 = vlaneseq
    %v5739 = vshrl.u32 %v5738, 7
    %v5740 = vsub.s32 4, %v5739
    %v5741 = vrot.slane %v4483, %v5740
    %v5742 = vmul.f32 %v5736, %v5741
    %v5743 = vmul.f32 %v5737, %v5741
    %v5744 = vlaneseq
    %v5745 = vshrl.u32 %v5744, 7
    %v5746 = vsub.s32 5, %v5745
    %v5747 = vrot.slane %v4483, %v5746
    %v5748 = vadd.f32 %v5742, %v5747
    %v5749 = vadd.f32 %v5743, %v5747
    %v5750 = vld [vmem:[%s3] sm:$0xff]
    %v5751 = vld [vmem:[%s3 + $0x8] sm:$0xff]
    %v5752 = vld [vmem:[%s3 + $0x10] sm:$0xff]
    %v5753 = vld [vmem:[%s3 + $0x18] sm:$0xff]
    %v5754 = vld [vmem:[%s3 + $0x20] sm:$0xff]
    %v5755 = vld [vmem:[%s3 + $0x28] sm:$0xff]
    %v5756 = vld [vmem:[%s3 + $0x30] sm:$0xff]
    %v5757 = vld [vmem:[%s3 + $0x38] sm:$0xff]
    %v5758 = vld [vmem:[%s3 + $0x40] sm:$0xff]
    %v5759 = vld [vmem:[%s3 + $0x48] sm:$0xff]
    %v5760 = vld [vmem:[%s3 + $0x50] sm:$0xff]
    %v5761 = vld [vmem:[%s3 + $0x58] sm:$0xff]
    %v5762 = vld [vmem:[%s3 + $0x60] sm:$0xff]
    %v5763 = vld [vmem:[%s3 + $0x68] sm:$0xff]
    %v5764 = vld [vmem:[%s3 + $0x70] sm:$0xff]
    %v5765 = vld [vmem:[%s3 + $0x78] sm:$0xff]
    %v5766 = vld [vmem:[%s3 + $0x80] sm:$0xff]
    %v5767 = vld [vmem:[%s3 + $0x88] sm:$0xff]
    %v5768 = vld [vmem:[%s3 + $0x90] sm:$0xff]
    %v5769 = vld [vmem:[%s3 + $0x98] sm:$0xff]
    %v5770 = vld [vmem:[%s3 + $0xa0] sm:$0xff]
    %v5771 = vld [vmem:[%s3 + $0xa8] sm:$0xff]
    %v5772 = vld [vmem:[%s3 + $0xb0] sm:$0xff]
    %v5773 = vld [vmem:[%s3 + $0xb8] sm:$0xff]
    %v5774 = vld [vmem:[%s3 + $0xc0] sm:$0xff]
    %v5775 = vld [vmem:[%s3 + $0xc8] sm:$0xff]
    %v5776 = vld [vmem:[%s3 + $0xd0] sm:$0xff]
    %v5777 = vld [vmem:[%s3 + $0xd8] sm:$0xff]
    %v5779 = vsel %vm80, %v5748, 0
    %v5782 = vsel %vm80, %v5749, 0
    %5784 = vmatprep.subr.mxu0 %v5751
    %5785 = vmatpush1.msra.mxu0 %v5750
    %5786 = vmatprep.subr.mxu0 %v5758
    %5787 = vmatpush1.msra.mxu0 %v5757
    %5788 = vmatprep.subr.mxu0 %v5765
    %5789 = vmatpush1.msra.mxu0 %v5764
    %5790 = vmatprep.subr.mxu0 %v5772
    %5791 = vmatpush1.msra.mxu0 %v5771
    %5792 = vmatprep.subr.mxu0 0.0
    %5793 = vmatpush1.msra.mxu0 0.0
    %5794 = vmatprep.subr.mxu0 0.0
    %5795 = vmatpush1.msra.mxu0 0.0
    %5796 = vmatprep.subr.mxu0 0.0
    %5797 = vmatpush1.msra.mxu0 0.0
    %5798 = vmatprep.subr.mxu0 0.0
    %5799 = vmatpush1.msra.mxu0 0.0
    %5800 = vmatprep.subr.mxu0 0.0
    %5801 = vmatpush1.msra.mxu0 0.0
    %5802 = vmatprep.subr.mxu0 0.0
    %5803 = vmatpush1.msra.mxu0 0.0
    %5804 = vmatprep.subr.mxu0 0.0
    %5805 = vmatpush1.msra.mxu0 0.0
    %5806 = vmatprep.subr.mxu0 0.0
    %5807 = vmatpush1.msra.mxu0 0.0
    %5808 = vmatprep.subr.mxu0 0.0
    %5809 = vmatpush1.msra.mxu0 0.0
    %5810 = vmatprep.subr.mxu0 0.0
    %5811 = vmatpush1.msra.mxu0 0.0
    %5812 = vmatprep.subr.mxu0 0.0
    %5813 = vmatpush1.msra.mxu0 0.0
    %5814 = vmatprep.subr.mxu0 0.0
    %5815 = vmatpush1.msra.mxu0 0.0
    %5816 = vmatprep.subr.mxu0 0.0
    %5817 = vmatpush1.msra.mxu0 0.0
    %5818 = vmatprep.subr.mxu0 0.0
    %5819 = vmatpush1.msra.mxu0 0.0
    %5820 = vmatprep.subr.mxu0 0.0
    %5821 = vmatpush1.msra.mxu0 0.0
    %5822 = vmatprep.subr.mxu0 0.0
    %5823 = vmatpush1.msra.mxu0 0.0
    %5824 = vmatprep.subr.mxu0 0.0
    %5825 = vmatpush1.msra.mxu0 0.0
    %5826 = vmatprep.subr.mxu0 0.0
    %5827 = vmatpush1.msra.mxu0 0.0
    %5828 = vmatprep.subr.mxu0 0.0
    %5829 = vmatpush1.msra.mxu0 0.0
    %5830 = vmatprep.subr.mxu0 0.0
    %5831 = vmatpush1.msra.mxu0 0.0
    %5832 = vmatprep.subr.mxu0 0.0
    %5833 = vmatpush1.msra.mxu0 0.0
    %5834 = vmatprep.subr.mxu0 0.0
    %5835 = vmatpush1.msra.mxu0 0.0
    %5836 = vmatprep.subr.mxu0 0.0
    %5837 = vmatpush1.msra.mxu0 0.0
    %5838 = vmatprep.subr.mxu0 0.0
    %5839 = vmatpush1.msra.mxu0 0.0
    %5840 = vmatprep.subr.mxu0 0.0
    %5841 = vmatpush1.msra.mxu0 0.0
    %5842 = vmatprep.subr.mxu0 0.0
    %5843 = vmatpush1.msra.mxu0 0.0
    %5844 = vmatprep.subr.mxu0 0.0
    %5845 = vmatpush1.msra.mxu0 0.0
    %5846 = vmatprep.subr.mxu0 0.0
    %5847 = vmatpush1.msra.mxu0 0.0
    %5848 = vmatprep.mubr.f32.mxu0 0.0
    %5849 = vmatmul.mubr.f32.gmra.mrb[0].mxu0 %v5779
    %v5850 = vpop.f32.mrb[0].mxu0
    %v5851 = vadd.f32 0.0, %v5850
    %v5852 = vpop.f32.mrb[0].mxu0
    %v5853 = vadd.f32 0.0, %v5852
    %5854 = vmatprep.mubr.f32.mxu0 0.0
    %5855 = vmatmul.mubr.f32.gmra.mrb[0].mxu0 %v5782
    %v5856 = vpop.f32.mrb[0].mxu0
    %v5857 = vadd.f32 0.0, %v5856
    %v5858 = vpop.f32.mrb[0].mxu0
    %v5859 = vadd.f32 0.0, %v5858
    %5860 = vdwg.mxu0
    %5861 = vmatprep.subr.mxu0 %v5753
    %5862 = vmatpush1.msra.mxu0 %v5752
    %5863 = vmatprep.subr.mxu0 %v5760
    %5864 = vmatpush1.msra.mxu0 %v5759
    %5865 = vmatprep.subr.mxu0 %v5767
    %5866 = vmatpush1.msra.mxu0 %v5766
    %5867 = vmatprep.subr.mxu0 %v5774
    %5868 = vmatpush1.msra.mxu0 %v5773
    %5869 = vmatprep.subr.mxu0 0.0
    %5870 = vmatpush1.msra.mxu0 0.0
    %5871 = vmatprep.subr.mxu0 0.0
    %5872 = vmatpush1.msra.mxu0 0.0
    %5873 = vmatprep.subr.mxu0 0.0
    %5874 = vmatpush1.msra.mxu0 0.0
    %5875 = vmatprep.subr.mxu0 0.0
    %5876 = vmatpush1.msra.mxu0 0.0
    %5877 = vmatprep.subr.mxu0 0.0
    %5878 = vmatpush1.msra.mxu0 0.0
    %5879 = vmatprep.subr.mxu0 0.0
    %5880 = vmatpush1.msra.mxu0 0.0
    %5881 = vmatprep.subr.mxu0 0.0
    %5882 = vmatpush1.msra.mxu0 0.0
    %5883 = vmatprep.subr.mxu0 0.0
    %5884 = vmatpush1.msra.mxu0 0.0
    %5885 = vmatprep.subr.mxu0 0.0
    %5886 = vmatpush1.msra.mxu0 0.0
    %5887 = vmatprep.subr.mxu0 0.0
    %5888 = vmatpush1.msra.mxu0 0.0
    %5889 = vmatprep.subr.mxu0 0.0
    %5890 = vmatpush1.msra.mxu0 0.0
    %5891 = vmatprep.subr.mxu0 0.0
    %5892 = vmatpush1.msra.mxu0 0.0
    %5893 = vmatprep.subr.mxu0 0.0
    %5894 = vmatpush1.msra.mxu0 0.0
    %5895 = vmatprep.subr.mxu0 0.0
    %5896 = vmatpush1.msra.mxu0 0.0
    %5897 = vmatprep.subr.mxu0 0.0
    %5898 = vmatpush1.msra.mxu0 0.0
    %5899 = vmatprep.subr.mxu0 0.0
    %5900 = vmatpush1.msra.mxu0 0.0
    %5901 = vmatprep.subr.mxu0 0.0
    %5902 = vmatpush1.msra.mxu0 0.0
    %5903 = vmatprep.subr.mxu0 0.0
    %5904 = vmatpush1.msra.mxu0 0.0
    %5905 = vmatprep.subr.mxu0 0.0
    %5906 = vmatpush1.msra.mxu0 0.0
    %5907 = vmatprep.subr.mxu0 0.0
    %5908 = vmatpush1.msra.mxu0 0.0
    %5909 = vmatprep.subr.mxu0 0.0
    %5910 = vmatpush1.msra.mxu0 0.0
    %5911 = vmatprep.subr.mxu0 0.0
    %5912 = vmatpush1.msra.mxu0 0.0
    %5913 = vmatprep.subr.mxu0 0.0
    %5914 = vmatpush1.msra.mxu0 0.0
    %5915 = vmatprep.subr.mxu0 0.0
    %5916 = vmatpush1.msra.mxu0 0.0
    %5917 = vmatprep.subr.mxu0 0.0
    %5918 = vmatpush1.msra.mxu0 0.0
    %5919 = vmatprep.subr.mxu0 0.0
    %5920 = vmatpush1.msra.mxu0 0.0
    %5921 = vmatprep.subr.mxu0 0.0
    %5922 = vmatpush1.msra.mxu0 0.0
    %5923 = vmatprep.subr.mxu0 0.0
    %5924 = vmatpush1.msra.mxu0 0.0
    %5925 = vmatprep.mubr.f32.mxu0 0.0
    %5926 = vmatmul.mubr.f32.gmra.mrb[0].mxu0 %v5779
    %v5927 = vpop.f32.mrb[0].mxu0
    %v5928 = vadd.f32 0.0, %v5927
    %v5929 = vpop.f32.mrb[0].mxu0
    %v5930 = vadd.f32 0.0, %v5929
    %5931 = vmatprep.mubr.f32.mxu0 0.0
    %5932 = vmatmul.mubr.f32.gmra.mrb[0].mxu0 %v5782
    %v5933 = vpop.f32.mrb[0].mxu0
    %v5934 = vadd.f32 0.0, %v5933
    %v5935 = vpop.f32.mrb[0].mxu0
    %v5936 = vadd.f32 0.0, %v5935
    %5937 = vdwg.mxu0
    %5938 = vmatprep.subr.mxu0 %v5755
    %5939 = vmatpush1.msra.mxu0 %v5754
    %5940 = vmatprep.subr.mxu0 %v5762
    %5941 = vmatpush1.msra.mxu0 %v5761
    %5942 = vmatprep.subr.mxu0 %v5769
    %5943 = vmatpush1.msra.mxu0 %v5768
    %5944 = vmatprep.subr.mxu0 %v5776
    %5945 = vmatpush1.msra.mxu0 %v5775
    %5946 = vmatprep.subr.mxu0 0.0
    %5947 = vmatpush1.msra.mxu0 0.0
    %5948 = vmatprep.subr.mxu0 0.0
    %5949 = vmatpush1.msra.mxu0 0.0
    %5950 = vmatprep.subr.mxu0 0.0
    %5951 = vmatpush1.msra.mxu0 0.0
    %5952 = vmatprep.subr.mxu0 0.0
    %5953 = vmatpush1.msra.mxu0 0.0
    %5954 = vmatprep.subr.mxu0 0.0
    %5955 = vmatpush1.msra.mxu0 0.0
    %5956 = vmatprep.subr.mxu0 0.0
    %5957 = vmatpush1.msra.mxu0 0.0
    %5958 = vmatprep.subr.mxu0 0.0
    %5959 = vmatpush1.msra.mxu0 0.0
    %5960 = vmatprep.subr.mxu0 0.0
    %5961 = vmatpush1.msra.mxu0 0.0
    %5962 = vmatprep.subr.mxu0 0.0
    %5963 = vmatpush1.msra.mxu0 0.0
    %5964 = vmatprep.subr.mxu0 0.0
    %5965 = vmatpush1.msra.mxu0 0.0
    %5966 = vmatprep.subr.mxu0 0.0
    %5967 = vmatpush1.msra.mxu0 0.0
    %5968 = vmatprep.subr.mxu0 0.0
    %5969 = vmatpush1.msra.mxu0 0.0
    %5970 = vmatprep.subr.mxu0 0.0
    %5971 = vmatpush1.msra.mxu0 0.0
    %5972 = vmatprep.subr.mxu0 0.0
    %5973 = vmatpush1.msra.mxu0 0.0
    %5974 = vmatprep.subr.mxu0 0.0
    %5975 = vmatpush1.msra.mxu0 0.0
    %5976 = vmatprep.subr.mxu0 0.0
    %5977 = vmatpush1.msra.mxu0 0.0
    %5978 = vmatprep.subr.mxu0 0.0
    %5979 = vmatpush1.msra.mxu0 0.0
    %5980 = vmatprep.subr.mxu0 0.0
    %5981 = vmatpush1.msra.mxu0 0.0
    %5982 = vmatprep.subr.mxu0 0.0
    %5983 = vmatpush1.msra.mxu0 0.0
    %5984 = vmatprep.subr.mxu0 0.0
    %5985 = vmatpush1.msra.mxu0 0.0
    %5986 = vmatprep.subr.mxu0 0.0
    %5987 = vmatpush1.msra.mxu0 0.0
    %5988 = vmatprep.subr.mxu0 0.0
    %5989 = vmatpush1.msra.mxu0 0.0
    %5990 = vmatprep.subr.mxu0 0.0
    %5991 = vmatpush1.msra.mxu0 0.0
    %5992 = vmatprep.subr.mxu0 0.0
    %5993 = vmatpush1.msra.mxu0 0.0
    %5994 = vmatprep.subr.mxu0 0.0
    %5995 = vmatpush1.msra.mxu0 0.0
    %5996 = vmatprep.subr.mxu0 0.0
    %5997 = vmatpush1.msra.mxu0 0.0
    %5998 = vmatprep.subr.mxu0 0.0
    %5999 = vmatpush1.msra.mxu0 0.0
    %6000 = vmatprep.subr.mxu0 0.0
    %6001 = vmatpush1.msra.mxu0 0.0
    %6002 = vmatprep.mubr.f32.mxu0 0.0
    %6003 = vmatmul.mubr.f32.gmra.mrb[0].mxu0 %v5779
    %v6004 = vpop.f32.mrb[0].mxu0
    %v6005 = vadd.f32 0.0, %v6004
    %v6006 = vpop.f32.mrb[0].mxu0
    %v6007 = vadd.f32 0.0, %v6006
    %6008 = vmatprep.mubr.f32.mxu0 0.0
    %6009 = vmatmul.mubr.f32.gmra.mrb[0].mxu0 %v5782
    %v6010 = vpop.f32.mrb[0].mxu0
    %v6011 = vadd.f32 0.0, %v6010
    %v6012 = vpop.f32.mrb[0].mxu0
    %v6013 = vadd.f32 0.0, %v6012
    %6014 = vdwg.mxu0
    %6015 = vmatprep.subr.mxu0 0.0
    %6016 = vmatpush1.msra.mxu0 %v5756
    %6017 = vmatprep.subr.mxu0 0.0
    %6018 = vmatpush1.msra.mxu0 %v5763
    %6019 = vmatprep.subr.mxu0 0.0
    %6020 = vmatpush1.msra.mxu0 %v5770
    %6021 = vmatprep.subr.mxu0 0.0
    %6022 = vmatpush1.msra.mxu0 %v5777
    %6023 = vmatprep.subr.mxu0 0.0
    %6024 = vmatpush1.msra.mxu0 0.0
    %6025 = vmatprep.subr.mxu0 0.0
    %6026 = vmatpush1.msra.mxu0 0.0
    %6027 = vmatprep.subr.mxu0 0.0
    %6028 = vmatpush1.msra.mxu0 0.0
    %6029 = vmatprep.subr.mxu0 0.0
    %6030 = vmatpush1.msra.mxu0 0.0
    %6031 = vmatprep.subr.mxu0 0.0
    %6032 = vmatpush1.msra.mxu0 0.0
    %6033 = vmatprep.subr.mxu0 0.0
    %6034 = vmatpush1.msra.mxu0 0.0
    %6035 = vmatprep.subr.mxu0 0.0
    %6036 = vmatpush1.msra.mxu0 0.0
    %6037 = vmatprep.subr.mxu0 0.0
    %6038 = vmatpush1.msra.mxu0 0.0
    %6039 = vmatprep.subr.mxu0 0.0
    %6040 = vmatpush1.msra.mxu0 0.0
    %6041 = vmatprep.subr.mxu0 0.0
    %6042 = vmatpush1.msra.mxu0 0.0
    %6043 = vmatprep.subr.mxu0 0.0
    %6044 = vmatpush1.msra.mxu0 0.0
    %6045 = vmatprep.subr.mxu0 0.0
    %6046 = vmatpush1.msra.mxu0 0.0
    %6047 = vmatprep.subr.mxu0 0.0
    %6048 = vmatpush1.msra.mxu0 0.0
    %6049 = vmatprep.subr.mxu0 0.0
    %6050 = vmatpush1.msra.mxu0 0.0
    %6051 = vmatprep.subr.mxu0 0.0
    %6052 = vmatpush1.msra.mxu0 0.0
    %6053 = vmatprep.subr.mxu0 0.0
    %6054 = vmatpush1.msra.mxu0 0.0
    %6055 = vmatprep.subr.mxu0 0.0
    %6056 = vmatpush1.msra.mxu0 0.0
    %6057 = vmatprep.subr.mxu0 0.0
    %6058 = vmatpush1.msra.mxu0 0.0
    %6059 = vmatprep.subr.mxu0 0.0
    %6060 = vmatpush1.msra.mxu0 0.0
    %6061 = vmatprep.subr.mxu0 0.0
    %6062 = vmatpush1.msra.mxu0 0.0
    %6063 = vmatprep.subr.mxu0 0.0
    %6064 = vmatpush1.msra.mxu0 0.0
    %6065 = vmatprep.subr.mxu0 0.0
    %6066 = vmatpush1.msra.mxu0 0.0
    %6067 = vmatprep.subr.mxu0 0.0
    %6068 = vmatpush1.msra.mxu0 0.0
    %6069 = vmatprep.subr.mxu0 0.0
    %6070 = vmatpush1.msra.mxu0 0.0
    %6071 = vmatprep.subr.mxu0 0.0
    %6072 = vmatpush1.msra.mxu0 0.0
    %6073 = vmatprep.subr.mxu0 0.0
    %6074 = vmatpush1.msra.mxu0 0.0
    %6075 = vmatprep.subr.mxu0 0.0
    %6076 = vmatpush1.msra.mxu0 0.0
    %6077 = vmatprep.subr.mxu0 0.0
    %6078 = vmatpush1.msra.mxu0 0.0
    %6079 = vmatprep.mubr.f32.mxu0 0.0
    %6080 = vmatmul.mubr.f32.gmra.mrb[0].mxu0 %v5779
    %v6081 = vpop.f32.mrb[0].mxu0
    %v6082 = vadd.f32 0.0, %v6081
    %v6083 = vpop.f32.mrb[0].mxu0
    %6084 = vmatprep.mubr.f32.mxu0 0.0
    %6085 = vmatmul.mubr.f32.gmra.mrb[0].mxu0 %v5782
    %v6086 = vpop.f32.mrb[0].mxu0
    %v6087 = vadd.f32 0.0, %v6086
    %v6088 = vpop.f32.mrb[0].mxu0
    %6089 = vdwg.mxu0
    %v6091 = vrot.slane %v5853, 1
    %v6093 = vadd.f32 %v5851, %v6091
    %v6095 = vrot.slane %v5930, 1
    %v6097 = vadd.f32 %v5928, %v6095
    %v6099 = vrot.slane %v6007, 1
    %v6101 = vadd.f32 %v6005, %v6099
    %v6103 = vrot.slane %v6097, 2
    %v6105 = vadd.f32 %v6093, %v6103
    %v6107 = vrot.slane %v6082, 2
    %v6109 = vadd.f32 %v6101, %v6107
    %v6111 = vrot.slane %v6109, 4
    %v6113 = vadd.f32 %v6105, %v6111
    %v6115 = vrot.slane %v5859, 1
    %v6117 = vadd.f32 %v5857, %v6115
    %v6119 = vrot.slane %v5936, 1
    %v6121 = vadd.f32 %v5934, %v6119
    %v6123 = vrot.slane %v6013, 1
    %v6125 = vadd.f32 %v6011, %v6123
    %v6127 = vrot.slane %v6121, 2
    %v6129 = vadd.f32 %v6117, %v6127
    %v6131 = vrot.slane %v6087, 2
    %v6133 = vadd.f32 %v6125, %v6131
    %v6135 = vrot.slane %v6133, 4
    %v6137 = vadd.f32 %v6129, %v6135
    %v6139 = vrot.slane %v6137, 7
    %v6141 = vsel %vm3084, %v6113, %v6139
    %v6142 = vlaneseq
    %v6143 = vshrl.u32 %v6142, 7
    %v6144 = vsub.s32 0, %v6143
    %v6145 = vrot.slane %v75, %v6144
    %v6146 = vadd.f32 %v6141, %v6145
    %vm6147 = vcmask 1041408
    %v6148 = vsel %vm6147, %v6146, -inf
    %6149 = vmax.xlane.f32.xlu0 %v6148
    %v6150 = vpop.xlane.xlu0 %6149
    %v6151 = vsub.f32 %v6146, %v6150
    %v6152 = vmul.f32 %v6151, 1.442695
    %v6153 = vpow.pop %v6152
    %v6154 = vld [vmem:[#allocation4] sm:$0xff]
    %v6155 = vld [vmem:[#allocation4 + $0x8] sm:$0xff]
    %v6156 = vld [vmem:[#allocation4 + $0x10] sm:$0xff]
    %v6157 = vld [vmem:[#allocation4 + $0x18] sm:$0xff]
    %v6158 = vld [vmem:[#allocation4 + $0x20] sm:$0xff]
    %v6159 = vld [vmem:[#allocation4 + $0x28] sm:$0xff]
    %v6160 = vld [vmem:[#allocation4 + $0x30] sm:$0xff]
    %v6161 = vld [vmem:[#allocation4 + $0x38] sm:$0xff]
    %v6162 = vld [vmem:[#allocation4 + $0x40] sm:$0xff]
    %v6163 = vld [vmem:[#allocation4 + $0x48] sm:$0xff]
    %v6164 = vld [vmem:[#allocation4 + $0x50] sm:$0xff]
    %v6165 = vld [vmem:[#allocation4 + $0x58] sm:$0xff]
    %v6166 = vld [vmem:[#allocation4 + $0x60] sm:$0xff]
    %v6167 = vld [vmem:[#allocation4 + $0x68] sm:$0xff]
    %v6168 = vld [vmem:[#allocation4 + $0x70] sm:$0xff]
    %v6169 = vld [vmem:[#allocation4 + $0x78] sm:$0xff]
    %6170 = vmatprep.subr.mxu0 0.0
    %6171 = vmatpush1.msra.mxu0 %v6154
    %6172 = vmatprep.subr.mxu0 0.0
    %6173 = vmatpush1.msra.mxu0 %v6155
    %6174 = vmatprep.subr.mxu0 0.0
    %6175 = vmatpush1.msra.mxu0 %v6156
    %6176 = vmatprep.subr.mxu0 0.0
    %6177 = vmatpush1.msra.mxu0 %v6157
    %6178 = vmatprep.subr.mxu0 0.0
    %6179 = vmatpush1.msra.mxu0 %v6158
    %6180 = vmatprep.subr.mxu0 0.0
    %6181 = vmatpush1.msra.mxu0 %v6159
    %6182 = vmatprep.subr.mxu0 0.0
    %6183 = vmatpush1.msra.mxu0 %v6160
    %6184 = vmatprep.subr.mxu0 0.0
    %6185 = vmatpush1.msra.mxu0 %v6161
    %6186 = vmatprep.subr.mxu0 0.0
    %6187 = vmatpush1.msra.mxu0 %v6162
    %6188 = vmatprep.subr.mxu0 0.0
    %6189 = vmatpush1.msra.mxu0 %v6163
    %6190 = vmatprep.subr.mxu0 0.0
    %6191 = vmatpush1.msra.mxu0 %v6164
    %6192 = vmatprep.subr.mxu0 0.0
    %6193 = vmatpush1.msra.mxu0 %v6165
    %6194 = vmatprep.subr.mxu0 0.0
    %6195 = vmatpush1.msra.mxu0 %v6166
    %6196 = vmatprep.subr.mxu0 0.0
    %6197 = vmatpush1.msra.mxu0 %v6167
    %6198 = vmatprep.subr.mxu0 0.0
    %6199 = vmatpush1.msra.mxu0 %v6168
    %6200 = vmatprep.subr.mxu0 0.0
    %6201 = vmatpush1.msra.mxu0 %v6169
    %6202 = vmatprep.subr.mxu0 0.0
    %6203 = vmatpush1.msra.mxu0 0.0
    %6204 = vmatprep.subr.mxu0 0.0
    %6205 = vmatpush1.msra.mxu0 0.0
    %6206 = vmatprep.subr.mxu0 0.0
    %6207 = vmatpush1.msra.mxu0 0.0
    %6208 = vmatprep.subr.mxu0 0.0
    %6209 = vmatpush1.msra.mxu0 0.0
    %6210 = vmatprep.subr.mxu0 0.0
    %6211 = vmatpush1.msra.mxu0 0.0
    %6212 = vmatprep.subr.mxu0 0.0
    %6213 = vmatpush1.msra.mxu0 0.0
    %6214 = vmatprep.subr.mxu0 0.0
    %6215 = vmatpush1.msra.mxu0 0.0
    %6216 = vmatprep.subr.mxu0 0.0
    %6217 = vmatpush1.msra.mxu0 0.0
    %6218 = vmatprep.subr.mxu0 0.0
    %6219 = vmatpush1.msra.mxu0 0.0
    %6220 = vmatprep.subr.mxu0 0.0
    %6221 = vmatpush1.msra.mxu0 0.0
    %6222 = vmatprep.subr.mxu0 0.0
    %6223 = vmatpush1.msra.mxu0 0.0
    %6224 = vmatprep.subr.mxu0 0.0
    %6225 = vmatpush1.msra.mxu0 0.0
    %6226 = vmatprep.subr.mxu0 0.0
    %6227 = vmatpush1.msra.mxu0 0.0
    %6228 = vmatprep.subr.mxu0 0.0
    %6229 = vmatpush1.msra.mxu0 0.0
    %6230 = vmatprep.subr.mxu0 0.0
    %6231 = vmatpush1.msra.mxu0 0.0
    %6232 = vmatprep.subr.mxu0 0.0
    %6233 = vmatpush1.msra.mxu0 0.0
    %6234 = vmatprep.mubr.f32.mxu0 0.0
    %6235 = vmatmul.mubr.f32.gmra.mrb[0].mxu0 %v6153
    %v6236 = vpop.f32.mrb[0].mxu0
    %v6237 = vadd.f32 0.0, %v6236
    %v6238 = vpop.f32.mrb[0].mxu0
    %6239 = vdwg.mxu0
    %v6240 = vrcp.pop %v6237
    %v6241 = vmul.f32 %v6153, %v6240
    %v6242 = vsub.f32 %v6241, %v55
    %v6243 = vmul.f32 %v6242, %v6242
    %v6244 = vld [vmem:[#allocation4 + $0x80] sm:$0xff]
    %v6245 = vld [vmem:[#allocation4 + $0x88] sm:$0xff]
    %v6246 = vld [vmem:[#allocation4 + $0x90] sm:$0xff]
    %v6247 = vld [vmem:[#allocation4 + $0x98] sm:$0xff]
    %v6248 = vld [vmem:[#allocation4 + $0xa0] sm:$0xff]
    %v6249 = vld [vmem:[#allocation4 + $0xa8] sm:$0xff]
    %v6250 = vld [vmem:[#allocation4 + $0xb0] sm:$0xff]
    %v6251 = vld [vmem:[#allocation4 + $0xb8] sm:$0xff]
    %v6252 = vld [vmem:[#allocation4 + $0xc0] sm:$0xff]
    %v6253 = vld [vmem:[#allocation4 + $0xc8] sm:$0xff]
    %v6254 = vld [vmem:[#allocation4 + $0xd0] sm:$0xff]
    %v6255 = vld [vmem:[#allocation4 + $0xd8] sm:$0xff]
    %v6256 = vld [vmem:[#allocation4 + $0xe0] sm:$0xff]
    %v6257 = vld [vmem:[#allocation4 + $0xe8] sm:$0xff]
    %v6258 = vld [vmem:[#allocation4 + $0xf0] sm:$0xff]
    %v6259 = vld [vmem:[#allocation4 + $0xf8] sm:$0xff]
    %6260 = vmatprep.subr.mxu0 0.0
    %6261 = vmatpush1.msra.mxu0 %v6244
    %6262 = vmatprep.subr.mxu0 0.0
    %6263 = vmatpush1.msra.mxu0 %v6245
    %6264 = vmatprep.subr.mxu0 0.0
    %6265 = vmatpush1.msra.mxu0 %v6246
    %6266 = vmatprep.subr.mxu0 0.0
    %6267 = vmatpush1.msra.mxu0 %v6247
    %6268 = vmatprep.subr.mxu0 0.0
    %6269 = vmatpush1.msra.mxu0 %v6248
    %6270 = vmatprep.subr.mxu0 0.0
    %6271 = vmatpush1.msra.mxu0 %v6249
    %6272 = vmatprep.subr.mxu0 0.0
    %6273 = vmatpush1.msra.mxu0 %v6250
    %6274 = vmatprep.subr.mxu0 0.0
    %6275 = vmatpush1.msra.mxu0 %v6251
    %6276 = vmatprep.subr.mxu0 0.0
    %6277 = vmatpush1.msra.mxu0 %v6252
    %6278 = vmatprep.subr.mxu0 0.0
    %6279 = vmatpush1.msra.mxu0 %v6253
    %6280 = vmatprep.subr.mxu0 0.0
    %6281 = vmatpush1.msra.mxu0 %v6254
    %6282 = vmatprep.subr.mxu0 0.0
    %6283 = vmatpush1.msra.mxu0 %v6255
    %6284 = vmatprep.subr.mxu0 0.0
    %6285 = vmatpush1.msra.mxu0 %v6256
    %6286 = vmatprep.subr.mxu0 0.0
    %6287 = vmatpush1.msra.mxu0 %v6257
    %6288 = vmatprep.subr.mxu0 0.0
    %6289 = vmatpush1.msra.mxu0 %v6258
    %6290 = vmatprep.subr.mxu0 0.0
    %6291 = vmatpush1.msra.mxu0 %v6259
    %6292 = vmatprep.subr.mxu0 0.0
    %6293 = vmatpush1.msra.mxu0 0.0
    %6294 = vmatprep.subr.mxu0 0.0
    %6295 = vmatpush1.msra.mxu0 0.0
    %6296 = vmatprep.subr.mxu0 0.0
    %6297 = vmatpush1.msra.mxu0 0.0
    %6298 = vmatprep.subr.mxu0 0.0
    %6299 = vmatpush1.msra.mxu0 0.0
    %6300 = vmatprep.subr.mxu0 0.0
    %6301 = vmatpush1.msra.mxu0 0.0
    %6302 = vmatprep.subr.mxu0 0.0
    %6303 = vmatpush1.msra.mxu0 0.0
    %6304 = vmatprep.subr.mxu0 0.0
    %6305 = vmatpush1.msra.mxu0 0.0
    %6306 = vmatprep.subr.mxu0 0.0
    %6307 = vmatpush1.msra.mxu0 0.0
    %6308 = vmatprep.subr.mxu0 0.0
    %6309 = vmatpush1.msra.mxu0 0.0
    %6310 = vmatprep.subr.mxu0 0.0
    %6311 = vmatpush1.msra.mxu0 0.0
    %6312 = vmatprep.subr.mxu0 0.0
    %6313 = vmatpush1.msra.mxu0 0.0
    %6314 = vmatprep.subr.mxu0 0.0
    %6315 = vmatpush1.msra.mxu0 0.0
    %6316 = vmatprep.subr.mxu0 0.0
    %6317 = vmatpush1.msra.mxu0 0.0
    %6318 = vmatprep.subr.mxu0 0.0
    %6319 = vmatpush1.msra.mxu0 0.0
    %6320 = vmatprep.subr.mxu0 0.0
    %6321 = vmatpush1.msra.mxu0 0.0
    %6322 = vmatprep.subr.mxu0 0.0
    %6323 = vmatpush1.msra.mxu0 0.0
    %6324 = vmatprep.mubr.f32.mxu0 0.0
    %6325 = vmatmul.mubr.f32.gmra.mrb[0].mxu0 %v6243
    %v6326 = vpop.f32.mrb[0].mxu0
    %v6327 = vadd.f32 0.0, %v6326
    %v6328 = vpop.f32.mrb[0].mxu0
    %6329 = vdwg.mxu0
    %v6330 = vsel %vm6147, %v6327, 0.0
    %6331 = vadd.xlane.f32.xlu0 %v6330
    %v6332 = vpop.xlane.xlu0 %6331
    %v6333 = vmul.f32 %v6332, 0.0625
    %v6334 = vadd.f32 %v6333, %v3086
    %v6335 = vmul.f32 %v2972, 0.071428575
    %v6336 = vadd.f32 %v6335, 1e-10
    %v6337 = vlog2.pop %v6336
    %v6338 = vmul.f32 %v6337, 0.6931472
    %v6339 = vmul.f32 %v6335, %v6338
    %v6340 = vsel %vm360, %v6339, 0.0
    %6341 = vadd.xlane.f32.xlu0 %v6340
    %v6342 = vpop.xlane.xlu0 %6341
    %v6343 = vsub.f32 0.0, %v6342
    %v6344 = vmul.f32 %v6343, 1.442695
    %v6345 = vpow.pop %v6344
    %v6346 = vlaneseq
    %v6347 = vshrl.u32 %v6346, 7
    %v6348 = vsub.s32 1, %v6347
    %v6349 = vrot.slane %v75, %v6348
    %v6350 = vmul.f32 %v6333, %v6349
    %v6351 = vadd.f32 %v6327, %v6350
    %6353 = vset.pattern.permute.xlu0 0
    %6354 = vperm.xlu0 %6353, %v6334
    %v6355 = vpop.permute.xlu0 %6354
    %v6357 = vlaneseq
    %v6358 = vshrl.u32 %v6357, 7
    %v6359 = vsub.s32 2, %v6358
    %v6360 = vrot.slane %v75, %v6359
    %v6361 = vmul.f32 %v6355, %v6360
    %v6362 = vadd.f32 %v6351, %v6361
    %6364 = vset.pattern.permute.xlu0 0
    %6365 = vperm.xlu0 %6364, %v3086
    %v6366 = vpop.permute.xlu0 %6365
    %v6368 = vlaneseq
    %v6369 = vshrl.u32 %v6368, 7
    %v6370 = vsub.s32 3, %v6369
    %v6371 = vrot.slane %v75, %v6370
    %v6372 = vmul.f32 %v6366, %v6371
    %v6373 = vadd.f32 %v6362, %v6372
    %v6374 = vmul.f32 %v6345, %v75
    %v6375 = vlaneseq
    %v6376 = vshrl.u32 %v6375, 7
    %v6377 = vsub.s32 4, %v6376
    %v6378 = vrot.slane %v6374, %v6377
    %v6379 = vadd.f32 %v6373, %v6378
    %v6381 = vrot.slane %v6243, 6
    %v6384 = vrot.slane %v6379, 4
    %v6386 = vsel %vm6147, %v6241, %v6381
    %vm6387 = vcmask 1043456
    %v6388 = vsel %vm6387, %v6386, %v6384
    %6389 = vst [vmem:[%s6] sm:$0x3f] %v6388
    // Predicated region
    $region34: #{abnativ_forward.1} parent=1 // pred_check
      _
    $region35: #{abnativ_forward.1} parent=1 // pred_check_branch
      %6391 = sbr.rel (0) target = $region37
    $region36: #{abnativ_forward.1} parent=1 // pred_region
      _
    $region37: #{abnativ_forward.1} parent=1 // pred_fallthru
      _
    // Predicated region
    $region38: #{abnativ_forward.1} parent=1 // pred_check
      _
    $region39: #{abnativ_forward.1} parent=1 // pred_check_branch
      %6393 = sbr.rel (0) target = $region41
    $region40: #{abnativ_forward.1} parent=1 // pred_region
      _
    $region41: #{abnativ_forward.1} parent=1 // pred_fallthru
      _
    // Predicated region
    $region42: #{abnativ_forward.1} parent=1 // pred_check
      _
    $region43: #{abnativ_forward.1} parent=1 // pred_check_branch
      %6395 = sbr.rel (0) target = $region45
    $region44: #{abnativ_forward.1} parent=1 // pred_region
      _
    $region45: #{abnativ_forward.1} parent=1 // pred_fallthru
      _
    // Predicated region
    $region46: #{abnativ_forward.1} parent=1 // pred_check
      _
    $region47: #{abnativ_forward.1} parent=1 // pred_check_branch
      %6397 = sbr.rel (0) target = $region49
    $region48: #{abnativ_forward.1} parent=1 // pred_region
      _
    $region49: #{abnativ_forward.1} parent=1 // pred_fallthru
      _
    %6398 = vsyncpa [#allocation3], 1
    %6399 = vsyncpa [#allocation5], 1

</llo_original>
